<compile_context>
chip_gen: v7x
topology: tpu7x:2x2x1
jax: 0.10.0
libtpu: 0.0.40
codegen_flags: <defaults>
</compile_context>

<pallas_src>
import functools
import math

import numpy as np

import jax
import jax.numpy as jnp
from jax import lax
from jax.experimental import pallas as pl
from jax.experimental.pallas import tpu as pltpu

LANE = 128
MASK_SCALE = 1e30        # int8 mask {0,-1} * MASK_SCALE -> additive bias {0,-1e30}
M_INIT = -1e29           # running-max init: below any real logit, above -1e30


# ----------------------------- in-kernel helpers -----------------------------

def _erf(x):
    # Abramowitz & Stegun 7.1.26 rational approximation (|err| < 1.5e-7).
    a1, a2, a3, a4, a5 = (0.254829592, -0.284496736, 1.421413741,
                          -1.453152027, 1.061405429)
    p = 0.3275911
    s = jnp.where(x >= 0, 1.0, -1.0)
    ax = jnp.abs(x)
    t = 1.0 / (1.0 + p * ax)
    poly = ((((a5 * t + a4) * t + a3) * t + a2) * t + a1) * t
    return s * (1.0 - poly * jnp.exp(-ax * ax))


def _gelu_exact(x):
    # torch.nn.GELU default: 0.5 * x * (1 + erf(x / sqrt(2)))  (off the hot loop)
    return 0.5 * x * (1.0 + _erf(x * (1.0 / math.sqrt(2.0))))


# ------------------------------ projection kernel -----------------------------

def _proj_kernel(x_ref, wcat_ref, wsT_ref, xp_ref, adst_ref, asrcT_ref, *, f):
    # Single bf16 MXU matmul produces both x' and the per-node alpha_dst scalars
    # (attention vectors folded into the last `heads` columns of W_cat).
    xb = x_ref[...].astype(jnp.bfloat16)
    y = jnp.dot(xb, wcat_ref[...], preferred_element_type=jnp.float32)  # [TM, F+H]
    xp_ref[...] = y[:, :f].astype(xp_ref.dtype)                          # bf16 x'
    adst_ref[...] = y[:, f:]                                             # [TM, H] f32
    # alpha_src^T directly from x (bf16 operands, no dependency on f32 x').
    asrcT_ref[...] = lax.dot_general(wsT_ref[...], xb,
                                     (((1,), (1,)), ((), ())),
                                     preferred_element_type=jnp.float32)  # [H, TM]


def gat_project(x, w_cat, wsT, *, heads, tile_m, vmem_limit):
    n_pad, f_in = x.shape
    f = w_cat.shape[1] - heads
    kernel = functools.partial(_proj_kernel, f=f)
    return pl.pallas_call(
        kernel,
        out_shape=(jax.ShapeDtypeStruct((n_pad, f), jnp.bfloat16),
                   jax.ShapeDtypeStruct((n_pad, heads), jnp.float32),
                   jax.ShapeDtypeStruct((heads, n_pad), jnp.float32)),
        grid=(n_pad // tile_m,),
        in_specs=[pl.BlockSpec((tile_m, f_in), lambda i: (i, 0)),
                  pl.BlockSpec((f_in, f + heads), lambda i: (0, 0)),
                  pl.BlockSpec((heads, f_in), lambda i: (0, 0))],
        out_specs=[pl.BlockSpec((tile_m, f), lambda i: (i, 0)),
                   pl.BlockSpec((tile_m, heads), lambda i: (i, 0)),
                   pl.BlockSpec((heads, tile_m), lambda i: (0, i))],
        compiler_params=pltpu.CompilerParams(
            dimension_semantics=("parallel",),
            vmem_limit_bytes=vmem_limit),
    )(x, w_cat, wsT)


# ------------------------ attention / aggregation kernel ----------------------

def _attn_kernel(*refs, heads, out_ch, fuse_head):
    if fuse_head:
        (tbl_ref, cnt_ref, mask_ref, xp_ref, adst_ref, asrcT_ref, bias_ref,
         pw_ref, pb_ref, out_ref, m_scr, l_scr, acc_scr) = refs
    else:
        (tbl_ref, cnt_ref, mask_ref, xp_ref, adst_ref, asrcT_ref, bias_ref,
         out_ref, m_scr, l_scr, acc_scr) = refs
        pw_ref = pb_ref = None
    del tbl_ref  # used only by the index_maps

    i = pl.program_id(0)
    j = pl.program_id(1)

    @pl.when(j == 0)
    def _():
        m_scr[...] = jnp.full(m_scr.shape, M_INIT, jnp.float32)
        l_scr[...] = jnp.zeros_like(l_scr)
        acc_scr[...] = jnp.zeros_like(acc_scr)

    # Only visited (non-empty) source blocks are ever DMA'd by the index_maps;
    # padded table entries are additionally skipped here.
    @pl.when(j < cnt_ref[i])
    def _():
        # int8 {0,-1} -> additive bias {0,-1e30}; hoisted out of the head loop.
        mask_bias = mask_ref[...].astype(jnp.float32) * MASK_SCALE   # [TM, TS]
        xp_src = xp_ref[...]                                          # [TS, F] bf16
        adst = adst_ref[...]                                          # [TM, H] f32
        asrcT = asrcT_ref[...]                                        # [H, TS] f32

        for h in range(heads):                    # heads small & static -> unrolled
            lo = h * out_ch
            e = adst[:, h:h + 1] + asrcT[h:h + 1, :]       # outer sum [TM, TS]
            e = jnp.maximum(e, 0.2 * e)                    # LeakyReLU(0.2), 2 VALU ops
            e = e + mask_bias                              # -1e30 on non-edges

            m_prev = m_scr[h]                              # [TM, 1]
            m_new = jnp.maximum(m_prev, jnp.max(e, axis=-1, keepdims=True))
            corr = jnp.exp(m_prev - m_new)
            p = jnp.exp(e - m_new)                         # unnormalized weights
            l_scr[h] = corr * l_scr[h] + jnp.sum(p, axis=-1, keepdims=True)
            acc_scr[h] = corr * acc_scr[h] + jnp.dot(
                p.astype(jnp.bfloat16), xp_src[:, lo:lo + out_ch],
                preferred_element_type=jnp.float32)        # bf16 MXU, f32 accumulate
            m_scr[h] = m_new

    @pl.when(j == pl.num_programs(1) - 1)
    def _():
        # Deferred normalization: scale the accumulator, not the [TM,TS] weights.
        # (Per-head slabs + one small concat per row block: off the hot loop.)
        pieces = []
        for h in range(heads):
            l_h = l_scr[h]                                              # [TM, 1]
            inv = pl.reciprocal(jnp.where(l_h > 0.0, l_h, 1.0), approx=True)
            pieces.append(acc_scr[h] * inv)
        o = jnp.concatenate(pieces, axis=-1) + bias_ref[...]            # [TM, F]
        o = _gelu_exact(o)                                              # GELU after every conv
        if fuse_head:
            # Fused prediction head: lane-padded (128) output -> dense vst.
            o = jnp.dot(o, pw_ref[...], preferred_element_type=jnp.float32) + pb_ref[...]
        out_ref[...] = o.astype(out_ref.dtype)


def gat_aggregate(mask_i8, blk_tbl, blk_cnt, xp, adst, asrcT, bias, *, heads,
                  out_ch, tile_m, tile_s, vmem_limit, pred_w=None, pred_b=None):
    n_pad = xp.shape[0]
    f = heads * out_ch
    fuse_head = pred_w is not None
    out_f = pred_w.shape[1] if fuse_head else f
    # bf16 intermediates (next layer casts to bf16 anyway); f32 for the final head.
    out_dtype = jnp.float32 if fuse_head else jnp.bfloat16
    n_row_blocks = n_pad // tile_m
    max_cnt = blk_tbl.shape[1]
    tbl_flat = blk_tbl.reshape(-1)                      # 1-D SMEM scalar table

    kernel = functools.partial(_attn_kernel, heads=heads, out_ch=out_ch,
                               fuse_head=fuse_head)

    # index_maps receive (i, j, tbl_ref, cnt_ref); tbl selects the source block.
    in_specs = [
        pl.BlockSpec((tile_m, tile_s),
                     lambda i, j, tbl, cnt: (i, tbl[i * max_cnt + j])),   # int8 mask
        pl.BlockSpec((tile_s, f),
                     lambda i, j, tbl, cnt: (tbl[i * max_cnt + j], 0)),   # x' (src rows)
        pl.BlockSpec((tile_m, heads), lambda i, j, tbl, cnt: (i, 0)),     # alpha_dst
        pl.BlockSpec((heads, tile_s),
                     lambda i, j, tbl, cnt: (0, tbl[i * max_cnt + j])),   # alpha_src^T
        pl.BlockSpec((1, f), lambda i, j, tbl, cnt: (0, 0)),              # conv bias
    ]
    args = [mask_i8, xp, adst, asrcT, bias]
    if fuse_head:
        in_specs += [pl.BlockSpec(pred_w.shape, lambda i, j, tbl, cnt: (0, 0)),
                     pl.BlockSpec(pred_b.shape, lambda i, j, tbl, cnt: (0, 0))]
        args += [pred_w, pred_b]

    grid_spec = pltpu.PrefetchScalarGridSpec(
        num_scalar_prefetch=2,
        grid=(n_row_blocks, max_cnt),
        in_specs=in_specs,
        out_specs=pl.BlockSpec((tile_m, out_f), lambda i, j, tbl, cnt: (i, 0)),
        scratch_shapes=[pltpu.VMEM((heads, tile_m, 1), jnp.float32),        # running max
                        pltpu.VMEM((heads, tile_m, 1), jnp.float32),        # running sum
                        pltpu.VMEM((heads, tile_m, out_ch), jnp.float32)])  # accumulator

    return pl.pallas_call(
        kernel,
        out_shape=jax.ShapeDtypeStruct((n_pad, out_f), out_dtype),
        grid_spec=grid_spec,
        compiler_params=pltpu.CompilerParams(
            # row blocks split across TensorCores; source axis is the online-softmax
            # reduction -> "arbitrary", last.
            dimension_semantics=("parallel", "arbitrary"),
            vmem_limit_bytes=vmem_limit),
    )(tbl_flat, blk_cnt, *args)


# ------------------------------ parameter setup -------------------------------

def _glorot(key, shape):
    fan_in, fan_out = shape[0], shape[-1]
    limit = math.sqrt(6.0 / (fan_in + fan_out))
    return jax.random.uniform(key, shape, jnp.float32, -limit, limit)


def init_gat_params(key, in_channels, hidden_channels, out_channels, heads,
                    hidden_layers):
    params = {"convs": []}
    f = heads * hidden_channels
    in_dims = [in_channels] + [f] * hidden_layers
    for layer_in in in_dims:
        key, k1, k2, k3 = jax.random.split(key, 4)
        w = _glorot(k1, (layer_in, f))
        a_src = _glorot(k2, (heads, hidden_channels))
        a_dst = _glorot(k3, (heads, hidden_channels))
        # Fold the attention vectors into the projection:
        #   adst[n,h] = <x'_n[h], a_dst[h]> = (x @ (W @ blockdiag(a_dst)))[n,h]
        w_heads = w.reshape(layer_in, heads, hidden_channels)
        wd = jnp.einsum("ihc,hc->ih", w_heads, a_dst)          # [F_in, H]
        ws = jnp.einsum("ihc,hc->ih", w_heads, a_src)          # [F_in, H]
        w_cat = jnp.concatenate([w, wd], axis=1).astype(jnp.bfloat16)  # [F_in, F+H]
        wsT = ws.T.astype(jnp.bfloat16)                        # [H, F_in]
        b = jnp.zeros((1, f), jnp.float32)
        params["convs"].append((w_cat, wsT, b))
    key, kw, kb = jax.random.split(key, 3)
    pred_w = _glorot(kw, (f, out_channels))
    pred_b = 0.01 * jax.random.normal(kb, (1, out_channels), jnp.float32)
    p_pad = max(LANE, ((out_channels + LANE - 1) // LANE) * LANE)
    # lane-padded prediction head (zeros beyond out_channels; sliced in wrapper)
    params["pred_w"] = jnp.zeros((f, p_pad), jnp.float32).at[:, :out_channels].set(pred_w)
    params["pred_b"] = jnp.zeros((1, p_pad), jnp.float32).at[:, :out_channels].set(pred_b)
    return params


# ------------------------------ graph preprocessing ----------------------------

def _round_up(n, m):
    return ((n + m - 1) // m) * m


def _select_config(n_pad):
    """Generation-aware tiles & VMEM cap (v5e/v6e: 128 MiB; v7x: 64 MiB/TC)."""
    try:
        kind = jax.devices()[0].device_kind.lower()
    except Exception:
        kind = ""
    phys = None
    try:
        phys = int(pltpu.get_tpu_info().vmem_capacity_bytes)
    except Exception:
        pass
    if phys is None:
        phys = 64 * 2**20 if "v7" in kind else 128 * 2**20
    big = phys >= 100 * 2**20
    tm_cands = (512, 256, 128) if big else (256, 128)
    ts_cands = (2048, 1024, 512, 256, 128) if big else (1024, 512, 256, 128)
    vmem_limit = min(96 * 2**20 if big else 48 * 2**20, (phys * 3) // 4)
    tile_m = next(c for c in tm_cands if n_pad % c == 0)
    tile_s = next(c for c in ts_cands if n_pad % c == 0)
    return tile_m, tile_s, vmem_limit


def build_graph_blocks(edge_index, num_nodes, n_pad, tile_m, tile_s):
    """int8 mask {0,-1} + block-sparsity tables (numpy, outside jit)."""
    src = np.asarray(edge_index[0])
    dst = np.asarray(edge_index[1])
    adj = np.zeros((n_pad, n_pad), dtype=bool)
    adj[dst, src] = True                         # edge j -> i stored at [i, j]
    rng = np.arange(num_nodes)
    adj[rng, rng] = True                         # add_self_loops=True (real nodes)
    mask_i8 = np.where(adj, 0, -1).astype(np.int8)

    nrb, ncb = n_pad // tile_m, n_pad // tile_s
    blk_any = adj.reshape(nrb, tile_m, ncb, tile_s).any(axis=(1, 3))   # [nrb, ncb]
    cnt = blk_any.sum(axis=1).astype(np.int32)
    max_cnt = max(int(cnt.max()), 1)
    tbl = np.zeros((nrb, max_cnt), dtype=np.int32)
    for r in range(nrb):
        cols = np.flatnonzero(blk_any[r])
        tbl[r, :cols.size] = cols
        if 0 < cols.size < max_cnt:
            tbl[r, cols.size:] = cols[-1]        # harmless padding (skipped via cnt)
    return jnp.asarray(mask_i8), jnp.asarray(tbl), jnp.asarray(cnt)


# ---------------------------------- forward ------------------------------------

def gat_forward(params, x, mask_i8, blk_tbl, blk_cnt, *, heads, hidden_channels,
                out_channels, n_real, tile_m, tile_s, vmem_limit):
    convs = params["convs"]
    h = x
    for li, (w_cat, wsT, b) in enumerate(convs):
        xp, adst, asrcT = gat_project(h, w_cat, wsT, heads=heads,
                                      tile_m=tile_m, vmem_limit=vmem_limit)
        last = li == len(convs) - 1
        h = gat_aggregate(
            mask_i8, blk_tbl, blk_cnt, xp, adst, asrcT, b,
            heads=heads, out_ch=hidden_channels,
            tile_m=tile_m, tile_s=tile_s, vmem_limit=vmem_limit,
            pred_w=params["pred_w"] if last else None,
            pred_b=params["pred_b"] if last else None)
    return h[:n_real, :out_channels]


# ------------------------------------ main --------------------------------------

if __name__ == "__main__":
    N, E = 32, 64
    in_channels, hidden_channels, out_channels = 8, 16, 4
    heads, hidden_layers = 2, 1

    key = jax.random.PRNGKey(0)
    kx, ks, kd, kp = jax.random.split(key, 4)

    x = jax.random.normal(kx, (N, in_channels), jnp.float32)
    src = jax.random.randint(ks, (E,), 0, N)
    dst = jax.random.randint(kd, (E,), 0, N)
    edge_index = jnp.stack([src, dst])                 # [2, E]

    n_pad = max(LANE, _round_up(N, LANE))
    tile_m, tile_s, vmem_limit = _select_config(n_pad)

    x_pad = jnp.pad(x, ((0, n_pad - N), (0, 0)))
    mask_i8, blk_tbl, blk_cnt = build_graph_blocks(edge_index, N, n_pad,
                                                   tile_m, tile_s)

    params = init_gat_params(kp, in_channels, hidden_channels, out_channels,
                             heads, hidden_layers)

    fwd = jax.jit(functools.partial(
        gat_forward, heads=heads, hidden_channels=hidden_channels,
        out_channels=out_channels, n_real=N,
        tile_m=tile_m, tile_s=tile_s, vmem_limit=vmem_limit))
    out = fwd(params, x_pad, mask_i8, blk_tbl, blk_cnt)
    out = jax.block_until_ready(out)

    assert out.shape == (N, out_channels), out.shape
    assert bool(jnp.all(jnp.isfinite(out)))
    print("KERNEL_OK")
</pallas_src>

<mosaic_0001>
module attributes {stable_mosaic.version = 11 : i64} {
  func.func @_proj_kernel(%arg0: i32, %arg1: memref<128x32xbf16, #tpu.memory_space<vmem>>, %arg2: memref<32x34xbf16, #tpu.memory_space<vmem>>, %arg3: memref<2x32xbf16, #tpu.memory_space<vmem>>, %arg4: memref<128x32xbf16, #tpu.memory_space<vmem>>, %arg5: memref<128x2xf32, #tpu.memory_space<vmem>>, %arg6: memref<2x128xf32, #tpu.memory_space<vmem>>) attributes {dimension_semantics = [#tpu.dimension_semantics<parallel>], iteration_bounds = array<i64: 1>, scalar_prefetch = 0 : i64, scratch_operands = 0 : i64, tpu.core_type = #tpu.core_type<tc>, window_params = [{transform_indices = @transform_0, window_bounds = array<i64: 128, 32>}, {pipeline_mode = #tpu.pipeline_mode<synchronous>, transform_indices = @transform_1, window_bounds = array<i64: 32, 34>}, {pipeline_mode = #tpu.pipeline_mode<synchronous>, transform_indices = @transform_2, window_bounds = array<i64: 2, 32>}, {transform_indices = @transform_3, window_bounds = array<i64: 128, 32>}, {transform_indices = @transform_4, window_bounds = array<i64: 128, 2>}, {transform_indices = @transform_5, window_bounds = array<i64: 2, 128>}]} {
    %c0 = arith.constant 0 : index
    %c0_0 = arith.constant 0 : index
    %0 = vector.load %arg1[%c0, %c0_0] : memref<128x32xbf16, #tpu.memory_space<vmem>>, vector<128x32xbf16>
    %c0_1 = arith.constant 0 : index
    %c0_2 = arith.constant 0 : index
    %1 = vector.load %arg2[%c0_1, %c0_2] : memref<32x34xbf16, #tpu.memory_space<vmem>>, vector<32x34xbf16>
    %cst = arith.constant dense<0.000000e+00> : vector<128x34xf32>
    %2 = tpu.matmul %0, %1, %cst {dimension_numbers = #tpu.dot_dimension_numbers<[1], [0], [0], [1], [0, 0, 1, 1], [], []>} : vector<128x32xbf16>, vector<32x34xbf16>, vector<128x34xf32> -> vector<128x34xf32>
    %3 = vector.extract_strided_slice %2 {offsets = [0, 0], sizes = [128, 32], strides = [1, 1]} : vector<128x34xf32> to vector<128x32xf32>
    %4 = arith.truncf %3 : vector<128x32xf32> to vector<128x32xbf16>
    %c0_3 = arith.constant 0 : index
    %c0_4 = arith.constant 0 : index
    %5 = vector.load %arg4[%c0_3, %c0_4] : memref<128x32xbf16, #tpu.memory_space<vmem>>, vector<128x32xbf16>
    tpu.vector_store %arg4[%c0_3, %c0_4], %4 {strides = array<i32>} : memref<128x32xbf16, #tpu.memory_space<vmem>>, vector<128x32xbf16>,
    %6 = vector.extract_strided_slice %2 {offsets = [0, 32], sizes = [128, 2], strides = [1, 1]} : vector<128x34xf32> to vector<128x2xf32>
    %c0_5 = arith.constant 0 : index
    %c0_6 = arith.constant 0 : index
    %7 = vector.load %arg5[%c0_5, %c0_6] : memref<128x2xf32, #tpu.memory_space<vmem>>, vector<128x2xf32>
    tpu.vector_store %arg5[%c0_5, %c0_6], %6 {strides = array<i32>} : memref<128x2xf32, #tpu.memory_space<vmem>>, vector<128x2xf32>,
    %c0_7 = arith.constant 0 : index
    %c0_8 = arith.constant 0 : index
    %8 = vector.load %arg3[%c0_7, %c0_8] : memref<2x32xbf16, #tpu.memory_space<vmem>>, vector<2x32xbf16>
    %cst_9 = arith.constant dense<0.000000e+00> : vector<2x128xf32>
    %9 = tpu.matmul %8, %0, %cst_9 {dimension_numbers = #tpu.dot_dimension_numbers<[1], [1], [0], [0], [0, 0, 1, 0], [], []>} : vector<2x32xbf16>, vector<128x32xbf16>, vector<2x128xf32> -> vector<2x128xf32>
    %c0_10 = arith.constant 0 : index
    %c0_11 = arith.constant 0 : index
    %10 = vector.load %arg6[%c0_10, %c0_11] : memref<2x128xf32, #tpu.memory_space<vmem>>, vector<2x128xf32>
    tpu.vector_store %arg6[%c0_10, %c0_11], %9 {strides = array<i32>} : memref<2x128xf32, #tpu.memory_space<vmem>>, vector<2x128xf32>,
    return
  }
  func.func @transform_0(%arg0: i32) -> (i32, i32) {
    %c0_i32 = arith.constant 0 : i32
    %c0_i32_0 = arith.constant 0 : i32
    return %arg0, %c0_i32 : i32, i32
  }
  func.func @transform_1(%arg0: i32) -> (i32, i32) {
    %c0_i32 = arith.constant 0 : i32
    %c0_i32_0 = arith.constant 0 : i32
    %c0_i32_1 = arith.constant 0 : i32
    return %c0_i32, %c0_i32_0 : i32, i32
  }
  func.func @transform_2(%arg0: i32) -> (i32, i32) {
    %c0_i32 = arith.constant 0 : i32
    %c0_i32_0 = arith.constant 0 : i32
    %c0_i32_1 = arith.constant 0 : i32
    return %c0_i32, %c0_i32_0 : i32, i32
  }
  func.func @transform_3(%arg0: i32) -> (i32, i32) {
    %c0_i32 = arith.constant 0 : i32
    %c0_i32_0 = arith.constant 0 : i32
    return %arg0, %c0_i32 : i32, i32
  }
  func.func @transform_4(%arg0: i32) -> (i32, i32) {
    %c0_i32 = arith.constant 0 : i32
    %c0_i32_0 = arith.constant 0 : i32
    return %arg0, %c0_i32 : i32, i32
  }
  func.func @transform_5(%arg0: i32) -> (i32, i32) {
    %c0_i32 = arith.constant 0 : i32
    %c0_i32_0 = arith.constant 0 : i32
    return %c0_i32, %arg0 : i32, i32
  }
}

module attributes {stable_mosaic.version = 11 : i64} {
  func.func @_attn_kernel(%arg0: i32, %arg1: i32, %arg2: memref<1xi32, #tpu.memory_space<smem>>, %arg3: memref<1xi32, #tpu.memory_space<smem>>, %arg4: memref<128x128xi8, #tpu.memory_space<vmem>>, %arg5: memref<128x32xbf16, #tpu.memory_space<vmem>>, %arg6: memref<128x2xf32, #tpu.memory_space<vmem>>, %arg7: memref<2x128xf32, #tpu.memory_space<vmem>>, %arg8: memref<1x32xf32, #tpu.memory_space<vmem>>, %arg9: memref<128x32xbf16, #tpu.memory_space<vmem>>, %arg10: memref<2x128x1xf32, #tpu.memory_space<vmem>>, %arg11: memref<2x128x1xf32, #tpu.memory_space<vmem>>, %arg12: memref<2x128x16xf32, #tpu.memory_space<vmem>>) attributes {dimension_semantics = [#tpu.dimension_semantics<parallel>, #tpu.dimension_semantics<arbitrary>], iteration_bounds = array<i64: 1, 1>, scalar_prefetch = 2 : i64, scratch_operands = 3 : i64, tpu.core_type = #tpu.core_type<tc>, window_params = [{transform_indices = @transform_0, window_bounds = array<i64: 128, 128>}, {transform_indices = @transform_1, window_bounds = array<i64: 128, 32>}, {transform_indices = @transform_2, window_bounds = array<i64: 128, 2>}, {transform_indices = @transform_3, window_bounds = array<i64: 2, 128>}, {pipeline_mode = #tpu.pipeline_mode<synchronous>, transform_indices = @transform_4, window_bounds = array<i64: 1, 32>}, {transform_indices = @transform_5, window_bounds = array<i64: 128, 32>}]} {
    %c0_i32 = arith.constant 0 : i32
    %0 = arith.cmpi eq, %arg1, %c0_i32 : i32
    %1 = arith.extui %0 : i1 to i32
    %c0_i32_0 = arith.constant 0 : i32
    %2 = arith.cmpi ne, %1, %c0_i32_0 : i32
    scf.if %2 {
      %cst = arith.constant -1.000000e+29 : f32
      %11 = vector.broadcast %cst : f32 to vector<2x128x1xf32>
      %c0 = arith.constant 0 : index
      %c0_4 = arith.constant 0 : index
      %c0_5 = arith.constant 0 : index
      %12 = vector.load %arg10[%c0, %c0_4, %c0_5] : memref<2x128x1xf32, #tpu.memory_space<vmem>>, vector<2x128x1xf32>
      tpu.vector_store %arg10[%c0, %c0_4, %c0_5], %11 {strides = array<i32>} : memref<2x128x1xf32, #tpu.memory_space<vmem>>, vector<2x128x1xf32>,
      %cst_6 = arith.constant 0.000000e+00 : f32
      %13 = vector.broadcast %cst_6 : f32 to vector<2x128x1xf32>
      %c0_7 = arith.constant 0 : index
      %c0_8 = arith.constant 0 : index
      %c0_9 = arith.constant 0 : index
      %14 = vector.load %arg11[%c0_7, %c0_8, %c0_9] : memref<2x128x1xf32, #tpu.memory_space<vmem>>, vector<2x128x1xf32>
      tpu.vector_store %arg11[%c0_7, %c0_8, %c0_9], %13 {strides = array<i32>} : memref<2x128x1xf32, #tpu.memory_space<vmem>>, vector<2x128x1xf32>,
      %cst_10 = arith.constant 0.000000e+00 : f32
      %15 = vector.broadcast %cst_10 : f32 to vector<2x128x16xf32>
      %c0_11 = arith.constant 0 : index
      %c0_12 = arith.constant 0 : index
      %c0_13 = arith.constant 0 : index
      %16 = vector.load %arg12[%c0_11, %c0_12, %c0_13] : memref<2x128x16xf32, #tpu.memory_space<vmem>>, vector<2x128x16xf32>
      tpu.vector_store %arg12[%c0_11, %c0_12, %c0_13], %15 {strides = array<i32>} : memref<2x128x16xf32, #tpu.memory_space<vmem>>, vector<2x128x16xf32>,
    } else {
    }
    %3 = arith.index_cast %arg0 : i32 to index
    %4 = memref.load %arg3[%3] : memref<1xi32, #tpu.memory_space<smem>>
    %5 = arith.cmpi slt, %arg1, %4 : i32
    %6 = arith.extui %5 : i1 to i32
    %c0_i32_1 = arith.constant 0 : i32
    %7 = arith.cmpi ne, %6, %c0_i32_1 : i32
    scf.if %7 {
      %c0 = arith.constant 0 : index
      %c0_4 = arith.constant 0 : index
      %11 = vector.load %arg4[%c0, %c0_4] : memref<128x128xi8, #tpu.memory_space<vmem>>, vector<128x128xi8>
      %12 = arith.sitofp %11 : vector<128x128xi8> to vector<128x128xf32>
      %cst = arith.constant 1.000000e+30 : f32
      %13 = vector.broadcast %cst : f32 to vector<128x128xf32>
      %14 = arith.mulf %12, %13 : vector<128x128xf32>
      %c0_5 = arith.constant 0 : index
      %c0_6 = arith.constant 0 : index
      %15 = vector.load %arg5[%c0_5, %c0_6] : memref<128x32xbf16, #tpu.memory_space<vmem>>, vector<128x32xbf16>
      %c0_7 = arith.constant 0 : index
      %c0_8 = arith.constant 0 : index
      %16 = vector.load %arg6[%c0_7, %c0_8] : memref<128x2xf32, #tpu.memory_space<vmem>>, vector<128x2xf32>
      %c0_9 = arith.constant 0 : index
      %c0_10 = arith.constant 0 : index
      %17 = vector.load %arg7[%c0_9, %c0_10] : memref<2x128xf32, #tpu.memory_space<vmem>>, vector<2x128xf32>
      %18 = vector.extract_strided_slice %16 {offsets = [0, 0], sizes = [128, 1], strides = [1, 1]} : vector<128x2xf32> to vector<128x1xf32>
      %19 = vector.extract_strided_slice %17 {offsets = [0, 0], sizes = [1, 128], strides = [1, 1]} : vector<2x128xf32> to vector<1x128xf32>
      %20 = vector.broadcast %18 : vector<128x1xf32> to vector<128x128xf32>
      %21 = vector.broadcast %19 : vector<1x128xf32> to vector<128x128xf32>
      %22 = arith.addf %20, %21 : vector<128x128xf32>
      %cst_11 = arith.constant 2.000000e-01 : f32
      %23 = vector.broadcast %cst_11 : f32 to vector<128x128xf32>
      %24 = arith.mulf %23, %22 : vector<128x128xf32>
      %25 = arith.maximumf %22, %24 : vector<128x128xf32>
      %26 = arith.addf %25, %14 : vector<128x128xf32>
      %c0_12 = arith.constant 0 : index
      %c0_13 = arith.constant 0 : index
      %c0_14 = arith.constant 0 : index
      %27 = vector.load %arg10[%c0_12, %c0_13, %c0_14] : memref<2x128x1xf32, #tpu.memory_space<vmem>>, vector<1x128x1xf32>
      %28 = vector.shape_cast %27 : vector<1x128x1xf32> to vector<128x1xf32>
      %cst_15 = arith.constant dense<0xFF800000> : vector<128xf32>
      %29 = vector.multi_reduction <maximumf>, %26, %cst_15 [1] : vector<128x128xf32> to vector<128xf32>
      %30 = vector.shape_cast %29 : vector<128xf32> to vector<128x1xf32>
      %31 = arith.maximumf %28, %30 : vector<128x1xf32>
      %32 = arith.subf %28, %31 : vector<128x1xf32>
      %33 = math.exp %32 : vector<128x1xf32>
      %34 = vector.broadcast %31 : vector<128x1xf32> to vector<128x128xf32>
      %35 = arith.subf %26, %34 : vector<128x128xf32>
      %36 = math.exp %35 : vector<128x128xf32>
      %c0_16 = arith.constant 0 : index
      %c0_17 = arith.constant 0 : index
      %c0_18 = arith.constant 0 : index
      %37 = vector.load %arg11[%c0_16, %c0_17, %c0_18] : memref<2x128x1xf32, #tpu.memory_space<vmem>>, vector<1x128x1xf32>
      %38 = vector.shape_cast %37 : vector<1x128x1xf32> to vector<128x1xf32>
      %39 = arith.mulf %33, %38 : vector<128x1xf32>
      %cst_19 = arith.constant dense<0.000000e+00> : vector<128xf32>
      %40 = vector.multi_reduction <add>, %36, %cst_19 [1] : vector<128x128xf32> to vector<128xf32>
      %41 = vector.shape_cast %40 : vector<128xf32> to vector<128x1xf32>
      %42 = arith.addf %39, %41 : vector<128x1xf32>
      %c0_20 = arith.constant 0 : index
      %c0_21 = arith.constant 0 : index
      %c0_22 = arith.constant 0 : index
      %43 = vector.load %arg11[%c0_20, %c0_21, %c0_22] : memref<2x128x1xf32, #tpu.memory_space<vmem>>, vector<1x128x1xf32>
      %44 = vector.shape_cast %43 : vector<1x128x1xf32> to vector<128x1xf32>
      %45 = vector.shape_cast %42 : vector<128x1xf32> to vector<1x128x1xf32>
      tpu.vector_store %arg11[%c0_20, %c0_21, %c0_22], %45 {strides = array<i32>} : memref<2x128x1xf32, #tpu.memory_space<vmem>>, vector<1x128x1xf32>,
      %c0_23 = arith.constant 0 : index
      %c0_24 = arith.constant 0 : index
      %c0_25 = arith.constant 0 : index
      %46 = vector.load %arg12[%c0_23, %c0_24, %c0_25] : memref<2x128x16xf32, #tpu.memory_space<vmem>>, vector<1x128x16xf32>
      %47 = vector.shape_cast %46 : vector<1x128x16xf32> to vector<128x16xf32>
      %48 = vector.broadcast %33 : vector<128x1xf32> to vector<128x16xf32>
      %49 = arith.mulf %48, %47 : vector<128x16xf32>
      %50 = arith.truncf %36 : vector<128x128xf32> to vector<128x128xbf16>
      %51 = vector.extract_strided_slice %15 {offsets = [0, 0], sizes = [128, 16], strides = [1, 1]} : vector<128x32xbf16> to vector<128x16xbf16>
      %cst_26 = arith.constant dense<0.000000e+00> : vector<128x16xf32>
      %52 = tpu.matmul %50, %51, %cst_26 {dimension_numbers = #tpu.dot_dimension_numbers<[1], [0], [0], [1], [0, 0, 1, 1], [], []>} : vector<128x128xbf16>, vector<128x16xbf16>, vector<128x16xf32> -> vector<128x16xf32>
      %53 = arith.addf %49, %52 : vector<128x16xf32>
      %c0_27 = arith.constant 0 : index
      %c0_28 = arith.constant 0 : index
      %c0_29 = arith.constant 0 : index
      %54 = vector.load %arg12[%c0_27, %c0_28, %c0_29] : memref<2x128x16xf32, #tpu.memory_space<vmem>>, vector<1x128x16xf32>
      %55 = vector.shape_cast %54 : vector<1x128x16xf32> to vector<128x16xf32>
      %56 = vector.shape_cast %53 : vector<128x16xf32> to vector<1x128x16xf32>
      tpu.vector_store %arg12[%c0_27, %c0_28, %c0_29], %56 {strides = array<i32>} : memref<2x128x16xf32, #tpu.memory_space<vmem>>, vector<1x128x16xf32>,
      %c0_30 = arith.constant 0 : index
      %c0_31 = arith.constant 0 : index
      %c0_32 = arith.constant 0 : index
      %57 = vector.load %arg10[%c0_30, %c0_31, %c0_32] : memref<2x128x1xf32, #tpu.memory_space<vmem>>, vector<1x128x1xf32>
      %58 = vector.shape_cast %57 : vector<1x128x1xf32> to vector<128x1xf32>
      %59 = vector.shape_cast %31 : vector<128x1xf32> to vector<1x128x1xf32>
      tpu.vector_store %arg10[%c0_30, %c0_31, %c0_32], %59 {strides = array<i32>} : memref<2x128x1xf32, #tpu.memory_space<vmem>>, vector<1x128x1xf32>,
      %60 = vector.extract_strided_slice %16 {offsets = [0, 1], sizes = [128, 1], strides = [1, 1]} : vector<128x2xf32> to vector<128x1xf32>
      %61 = vector.extract_strided_slice %17 {offsets = [1, 0], sizes = [1, 128], strides = [1, 1]} : vector<2x128xf32> to vector<1x128xf32>
      %62 = vector.broadcast %60 : vector<128x1xf32> to vector<128x128xf32>
      %63 = vector.broadcast %61 : vector<1x128xf32> to vector<128x128xf32>
      %64 = arith.addf %62, %63 : vector<128x128xf32>
      %cst_33 = arith.constant 2.000000e-01 : f32
      %65 = vector.broadcast %cst_33 : f32 to vector<128x128xf32>
      %66 = arith.mulf %65, %64 : vector<128x128xf32>
      %67 = arith.maximumf %64, %66 : vector<128x128xf32>
      %68 = arith.addf %67, %14 : vector<128x128xf32>
      %c1 = arith.constant 1 : index
      %c0_34 = arith.constant 0 : index
      %c0_35 = arith.constant 0 : index
      %69 = vector.load %arg10[%c1, %c0_34, %c0_35] : memref<2x128x1xf32, #tpu.memory_space<vmem>>, vector<1x128x1xf32>
      %70 = vector.shape_cast %69 : vector<1x128x1xf32> to vector<128x1xf32>
      %cst_36 = arith.constant dense<0xFF800000> : vector<128xf32>
      %71 = vector.multi_reduction <maximumf>, %68, %cst_36 [1] : vector<128x128xf32> to vector<128xf32>
      %72 = vector.shape_cast %71 : vector<128xf32> to vector<128x1xf32>
      %73 = arith.maximumf %70, %72 : vector<128x1xf32>
      %74 = arith.subf %70, %73 : vector<128x1xf32>
      %75 = math.exp %74 : vector<128x1xf32>
      %76 = vector.broadcast %73 : vector<128x1xf32> to vector<128x128xf32>
      %77 = arith.subf %68, %76 : vector<128x128xf32>
      %78 = math.exp %77 : vector<128x128xf32>
      %c1_37 = arith.constant 1 : index
      %c0_38 = arith.constant 0 : index
      %c0_39 = arith.constant 0 : index
      %79 = vector.load %arg11[%c1_37, %c0_38, %c0_39] : memref<2x128x1xf32, #tpu.memory_space<vmem>>, vector<1x128x1xf32>
      %80 = vector.shape_cast %79 : vector<1x128x1xf32> to vector<128x1xf32>
      %81 = arith.mulf %75, %80 : vector<128x1xf32>
      %cst_40 = arith.constant dense<0.000000e+00> : vector<128xf32>
      %82 = vector.multi_reduction <add>, %78, %cst_40 [1] : vector<128x128xf32> to vector<128xf32>
      %83 = vector.shape_cast %82 : vector<128xf32> to vector<128x1xf32>
      %84 = arith.addf %81, %83 : vector<128x1xf32>
      %c1_41 = arith.constant 1 : index
      %c0_42 = arith.constant 0 : index
      %c0_43 = arith.constant 0 : index
      %85 = vector.load %arg11[%c1_41, %c0_42, %c0_43] : memref<2x128x1xf32, #tpu.memory_space<vmem>>, vector<1x128x1xf32>
      %86 = vector.shape_cast %85 : vector<1x128x1xf32> to vector<128x1xf32>
      %87 = vector.shape_cast %84 : vector<128x1xf32> to vector<1x128x1xf32>
      tpu.vector_store %arg11[%c1_41, %c0_42, %c0_43], %87 {strides = array<i32>} : memref<2x128x1xf32, #tpu.memory_space<vmem>>, vector<1x128x1xf32>,
      %c1_44 = arith.constant 1 : index
      %c0_45 = arith.constant 0 : index
      %c0_46 = arith.constant 0 : index
      %88 = vector.load %arg12[%c1_44, %c0_45, %c0_46] : memref<2x128x16xf32, #tpu.memory_space<vmem>>, vector<1x128x16xf32>
      %89 = vector.shape_cast %88 : vector<1x128x16xf32> to vector<128x16xf32>
      %90 = vector.broadcast %75 : vector<128x1xf32> to vector<128x16xf32>
      %91 = arith.mulf %90, %89 : vector<128x16xf32>
      %92 = arith.truncf %78 : vector<128x128xf32> to vector<128x128xbf16>
      %93 = vector.extract_strided_slice %15 {offsets = [0, 16], sizes = [128, 16], strides = [1, 1]} : vector<128x32xbf16> to vector<128x16xbf16>
      %cst_47 = arith.constant dense<0.000000e+00> : vector<128x16xf32>
      %94 = tpu.matmul %92, %93, %cst_47 {dimension_numbers = #tpu.dot_dimension_numbers<[1], [0], [0], [1], [0, 0, 1, 1], [], []>} : vector<128x128xbf16>, vector<128x16xbf16>, vector<128x16xf32> -> vector<128x16xf32>
      %95 = arith.addf %91, %94 : vector<128x16xf32>
      %c1_48 = arith.constant 1 : index
      %c0_49 = arith.constant 0 : index
      %c0_50 = arith.constant 0 : index
      %96 = vector.load %arg12[%c1_48, %c0_49, %c0_50] : memref<2x128x16xf32, #tpu.memory_space<vmem>>, vector<1x128x16xf32>
      %97 = vector.shape_cast %96 : vector<1x128x16xf32> to vector<128x16xf32>
      %98 = vector.shape_cast %95 : vector<128x16xf32> to vector<1x128x16xf32>
      tpu.vector_store %arg12[%c1_48, %c0_49, %c0_50], %98 {strides = array<i32>} : memref<2x128x16xf32, #tpu.memory_space<vmem>>, vector<1x128x16xf32>,
      %c1_51 = arith.constant 1 : index
      %c0_52 = arith.constant 0 : index
      %c0_53 = arith.constant 0 : index
      %99 = vector.load %arg10[%c1_51, %c0_52, %c0_53] : memref<2x128x1xf32, #tpu.memory_space<vmem>>, vector<1x128x1xf32>
      %100 = vector.shape_cast %99 : vector<1x128x1xf32> to vector<128x1xf32>
      %101 = vector.shape_cast %73 : vector<128x1xf32> to vector<1x128x1xf32>
      tpu.vector_store %arg10[%c1_51, %c0_52, %c0_53], %101 {strides = array<i32>} : memref<2x128x1xf32, #tpu.memory_space<vmem>>, vector<1x128x1xf32>,
    } else {
    }
    %c0_i32_2 = arith.constant 0 : i32
    %8 = arith.cmpi eq, %arg1, %c0_i32_2 : i32
    %9 = arith.extui %8 : i1 to i32
    %c0_i32_3 = arith.constant 0 : i32
    %10 = arith.cmpi ne, %9, %c0_i32_3 : i32
    scf.if %10 {
      %c0 = arith.constant 0 : index
      %c0_4 = arith.constant 0 : index
      %c0_5 = arith.constant 0 : index
      %11 = vector.load %arg11[%c0, %c0_4, %c0_5] : memref<2x128x1xf32, #tpu.memory_space<vmem>>, vector<1x128x1xf32>
      %12 = vector.shape_cast %11 : vector<1x128x1xf32> to vector<128x1xf32>
      %cst = arith.constant 0.000000e+00 : f32
      %13 = vector.broadcast %cst : f32 to vector<128x1xf32>
      %14 = arith.cmpf ogt, %12, %13 : vector<128x1xf32>
      %cst_6 = arith.constant 1.000000e+00 : f32
      %15 = vector.broadcast %cst_6 : f32 to vector<128x1xf32>
      %16 = arith.select %14, %12, %15 : vector<128x1xi1>, vector<128x1xf32>
      %17 = tpu.reciprocal %16 {approx = true} : vector<128x1xf32> -> vector<128x1xf32>
      %c0_7 = arith.constant 0 : index
      %c0_8 = arith.constant 0 : index
      %c0_9 = arith.constant 0 : index
      %18 = vector.load %arg12[%c0_7, %c0_8, %c0_9] : memref<2x128x16xf32, #tpu.memory_space<vmem>>, vector<1x128x16xf32>
      %19 = vector.shape_cast %18 : vector<1x128x16xf32> to vector<128x16xf32>
      %20 = vector.broadcast %17 : vector<128x1xf32> to vector<128x16xf32>
      %21 = arith.mulf %19, %20 : vector<128x16xf32>
      %c1 = arith.constant 1 : index
      %c0_10 = arith.constant 0 : index
      %c0_11 = arith.constant 0 : index
      %22 = vector.load %arg11[%c1, %c0_10, %c0_11] : memref<2x128x1xf32, #tpu.memory_space<vmem>>, vector<1x128x1xf32>
      %23 = vector.shape_cast %22 : vector<1x128x1xf32> to vector<128x1xf32>
      %cst_12 = arith.constant 0.000000e+00 : f32
      %24 = vector.broadcast %cst_12 : f32 to vector<128x1xf32>
      %25 = arith.cmpf ogt, %23, %24 : vector<128x1xf32>
      %cst_13 = arith.constant 1.000000e+00 : f32
      %26 = vector.broadcast %cst_13 : f32 to vector<128x1xf32>
      %27 = arith.select %25, %23, %26 : vector<128x1xi1>, vector<128x1xf32>
      %28 = tpu.reciprocal %27 {approx = true} : vector<128x1xf32> -> vector<128x1xf32>
      %c1_14 = arith.constant 1 : index
      %c0_15 = arith.constant 0 : index
      %c0_16 = arith.constant 0 : index
      %29 = vector.load %arg12[%c1_14, %c0_15, %c0_16] : memref<2x128x16xf32, #tpu.memory_space<vmem>>, vector<1x128x16xf32>
      %30 = vector.shape_cast %29 : vector<1x128x16xf32> to vector<128x16xf32>
      %31 = vector.broadcast %28 : vector<128x1xf32> to vector<128x16xf32>
      %32 = arith.mulf %30, %31 : vector<128x16xf32>
      %33 = tpu.concatenate %21, %32 in 1 : vector<128x16xf32>, vector<128x16xf32> -> vector<128x32xf32>
      %c0_17 = arith.constant 0 : index
      %c0_18 = arith.constant 0 : index
      %34 = vector.load %arg8[%c0_17, %c0_18] : memref<1x32xf32, #tpu.memory_space<vmem>>, vector<1x32xf32>
      %35 = vector.broadcast %34 : vector<1x32xf32> to vector<128x32xf32>
      %36 = arith.addf %33, %35 : vector<128x32xf32>
      %cst_19 = arith.constant 5.000000e-01 : f32
      %37 = vector.broadcast %cst_19 : f32 to vector<128x32xf32>
      %38 = arith.mulf %37, %36 : vector<128x32xf32>
      %cst_20 = arith.constant 0.707106769 : f32
      %39 = vector.broadcast %cst_20 : f32 to vector<128x32xf32>
      %40 = arith.mulf %36, %39 : vector<128x32xf32>
      %cst_21 = arith.constant 0.000000e+00 : f32
      %41 = vector.broadcast %cst_21 : f32 to vector<128x32xf32>
      %42 = arith.cmpf oge, %40, %41 : vector<128x32xf32>
      %cst_22 = arith.constant 1.000000e+00 : f32
      %cst_23 = arith.constant -1.000000e+00 : f32
      %43 = vector.broadcast %cst_22 : f32 to vector<128x32xf32>
      %44 = vector.broadcast %cst_23 : f32 to vector<128x32xf32>
      %45 = arith.select %42, %43, %44 : vector<128x32xi1>, vector<128x32xf32>
      %46 = math.absf %40 : vector<128x32xf32>
      %cst_24 = arith.constant 0.327591091 : f32
      %47 = vector.broadcast %cst_24 : f32 to vector<128x32xf32>
      %48 = arith.mulf %47, %46 : vector<128x32xf32>
      %cst_25 = arith.constant 1.000000e+00 : f32
      %49 = vector.broadcast %cst_25 : f32 to vector<128x32xf32>
      %50 = arith.addf %49, %48 : vector<128x32xf32>
      %cst_26 = arith.constant 1.000000e+00 : f32
      %51 = vector.broadcast %cst_26 : f32 to vector<128x32xf32>
      %52 = arith.divf %51, %50 : vector<128x32xf32>
      %cst_27 = arith.constant 1.06140542 : f32
      %53 = vector.broadcast %cst_27 : f32 to vector<128x32xf32>
      %54 = arith.mulf %53, %52 : vector<128x32xf32>
      %cst_28 = arith.constant -1.45315206 : f32
      %55 = vector.broadcast %cst_28 : f32 to vector<128x32xf32>
      %56 = arith.addf %54, %55 : vector<128x32xf32>
      %57 = arith.mulf %56, %52 : vector<128x32xf32>
      %cst_29 = arith.constant 1.42141378 : f32
      %58 = vector.broadcast %cst_29 : f32 to vector<128x32xf32>
      %59 = arith.addf %57, %58 : vector<128x32xf32>
      %60 = arith.mulf %59, %52 : vector<128x32xf32>
      %cst_30 = arith.constant -0.284496725 : f32
      %61 = vector.broadcast %cst_30 : f32 to vector<128x32xf32>
      %62 = arith.addf %60, %61 : vector<128x32xf32>
      %63 = arith.mulf %62, %52 : vector<128x32xf32>
      %cst_31 = arith.constant 0.254829586 : f32
      %64 = vector.broadcast %cst_31 : f32 to vector<128x32xf32>
      %65 = arith.addf %63, %64 : vector<128x32xf32>
      %66 = arith.mulf %65, %52 : vector<128x32xf32>
      %cst_32 = arith.constant 0.000000e+00 : f32
      %67 = vector.broadcast %cst_32 : f32 to vector<128x32xf32>
      %68 = arith.subf %67, %46 : vector<128x32xf32>
      %69 = arith.mulf %68, %46 : vector<128x32xf32>
      %70 = math.exp %69 : vector<128x32xf32>
      %71 = arith.mulf %66, %70 : vector<128x32xf32>
      %cst_33 = arith.constant 1.000000e+00 : f32
      %72 = vector.broadcast %cst_33 : f32 to vector<128x32xf32>
      %73 = arith.subf %72, %71 : vector<128x32xf32>
      %74 = arith.mulf %45, %73 : vector<128x32xf32>
      %cst_34 = arith.constant 1.000000e+00 : f32
      %75 = vector.broadcast %cst_34 : f32 to vector<128x32xf32>
      %76 = arith.addf %75, %74 : vector<128x32xf32>
      %77 = arith.mulf %38, %76 : vector<128x32xf32>
      %78 = arith.truncf %77 : vector<128x32xf32> to vector<128x32xbf16>
      %c0_35 = arith.constant 0 : index
      %c0_36 = arith.constant 0 : index
      %79 = vector.load %arg9[%c0_35, %c0_36] : memref<128x32xbf16, #tpu.memory_space<vmem>>, vector<128x32xbf16>
      tpu.vector_store %arg9[%c0_35, %c0_36], %78 {strides = array<i32>} : memref<128x32xbf16, #tpu.memory_space<vmem>>, vector<128x32xbf16>,
    } else {
    }
    return
  }
  func.func @transform_0(%arg0: i32, %arg1: i32, %arg2: memref<1xi32, #tpu.memory_space<smem>>, %arg3: memref<1xi32, #tpu.memory_space<smem>>) -> (i32, i32) {
    %c1_i32 = arith.constant 1 : i32
    %0 = arith.muli %arg0, %c1_i32 : i32
    %1 = arith.addi %0, %arg1 : i32
    %2 = arith.index_cast %1 : i32 to index
    %3 = memref.load %arg2[%2] : memref<1xi32, #tpu.memory_space<smem>>
    %c0_i32 = arith.constant 0 : i32
    return %arg0, %3 : i32, i32
  }
  func.func @transform_1(%arg0: i32, %arg1: i32, %arg2: memref<1xi32, #tpu.memory_space<smem>>, %arg3: memref<1xi32, #tpu.memory_space<smem>>) -> (i32, i32) {
    %c1_i32 = arith.constant 1 : i32
    %0 = arith.muli %arg0, %c1_i32 : i32
    %1 = arith.addi %0, %arg1 : i32
    %2 = arith.index_cast %1 : i32 to index
    %3 = memref.load %arg2[%2] : memref<1xi32, #tpu.memory_space<smem>>
    %c0_i32 = arith.constant 0 : i32
    %c0_i32_0 = arith.constant 0 : i32
    return %3, %c0_i32 : i32, i32
  }
  func.func @transform_2(%arg0: i32, %arg1: i32, %arg2: memref<1xi32, #tpu.memory_space<smem>>, %arg3: memref<1xi32, #tpu.memory_space<smem>>) -> (i32, i32) {
    %c0_i32 = arith.constant 0 : i32
    %c0_i32_0 = arith.constant 0 : i32
    return %arg0, %c0_i32 : i32, i32
  }
  func.func @transform_3(%arg0: i32, %arg1: i32, %arg2: memref<1xi32, #tpu.memory_space<smem>>, %arg3: memref<1xi32, #tpu.memory_space<smem>>) -> (i32, i32) {
    %c1_i32 = arith.constant 1 : i32
    %0 = arith.muli %arg0, %c1_i32 : i32
    %1 = arith.addi %0, %arg1 : i32
    %2 = arith.index_cast %1 : i32 to index
    %3 = memref.load %arg2[%2] : memref<1xi32, #tpu.memory_space<smem>>
    %c0_i32 = arith.constant 0 : i32
    %c0_i32_0 = arith.constant 0 : i32
    return %c0_i32, %3 : i32, i32
  }
  func.func @transform_4(%arg0: i32, %arg1: i32, %arg2: memref<1xi32, #tpu.memory_space<smem>>, %arg3: memref<1xi32, #tpu.memory_space<smem>>) -> (i32, i32) {
    %c0_i32 = arith.constant 0 : i32
    %c0_i32_0 = arith.constant 0 : i32
    %c0_i32_1 = arith.constant 0 : i32
    return %c0_i32, %c0_i32_0 : i32, i32
  }
  func.func @transform_5(%arg0: i32, %arg1: i32, %arg2: memref<1xi32, #tpu.memory_space<smem>>, %arg3: memref<1xi32, #tpu.memory_space<smem>>) -> (i32, i32) {
    %c0_i32 = arith.constant 0 : i32
    %c0_i32_0 = arith.constant 0 : i32
    return %arg0, %c0_i32 : i32, i32
  }
}

module attributes {stable_mosaic.version = 11 : i64} {
  func.func @_proj_kernel(%arg0: i32, %arg1: memref<128x8xf32, #tpu.memory_space<vmem>>, %arg2: memref<8x34xbf16, #tpu.memory_space<vmem>>, %arg3: memref<2x8xbf16, #tpu.memory_space<vmem>>, %arg4: memref<128x32xbf16, #tpu.memory_space<vmem>>, %arg5: memref<128x2xf32, #tpu.memory_space<vmem>>, %arg6: memref<2x128xf32, #tpu.memory_space<vmem>>) attributes {dimension_semantics = [#tpu.dimension_semantics<parallel>], iteration_bounds = array<i64: 1>, scalar_prefetch = 0 : i64, scratch_operands = 0 : i64, tpu.core_type = #tpu.core_type<tc>, window_params = [{transform_indices = @transform_0, window_bounds = array<i64: 128, 8>}, {pipeline_mode = #tpu.pipeline_mode<synchronous>, transform_indices = @transform_1, window_bounds = array<i64: 8, 34>}, {pipeline_mode = #tpu.pipeline_mode<synchronous>, transform_indices = @transform_2, window_bounds = array<i64: 2, 8>}, {transform_indices = @transform_3, window_bounds = array<i64: 128, 32>}, {transform_indices = @transform_4, window_bounds = array<i64: 128, 2>}, {transform_indices = @transform_5, window_bounds = array<i64: 2, 128>}]} {
    %c0 = arith.constant 0 : index
    %c0_0 = arith.constant 0 : index
    %0 = vector.load %arg1[%c0, %c0_0] : memref<128x8xf32, #tpu.memory_space<vmem>>, vector<128x8xf32>
    %1 = arith.truncf %0 : vector<128x8xf32> to vector<128x8xbf16>
    %c0_1 = arith.constant 0 : index
    %c0_2 = arith.constant 0 : index
    %2 = vector.load %arg2[%c0_1, %c0_2] : memref<8x34xbf16, #tpu.memory_space<vmem>>, vector<8x34xbf16>
    %cst = arith.constant dense<0.000000e+00> : vector<128x34xf32>
    %3 = tpu.matmul %1, %2, %cst {dimension_numbers = #tpu.dot_dimension_numbers<[1], [0], [0], [1], [0, 0, 1, 1], [], []>} : vector<128x8xbf16>, vector<8x34xbf16>, vector<128x34xf32> -> vector<128x34xf32>
    %4 = vector.extract_strided_slice %3 {offsets = [0, 0], sizes = [128, 32], strides = [1, 1]} : vector<128x34xf32> to vector<128x32xf32>
    %5 = arith.truncf %4 : vector<128x32xf32> to vector<128x32xbf16>
    %c0_3 = arith.constant 0 : index
    %c0_4 = arith.constant 0 : index
    %6 = vector.load %arg4[%c0_3, %c0_4] : memref<128x32xbf16, #tpu.memory_space<vmem>>, vector<128x32xbf16>
    tpu.vector_store %arg4[%c0_3, %c0_4], %5 {strides = array<i32>} : memref<128x32xbf16, #tpu.memory_space<vmem>>, vector<128x32xbf16>,
    %7 = vector.extract_strided_slice %3 {offsets = [0, 32], sizes = [128, 2], strides = [1, 1]} : vector<128x34xf32> to vector<128x2xf32>
    %c0_5 = arith.constant 0 : index
    %c0_6 = arith.constant 0 : index
    %8 = vector.load %arg5[%c0_5, %c0_6] : memref<128x2xf32, #tpu.memory_space<vmem>>, vector<128x2xf32>
    tpu.vector_store %arg5[%c0_5, %c0_6], %7 {strides = array<i32>} : memref<128x2xf32, #tpu.memory_space<vmem>>, vector<128x2xf32>,
    %c0_7 = arith.constant 0 : index
    %c0_8 = arith.constant 0 : index
    %9 = vector.load %arg3[%c0_7, %c0_8] : memref<2x8xbf16, #tpu.memory_space<vmem>>, vector<2x8xbf16>
    %cst_9 = arith.constant dense<0.000000e+00> : vector<2x128xf32>
    %10 = tpu.matmul %9, %1, %cst_9 {dimension_numbers = #tpu.dot_dimension_numbers<[1], [1], [0], [0], [0, 0, 1, 0], [], []>} : vector<2x8xbf16>, vector<128x8xbf16>, vector<2x128xf32> -> vector<2x128xf32>
    %c0_10 = arith.constant 0 : index
    %c0_11 = arith.constant 0 : index
    %11 = vector.load %arg6[%c0_10, %c0_11] : memref<2x128xf32, #tpu.memory_space<vmem>>, vector<2x128xf32>
    tpu.vector_store %arg6[%c0_10, %c0_11], %10 {strides = array<i32>} : memref<2x128xf32, #tpu.memory_space<vmem>>, vector<2x128xf32>,
    return
  }
  func.func @transform_0(%arg0: i32) -> (i32, i32) {
    %c0_i32 = arith.constant 0 : i32
    %c0_i32_0 = arith.constant 0 : i32
    return %arg0, %c0_i32 : i32, i32
  }
  func.func @transform_1(%arg0: i32) -> (i32, i32) {
    %c0_i32 = arith.constant 0 : i32
    %c0_i32_0 = arith.constant 0 : i32
    %c0_i32_1 = arith.constant 0 : i32
    return %c0_i32, %c0_i32_0 : i32, i32
  }
  func.func @transform_2(%arg0: i32) -> (i32, i32) {
    %c0_i32 = arith.constant 0 : i32
    %c0_i32_0 = arith.constant 0 : i32
    %c0_i32_1 = arith.constant 0 : i32
    return %c0_i32, %c0_i32_0 : i32, i32
  }
  func.func @transform_3(%arg0: i32) -> (i32, i32) {
    %c0_i32 = arith.constant 0 : i32
    %c0_i32_0 = arith.constant 0 : i32
    return %arg0, %c0_i32 : i32, i32
  }
  func.func @transform_4(%arg0: i32) -> (i32, i32) {
    %c0_i32 = arith.constant 0 : i32
    %c0_i32_0 = arith.constant 0 : i32
    return %arg0, %c0_i32 : i32, i32
  }
  func.func @transform_5(%arg0: i32) -> (i32, i32) {
    %c0_i32 = arith.constant 0 : i32
    %c0_i32_0 = arith.constant 0 : i32
    return %c0_i32, %arg0 : i32, i32
  }
}

module attributes {stable_mosaic.version = 11 : i64} {
  func.func @_attn_kernel(%arg0: i32, %arg1: i32, %arg2: memref<1xi32, #tpu.memory_space<smem>>, %arg3: memref<1xi32, #tpu.memory_space<smem>>, %arg4: memref<128x128xi8, #tpu.memory_space<vmem>>, %arg5: memref<128x32xbf16, #tpu.memory_space<vmem>>, %arg6: memref<128x2xf32, #tpu.memory_space<vmem>>, %arg7: memref<2x128xf32, #tpu.memory_space<vmem>>, %arg8: memref<1x32xf32, #tpu.memory_space<vmem>>, %arg9: memref<32x128xf32, #tpu.memory_space<vmem>>, %arg10: memref<1x128xf32, #tpu.memory_space<vmem>>, %arg11: memref<128x128xf32, #tpu.memory_space<vmem>>, %arg12: memref<2x128x1xf32, #tpu.memory_space<vmem>>, %arg13: memref<2x128x1xf32, #tpu.memory_space<vmem>>, %arg14: memref<2x128x16xf32, #tpu.memory_space<vmem>>) attributes {dimension_semantics = [#tpu.dimension_semantics<parallel>, #tpu.dimension_semantics<arbitrary>], iteration_bounds = array<i64: 1, 1>, scalar_prefetch = 2 : i64, scratch_operands = 3 : i64, tpu.core_type = #tpu.core_type<tc>, window_params = [{transform_indices = @transform_0, window_bounds = array<i64: 128, 128>}, {transform_indices = @transform_1, window_bounds = array<i64: 128, 32>}, {transform_indices = @transform_2, window_bounds = array<i64: 128, 2>}, {transform_indices = @transform_3, window_bounds = array<i64: 2, 128>}, {pipeline_mode = #tpu.pipeline_mode<synchronous>, transform_indices = @transform_4, window_bounds = array<i64: 1, 32>}, {pipeline_mode = #tpu.pipeline_mode<synchronous>, transform_indices = @transform_5, window_bounds = array<i64: 32, 128>}, {pipeline_mode = #tpu.pipeline_mode<synchronous>, transform_indices = @transform_6, window_bounds = array<i64: 1, 128>}, {transform_indices = @transform_7, window_bounds = array<i64: 128, 128>}]} {
    %c0_i32 = arith.constant 0 : i32
    %0 = arith.cmpi eq, %arg1, %c0_i32 : i32
    %1 = arith.extui %0 : i1 to i32
    %c0_i32_0 = arith.constant 0 : i32
    %2 = arith.cmpi ne, %1, %c0_i32_0 : i32
    scf.if %2 {
      %cst = arith.constant -1.000000e+29 : f32
      %11 = vector.broadcast %cst : f32 to vector<2x128x1xf32>
      %c0 = arith.constant 0 : index
      %c0_4 = arith.constant 0 : index
      %c0_5 = arith.constant 0 : index
      %12 = vector.load %arg12[%c0, %c0_4, %c0_5] : memref<2x128x1xf32, #tpu.memory_space<vmem>>, vector<2x128x1xf32>
      tpu.vector_store %arg12[%c0, %c0_4, %c0_5], %11 {strides = array<i32>} : memref<2x128x1xf32, #tpu.memory_space<vmem>>, vector<2x128x1xf32>,
      %cst_6 = arith.constant 0.000000e+00 : f32
      %13 = vector.broadcast %cst_6 : f32 to vector<2x128x1xf32>
      %c0_7 = arith.constant 0 : index
      %c0_8 = arith.constant 0 : index
      %c0_9 = arith.constant 0 : index
      %14 = vector.load %arg13[%c0_7, %c0_8, %c0_9] : memref<2x128x1xf32, #tpu.memory_space<vmem>>, vector<2x128x1xf32>
      tpu.vector_store %arg13[%c0_7, %c0_8, %c0_9], %13 {strides = array<i32>} : memref<2x128x1xf32, #tpu.memory_space<vmem>>, vector<2x128x1xf32>,
      %cst_10 = arith.constant 0.000000e+00 : f32
      %15 = vector.broadcast %cst_10 : f32 to vector<2x128x16xf32>
      %c0_11 = arith.constant 0 : index
      %c0_12 = arith.constant 0 : index
      %c0_13 = arith.constant 0 : index
      %16 = vector.load %arg14[%c0_11, %c0_12, %c0_13] : memref<2x128x16xf32, #tpu.memory_space<vmem>>, vector<2x128x16xf32>
      tpu.vector_store %arg14[%c0_11, %c0_12, %c0_13], %15 {strides = array<i32>} : memref<2x128x16xf32, #tpu.memory_space<vmem>>, vector<2x128x16xf32>,
    } else {
    }
    %3 = arith.index_cast %arg0 : i32 to index
    %4 = memref.load %arg3[%3] : memref<1xi32, #tpu.memory_space<smem>>
    %5 = arith.cmpi slt, %arg1, %4 : i32
    %6 = arith.extui %5 : i1 to i32
    %c0_i32_1 = arith.constant 0 : i32
    %7 = arith.cmpi ne, %6, %c0_i32_1 : i32
    scf.if %7 {
      %c0 = arith.constant 0 : index
      %c0_4 = arith.constant 0 : index
      %11 = vector.load %arg4[%c0, %c0_4] : memref<128x128xi8, #tpu.memory_space<vmem>>, vector<128x128xi8>
      %12 = arith.sitofp %11 : vector<128x128xi8> to vector<128x128xf32>
      %cst = arith.constant 1.000000e+30 : f32
      %13 = vector.broadcast %cst : f32 to vector<128x128xf32>
      %14 = arith.mulf %12, %13 : vector<128x128xf32>
      %c0_5 = arith.constant 0 : index
      %c0_6 = arith.constant 0 : index
      %15 = vector.load %arg5[%c0_5, %c0_6] : memref<128x32xbf16, #tpu.memory_space<vmem>>, vector<128x32xbf16>
      %c0_7 = arith.constant 0 : index
      %c0_8 = arith.constant 0 : index
      %16 = vector.load %arg6[%c0_7, %c0_8] : memref<128x2xf32, #tpu.memory_space<vmem>>, vector<128x2xf32>
      %c0_9 = arith.constant 0 : index
      %c0_10 = arith.constant 0 : index
      %17 = vector.load %arg7[%c0_9, %c0_10] : memref<2x128xf32, #tpu.memory_space<vmem>>, vector<2x128xf32>
      %18 = vector.extract_strided_slice %16 {offsets = [0, 0], sizes = [128, 1], strides = [1, 1]} : vector<128x2xf32> to vector<128x1xf32>
      %19 = vector.extract_strided_slice %17 {offsets = [0, 0], sizes = [1, 128], strides = [1, 1]} : vector<2x128xf32> to vector<1x128xf32>
      %20 = vector.broadcast %18 : vector<128x1xf32> to vector<128x128xf32>
      %21 = vector.broadcast %19 : vector<1x128xf32> to vector<128x128xf32>
      %22 = arith.addf %20, %21 : vector<128x128xf32>
      %cst_11 = arith.constant 2.000000e-01 : f32
      %23 = vector.broadcast %cst_11 : f32 to vector<128x128xf32>
      %24 = arith.mulf %23, %22 : vector<128x128xf32>
      %25 = arith.maximumf %22, %24 : vector<128x128xf32>
      %26 = arith.addf %25, %14 : vector<128x128xf32>
      %c0_12 = arith.constant 0 : index
      %c0_13 = arith.constant 0 : index
      %c0_14 = arith.constant 0 : index
      %27 = vector.load %arg12[%c0_12, %c0_13, %c0_14] : memref<2x128x1xf32, #tpu.memory_space<vmem>>, vector<1x128x1xf32>
      %28 = vector.shape_cast %27 : vector<1x128x1xf32> to vector<128x1xf32>
      %cst_15 = arith.constant dense<0xFF800000> : vector<128xf32>
      %29 = vector.multi_reduction <maximumf>, %26, %cst_15 [1] : vector<128x128xf32> to vector<128xf32>
      %30 = vector.shape_cast %29 : vector<128xf32> to vector<128x1xf32>
      %31 = arith.maximumf %28, %30 : vector<128x1xf32>
      %32 = arith.subf %28, %31 : vector<128x1xf32>
      %33 = math.exp %32 : vector<128x1xf32>
      %34 = vector.broadcast %31 : vector<128x1xf32> to vector<128x128xf32>
      %35 = arith.subf %26, %34 : vector<128x128xf32>
      %36 = math.exp %35 : vector<128x128xf32>
      %c0_16 = arith.constant 0 : index
      %c0_17 = arith.constant 0 : index
      %c0_18 = arith.constant 0 : index
      %37 = vector.load %arg13[%c0_16, %c0_17, %c0_18] : memref<2x128x1xf32, #tpu.memory_space<vmem>>, vector<1x128x1xf32>
      %38 = vector.shape_cast %37 : vector<1x128x1xf32> to vector<128x1xf32>
      %39 = arith.mulf %33, %38 : vector<128x1xf32>
      %cst_19 = arith.constant dense<0.000000e+00> : vector<128xf32>
      %40 = vector.multi_reduction <add>, %36, %cst_19 [1] : vector<128x128xf32> to vector<128xf32>
      %41 = vector.shape_cast %40 : vector<128xf32> to vector<128x1xf32>
      %42 = arith.addf %39, %41 : vector<128x1xf32>
      %c0_20 = arith.constant 0 : index
      %c0_21 = arith.constant 0 : index
      %c0_22 = arith.constant 0 : index
      %43 = vector.load %arg13[%c0_20, %c0_21, %c0_22] : memref<2x128x1xf32, #tpu.memory_space<vmem>>, vector<1x128x1xf32>
      %44 = vector.shape_cast %43 : vector<1x128x1xf32> to vector<128x1xf32>
      %45 = vector.shape_cast %42 : vector<128x1xf32> to vector<1x128x1xf32>
      tpu.vector_store %arg13[%c0_20, %c0_21, %c0_22], %45 {strides = array<i32>} : memref<2x128x1xf32, #tpu.memory_space<vmem>>, vector<1x128x1xf32>,
      %c0_23 = arith.constant 0 : index
      %c0_24 = arith.constant 0 : index
      %c0_25 = arith.constant 0 : index
      %46 = vector.load %arg14[%c0_23, %c0_24, %c0_25] : memref<2x128x16xf32, #tpu.memory_space<vmem>>, vector<1x128x16xf32>
      %47 = vector.shape_cast %46 : vector<1x128x16xf32> to vector<128x16xf32>
      %48 = vector.broadcast %33 : vector<128x1xf32> to vector<128x16xf32>
      %49 = arith.mulf %48, %47 : vector<128x16xf32>
      %50 = arith.truncf %36 : vector<128x128xf32> to vector<128x128xbf16>
      %51 = vector.extract_strided_slice %15 {offsets = [0, 0], sizes = [128, 16], strides = [1, 1]} : vector<128x32xbf16> to vector<128x16xbf16>
      %cst_26 = arith.constant dense<0.000000e+00> : vector<128x16xf32>
      %52 = tpu.matmul %50, %51, %cst_26 {dimension_numbers = #tpu.dot_dimension_numbers<[1], [0], [0], [1], [0, 0, 1, 1], [], []>} : vector<128x128xbf16>, vector<128x16xbf16>, vector<128x16xf32> -> vector<128x16xf32>
      %53 = arith.addf %49, %52 : vector<128x16xf32>
      %c0_27 = arith.constant 0 : index
      %c0_28 = arith.constant 0 : index
      %c0_29 = arith.constant 0 : index
      %54 = vector.load %arg14[%c0_27, %c0_28, %c0_29] : memref<2x128x16xf32, #tpu.memory_space<vmem>>, vector<1x128x16xf32>
      %55 = vector.shape_cast %54 : vector<1x128x16xf32> to vector<128x16xf32>
      %56 = vector.shape_cast %53 : vector<128x16xf32> to vector<1x128x16xf32>
      tpu.vector_store %arg14[%c0_27, %c0_28, %c0_29], %56 {strides = array<i32>} : memref<2x128x16xf32, #tpu.memory_space<vmem>>, vector<1x128x16xf32>,
      %c0_30 = arith.constant 0 : index
      %c0_31 = arith.constant 0 : index
      %c0_32 = arith.constant 0 : index
      %57 = vector.load %arg12[%c0_30, %c0_31, %c0_32] : memref<2x128x1xf32, #tpu.memory_space<vmem>>, vector<1x128x1xf32>
      %58 = vector.shape_cast %57 : vector<1x128x1xf32> to vector<128x1xf32>
      %59 = vector.shape_cast %31 : vector<128x1xf32> to vector<1x128x1xf32>
      tpu.vector_store %arg12[%c0_30, %c0_31, %c0_32], %59 {strides = array<i32>} : memref<2x128x1xf32, #tpu.memory_space<vmem>>, vector<1x128x1xf32>,
      %60 = vector.extract_strided_slice %16 {offsets = [0, 1], sizes = [128, 1], strides = [1, 1]} : vector<128x2xf32> to vector<128x1xf32>
      %61 = vector.extract_strided_slice %17 {offsets = [1, 0], sizes = [1, 128], strides = [1, 1]} : vector<2x128xf32> to vector<1x128xf32>
      %62 = vector.broadcast %60 : vector<128x1xf32> to vector<128x128xf32>
      %63 = vector.broadcast %61 : vector<1x128xf32> to vector<128x128xf32>
      %64 = arith.addf %62, %63 : vector<128x128xf32>
      %cst_33 = arith.constant 2.000000e-01 : f32
      %65 = vector.broadcast %cst_33 : f32 to vector<128x128xf32>
      %66 = arith.mulf %65, %64 : vector<128x128xf32>
      %67 = arith.maximumf %64, %66 : vector<128x128xf32>
      %68 = arith.addf %67, %14 : vector<128x128xf32>
      %c1 = arith.constant 1 : index
      %c0_34 = arith.constant 0 : index
      %c0_35 = arith.constant 0 : index
      %69 = vector.load %arg12[%c1, %c0_34, %c0_35] : memref<2x128x1xf32, #tpu.memory_space<vmem>>, vector<1x128x1xf32>
      %70 = vector.shape_cast %69 : vector<1x128x1xf32> to vector<128x1xf32>
      %cst_36 = arith.constant dense<0xFF800000> : vector<128xf32>
      %71 = vector.multi_reduction <maximumf>, %68, %cst_36 [1] : vector<128x128xf32> to vector<128xf32>
      %72 = vector.shape_cast %71 : vector<128xf32> to vector<128x1xf32>
      %73 = arith.maximumf %70, %72 : vector<128x1xf32>
      %74 = arith.subf %70, %73 : vector<128x1xf32>
      %75 = math.exp %74 : vector<128x1xf32>
      %76 = vector.broadcast %73 : vector<128x1xf32> to vector<128x128xf32>
      %77 = arith.subf %68, %76 : vector<128x128xf32>
      %78 = math.exp %77 : vector<128x128xf32>
      %c1_37 = arith.constant 1 : index
      %c0_38 = arith.constant 0 : index
      %c0_39 = arith.constant 0 : index
      %79 = vector.load %arg13[%c1_37, %c0_38, %c0_39] : memref<2x128x1xf32, #tpu.memory_space<vmem>>, vector<1x128x1xf32>
      %80 = vector.shape_cast %79 : vector<1x128x1xf32> to vector<128x1xf32>
      %81 = arith.mulf %75, %80 : vector<128x1xf32>
      %cst_40 = arith.constant dense<0.000000e+00> : vector<128xf32>
      %82 = vector.multi_reduction <add>, %78, %cst_40 [1] : vector<128x128xf32> to vector<128xf32>
      %83 = vector.shape_cast %82 : vector<128xf32> to vector<128x1xf32>
      %84 = arith.addf %81, %83 : vector<128x1xf32>
      %c1_41 = arith.constant 1 : index
      %c0_42 = arith.constant 0 : index
      %c0_43 = arith.constant 0 : index
      %85 = vector.load %arg13[%c1_41, %c0_42, %c0_43] : memref<2x128x1xf32, #tpu.memory_space<vmem>>, vector<1x128x1xf32>
      %86 = vector.shape_cast %85 : vector<1x128x1xf32> to vector<128x1xf32>
      %87 = vector.shape_cast %84 : vector<128x1xf32> to vector<1x128x1xf32>
      tpu.vector_store %arg13[%c1_41, %c0_42, %c0_43], %87 {strides = array<i32>} : memref<2x128x1xf32, #tpu.memory_space<vmem>>, vector<1x128x1xf32>,
      %c1_44 = arith.constant 1 : index
      %c0_45 = arith.constant 0 : index
      %c0_46 = arith.constant 0 : index
      %88 = vector.load %arg14[%c1_44, %c0_45, %c0_46] : memref<2x128x16xf32, #tpu.memory_space<vmem>>, vector<1x128x16xf32>
      %89 = vector.shape_cast %88 : vector<1x128x16xf32> to vector<128x16xf32>
      %90 = vector.broadcast %75 : vector<128x1xf32> to vector<128x16xf32>
      %91 = arith.mulf %90, %89 : vector<128x16xf32>
      %92 = arith.truncf %78 : vector<128x128xf32> to vector<128x128xbf16>
      %93 = vector.extract_strided_slice %15 {offsets = [0, 16], sizes = [128, 16], strides = [1, 1]} : vector<128x32xbf16> to vector<128x16xbf16>
      %cst_47 = arith.constant dense<0.000000e+00> : vector<128x16xf32>
      %94 = tpu.matmul %92, %93, %cst_47 {dimension_numbers = #tpu.dot_dimension_numbers<[1], [0], [0], [1], [0, 0, 1, 1], [], []>} : vector<128x128xbf16>, vector<128x16xbf16>, vector<128x16xf32> -> vector<128x16xf32>
      %95 = arith.addf %91, %94 : vector<128x16xf32>
      %c1_48 = arith.constant 1 : index
      %c0_49 = arith.constant 0 : index
      %c0_50 = arith.constant 0 : index
      %96 = vector.load %arg14[%c1_48, %c0_49, %c0_50] : memref<2x128x16xf32, #tpu.memory_space<vmem>>, vector<1x128x16xf32>
      %97 = vector.shape_cast %96 : vector<1x128x16xf32> to vector<128x16xf32>
      %98 = vector.shape_cast %95 : vector<128x16xf32> to vector<1x128x16xf32>
      tpu.vector_store %arg14[%c1_48, %c0_49, %c0_50], %98 {strides = array<i32>} : memref<2x128x16xf32, #tpu.memory_space<vmem>>, vector<1x128x16xf32>,
      %c1_51 = arith.constant 1 : index
      %c0_52 = arith.constant 0 : index
      %c0_53 = arith.constant 0 : index
      %99 = vector.load %arg12[%c1_51, %c0_52, %c0_53] : memref<2x128x1xf32, #tpu.memory_space<vmem>>, vector<1x128x1xf32>
      %100 = vector.shape_cast %99 : vector<1x128x1xf32> to vector<128x1xf32>
      %101 = vector.shape_cast %73 : vector<128x1xf32> to vector<1x128x1xf32>
      tpu.vector_store %arg12[%c1_51, %c0_52, %c0_53], %101 {strides = array<i32>} : memref<2x128x1xf32, #tpu.memory_space<vmem>>, vector<1x128x1xf32>,
    } else {
    }
    %c0_i32_2 = arith.constant 0 : i32
    %8 = arith.cmpi eq, %arg1, %c0_i32_2 : i32
    %9 = arith.extui %8 : i1 to i32
    %c0_i32_3 = arith.constant 0 : i32
    %10 = arith.cmpi ne, %9, %c0_i32_3 : i32
    scf.if %10 {
      %c0 = arith.constant 0 : index
      %c0_4 = arith.constant 0 : index
      %c0_5 = arith.constant 0 : index
      %11 = vector.load %arg13[%c0, %c0_4, %c0_5] : memref<2x128x1xf32, #tpu.memory_space<vmem>>, vector<1x128x1xf32>
      %12 = vector.shape_cast %11 : vector<1x128x1xf32> to vector<128x1xf32>
      %cst = arith.constant 0.000000e+00 : f32
      %13 = vector.broadcast %cst : f32 to vector<128x1xf32>
      %14 = arith.cmpf ogt, %12, %13 : vector<128x1xf32>
      %cst_6 = arith.constant 1.000000e+00 : f32
      %15 = vector.broadcast %cst_6 : f32 to vector<128x1xf32>
      %16 = arith.select %14, %12, %15 : vector<128x1xi1>, vector<128x1xf32>
      %17 = tpu.reciprocal %16 {approx = true} : vector<128x1xf32> -> vector<128x1xf32>
      %c0_7 = arith.constant 0 : index
      %c0_8 = arith.constant 0 : index
      %c0_9 = arith.constant 0 : index
      %18 = vector.load %arg14[%c0_7, %c0_8, %c0_9] : memref<2x128x16xf32, #tpu.memory_space<vmem>>, vector<1x128x16xf32>
      %19 = vector.shape_cast %18 : vector<1x128x16xf32> to vector<128x16xf32>
      %20 = vector.broadcast %17 : vector<128x1xf32> to vector<128x16xf32>
      %21 = arith.mulf %19, %20 : vector<128x16xf32>
      %c1 = arith.constant 1 : index
      %c0_10 = arith.constant 0 : index
      %c0_11 = arith.constant 0 : index
      %22 = vector.load %arg13[%c1, %c0_10, %c0_11] : memref<2x128x1xf32, #tpu.memory_space<vmem>>, vector<1x128x1xf32>
      %23 = vector.shape_cast %22 : vector<1x128x1xf32> to vector<128x1xf32>
      %cst_12 = arith.constant 0.000000e+00 : f32
      %24 = vector.broadcast %cst_12 : f32 to vector<128x1xf32>
      %25 = arith.cmpf ogt, %23, %24 : vector<128x1xf32>
      %cst_13 = arith.constant 1.000000e+00 : f32
      %26 = vector.broadcast %cst_13 : f32 to vector<128x1xf32>
      %27 = arith.select %25, %23, %26 : vector<128x1xi1>, vector<128x1xf32>
      %28 = tpu.reciprocal %27 {approx = true} : vector<128x1xf32> -> vector<128x1xf32>
      %c1_14 = arith.constant 1 : index
      %c0_15 = arith.constant 0 : index
      %c0_16 = arith.constant 0 : index
      %29 = vector.load %arg14[%c1_14, %c0_15, %c0_16] : memref<2x128x16xf32, #tpu.memory_space<vmem>>, vector<1x128x16xf32>
      %30 = vector.shape_cast %29 : vector<1x128x16xf32> to vector<128x16xf32>
      %31 = vector.broadcast %28 : vector<128x1xf32> to vector<128x16xf32>
      %32 = arith.mulf %30, %31 : vector<128x16xf32>
      %33 = tpu.concatenate %21, %32 in 1 : vector<128x16xf32>, vector<128x16xf32> -> vector<128x32xf32>
      %c0_17 = arith.constant 0 : index
      %c0_18 = arith.constant 0 : index
      %34 = vector.load %arg8[%c0_17, %c0_18] : memref<1x32xf32, #tpu.memory_space<vmem>>, vector<1x32xf32>
      %35 = vector.broadcast %34 : vector<1x32xf32> to vector<128x32xf32>
      %36 = arith.addf %33, %35 : vector<128x32xf32>
      %cst_19 = arith.constant 5.000000e-01 : f32
      %37 = vector.broadcast %cst_19 : f32 to vector<128x32xf32>
      %38 = arith.mulf %37, %36 : vector<128x32xf32>
      %cst_20 = arith.constant 0.707106769 : f32
      %39 = vector.broadcast %cst_20 : f32 to vector<128x32xf32>
      %40 = arith.mulf %36, %39 : vector<128x32xf32>
      %cst_21 = arith.constant 0.000000e+00 : f32
      %41 = vector.broadcast %cst_21 : f32 to vector<128x32xf32>
      %42 = arith.cmpf oge, %40, %41 : vector<128x32xf32>
      %cst_22 = arith.constant 1.000000e+00 : f32
      %cst_23 = arith.constant -1.000000e+00 : f32
      %43 = vector.broadcast %cst_22 : f32 to vector<128x32xf32>
      %44 = vector.broadcast %cst_23 : f32 to vector<128x32xf32>
      %45 = arith.select %42, %43, %44 : vector<128x32xi1>, vector<128x32xf32>
      %46 = math.absf %40 : vector<128x32xf32>
      %cst_24 = arith.constant 0.327591091 : f32
      %47 = vector.broadcast %cst_24 : f32 to vector<128x32xf32>
      %48 = arith.mulf %47, %46 : vector<128x32xf32>
      %cst_25 = arith.constant 1.000000e+00 : f32
      %49 = vector.broadcast %cst_25 : f32 to vector<128x32xf32>
      %50 = arith.addf %49, %48 : vector<128x32xf32>
      %cst_26 = arith.constant 1.000000e+00 : f32
      %51 = vector.broadcast %cst_26 : f32 to vector<128x32xf32>
      %52 = arith.divf %51, %50 : vector<128x32xf32>
      %cst_27 = arith.constant 1.06140542 : f32
      %53 = vector.broadcast %cst_27 : f32 to vector<128x32xf32>
      %54 = arith.mulf %53, %52 : vector<128x32xf32>
      %cst_28 = arith.constant -1.45315206 : f32
      %55 = vector.broadcast %cst_28 : f32 to vector<128x32xf32>
      %56 = arith.addf %54, %55 : vector<128x32xf32>
      %57 = arith.mulf %56, %52 : vector<128x32xf32>
      %cst_29 = arith.constant 1.42141378 : f32
      %58 = vector.broadcast %cst_29 : f32 to vector<128x32xf32>
      %59 = arith.addf %57, %58 : vector<128x32xf32>
      %60 = arith.mulf %59, %52 : vector<128x32xf32>
      %cst_30 = arith.constant -0.284496725 : f32
      %61 = vector.broadcast %cst_30 : f32 to vector<128x32xf32>
      %62 = arith.addf %60, %61 : vector<128x32xf32>
      %63 = arith.mulf %62, %52 : vector<128x32xf32>
      %cst_31 = arith.constant 0.254829586 : f32
      %64 = vector.broadcast %cst_31 : f32 to vector<128x32xf32>
      %65 = arith.addf %63, %64 : vector<128x32xf32>
      %66 = arith.mulf %65, %52 : vector<128x32xf32>
      %cst_32 = arith.constant 0.000000e+00 : f32
      %67 = vector.broadcast %cst_32 : f32 to vector<128x32xf32>
      %68 = arith.subf %67, %46 : vector<128x32xf32>
      %69 = arith.mulf %68, %46 : vector<128x32xf32>
      %70 = math.exp %69 : vector<128x32xf32>
      %71 = arith.mulf %66, %70 : vector<128x32xf32>
      %cst_33 = arith.constant 1.000000e+00 : f32
      %72 = vector.broadcast %cst_33 : f32 to vector<128x32xf32>
      %73 = arith.subf %72, %71 : vector<128x32xf32>
      %74 = arith.mulf %45, %73 : vector<128x32xf32>
      %cst_34 = arith.constant 1.000000e+00 : f32
      %75 = vector.broadcast %cst_34 : f32 to vector<128x32xf32>
      %76 = arith.addf %75, %74 : vector<128x32xf32>
      %77 = arith.mulf %38, %76 : vector<128x32xf32>
      %c0_35 = arith.constant 0 : index
      %c0_36 = arith.constant 0 : index
      %78 = vector.load %arg9[%c0_35, %c0_36] : memref<32x128xf32, #tpu.memory_space<vmem>>, vector<32x128xf32>
      %cst_37 = arith.constant dense<0.000000e+00> : vector<128x128xf32>
      %79 = tpu.matmul %77, %78, %cst_37 {dimension_numbers = #tpu.dot_dimension_numbers<[1], [0], [0], [1], [0, 0, 1, 1], [], []>} : vector<128x32xf32>, vector<32x128xf32>, vector<128x128xf32> -> vector<128x128xf32>
      %c0_38 = arith.constant 0 : index
      %c0_39 = arith.constant 0 : index
      %80 = vector.load %arg10[%c0_38, %c0_39] : memref<1x128xf32, #tpu.memory_space<vmem>>, vector<1x128xf32>
      %81 = vector.broadcast %80 : vector<1x128xf32> to vector<128x128xf32>
      %82 = arith.addf %79, %81 : vector<128x128xf32>
      %c0_40 = arith.constant 0 : index
      %c0_41 = arith.constant 0 : index
      %83 = vector.load %arg11[%c0_40, %c0_41] : memref<128x128xf32, #tpu.memory_space<vmem>>, vector<128x128xf32>
      tpu.vector_store %arg11[%c0_40, %c0_41], %82 {strides = array<i32>} : memref<128x128xf32, #tpu.memory_space<vmem>>, vector<128x128xf32>,
    } else {
    }
    return
  }
  func.func @transform_0(%arg0: i32, %arg1: i32, %arg2: memref<1xi32, #tpu.memory_space<smem>>, %arg3: memref<1xi32, #tpu.memory_space<smem>>) -> (i32, i32) {
    %c1_i32 = arith.constant 1 : i32
    %0 = arith.muli %arg0, %c1_i32 : i32
    %1 = arith.addi %0, %arg1 : i32
    %2 = arith.index_cast %1 : i32 to index
    %3 = memref.load %arg2[%2] : memref<1xi32, #tpu.memory_space<smem>>
    %c0_i32 = arith.constant 0 : i32
    return %arg0, %3 : i32, i32
  }
  func.func @transform_1(%arg0: i32, %arg1: i32, %arg2: memref<1xi32, #tpu.memory_space<smem>>, %arg3: memref<1xi32, #tpu.memory_space<smem>>) -> (i32, i32) {
    %c1_i32 = arith.constant 1 : i32
    %0 = arith.muli %arg0, %c1_i32 : i32
    %1 = arith.addi %0, %arg1 : i32
    %2 = arith.index_cast %1 : i32 to index
    %3 = memref.load %arg2[%2] : memref<1xi32, #tpu.memory_space<smem>>
    %c0_i32 = arith.constant 0 : i32
    %c0_i32_0 = arith.constant 0 : i32
    return %3, %c0_i32 : i32, i32
  }
  func.func @transform_2(%arg0: i32, %arg1: i32, %arg2: memref<1xi32, #tpu.memory_space<smem>>, %arg3: memref<1xi32, #tpu.memory_space<smem>>) -> (i32, i32) {
    %c0_i32 = arith.constant 0 : i32
    %c0_i32_0 = arith.constant 0 : i32
    return %arg0, %c0_i32 : i32, i32
  }
  func.func @transform_3(%arg0: i32, %arg1: i32, %arg2: memref<1xi32, #tpu.memory_space<smem>>, %arg3: memref<1xi32, #tpu.memory_space<smem>>) -> (i32, i32) {
    %c1_i32 = arith.constant 1 : i32
    %0 = arith.muli %arg0, %c1_i32 : i32
    %1 = arith.addi %0, %arg1 : i32
    %2 = arith.index_cast %1 : i32 to index
    %3 = memref.load %arg2[%2] : memref<1xi32, #tpu.memory_space<smem>>
    %c0_i32 = arith.constant 0 : i32
    %c0_i32_0 = arith.constant 0 : i32
    return %c0_i32, %3 : i32, i32
  }
  func.func @transform_4(%arg0: i32, %arg1: i32, %arg2: memref<1xi32, #tpu.memory_space<smem>>, %arg3: memref<1xi32, #tpu.memory_space<smem>>) -> (i32, i32) {
    %c0_i32 = arith.constant 0 : i32
    %c0_i32_0 = arith.constant 0 : i32
    %c0_i32_1 = arith.constant 0 : i32
    return %c0_i32, %c0_i32_0 : i32, i32
  }
  func.func @transform_5(%arg0: i32, %arg1: i32, %arg2: memref<1xi32, #tpu.memory_space<smem>>, %arg3: memref<1xi32, #tpu.memory_space<smem>>) -> (i32, i32) {
    %c0_i32 = arith.constant 0 : i32
    %c0_i32_0 = arith.constant 0 : i32
    %c0_i32_1 = arith.constant 0 : i32
    return %c0_i32, %c0_i32_0 : i32, i32
  }
  func.func @transform_6(%arg0: i32, %arg1: i32, %arg2: memref<1xi32, #tpu.memory_space<smem>>, %arg3: memref<1xi32, #tpu.memory_space<smem>>) -> (i32, i32) {
    %c0_i32 = arith.constant 0 : i32
    %c0_i32_0 = arith.constant 0 : i32
    %c0_i32_1 = arith.constant 0 : i32
    return %c0_i32, %c0_i32_0 : i32, i32
  }
  func.func @transform_7(%arg0: i32, %arg1: i32, %arg2: memref<1xi32, #tpu.memory_space<smem>>, %arg3: memref<1xi32, #tpu.memory_space<smem>>) -> (i32, i32) {
    %c0_i32 = arith.constant 0 : i32
    %c0_i32_0 = arith.constant 0 : i32
    return %arg0, %c0_i32 : i32, i32
  }
}

</mosaic_0001>

<llo_original>
// kernel: gat_forward.6
$region0: #{gat_forward.6}
  #allocation0 [shape = 'u32[]', space=smem, size = 0x4, offset = 0x4, fixed_abs, tag = 'smem constant byte address 0x4 - core index']
  #allocation1 [shape = 'u32[144,128]{1,0:T(1,128)}', space=vmem, size = 0x12000, scoped, tag = 'internal scratch']
  %s0 = inlined_call_operand.hbm [shape: bf16[128,32], index: 0, kind: input, shape index: {}]
  %s1 = inlined_call_operand.hbm [shape: bf16[32,34], index: 1, kind: input, shape index: {}]
  %s2 = inlined_call_operand.hbm [shape: bf16[2,32], index: 2, kind: input, shape index: {}]
  %s3 = inlined_call_operand.hbm [shape: bf16[128,32], index: 3, kind: output, shape index: {0}]
  %s4 = inlined_call_operand.hbm [shape: f32[128,2], index: 4, kind: output, shape index: {1}]
  %s5 = inlined_call_operand.hbm [shape: f32[2,128], index: 5, kind: output, shape index: {2}]
  %6 = xla_tuple %s3, %s4, %s5
  %s7 = sld [smem:[#allocation0]]
  $region50: #{gat_forward.6} parent=0
    _
  %s9 = ssub.s32 1, %s7
  %s10 = scalar_select 0, %s9, %s7
  $region1: #{gat_forward.6} parent=0
    #allocation2 [shape = 'u8[32768]{0}', space=vmem, size = 0x8000, scoped, tag = 'input window, operand 0, single buffered']
    #allocation3 [shape = 's32[1]{0}', space=sflag, size = 0x4, scoped, tag = 'scoped memory for gat_forward.6']
    #allocation4 [shape = 's32[1]{0}', space=sflag, size = 0x4, scoped, tag = 'scoped memory for gat_forward.6']
    #allocation5 [shape = 'u8[8192]{0}', space=vmem, size = 0x2000, scoped, tag = 'input window, operand 1, single buffered']
    #allocation6 [shape = 's32[1]{0}', space=sflag, size = 0x4, scoped, tag = 'scoped memory for gat_forward.6']
    #allocation7 [shape = 'u8[512]{0}', space=vmem, size = 0x400, scoped, tag = 'input window, operand 2, single buffered']
    #allocation8 [shape = 'u8[32768]{0}', space=vmem, size = 0x8000, scoped, tag = 'output window, operand 0, single buffered']
    #allocation9 [shape = 'u8[65536]{0}', space=vmem, size = 0x10000, scoped, tag = 'output window, operand 1, single buffered']
    #allocation10 [shape = 's32[1]{0}', space=sflag, size = 0x4, scoped, tag = 'scoped memory for gat_forward.6']
    #allocation11 [shape = 'u8[1024]{0}', space=vmem, size = 0x400, scoped, tag = 'output window, operand 2, single buffered']
    %11 = vsyncpa [#allocation3], 0
    %12 = vsyncpa [#allocation6], 0
    %13 = vsyncpa [#allocation4], 0
    %14 = vsyncpa [#allocation10], 0
    // Predicated region
    $region2: #{gat_forward.6} parent=1 // pred_check
      _
    $region3: #{gat_forward.6} parent=1 // pred_check_branch
      %16 = sbr.rel (0) target = $region5
    $region4: #{gat_forward.6} parent=1 // pred_region
      %s18 = ssub.s32 1024, 1024
      %19 = vsyncadd [#allocation3], %s18
      %s20 = sshll.u32 [#allocation2], 4
      %s21 = int_to_ptr.vmem [resolvable:$true] %s20
      %26 = dma.hbm_to_vmem [thread:$0]  %s0, 1024, %s21, [#allocation3], 64, 64, 4
    $region5: #{gat_forward.6} parent=1 // pred_fallthru
      _
    // Predicated region
    $region6: #{gat_forward.6} parent=1 // pred_check
      _
    $region7: #{gat_forward.6} parent=1 // pred_check_branch
      %28 = sbr.rel (0) target = $region9
    $region8: #{gat_forward.6} parent=1 // pred_region
      %s30 = ssub.s32 256, 256
      %31 = vsyncadd [#allocation6], %s30
      %s32 = sshll.u32 [#allocation5], 4
      %s33 = int_to_ptr.vmem [resolvable:$true] %s32
      %38 = dma.hbm_to_vmem [thread:$0]  %s1, 256, %s33, [#allocation6], 64, 64, 4
    $region9: #{gat_forward.6} parent=1 // pred_fallthru
      _
    // Predicated region
    $region10: #{gat_forward.6} parent=1 // pred_check
      _
    $region11: #{gat_forward.6} parent=1 // pred_check_branch
      %40 = sbr.rel (0) target = $region13
    $region12: #{gat_forward.6} parent=1 // pred_region
      %s42 = ssub.s32 16, 16
      %43 = vsyncadd [#allocation6], %s42
      %s45 = sshll.u32 [#allocation7], 4
      %s46 = int_to_ptr.vmem [resolvable:$true] %s45
      %48 = dma.hbm_to_vmem [thread:$0]  %s2, 16, %s46, [#allocation6]
    $region13: #{gat_forward.6} parent=1 // pred_fallthru
      _
    // Predicated region
    $region14: #{gat_forward.6} parent=1 // pred_check
      _
    $region15: #{gat_forward.6} parent=1 // pred_check_branch
      %50 = sbr.rel (0) target = $region17
    $region16: #{gat_forward.6} parent=1 // pred_region
      %51 = dma.done [#allocation3], 1024
    $region17: #{gat_forward.6} parent=1 // pred_fallthru
      _
    // Predicated region
    $region18: #{gat_forward.6} parent=1 // pred_check
      _
    $region19: #{gat_forward.6} parent=1 // pred_check_branch
      %53 = sbr.rel (0) target = $region21
    $region20: #{gat_forward.6} parent=1 // pred_region
      %54 = dma.done [#allocation6], 256
    $region21: #{gat_forward.6} parent=1 // pred_fallthru
      _
    // Predicated region
    $region22: #{gat_forward.6} parent=1 // pred_check
      _
    $region23: #{gat_forward.6} parent=1 // pred_check_branch
      %56 = sbr.rel (0) target = $region25
    $region24: #{gat_forward.6} parent=1 // pred_region
      %57 = dma.done [#allocation6], 16
    $region25: #{gat_forward.6} parent=1 // pred_fallthru
      _
    %v59 = vld [vmem:[#allocation2] sm:$0xf]
    %v60 = vld [vmem:[#allocation2 + $0x4] sm:$0xf]
    %v61 = vld [vmem:[#allocation2 + $0x8] sm:$0xf]
    %v62 = vld [vmem:[#allocation2 + $0xc] sm:$0xf]
    %v63 = vld [vmem:[#allocation2 + $0x10] sm:$0xf]
    %v64 = vld [vmem:[#allocation2 + $0x14] sm:$0xf]
    %v65 = vld [vmem:[#allocation2 + $0x18] sm:$0xf]
    %v66 = vld [vmem:[#allocation2 + $0x1c] sm:$0xf]
    %v67 = vld [vmem:[#allocation2 + $0x20] sm:$0xf]
    %v68 = vld [vmem:[#allocation2 + $0x24] sm:$0xf]
    %v69 = vld [vmem:[#allocation2 + $0x28] sm:$0xf]
    %v70 = vld [vmem:[#allocation2 + $0x2c] sm:$0xf]
    %v71 = vld [vmem:[#allocation2 + $0x30] sm:$0xf]
    %v72 = vld [vmem:[#allocation2 + $0x34] sm:$0xf]
    %v73 = vld [vmem:[#allocation2 + $0x38] sm:$0xf]
    %v74 = vld [vmem:[#allocation2 + $0x3c] sm:$0xf]
    %v75 = vld [vmem:[#allocation5] sm:$0xf]
    %v76 = vld [vmem:[#allocation5 + $0x4] sm:$0xf]
    %v77 = vld [vmem:[#allocation5 + $0x8] sm:$0xf]
    %v78 = vld [vmem:[#allocation5 + $0xc] sm:$0xf]
    %v95 = vunpack.c.l.b16 %v59
    %v96 = vunpack.c.l.b16 %v60
    %v97 = vunpack.c.l.b16 %v61
    %v98 = vunpack.c.l.b16 %v62
    %v99 = vunpack.c.l.b16 %v63
    %v100 = vunpack.c.l.b16 %v64
    %v101 = vunpack.c.l.b16 %v65
    %v102 = vunpack.c.l.b16 %v66
    %v103 = vunpack.c.l.b16 %v67
    %v104 = vunpack.c.l.b16 %v68
    %v105 = vunpack.c.l.b16 %v69
    %v106 = vunpack.c.l.b16 %v70
    %v107 = vunpack.c.l.b16 %v71
    %v108 = vunpack.c.l.b16 %v72
    %v109 = vunpack.c.l.b16 %v73
    %v110 = vunpack.c.l.b16 %v74
    %v111 = vpack.c.b16 %v96, %v95
    %v112 = vpack.c.b16 %v98, %v97
    %v113 = vpack.c.b16 %v100, %v99
    %v114 = vpack.c.b16 %v102, %v101
    %v115 = vpack.c.b16 %v104, %v103
    %v116 = vpack.c.b16 %v106, %v105
    %v117 = vpack.c.b16 %v108, %v107
    %v118 = vpack.c.b16 %v110, %v109
    %v123 = vunpack.c.l.b16 %v75
    %v124 = vunpack.c.l.b16 %v76
    %v125 = vunpack.c.l.b16 %v77
    %v126 = vunpack.c.l.b16 %v78
    %v127 = vpack.c.b16 %v124, %v123
    %v128 = vpack.c.b16 %v126, %v125
    %vm131 = vcmask 261120
    %v133 = vsel %vm131, %v111, 0
    %v136 = vsel %vm131, %v112, 0
    %v139 = vsel %vm131, %v113, 0
    %v142 = vsel %vm131, %v114, 0
    %v145 = vsel %vm131, %v115, 0
    %v148 = vsel %vm131, %v116, 0
    %v151 = vsel %vm131, %v117, 0
    %v154 = vsel %vm131, %v118, 0
    %156 = vmatprep.subr.bf16.mxu0 0
    %157 = vmatpush1.bf16.msra.mxu0 %v127
    %158 = vmatprep.subr.bf16.mxu0 0
    %159 = vmatpush1.bf16.msra.mxu0 %v128
    %160 = vmatprep.subr.bf16.mxu0 0
    %161 = vmatpush1.bf16.msra.mxu0 0
    %162 = vmatprep.subr.bf16.mxu0 0
    %163 = vmatpush1.bf16.msra.mxu0 0
    %164 = vmatprep.subr.bf16.mxu0 0
    %165 = vmatpush1.bf16.msra.mxu0 0
    %166 = vmatprep.subr.bf16.mxu0 0
    %167 = vmatpush1.bf16.msra.mxu0 0
    %168 = vmatprep.subr.bf16.mxu0 0
    %169 = vmatpush1.bf16.msra.mxu0 0
    %170 = vmatprep.subr.bf16.mxu0 0
    %171 = vmatpush1.bf16.msra.mxu0 0
    %172 = vmatprep.subr.bf16.mxu0 0
    %173 = vmatpush1.bf16.msra.mxu0 0
    %174 = vmatprep.subr.bf16.mxu0 0
    %175 = vmatpush1.bf16.msra.mxu0 0
    %176 = vmatprep.subr.bf16.mxu0 0
    %177 = vmatpush1.bf16.msra.mxu0 0
    %178 = vmatprep.subr.bf16.mxu0 0
    %179 = vmatpush1.bf16.msra.mxu0 0
    %180 = vmatprep.subr.bf16.mxu0 0
    %181 = vmatpush1.bf16.msra.mxu0 0
    %182 = vmatprep.subr.bf16.mxu0 0
    %183 = vmatpush1.bf16.msra.mxu0 0
    %184 = vmatprep.subr.bf16.mxu0 0
    %185 = vmatpush1.bf16.msra.mxu0 0
    %186 = vmatprep.subr.bf16.mxu0 0
    %187 = vmatpush1.bf16.msra.mxu0 0
    %188 = vmatprep.mubr.bf16.mxu0 0
    %189 = vmatmul.mubr.bf16.gmra.mrb[0].mxu0 %v133
    %v190 = vpop.f32.mrb[0].mxu0
    %v191 = vadd.f32 0.0, %v190
    %v192 = vpop.f32.mrb[0].mxu0
    %v193 = vpop.f32.mrb[0].mxu0
    %v194 = vadd.f32 0.0, %v193
    %v195 = vpop.f32.mrb[0].mxu0
    %196 = vmatprep.mubr.bf16.mxu0 0
    %197 = vmatmul.mubr.bf16.gmra.mrb[0].mxu0 %v136
    %v198 = vpop.f32.mrb[0].mxu0
    %v199 = vadd.f32 0.0, %v198
    %v200 = vpop.f32.mrb[0].mxu0
    %v201 = vpop.f32.mrb[0].mxu0
    %v202 = vadd.f32 0.0, %v201
    %v203 = vpop.f32.mrb[0].mxu0
    %204 = vmatprep.mubr.bf16.mxu0 0
    %205 = vmatmul.mubr.bf16.gmra.mrb[0].mxu0 %v139
    %v206 = vpop.f32.mrb[0].mxu0
    %v207 = vadd.f32 0.0, %v206
    %v208 = vpop.f32.mrb[0].mxu0
    %v209 = vpop.f32.mrb[0].mxu0
    %v210 = vadd.f32 0.0, %v209
    %v211 = vpop.f32.mrb[0].mxu0
    %212 = vmatprep.mubr.bf16.mxu0 0
    %213 = vmatmul.mubr.bf16.gmra.mrb[0].mxu0 %v142
    %v214 = vpop.f32.mrb[0].mxu0
    %v215 = vadd.f32 0.0, %v214
    %v216 = vpop.f32.mrb[0].mxu0
    %v217 = vpop.f32.mrb[0].mxu0
    %v218 = vadd.f32 0.0, %v217
    %v219 = vpop.f32.mrb[0].mxu0
    %220 = vmatprep.mubr.bf16.mxu0 0
    %221 = vmatmul.mubr.bf16.gmra.mrb[0].mxu0 %v145
    %v222 = vpop.f32.mrb[0].mxu0
    %v223 = vadd.f32 0.0, %v222
    %v224 = vpop.f32.mrb[0].mxu0
    %v225 = vpop.f32.mrb[0].mxu0
    %v226 = vadd.f32 0.0, %v225
    %v227 = vpop.f32.mrb[0].mxu0
    %228 = vmatprep.mubr.bf16.mxu0 0
    %229 = vmatmul.mubr.bf16.gmra.mrb[0].mxu0 %v148
    %v230 = vpop.f32.mrb[0].mxu0
    %v231 = vadd.f32 0.0, %v230
    %v232 = vpop.f32.mrb[0].mxu0
    %v233 = vpop.f32.mrb[0].mxu0
    %v234 = vadd.f32 0.0, %v233
    %v235 = vpop.f32.mrb[0].mxu0
    %236 = vmatprep.mubr.bf16.mxu0 0
    %237 = vmatmul.mubr.bf16.gmra.mrb[0].mxu0 %v151
    %v238 = vpop.f32.mrb[0].mxu0
    %v239 = vadd.f32 0.0, %v238
    %v240 = vpop.f32.mrb[0].mxu0
    %v241 = vpop.f32.mrb[0].mxu0
    %v242 = vadd.f32 0.0, %v241
    %v243 = vpop.f32.mrb[0].mxu0
    %244 = vmatprep.mubr.bf16.mxu0 0
    %245 = vmatmul.mubr.bf16.gmra.mrb[0].mxu0 %v154
    %v246 = vpop.f32.mrb[0].mxu0
    %v247 = vadd.f32 0.0, %v246
    %v248 = vpop.f32.mrb[0].mxu0
    %v249 = vpop.f32.mrb[0].mxu0
    %v250 = vadd.f32 0.0, %v249
    %v251 = vpop.f32.mrb[0].mxu0
    %252 = vdwg.mxu0
    %v253 = vpack.c.bf16 %v194, %v191
    %v254 = vpack.c.bf16 %v202, %v199
    %v255 = vpack.c.bf16 %v210, %v207
    %v256 = vpack.c.bf16 %v218, %v215
    %v257 = vpack.c.bf16 %v226, %v223
    %v258 = vpack.c.bf16 %v234, %v231
    %v259 = vpack.c.bf16 %v242, %v239
    %v260 = vpack.c.bf16 %v250, %v247
    %v269 = vunpack.c.l.b16 %v253
    %v270 = vunpack.c.h.b16 %v253
    %v271 = vunpack.c.l.b16 %v254
    %v272 = vunpack.c.h.b16 %v254
    %v273 = vunpack.c.l.b16 %v255
    %v274 = vunpack.c.h.b16 %v255
    %v275 = vunpack.c.l.b16 %v256
    %v276 = vunpack.c.h.b16 %v256
    %v277 = vunpack.c.l.b16 %v257
    %v278 = vunpack.c.h.b16 %v257
    %v279 = vunpack.c.l.b16 %v258
    %v280 = vunpack.c.h.b16 %v258
    %v281 = vunpack.c.l.b16 %v259
    %v282 = vunpack.c.h.b16 %v259
    %v283 = vunpack.c.l.b16 %v260
    %v284 = vunpack.c.h.b16 %v260
    %v285 = vpack.c.b16 %v269, %v269
    %v286 = vpack.c.b16 %v270, %v270
    %v287 = vpack.c.b16 %v271, %v271
    %v288 = vpack.c.b16 %v272, %v272
    %v289 = vpack.c.b16 %v273, %v273
    %v290 = vpack.c.b16 %v274, %v274
    %v291 = vpack.c.b16 %v275, %v275
    %v292 = vpack.c.b16 %v276, %v276
    %v293 = vpack.c.b16 %v277, %v277
    %v294 = vpack.c.b16 %v278, %v278
    %v295 = vpack.c.b16 %v279, %v279
    %v296 = vpack.c.b16 %v280, %v280
    %v297 = vpack.c.b16 %v281, %v281
    %v298 = vpack.c.b16 %v282, %v282
    %v299 = vpack.c.b16 %v283, %v283
    %v300 = vpack.c.b16 %v284, %v284
    %vm317 = vcmask 257024
    %318 = vst.msk [vmem:[#allocation8] sm:$0xf] %vm317, %v285
    %319 = vst.msk [vmem:[#allocation8 + $0x4] sm:$0xf] %vm317, %v286
    %320 = vst.msk [vmem:[#allocation8 + $0x8] sm:$0xf] %vm317, %v287
    %321 = vst.msk [vmem:[#allocation8 + $0xc] sm:$0xf] %vm317, %v288
    %322 = vst.msk [vmem:[#allocation8 + $0x10] sm:$0xf] %vm317, %v289
    %323 = vst.msk [vmem:[#allocation8 + $0x14] sm:$0xf] %vm317, %v290
    %324 = vst.msk [vmem:[#allocation8 + $0x18] sm:$0xf] %vm317, %v291
    %325 = vst.msk [vmem:[#allocation8 + $0x1c] sm:$0xf] %vm317, %v292
    %326 = vst.msk [vmem:[#allocation8 + $0x20] sm:$0xf] %vm317, %v293
    %327 = vst.msk [vmem:[#allocation8 + $0x24] sm:$0xf] %vm317, %v294
    %328 = vst.msk [vmem:[#allocation8 + $0x28] sm:$0xf] %vm317, %v295
    %329 = vst.msk [vmem:[#allocation8 + $0x2c] sm:$0xf] %vm317, %v296
    %330 = vst.msk [vmem:[#allocation8 + $0x30] sm:$0xf] %vm317, %v297
    %331 = vst.msk [vmem:[#allocation8 + $0x34] sm:$0xf] %vm317, %v298
    %332 = vst.msk [vmem:[#allocation8 + $0x38] sm:$0xf] %vm317, %v299
    %333 = vst.msk [vmem:[#allocation8 + $0x3c] sm:$0xf] %vm317, %v300
    %350 = vrot.lane.b32.xlu0 %v191, 96
    %v351 = vpop.permute.xlu0 %350
    %352 = vrot.lane.b32.xlu0 %v194, 96
    %v353 = vpop.permute.xlu0 %352
    %354 = vrot.lane.b32.xlu0 %v199, 96
    %v355 = vpop.permute.xlu0 %354
    %356 = vrot.lane.b32.xlu0 %v202, 96
    %v357 = vpop.permute.xlu0 %356
    %358 = vrot.lane.b32.xlu0 %v207, 96
    %v359 = vpop.permute.xlu0 %358
    %360 = vrot.lane.b32.xlu0 %v210, 96
    %v361 = vpop.permute.xlu0 %360
    %362 = vrot.lane.b32.xlu0 %v215, 96
    %v363 = vpop.permute.xlu0 %362
    %364 = vrot.lane.b32.xlu0 %v218, 96
    %v365 = vpop.permute.xlu0 %364
    %366 = vrot.lane.b32.xlu0 %v223, 96
    %v367 = vpop.permute.xlu0 %366
    %368 = vrot.lane.b32.xlu0 %v226, 96
    %v369 = vpop.permute.xlu0 %368
    %370 = vrot.lane.b32.xlu0 %v231, 96
    %v371 = vpop.permute.xlu0 %370
    %372 = vrot.lane.b32.xlu0 %v234, 96
    %v373 = vpop.permute.xlu0 %372
    %374 = vrot.lane.b32.xlu0 %v239, 96
    %v375 = vpop.permute.xlu0 %374
    %376 = vrot.lane.b32.xlu0 %v242, 96
    %v377 = vpop.permute.xlu0 %376
    %378 = vrot.lane.b32.xlu0 %v247, 96
    %v379 = vpop.permute.xlu0 %378
    %380 = vrot.lane.b32.xlu0 %v250, 96
    %v381 = vpop.permute.xlu0 %380
    %vm398 = vcmask 15360
    %399 = vst.msk [vmem:[#allocation9] sm:$0xff] %vm398, %v351
    %400 = vst.msk [vmem:[#allocation9 + $0x8] sm:$0xff] %vm398, %v353
    %401 = vst.msk [vmem:[#allocation9 + $0x10] sm:$0xff] %vm398, %v355
    %402 = vst.msk [vmem:[#allocation9 + $0x18] sm:$0xff] %vm398, %v357
    %403 = vst.msk [vmem:[#allocation9 + $0x20] sm:$0xff] %vm398, %v359
    %404 = vst.msk [vmem:[#allocation9 + $0x28] sm:$0xff] %vm398, %v361
    %405 = vst.msk [vmem:[#allocation9 + $0x30] sm:$0xff] %vm398, %v363
    %406 = vst.msk [vmem:[#allocation9 + $0x38] sm:$0xff] %vm398, %v365
    %407 = vst.msk [vmem:[#allocation9 + $0x40] sm:$0xff] %vm398, %v367
    %408 = vst.msk [vmem:[#allocation9 + $0x48] sm:$0xff] %vm398, %v369
    %409 = vst.msk [vmem:[#allocation9 + $0x50] sm:$0xff] %vm398, %v371
    %410 = vst.msk [vmem:[#allocation9 + $0x58] sm:$0xff] %vm398, %v373
    %411 = vst.msk [vmem:[#allocation9 + $0x60] sm:$0xff] %vm398, %v375
    %412 = vst.msk [vmem:[#allocation9 + $0x68] sm:$0xff] %vm398, %v377
    %413 = vst.msk [vmem:[#allocation9 + $0x70] sm:$0xff] %vm398, %v379
    %414 = vst.msk [vmem:[#allocation9 + $0x78] sm:$0xff] %vm398, %v381
    %v415 = vld [vmem:[#allocation7] sm:$0x1]
    %v417 = vsel %vm131, %v415, 0
    %419 = vmatprep.subr.bf16.mxu0 0
    %420 = vmatpush1.bf16.xpose.msra.mxu0 %v133
    %421 = vmatprep.subr.bf16.mxu0 0
    %422 = vmatpush1.bf16.xpose.msra.mxu0 %v136
    %423 = vmatprep.subr.bf16.mxu0 0
    %424 = vmatpush1.bf16.xpose.msra.mxu0 %v139
    %425 = vmatprep.subr.bf16.mxu0 0
    %426 = vmatpush1.bf16.xpose.msra.mxu0 %v142
    %427 = vmatprep.subr.bf16.mxu0 0
    %428 = vmatpush1.bf16.xpose.msra.mxu0 %v145
    %429 = vmatprep.subr.bf16.mxu0 0
    %430 = vmatpush1.bf16.xpose.msra.mxu0 %v148
    %431 = vmatprep.subr.bf16.mxu0 0
    %432 = vmatpush1.bf16.xpose.msra.mxu0 %v151
    %433 = vmatprep.subr.bf16.mxu0 0
    %434 = vmatpush1.bf16.xpose.msra.mxu0 %v154
    %435 = vmatprep.subr.bf16.mxu0 0
    %436 = vmatpush1.bf16.xpose.msra.mxu0 0
    %437 = vmatprep.subr.bf16.mxu0 0
    %438 = vmatpush1.bf16.xpose.msra.mxu0 0
    %439 = vmatprep.subr.bf16.mxu0 0
    %440 = vmatpush1.bf16.xpose.msra.mxu0 0
    %441 = vmatprep.subr.bf16.mxu0 0
    %442 = vmatpush1.bf16.xpose.msra.mxu0 0
    %443 = vmatprep.subr.bf16.mxu0 0
    %444 = vmatpush1.bf16.xpose.msra.mxu0 0
    %445 = vmatprep.subr.bf16.mxu0 0
    %446 = vmatpush1.bf16.xpose.msra.mxu0 0
    %447 = vmatprep.subr.bf16.mxu0 0
    %448 = vmatpush1.bf16.xpose.msra.mxu0 0
    %449 = vmatprep.subr.bf16.mxu0 0
    %450 = vmatpush1.bf16.xpose.msra.mxu0 0
    %451 = vmatprep.mubr.bf16.mxu0 0
    %452 = vmatmul.mubr.bf16.gmra.mrb[0].mxu0 %v417
    %v453 = vpop.f32.mrb[0].mxu0
    %v454 = vadd.f32 0.0, %v453
    %v455 = vpop.f32.mrb[0].mxu0
    %v456 = vpop.f32.mrb[0].mxu0
    %v457 = vpop.f32.mrb[0].mxu0
    %458 = vdwg.mxu0
    %459 = vst [vmem:[#allocation11] sm:$0x3] %v454
    // Predicated region
    $region26: #{gat_forward.6} parent=1 // pred_check
      _
    $region27: #{gat_forward.6} parent=1 // pred_check_branch
      %461 = sbr.rel (0) target = $region29
    $region28: #{gat_forward.6} parent=1 // pred_region
      %s463 = ssub.s32 1024, 1024
      %464 = vsyncadd [#allocation4], %s463
      %s465 = sshll.u32 [#allocation8], 4
      %s466 = int_to_ptr.vmem [resolvable:$true] %s465
      %471 = dma.vmem_to_hbm [thread:$0]  %s466, 1024, %s3, [#allocation4], 64, 64, 4
    $region29: #{gat_forward.6} parent=1 // pred_fallthru
      _
    // Predicated region
    $region30: #{gat_forward.6} parent=1 // pred_check
      _
    $region31: #{gat_forward.6} parent=1 // pred_check_branch
      %473 = sbr.rel (0) target = $region33
    $region32: #{gat_forward.6} parent=1 // pred_region
      %s475 = ssub.s32 2048, 2048
      %476 = vsyncadd [#allocation10], %s475
      %s477 = sshll.u32 [#allocation9], 4
      %s478 = int_to_ptr.vmem [resolvable:$true] %s477
      %483 = dma.vmem_to_hbm [thread:$0]  %s478, 2048, %s4, [#allocation10], 128, 128, 8
    $region33: #{gat_forward.6} parent=1 // pred_fallthru
      _
    // Predicated region
    $region34: #{gat_forward.6} parent=1 // pred_check
      _
    $region35: #{gat_forward.6} parent=1 // pred_check_branch
      %485 = sbr.rel (0) target = $region37
    $region36: #{gat_forward.6} parent=1 // pred_region
      %s487 = ssub.s32 32, 32
      %488 = vsyncadd [#allocation10], %s487
      %s490 = sshll.u32 [#allocation11], 4
      %s491 = int_to_ptr.vmem [resolvable:$true] %s490
      %493 = dma.vmem_to_hbm [thread:$0]  %s491, 32, %s5, [#allocation10]
    $region37: #{gat_forward.6} parent=1 // pred_fallthru
      _
    // Predicated region
    $region38: #{gat_forward.6} parent=1 // pred_check
      _
    $region39: #{gat_forward.6} parent=1 // pred_check_branch
      %495 = sbr.rel (0) target = $region41
    $region40: #{gat_forward.6} parent=1 // pred_region
      %496 = dma.done [#allocation4], 1024
    $region41: #{gat_forward.6} parent=1 // pred_fallthru
      _
    // Predicated region
    $region42: #{gat_forward.6} parent=1 // pred_check
      _
    $region43: #{gat_forward.6} parent=1 // pred_check_branch
      %498 = sbr.rel (0) target = $region45
    $region44: #{gat_forward.6} parent=1 // pred_region
      %499 = dma.done [#allocation10], 2048
    $region45: #{gat_forward.6} parent=1 // pred_fallthru
      _
    // Predicated region
    $region46: #{gat_forward.6} parent=1 // pred_check
      _
    $region47: #{gat_forward.6} parent=1 // pred_check_branch
      %501 = sbr.rel (0) target = $region49
    $region48: #{gat_forward.6} parent=1 // pred_region
      %502 = dma.done [#allocation10], 32
    $region49: #{gat_forward.6} parent=1 // pred_fallthru
      _
    %503 = vsyncpa [#allocation3], 1
    %504 = vsyncpa [#allocation6], 1
    %505 = vsyncpa [#allocation4], 1
    %506 = vsyncpa [#allocation10], 1

// kernel: gat_forward.4
$region0: #{gat_forward.4}
  #allocation0 [shape = 'u32[]', space=smem, size = 0x4, offset = 0x4, fixed_abs, tag = 'smem constant byte address 0x4 - core index']
  #allocation1 [shape = 'u32[144,128]{1,0:T(1,128)}', space=vmem, size = 0x12000, scoped, tag = 'internal scratch']
  %s0 = inlined_call_operand.hbm [shape: f32[128,8], index: 0, kind: input, shape index: {}]
  %s1 = inlined_call_operand.hbm [shape: bf16[8,34], index: 1, kind: input, shape index: {}]
  %s2 = inlined_call_operand.hbm [shape: bf16[2,8], index: 2, kind: input, shape index: {}]
  %s3 = inlined_call_operand.hbm [shape: bf16[128,32], index: 3, kind: output, shape index: {0}]
  %s4 = inlined_call_operand.hbm [shape: f32[128,2], index: 4, kind: output, shape index: {1}]
  %s5 = inlined_call_operand.hbm [shape: f32[2,128], index: 5, kind: output, shape index: {2}]
  %6 = xla_tuple %s3, %s4, %s5
  %s7 = sld [smem:[#allocation0]]
  $region50: #{gat_forward.4} parent=0
    _
  %s9 = ssub.s32 1, %s7
  %s10 = scalar_select 0, %s9, %s7
  $region1: #{gat_forward.4} parent=0
    #allocation2 [shape = 'u8[65536]{0}', space=vmem, size = 0x10000, scoped, tag = 'input window, operand 0, single buffered']
    #allocation3 [shape = 's32[1]{0}', space=sflag, size = 0x4, scoped, tag = 'scoped memory for gat_forward.4']
    #allocation4 [shape = 's32[1]{0}', space=sflag, size = 0x4, scoped, tag = 'scoped memory for gat_forward.4']
    #allocation5 [shape = 'u8[2048]{0}', space=vmem, size = 0x800, scoped, tag = 'input window, operand 1, single buffered']
    #allocation6 [shape = 's32[1]{0}', space=sflag, size = 0x4, scoped, tag = 'scoped memory for gat_forward.4']
    #allocation7 [shape = 'u8[512]{0}', space=vmem, size = 0x400, scoped, tag = 'input window, operand 2, single buffered']
    #allocation8 [shape = 'u8[32768]{0}', space=vmem, size = 0x8000, scoped, tag = 'output window, operand 0, single buffered']
    #allocation9 [shape = 'u8[65536]{0}', space=vmem, size = 0x10000, scoped, tag = 'output window, operand 1, single buffered']
    #allocation10 [shape = 's32[1]{0}', space=sflag, size = 0x4, scoped, tag = 'scoped memory for gat_forward.4']
    #allocation11 [shape = 'u8[1024]{0}', space=vmem, size = 0x400, scoped, tag = 'output window, operand 2, single buffered']
    %11 = vsyncpa [#allocation3], 0
    %12 = vsyncpa [#allocation6], 0
    %13 = vsyncpa [#allocation4], 0
    %14 = vsyncpa [#allocation10], 0
    // Predicated region
    $region2: #{gat_forward.4} parent=1 // pred_check
      _
    $region3: #{gat_forward.4} parent=1 // pred_check_branch
      %16 = sbr.rel (0) target = $region5
    $region4: #{gat_forward.4} parent=1 // pred_region
      %s18 = ssub.s32 2048, 2048
      %19 = vsyncadd [#allocation3], %s18
      %s20 = sshll.u32 [#allocation2], 4
      %s21 = int_to_ptr.vmem [resolvable:$true] %s20
      %26 = dma.hbm_to_vmem [thread:$0]  %s0, 2048, %s21, [#allocation3], 128, 128, 8
    $region5: #{gat_forward.4} parent=1 // pred_fallthru
      _
    // Predicated region
    $region6: #{gat_forward.4} parent=1 // pred_check
      _
    $region7: #{gat_forward.4} parent=1 // pred_check_branch
      %28 = sbr.rel (0) target = $region9
    $region8: #{gat_forward.4} parent=1 // pred_region
      %s30 = ssub.s32 64, 64
      %31 = vsyncadd [#allocation6], %s30
      %s33 = sshll.u32 [#allocation5], 4
      %s34 = int_to_ptr.vmem [resolvable:$true] %s33
      %36 = dma.hbm_to_vmem [thread:$0]  %s1, 64, %s34, [#allocation6]
    $region9: #{gat_forward.4} parent=1 // pred_fallthru
      _
    // Predicated region
    $region10: #{gat_forward.4} parent=1 // pred_check
      _
    $region11: #{gat_forward.4} parent=1 // pred_check_branch
      %38 = sbr.rel (0) target = $region13
    $region12: #{gat_forward.4} parent=1 // pred_region
      %s40 = ssub.s32 16, 16
      %41 = vsyncadd [#allocation6], %s40
      %s43 = sshll.u32 [#allocation7], 4
      %s44 = int_to_ptr.vmem [resolvable:$true] %s43
      %46 = dma.hbm_to_vmem [thread:$0]  %s2, 16, %s44, [#allocation6]
    $region13: #{gat_forward.4} parent=1 // pred_fallthru
      _
    // Predicated region
    $region14: #{gat_forward.4} parent=1 // pred_check
      _
    $region15: #{gat_forward.4} parent=1 // pred_check_branch
      %48 = sbr.rel (0) target = $region17
    $region16: #{gat_forward.4} parent=1 // pred_region
      %49 = dma.done [#allocation3], 2048
    $region17: #{gat_forward.4} parent=1 // pred_fallthru
      _
    // Predicated region
    $region18: #{gat_forward.4} parent=1 // pred_check
      _
    $region19: #{gat_forward.4} parent=1 // pred_check_branch
      %51 = sbr.rel (0) target = $region21
    $region20: #{gat_forward.4} parent=1 // pred_region
      %52 = dma.done [#allocation6], 64
    $region21: #{gat_forward.4} parent=1 // pred_fallthru
      _
    // Predicated region
    $region22: #{gat_forward.4} parent=1 // pred_check
      _
    $region23: #{gat_forward.4} parent=1 // pred_check_branch
      %54 = sbr.rel (0) target = $region25
    $region24: #{gat_forward.4} parent=1 // pred_region
      %55 = dma.done [#allocation6], 16
    $region25: #{gat_forward.4} parent=1 // pred_fallthru
      _
    %v57 = vld [vmem:[#allocation2] sm:$0xff]
    %v58 = vld [vmem:[#allocation2 + $0x8] sm:$0xff]
    %v59 = vld [vmem:[#allocation2 + $0x10] sm:$0xff]
    %v60 = vld [vmem:[#allocation2 + $0x18] sm:$0xff]
    %v61 = vld [vmem:[#allocation2 + $0x20] sm:$0xff]
    %v62 = vld [vmem:[#allocation2 + $0x28] sm:$0xff]
    %v63 = vld [vmem:[#allocation2 + $0x30] sm:$0xff]
    %v64 = vld [vmem:[#allocation2 + $0x38] sm:$0xff]
    %v65 = vld [vmem:[#allocation2 + $0x40] sm:$0xff]
    %v66 = vld [vmem:[#allocation2 + $0x48] sm:$0xff]
    %v67 = vld [vmem:[#allocation2 + $0x50] sm:$0xff]
    %v68 = vld [vmem:[#allocation2 + $0x58] sm:$0xff]
    %v69 = vld [vmem:[#allocation2 + $0x60] sm:$0xff]
    %v70 = vld [vmem:[#allocation2 + $0x68] sm:$0xff]
    %v71 = vld [vmem:[#allocation2 + $0x70] sm:$0xff]
    %v72 = vld [vmem:[#allocation2 + $0x78] sm:$0xff]
    %v73 = vpack.c.bf16 %v58, %v57
    %v74 = vpack.c.bf16 %v60, %v59
    %v75 = vpack.c.bf16 %v62, %v61
    %v76 = vpack.c.bf16 %v64, %v63
    %v77 = vpack.c.bf16 %v66, %v65
    %v78 = vpack.c.bf16 %v68, %v67
    %v79 = vpack.c.bf16 %v70, %v69
    %v80 = vpack.c.bf16 %v72, %v71
    %v81 = vld [vmem:[#allocation5] sm:$0xf]
    %vm82 = vcmask 64512
    %v84 = vsel %vm82, %v73, 0
    %v87 = vsel %vm82, %v74, 0
    %v90 = vsel %vm82, %v75, 0
    %v93 = vsel %vm82, %v76, 0
    %v96 = vsel %vm82, %v77, 0
    %v99 = vsel %vm82, %v78, 0
    %v102 = vsel %vm82, %v79, 0
    %v105 = vsel %vm82, %v80, 0
    %vm107 = vcmask 1043456
    %v109 = vsel %vm107, %v81, 0
    %111 = vmatprep.subr.bf16.mxu0 0
    %112 = vmatpush1.bf16.msra.mxu0 %v109
    %113 = vmatprep.subr.bf16.mxu0 0
    %114 = vmatpush1.bf16.msra.mxu0 0
    %115 = vmatprep.subr.bf16.mxu0 0
    %116 = vmatpush1.bf16.msra.mxu0 0
    %117 = vmatprep.subr.bf16.mxu0 0
    %118 = vmatpush1.bf16.msra.mxu0 0
    %119 = vmatprep.subr.bf16.mxu0 0
    %120 = vmatpush1.bf16.msra.mxu0 0
    %121 = vmatprep.subr.bf16.mxu0 0
    %122 = vmatpush1.bf16.msra.mxu0 0
    %123 = vmatprep.subr.bf16.mxu0 0
    %124 = vmatpush1.bf16.msra.mxu0 0
    %125 = vmatprep.subr.bf16.mxu0 0
    %126 = vmatpush1.bf16.msra.mxu0 0
    %127 = vmatprep.subr.bf16.mxu0 0
    %128 = vmatpush1.bf16.msra.mxu0 0
    %129 = vmatprep.subr.bf16.mxu0 0
    %130 = vmatpush1.bf16.msra.mxu0 0
    %131 = vmatprep.subr.bf16.mxu0 0
    %132 = vmatpush1.bf16.msra.mxu0 0
    %133 = vmatprep.subr.bf16.mxu0 0
    %134 = vmatpush1.bf16.msra.mxu0 0
    %135 = vmatprep.subr.bf16.mxu0 0
    %136 = vmatpush1.bf16.msra.mxu0 0
    %137 = vmatprep.subr.bf16.mxu0 0
    %138 = vmatpush1.bf16.msra.mxu0 0
    %139 = vmatprep.subr.bf16.mxu0 0
    %140 = vmatpush1.bf16.msra.mxu0 0
    %141 = vmatprep.subr.bf16.mxu0 0
    %142 = vmatpush1.bf16.msra.mxu0 0
    %143 = vmatprep.mubr.bf16.mxu0 0
    %144 = vmatmul.mubr.bf16.gmra.mrb[0].mxu0 %v84
    %v145 = vpop.f32.mrb[0].mxu0
    %v146 = vadd.f32 0.0, %v145
    %v147 = vpop.f32.mrb[0].mxu0
    %v148 = vpop.f32.mrb[0].mxu0
    %v149 = vadd.f32 0.0, %v148
    %v150 = vpop.f32.mrb[0].mxu0
    %151 = vmatprep.mubr.bf16.mxu0 0
    %152 = vmatmul.mubr.bf16.gmra.mrb[0].mxu0 %v87
    %v153 = vpop.f32.mrb[0].mxu0
    %v154 = vadd.f32 0.0, %v153
    %v155 = vpop.f32.mrb[0].mxu0
    %v156 = vpop.f32.mrb[0].mxu0
    %v157 = vadd.f32 0.0, %v156
    %v158 = vpop.f32.mrb[0].mxu0
    %159 = vmatprep.mubr.bf16.mxu0 0
    %160 = vmatmul.mubr.bf16.gmra.mrb[0].mxu0 %v90
    %v161 = vpop.f32.mrb[0].mxu0
    %v162 = vadd.f32 0.0, %v161
    %v163 = vpop.f32.mrb[0].mxu0
    %v164 = vpop.f32.mrb[0].mxu0
    %v165 = vadd.f32 0.0, %v164
    %v166 = vpop.f32.mrb[0].mxu0
    %167 = vmatprep.mubr.bf16.mxu0 0
    %168 = vmatmul.mubr.bf16.gmra.mrb[0].mxu0 %v93
    %v169 = vpop.f32.mrb[0].mxu0
    %v170 = vadd.f32 0.0, %v169
    %v171 = vpop.f32.mrb[0].mxu0
    %v172 = vpop.f32.mrb[0].mxu0
    %v173 = vadd.f32 0.0, %v172
    %v174 = vpop.f32.mrb[0].mxu0
    %175 = vmatprep.mubr.bf16.mxu0 0
    %176 = vmatmul.mubr.bf16.gmra.mrb[0].mxu0 %v96
    %v177 = vpop.f32.mrb[0].mxu0
    %v178 = vadd.f32 0.0, %v177
    %v179 = vpop.f32.mrb[0].mxu0
    %v180 = vpop.f32.mrb[0].mxu0
    %v181 = vadd.f32 0.0, %v180
    %v182 = vpop.f32.mrb[0].mxu0
    %183 = vmatprep.mubr.bf16.mxu0 0
    %184 = vmatmul.mubr.bf16.gmra.mrb[0].mxu0 %v99
    %v185 = vpop.f32.mrb[0].mxu0
    %v186 = vadd.f32 0.0, %v185
    %v187 = vpop.f32.mrb[0].mxu0
    %v188 = vpop.f32.mrb[0].mxu0
    %v189 = vadd.f32 0.0, %v188
    %v190 = vpop.f32.mrb[0].mxu0
    %191 = vmatprep.mubr.bf16.mxu0 0
    %192 = vmatmul.mubr.bf16.gmra.mrb[0].mxu0 %v102
    %v193 = vpop.f32.mrb[0].mxu0
    %v194 = vadd.f32 0.0, %v193
    %v195 = vpop.f32.mrb[0].mxu0
    %v196 = vpop.f32.mrb[0].mxu0
    %v197 = vadd.f32 0.0, %v196
    %v198 = vpop.f32.mrb[0].mxu0
    %199 = vmatprep.mubr.bf16.mxu0 0
    %200 = vmatmul.mubr.bf16.gmra.mrb[0].mxu0 %v105
    %v201 = vpop.f32.mrb[0].mxu0
    %v202 = vadd.f32 0.0, %v201
    %v203 = vpop.f32.mrb[0].mxu0
    %v204 = vpop.f32.mrb[0].mxu0
    %v205 = vadd.f32 0.0, %v204
    %v206 = vpop.f32.mrb[0].mxu0
    %207 = vdwg.mxu0
    %v208 = vpack.c.bf16 %v149, %v146
    %v209 = vpack.c.bf16 %v157, %v154
    %v210 = vpack.c.bf16 %v165, %v162
    %v211 = vpack.c.bf16 %v173, %v170
    %v212 = vpack.c.bf16 %v181, %v178
    %v213 = vpack.c.bf16 %v189, %v186
    %v214 = vpack.c.bf16 %v197, %v194
    %v215 = vpack.c.bf16 %v205, %v202
    %v224 = vunpack.c.l.b16 %v208
    %v225 = vunpack.c.h.b16 %v208
    %v226 = vunpack.c.l.b16 %v209
    %v227 = vunpack.c.h.b16 %v209
    %v228 = vunpack.c.l.b16 %v210
    %v229 = vunpack.c.h.b16 %v210
    %v230 = vunpack.c.l.b16 %v211
    %v231 = vunpack.c.h.b16 %v211
    %v232 = vunpack.c.l.b16 %v212
    %v233 = vunpack.c.h.b16 %v212
    %v234 = vunpack.c.l.b16 %v213
    %v235 = vunpack.c.h.b16 %v213
    %v236 = vunpack.c.l.b16 %v214
    %v237 = vunpack.c.h.b16 %v214
    %v238 = vunpack.c.l.b16 %v215
    %v239 = vunpack.c.h.b16 %v215
    %v240 = vpack.c.b16 %v224, %v224
    %v241 = vpack.c.b16 %v225, %v225
    %v242 = vpack.c.b16 %v226, %v226
    %v243 = vpack.c.b16 %v227, %v227
    %v244 = vpack.c.b16 %v228, %v228
    %v245 = vpack.c.b16 %v229, %v229
    %v246 = vpack.c.b16 %v230, %v230
    %v247 = vpack.c.b16 %v231, %v231
    %v248 = vpack.c.b16 %v232, %v232
    %v249 = vpack.c.b16 %v233, %v233
    %v250 = vpack.c.b16 %v234, %v234
    %v251 = vpack.c.b16 %v235, %v235
    %v252 = vpack.c.b16 %v236, %v236
    %v253 = vpack.c.b16 %v237, %v237
    %v254 = vpack.c.b16 %v238, %v238
    %v255 = vpack.c.b16 %v239, %v239
    %vm272 = vcmask 257024
    %273 = vst.msk [vmem:[#allocation8] sm:$0xf] %vm272, %v240
    %274 = vst.msk [vmem:[#allocation8 + $0x4] sm:$0xf] %vm272, %v241
    %275 = vst.msk [vmem:[#allocation8 + $0x8] sm:$0xf] %vm272, %v242
    %276 = vst.msk [vmem:[#allocation8 + $0xc] sm:$0xf] %vm272, %v243
    %277 = vst.msk [vmem:[#allocation8 + $0x10] sm:$0xf] %vm272, %v244
    %278 = vst.msk [vmem:[#allocation8 + $0x14] sm:$0xf] %vm272, %v245
    %279 = vst.msk [vmem:[#allocation8 + $0x18] sm:$0xf] %vm272, %v246
    %280 = vst.msk [vmem:[#allocation8 + $0x1c] sm:$0xf] %vm272, %v247
    %281 = vst.msk [vmem:[#allocation8 + $0x20] sm:$0xf] %vm272, %v248
    %282 = vst.msk [vmem:[#allocation8 + $0x24] sm:$0xf] %vm272, %v249
    %283 = vst.msk [vmem:[#allocation8 + $0x28] sm:$0xf] %vm272, %v250
    %284 = vst.msk [vmem:[#allocation8 + $0x2c] sm:$0xf] %vm272, %v251
    %285 = vst.msk [vmem:[#allocation8 + $0x30] sm:$0xf] %vm272, %v252
    %286 = vst.msk [vmem:[#allocation8 + $0x34] sm:$0xf] %vm272, %v253
    %287 = vst.msk [vmem:[#allocation8 + $0x38] sm:$0xf] %vm272, %v254
    %288 = vst.msk [vmem:[#allocation8 + $0x3c] sm:$0xf] %vm272, %v255
    %305 = vrot.lane.b32.xlu0 %v146, 96
    %v306 = vpop.permute.xlu0 %305
    %307 = vrot.lane.b32.xlu0 %v149, 96
    %v308 = vpop.permute.xlu0 %307
    %309 = vrot.lane.b32.xlu0 %v154, 96
    %v310 = vpop.permute.xlu0 %309
    %311 = vrot.lane.b32.xlu0 %v157, 96
    %v312 = vpop.permute.xlu0 %311
    %313 = vrot.lane.b32.xlu0 %v162, 96
    %v314 = vpop.permute.xlu0 %313
    %315 = vrot.lane.b32.xlu0 %v165, 96
    %v316 = vpop.permute.xlu0 %315
    %317 = vrot.lane.b32.xlu0 %v170, 96
    %v318 = vpop.permute.xlu0 %317
    %319 = vrot.lane.b32.xlu0 %v173, 96
    %v320 = vpop.permute.xlu0 %319
    %321 = vrot.lane.b32.xlu0 %v178, 96
    %v322 = vpop.permute.xlu0 %321
    %323 = vrot.lane.b32.xlu0 %v181, 96
    %v324 = vpop.permute.xlu0 %323
    %325 = vrot.lane.b32.xlu0 %v186, 96
    %v326 = vpop.permute.xlu0 %325
    %327 = vrot.lane.b32.xlu0 %v189, 96
    %v328 = vpop.permute.xlu0 %327
    %329 = vrot.lane.b32.xlu0 %v194, 96
    %v330 = vpop.permute.xlu0 %329
    %331 = vrot.lane.b32.xlu0 %v197, 96
    %v332 = vpop.permute.xlu0 %331
    %333 = vrot.lane.b32.xlu0 %v202, 96
    %v334 = vpop.permute.xlu0 %333
    %335 = vrot.lane.b32.xlu0 %v205, 96
    %v336 = vpop.permute.xlu0 %335
    %vm353 = vcmask 15360
    %354 = vst.msk [vmem:[#allocation9] sm:$0xff] %vm353, %v306
    %355 = vst.msk [vmem:[#allocation9 + $0x8] sm:$0xff] %vm353, %v308
    %356 = vst.msk [vmem:[#allocation9 + $0x10] sm:$0xff] %vm353, %v310
    %357 = vst.msk [vmem:[#allocation9 + $0x18] sm:$0xff] %vm353, %v312
    %358 = vst.msk [vmem:[#allocation9 + $0x20] sm:$0xff] %vm353, %v314
    %359 = vst.msk [vmem:[#allocation9 + $0x28] sm:$0xff] %vm353, %v316
    %360 = vst.msk [vmem:[#allocation9 + $0x30] sm:$0xff] %vm353, %v318
    %361 = vst.msk [vmem:[#allocation9 + $0x38] sm:$0xff] %vm353, %v320
    %362 = vst.msk [vmem:[#allocation9 + $0x40] sm:$0xff] %vm353, %v322
    %363 = vst.msk [vmem:[#allocation9 + $0x48] sm:$0xff] %vm353, %v324
    %364 = vst.msk [vmem:[#allocation9 + $0x50] sm:$0xff] %vm353, %v326
    %365 = vst.msk [vmem:[#allocation9 + $0x58] sm:$0xff] %vm353, %v328
    %366 = vst.msk [vmem:[#allocation9 + $0x60] sm:$0xff] %vm353, %v330
    %367 = vst.msk [vmem:[#allocation9 + $0x68] sm:$0xff] %vm353, %v332
    %368 = vst.msk [vmem:[#allocation9 + $0x70] sm:$0xff] %vm353, %v334
    %369 = vst.msk [vmem:[#allocation9 + $0x78] sm:$0xff] %vm353, %v336
    %v370 = vld [vmem:[#allocation7] sm:$0x1]
    %v372 = vsel %vm82, %v370, 0
    %374 = vmatprep.subr.bf16.mxu0 0
    %375 = vmatpush1.bf16.xpose.msra.mxu0 %v84
    %376 = vmatprep.subr.bf16.mxu0 0
    %377 = vmatpush1.bf16.xpose.msra.mxu0 %v87
    %378 = vmatprep.subr.bf16.mxu0 0
    %379 = vmatpush1.bf16.xpose.msra.mxu0 %v90
    %380 = vmatprep.subr.bf16.mxu0 0
    %381 = vmatpush1.bf16.xpose.msra.mxu0 %v93
    %382 = vmatprep.subr.bf16.mxu0 0
    %383 = vmatpush1.bf16.xpose.msra.mxu0 %v96
    %384 = vmatprep.subr.bf16.mxu0 0
    %385 = vmatpush1.bf16.xpose.msra.mxu0 %v99
    %386 = vmatprep.subr.bf16.mxu0 0
    %387 = vmatpush1.bf16.xpose.msra.mxu0 %v102
    %388 = vmatprep.subr.bf16.mxu0 0
    %389 = vmatpush1.bf16.xpose.msra.mxu0 %v105
    %390 = vmatprep.subr.bf16.mxu0 0
    %391 = vmatpush1.bf16.xpose.msra.mxu0 0
    %392 = vmatprep.subr.bf16.mxu0 0
    %393 = vmatpush1.bf16.xpose.msra.mxu0 0
    %394 = vmatprep.subr.bf16.mxu0 0
    %395 = vmatpush1.bf16.xpose.msra.mxu0 0
    %396 = vmatprep.subr.bf16.mxu0 0
    %397 = vmatpush1.bf16.xpose.msra.mxu0 0
    %398 = vmatprep.subr.bf16.mxu0 0
    %399 = vmatpush1.bf16.xpose.msra.mxu0 0
    %400 = vmatprep.subr.bf16.mxu0 0
    %401 = vmatpush1.bf16.xpose.msra.mxu0 0
    %402 = vmatprep.subr.bf16.mxu0 0
    %403 = vmatpush1.bf16.xpose.msra.mxu0 0
    %404 = vmatprep.subr.bf16.mxu0 0
    %405 = vmatpush1.bf16.xpose.msra.mxu0 0
    %406 = vmatprep.mubr.bf16.mxu0 0
    %407 = vmatmul.mubr.bf16.gmra.mrb[0].mxu0 %v372
    %v408 = vpop.f32.mrb[0].mxu0
    %v409 = vadd.f32 0.0, %v408
    %v410 = vpop.f32.mrb[0].mxu0
    %v411 = vpop.f32.mrb[0].mxu0
    %v412 = vpop.f32.mrb[0].mxu0
    %413 = vdwg.mxu0
    %414 = vst [vmem:[#allocation11] sm:$0x3] %v409
    // Predicated region
    $region26: #{gat_forward.4} parent=1 // pred_check
      _
    $region27: #{gat_forward.4} parent=1 // pred_check_branch
      %416 = sbr.rel (0) target = $region29
    $region28: #{gat_forward.4} parent=1 // pred_region
      %s418 = ssub.s32 1024, 1024
      %419 = vsyncadd [#allocation4], %s418
      %s420 = sshll.u32 [#allocation8], 4
      %s421 = int_to_ptr.vmem [resolvable:$true] %s420
      %426 = dma.vmem_to_hbm [thread:$0]  %s421, 1024, %s3, [#allocation4], 64, 64, 4
    $region29: #{gat_forward.4} parent=1 // pred_fallthru
      _
    // Predicated region
    $region30: #{gat_forward.4} parent=1 // pred_check
      _
    $region31: #{gat_forward.4} parent=1 // pred_check_branch
      %428 = sbr.rel (0) target = $region33
    $region32: #{gat_forward.4} parent=1 // pred_region
      %s430 = ssub.s32 2048, 2048
      %431 = vsyncadd [#allocation10], %s430
      %s432 = sshll.u32 [#allocation9], 4
      %s433 = int_to_ptr.vmem [resolvable:$true] %s432
      %438 = dma.vmem_to_hbm [thread:$0]  %s433, 2048, %s4, [#allocation10], 128, 128, 8
    $region33: #{gat_forward.4} parent=1 // pred_fallthru
      _
    // Predicated region
    $region34: #{gat_forward.4} parent=1 // pred_check
      _
    $region35: #{gat_forward.4} parent=1 // pred_check_branch
      %440 = sbr.rel (0) target = $region37
    $region36: #{gat_forward.4} parent=1 // pred_region
      %s442 = ssub.s32 32, 32
      %443 = vsyncadd [#allocation10], %s442
      %s445 = sshll.u32 [#allocation11], 4
      %s446 = int_to_ptr.vmem [resolvable:$true] %s445
      %448 = dma.vmem_to_hbm [thread:$0]  %s446, 32, %s5, [#allocation10]
    $region37: #{gat_forward.4} parent=1 // pred_fallthru
      _
    // Predicated region
    $region38: #{gat_forward.4} parent=1 // pred_check
      _
    $region39: #{gat_forward.4} parent=1 // pred_check_branch
      %450 = sbr.rel (0) target = $region41
    $region40: #{gat_forward.4} parent=1 // pred_region
      %451 = dma.done [#allocation4], 1024
    $region41: #{gat_forward.4} parent=1 // pred_fallthru
      _
    // Predicated region
    $region42: #{gat_forward.4} parent=1 // pred_check
      _
    $region43: #{gat_forward.4} parent=1 // pred_check_branch
      %453 = sbr.rel (0) target = $region45
    $region44: #{gat_forward.4} parent=1 // pred_region
      %454 = dma.done [#allocation10], 2048
    $region45: #{gat_forward.4} parent=1 // pred_fallthru
      _
    // Predicated region
    $region46: #{gat_forward.4} parent=1 // pred_check
      _
    $region47: #{gat_forward.4} parent=1 // pred_check_branch
      %456 = sbr.rel (0) target = $region49
    $region48: #{gat_forward.4} parent=1 // pred_region
      %457 = dma.done [#allocation10], 32
    $region49: #{gat_forward.4} parent=1 // pred_fallthru
      _
    %458 = vsyncpa [#allocation3], 1
    %459 = vsyncpa [#allocation6], 1
    %460 = vsyncpa [#allocation4], 1
    %461 = vsyncpa [#allocation10], 1

// kernel: gat_forward.5
$region0: #{gat_forward.5}
  #allocation0 [shape = 'u32[]', space=smem, size = 0x4, offset = 0x4, fixed_abs, tag = 'smem constant byte address 0x4 - core index']
  #allocation1 [shape = 'u32[144,128]{1,0:T(1,128)}', space=vmem, size = 0x12000, scoped, tag = 'internal scratch']
  #allocation2 [shape = 'f32[2,128,1]{2,1,0:T(8,128)}', space=vmem, size = 0x20000, scoped, tag = 'scratch operand']
  #allocation3 [shape = 'f32[2,128,1]{2,1,0:T(8,128)}', space=vmem, size = 0x20000, scoped, tag = 'scratch operand']
  #allocation4 [shape = 'f32[2,128,16]{2,1,0:T(8,128)}', space=vmem, size = 0x20000, scoped, tag = 'scratch operand']
  #allocation5 [shape = 's32[1]{0}', space=sflag, size = 0x4, scoped, tag = 'scoped memory for gat_forward.5']
  #allocation6 [shape = 's32[1]{0:T(128)S(6)}', space=smem, size = 0x200, scoped, tag = 'prefetched SMEM operand 0']
  #allocation7 [shape = 's32[1]{0:T(128)S(6)}', space=smem, size = 0x200, scoped, tag = 'prefetched SMEM operand 1']
  %s0 = inlined_call_operand.<no memory space> [shape: s32[1], index: 0, kind: input, shape index: {}]
  %s1 = inlined_call_operand.<no memory space> [shape: s32[1], index: 1, kind: input, shape index: {}]
  %s2 = inlined_call_operand.hbm [shape: s8[128,128], index: 2, kind: input, shape index: {}]
  %s3 = inlined_call_operand.hbm [shape: bf16[128,32], index: 3, kind: input, shape index: {}]
  %s4 = inlined_call_operand.hbm [shape: f32[128,2], index: 4, kind: input, shape index: {}]
  %s5 = inlined_call_operand.hbm [shape: f32[2,128], index: 5, kind: input, shape index: {}]
  %s6 = inlined_call_operand.hbm [shape: f32[1,32], index: 6, kind: input, shape index: {}]
  %s7 = inlined_call_operand.hbm [shape: bf16[128,32], index: 7, kind: output, shape index: {}]
  %s8 = sld [smem:[#allocation0]]
  $region62: #{gat_forward.5} parent=0
    _
  %s10 = ssub.s32 1, %s8
  %s11 = scalar_select 0, %s10, %s8
  %12 = sst [smem:[#allocation6]] %s0
  %13 = sst [smem:[#allocation7]] %s1
  $region1: #{gat_forward.5} parent=0
    #allocation8 [shape = 'u8[16384]{0}', space=vmem, size = 0x4000, scoped, tag = 'input window, operand 2, single buffered']
    #allocation9 [shape = 's32[1]{0}', space=sflag, size = 0x4, scoped, tag = 'scoped memory for gat_forward.5']
    #allocation10 [shape = 's32[1]{0}', space=sflag, size = 0x4, scoped, tag = 'scoped memory for gat_forward.5']
    #allocation11 [shape = 'u8[32768]{0}', space=vmem, size = 0x8000, scoped, tag = 'input window, operand 3, single buffered']
    #allocation12 [shape = 's32[1]{0}', space=sflag, size = 0x4, scoped, tag = 'scoped memory for gat_forward.5']
    #allocation13 [shape = 'u8[65536]{0}', space=vmem, size = 0x10000, scoped, tag = 'input window, operand 4, single buffered']
    #allocation14 [shape = 'u8[1024]{0}', space=vmem, size = 0x400, scoped, tag = 'input window, operand 5, single buffered']
    #allocation15 [shape = 's32[1]{0}', space=sflag, size = 0x4, scoped, tag = 'scoped memory for gat_forward.5']
    #allocation16 [shape = 'u8[512]{0}', space=vmem, size = 0x400, scoped, tag = 'input window, operand 6, single buffered']
    #allocation17 [shape = 'u8[32768]{0}', space=vmem, size = 0x8000, scoped, tag = 'output window, operand 0, single buffered']
    %14 = vsyncpa [#allocation9], 0
    %15 = vsyncpa [#allocation12], 0
    %16 = vsyncpa [#allocation15], 0
    %17 = vsyncpa [#allocation10], 0
    // Predicated region
    $region2: #{gat_forward.5} parent=1 // pred_check
      _
    $region3: #{gat_forward.5} parent=1 // pred_check_branch
      %19 = sbr.rel (0) target = $region5
    $region4: #{gat_forward.5} parent=1 // pred_region
      %s20 = sadd.s32 0, 0
      %s21 = sld [smem:[#allocation6 + %s20]]
      %s23 = ssub.s32 512, 512
      %24 = vsyncadd [#allocation9], %s23
      %s25 = smul.addr %s21, 128
      %s26 = scalar_lea.hbm %s2, %s25
      %s27 = sshll.u32 [#allocation8], 4
      %s28 = int_to_ptr.vmem [resolvable:$true] %s27
      %33 = dma.hbm_to_vmem [thread:$0]  %s26, 512, %s28, [#allocation9], 128, 128, 8
    $region5: #{gat_forward.5} parent=1 // pred_fallthru
      _
    // Predicated region
    $region6: #{gat_forward.5} parent=1 // pred_check
      _
    $region7: #{gat_forward.5} parent=1 // pred_check_branch
      %35 = sbr.rel (0) target = $region9
    $region8: #{gat_forward.5} parent=1 // pred_region
      %s36 = sadd.s32 0, 0
      %s37 = sld [smem:[#allocation6 + %s36]]
      %s38 = smul.u32 16, %s37
      %s40 = ssub.s32 1024, 1024
      %41 = vsyncadd [#allocation12], %s40
      %s42 = smul.addr %s38, 64
      %s43 = scalar_lea.hbm %s3, %s42
      %s44 = sshll.u32 [#allocation11], 4
      %s45 = int_to_ptr.vmem [resolvable:$true] %s44
      %50 = dma.hbm_to_vmem [thread:$0]  %s43, 1024, %s45, [#allocation12], 64, 64, 4
    $region9: #{gat_forward.5} parent=1 // pred_fallthru
      _
    // Predicated region
    $region10: #{gat_forward.5} parent=1 // pred_check
      _
    $region11: #{gat_forward.5} parent=1 // pred_check_branch
      %52 = sbr.rel (0) target = $region13
    $region12: #{gat_forward.5} parent=1 // pred_region
      %s54 = ssub.s32 2048, 2048
      %55 = vsyncadd [#allocation12], %s54
      %s56 = sshll.u32 [#allocation13], 4
      %s57 = int_to_ptr.vmem [resolvable:$true] %s56
      %62 = dma.hbm_to_vmem [thread:$0]  %s4, 2048, %s57, [#allocation12], 128, 128, 8
    $region13: #{gat_forward.5} parent=1 // pred_fallthru
      _
    // Predicated region
    $region14: #{gat_forward.5} parent=1 // pred_check
      _
    $region15: #{gat_forward.5} parent=1 // pred_check_branch
      %64 = sbr.rel (0) target = $region17
    $region16: #{gat_forward.5} parent=1 // pred_region
      %s65 = sadd.s32 0, 0
      %s66 = sld [smem:[#allocation6 + %s65]]
      %s68 = ssub.s32 32, 32
      %69 = vsyncadd [#allocation15], %s68
      %s70 = smul.addr %s66, 32
      %s71 = scalar_lea.hbm %s5, %s70
      %s73 = sshll.u32 [#allocation14], 4
      %s74 = int_to_ptr.vmem [resolvable:$true] %s73
      %76 = dma.hbm_to_vmem [thread:$0]  %s71, 32, %s74, [#allocation15]
    $region17: #{gat_forward.5} parent=1 // pred_fallthru
      _
    // Predicated region
    $region18: #{gat_forward.5} parent=1 // pred_check
      _
    $region19: #{gat_forward.5} parent=1 // pred_check_branch
      %78 = sbr.rel (0) target = $region21
    $region20: #{gat_forward.5} parent=1 // pred_region
      %s80 = ssub.s32 16, 16
      %81 = vsyncadd [#allocation15], %s80
      %s83 = sshll.u32 [#allocation16], 4
      %s84 = int_to_ptr.vmem [resolvable:$true] %s83
      %86 = dma.hbm_to_vmem [thread:$0]  %s6, 16, %s84, [#allocation15]
    $region21: #{gat_forward.5} parent=1 // pred_fallthru
      _
    // Predicated region
    $region22: #{gat_forward.5} parent=1 // pred_check
      _
    $region23: #{gat_forward.5} parent=1 // pred_check_branch
      %88 = sbr.rel (0) target = $region25
    $region24: #{gat_forward.5} parent=1 // pred_region
      %89 = dma.done [#allocation9], 512
    $region25: #{gat_forward.5} parent=1 // pred_fallthru
      _
    // Predicated region
    $region26: #{gat_forward.5} parent=1 // pred_check
      _
    $region27: #{gat_forward.5} parent=1 // pred_check_branch
      %91 = sbr.rel (0) target = $region29
    $region28: #{gat_forward.5} parent=1 // pred_region
      %92 = dma.done [#allocation12], 1024
    $region29: #{gat_forward.5} parent=1 // pred_fallthru
      _
    // Predicated region
    $region30: #{gat_forward.5} parent=1 // pred_check
      _
    $region31: #{gat_forward.5} parent=1 // pred_check_branch
      %94 = sbr.rel (0) target = $region33
    $region32: #{gat_forward.5} parent=1 // pred_region
      %95 = dma.done [#allocation12], 2048
    $region33: #{gat_forward.5} parent=1 // pred_fallthru
      _
    // Predicated region
    $region34: #{gat_forward.5} parent=1 // pred_check
      _
    $region35: #{gat_forward.5} parent=1 // pred_check_branch
      %97 = sbr.rel (0) target = $region37
    $region36: #{gat_forward.5} parent=1 // pred_region
      %98 = dma.done [#allocation15], 32
    $region37: #{gat_forward.5} parent=1 // pred_fallthru
      _
    // Predicated region
    $region38: #{gat_forward.5} parent=1 // pred_check
      _
    $region39: #{gat_forward.5} parent=1 // pred_check_branch
      %100 = sbr.rel (0) target = $region41
    $region40: #{gat_forward.5} parent=1 // pred_region
      %101 = dma.done [#allocation15], 16
    $region41: #{gat_forward.5} parent=1 // pred_fallthru
      _
    %s102 = sadd.s32 0, 0
    %s103 = sld [smem:[#allocation6 + %s102]]
    %s104 = sadd.s32 0, 0
    %s105 = sld [smem:[#allocation6 + %s104]]
    %s106 = smul.u32 16, %s105
    %s107 = sadd.s32 0, 0
    %s108 = sld [smem:[#allocation6 + %s107]]
    %p110 = scmp.eq.s32.totalorder 0, 0
    // Predicated region
    $region42: #{gat_forward.5} parent=1 // pred_check
      %p111 = pneg %p110
    $region43: #{gat_forward.5} parent=1 // pred_check_branch
      %113 = sbr.rel (%p111) target = $region45
    $region44: #{gat_forward.5} parent=1 // pred_region
      %vm114 = vcmask 7168
      %115 = vst.msk [vmem:[#allocation2] sm:$0xff] %vm114, -1e+29
      %116 = vst.msk [vmem:[#allocation2 + $0x8] sm:$0xff] %vm114, -1e+29
      %117 = vst.msk [vmem:[#allocation2 + $0x10] sm:$0xff] %vm114, -1e+29
      %118 = vst.msk [vmem:[#allocation2 + $0x18] sm:$0xff] %vm114, -1e+29
      %119 = vst.msk [vmem:[#allocation2 + $0x20] sm:$0xff] %vm114, -1e+29
      %120 = vst.msk [vmem:[#allocation2 + $0x28] sm:$0xff] %vm114, -1e+29
      %121 = vst.msk [vmem:[#allocation2 + $0x30] sm:$0xff] %vm114, -1e+29
      %122 = vst.msk [vmem:[#allocation2 + $0x38] sm:$0xff] %vm114, -1e+29
      %123 = vst.msk [vmem:[#allocation2 + $0x40] sm:$0xff] %vm114, -1e+29
      %124 = vst.msk [vmem:[#allocation2 + $0x48] sm:$0xff] %vm114, -1e+29
      %125 = vst.msk [vmem:[#allocation2 + $0x50] sm:$0xff] %vm114, -1e+29
      %126 = vst.msk [vmem:[#allocation2 + $0x58] sm:$0xff] %vm114, -1e+29
      %127 = vst.msk [vmem:[#allocation2 + $0x60] sm:$0xff] %vm114, -1e+29
      %128 = vst.msk [vmem:[#allocation2 + $0x68] sm:$0xff] %vm114, -1e+29
      %129 = vst.msk [vmem:[#allocation2 + $0x70] sm:$0xff] %vm114, -1e+29
      %130 = vst.msk [vmem:[#allocation2 + $0x78] sm:$0xff] %vm114, -1e+29
      %131 = vst.msk [vmem:[#allocation2 + $0x80] sm:$0xff] %vm114, -1e+29
      %132 = vst.msk [vmem:[#allocation2 + $0x88] sm:$0xff] %vm114, -1e+29
      %133 = vst.msk [vmem:[#allocation2 + $0x90] sm:$0xff] %vm114, -1e+29
      %134 = vst.msk [vmem:[#allocation2 + $0x98] sm:$0xff] %vm114, -1e+29
      %135 = vst.msk [vmem:[#allocation2 + $0xa0] sm:$0xff] %vm114, -1e+29
      %136 = vst.msk [vmem:[#allocation2 + $0xa8] sm:$0xff] %vm114, -1e+29
      %137 = vst.msk [vmem:[#allocation2 + $0xb0] sm:$0xff] %vm114, -1e+29
      %138 = vst.msk [vmem:[#allocation2 + $0xb8] sm:$0xff] %vm114, -1e+29
      %139 = vst.msk [vmem:[#allocation2 + $0xc0] sm:$0xff] %vm114, -1e+29
      %140 = vst.msk [vmem:[#allocation2 + $0xc8] sm:$0xff] %vm114, -1e+29
      %141 = vst.msk [vmem:[#allocation2 + $0xd0] sm:$0xff] %vm114, -1e+29
      %142 = vst.msk [vmem:[#allocation2 + $0xd8] sm:$0xff] %vm114, -1e+29
      %143 = vst.msk [vmem:[#allocation2 + $0xe0] sm:$0xff] %vm114, -1e+29
      %144 = vst.msk [vmem:[#allocation2 + $0xe8] sm:$0xff] %vm114, -1e+29
      %145 = vst.msk [vmem:[#allocation2 + $0xf0] sm:$0xff] %vm114, -1e+29
      %146 = vst.msk [vmem:[#allocation2 + $0xf8] sm:$0xff] %vm114, -1e+29
      %147 = vst.msk [vmem:[#allocation3] sm:$0xff] %vm114, 0.0
      %148 = vst.msk [vmem:[#allocation3 + $0x8] sm:$0xff] %vm114, 0.0
      %149 = vst.msk [vmem:[#allocation3 + $0x10] sm:$0xff] %vm114, 0.0
      %150 = vst.msk [vmem:[#allocation3 + $0x18] sm:$0xff] %vm114, 0.0
      %151 = vst.msk [vmem:[#allocation3 + $0x20] sm:$0xff] %vm114, 0.0
      %152 = vst.msk [vmem:[#allocation3 + $0x28] sm:$0xff] %vm114, 0.0
      %153 = vst.msk [vmem:[#allocation3 + $0x30] sm:$0xff] %vm114, 0.0
      %154 = vst.msk [vmem:[#allocation3 + $0x38] sm:$0xff] %vm114, 0.0
      %155 = vst.msk [vmem:[#allocation3 + $0x40] sm:$0xff] %vm114, 0.0
      %156 = vst.msk [vmem:[#allocation3 + $0x48] sm:$0xff] %vm114, 0.0
      %157 = vst.msk [vmem:[#allocation3 + $0x50] sm:$0xff] %vm114, 0.0
      %158 = vst.msk [vmem:[#allocation3 + $0x58] sm:$0xff] %vm114, 0.0
      %159 = vst.msk [vmem:[#allocation3 + $0x60] sm:$0xff] %vm114, 0.0
      %160 = vst.msk [vmem:[#allocation3 + $0x68] sm:$0xff] %vm114, 0.0
      %161 = vst.msk [vmem:[#allocation3 + $0x70] sm:$0xff] %vm114, 0.0
      %162 = vst.msk [vmem:[#allocation3 + $0x78] sm:$0xff] %vm114, 0.0
      %163 = vst.msk [vmem:[#allocation3 + $0x80] sm:$0xff] %vm114, 0.0
      %164 = vst.msk [vmem:[#allocation3 + $0x88] sm:$0xff] %vm114, 0.0
      %165 = vst.msk [vmem:[#allocation3 + $0x90] sm:$0xff] %vm114, 0.0
      %166 = vst.msk [vmem:[#allocation3 + $0x98] sm:$0xff] %vm114, 0.0
      %167 = vst.msk [vmem:[#allocation3 + $0xa0] sm:$0xff] %vm114, 0.0
      %168 = vst.msk [vmem:[#allocation3 + $0xa8] sm:$0xff] %vm114, 0.0
      %169 = vst.msk [vmem:[#allocation3 + $0xb0] sm:$0xff] %vm114, 0.0
      %170 = vst.msk [vmem:[#allocation3 + $0xb8] sm:$0xff] %vm114, 0.0
      %171 = vst.msk [vmem:[#allocation3 + $0xc0] sm:$0xff] %vm114, 0.0
      %172 = vst.msk [vmem:[#allocation3 + $0xc8] sm:$0xff] %vm114, 0.0
      %173 = vst.msk [vmem:[#allocation3 + $0xd0] sm:$0xff] %vm114, 0.0
      %174 = vst.msk [vmem:[#allocation3 + $0xd8] sm:$0xff] %vm114, 0.0
      %175 = vst.msk [vmem:[#allocation3 + $0xe0] sm:$0xff] %vm114, 0.0
      %176 = vst.msk [vmem:[#allocation3 + $0xe8] sm:$0xff] %vm114, 0.0
      %177 = vst.msk [vmem:[#allocation3 + $0xf0] sm:$0xff] %vm114, 0.0
      %178 = vst.msk [vmem:[#allocation3 + $0xf8] sm:$0xff] %vm114, 0.0
      %vm179 = vcmask 130048
      %180 = vst.msk [vmem:[#allocation4] sm:$0xff] %vm179, 0.0
      %181 = vst.msk [vmem:[#allocation4 + $0x8] sm:$0xff] %vm179, 0.0
      %182 = vst.msk [vmem:[#allocation4 + $0x10] sm:$0xff] %vm179, 0.0
      %183 = vst.msk [vmem:[#allocation4 + $0x18] sm:$0xff] %vm179, 0.0
      %184 = vst.msk [vmem:[#allocation4 + $0x20] sm:$0xff] %vm179, 0.0
      %185 = vst.msk [vmem:[#allocation4 + $0x28] sm:$0xff] %vm179, 0.0
      %186 = vst.msk [vmem:[#allocation4 + $0x30] sm:$0xff] %vm179, 0.0
      %187 = vst.msk [vmem:[#allocation4 + $0x38] sm:$0xff] %vm179, 0.0
      %188 = vst.msk [vmem:[#allocation4 + $0x40] sm:$0xff] %vm179, 0.0
      %189 = vst.msk [vmem:[#allocation4 + $0x48] sm:$0xff] %vm179, 0.0
      %190 = vst.msk [vmem:[#allocation4 + $0x50] sm:$0xff] %vm179, 0.0
      %191 = vst.msk [vmem:[#allocation4 + $0x58] sm:$0xff] %vm179, 0.0
      %192 = vst.msk [vmem:[#allocation4 + $0x60] sm:$0xff] %vm179, 0.0
      %193 = vst.msk [vmem:[#allocation4 + $0x68] sm:$0xff] %vm179, 0.0
      %194 = vst.msk [vmem:[#allocation4 + $0x70] sm:$0xff] %vm179, 0.0
      %195 = vst.msk [vmem:[#allocation4 + $0x78] sm:$0xff] %vm179, 0.0
      %196 = vst.msk [vmem:[#allocation4 + $0x80] sm:$0xff] %vm179, 0.0
      %197 = vst.msk [vmem:[#allocation4 + $0x88] sm:$0xff] %vm179, 0.0
      %198 = vst.msk [vmem:[#allocation4 + $0x90] sm:$0xff] %vm179, 0.0
      %199 = vst.msk [vmem:[#allocation4 + $0x98] sm:$0xff] %vm179, 0.0
      %200 = vst.msk [vmem:[#allocation4 + $0xa0] sm:$0xff] %vm179, 0.0
      %201 = vst.msk [vmem:[#allocation4 + $0xa8] sm:$0xff] %vm179, 0.0
      %202 = vst.msk [vmem:[#allocation4 + $0xb0] sm:$0xff] %vm179, 0.0
      %203 = vst.msk [vmem:[#allocation4 + $0xb8] sm:$0xff] %vm179, 0.0
      %204 = vst.msk [vmem:[#allocation4 + $0xc0] sm:$0xff] %vm179, 0.0
      %205 = vst.msk [vmem:[#allocation4 + $0xc8] sm:$0xff] %vm179, 0.0
      %206 = vst.msk [vmem:[#allocation4 + $0xd0] sm:$0xff] %vm179, 0.0
      %207 = vst.msk [vmem:[#allocation4 + $0xd8] sm:$0xff] %vm179, 0.0
      %208 = vst.msk [vmem:[#allocation4 + $0xe0] sm:$0xff] %vm179, 0.0
      %209 = vst.msk [vmem:[#allocation4 + $0xe8] sm:$0xff] %vm179, 0.0
      %210 = vst.msk [vmem:[#allocation4 + $0xf0] sm:$0xff] %vm179, 0.0
      %211 = vst.msk [vmem:[#allocation4 + $0xf8] sm:$0xff] %vm179, 0.0
    $region45: #{gat_forward.5} parent=1 // pred_fallthru
      _
    %s212 = sld [smem:[#allocation7]]
    %p213 = scmp.lt.s32.totalorder 0, %s212
    // Predicated region
    $region46: #{gat_forward.5} parent=1 // pred_check
      %p214 = pneg %p213
    $region47: #{gat_forward.5} parent=1 // pred_check_branch
      %216 = sbr.rel (%p214) target = $region49
    $region48: #{gat_forward.5} parent=1 // pred_region
      %v217 = vld [vmem:[#allocation8] sm:$0xff]
      %v218 = vld [vmem:[#allocation8 + $0x8] sm:$0xff]
      %v219 = vld [vmem:[#allocation8 + $0x10] sm:$0xff]
      %v220 = vld [vmem:[#allocation8 + $0x18] sm:$0xff]
      %v221 = vunpack.c.0.s8 %v217
      %v222 = vunpack.c.1.s8 %v217
      %v223 = vunpack.c.2.s8 %v217
      %v224 = vunpack.c.3.s8 %v217
      %v225 = vunpack.c.0.s8 %v218
      %v226 = vunpack.c.1.s8 %v218
      %v227 = vunpack.c.2.s8 %v218
      %v228 = vunpack.c.3.s8 %v218
      %v229 = vunpack.c.0.s8 %v219
      %v230 = vunpack.c.1.s8 %v219
      %v231 = vunpack.c.2.s8 %v219
      %v232 = vunpack.c.3.s8 %v219
      %v233 = vunpack.c.0.s8 %v220
      %v234 = vunpack.c.1.s8 %v220
      %v235 = vunpack.c.2.s8 %v220
      %v236 = vunpack.c.3.s8 %v220
      %v237 = vcvt.s32.f32 %v221
      %v238 = vcvt.s32.f32 %v222
      %v239 = vcvt.s32.f32 %v223
      %v240 = vcvt.s32.f32 %v224
      %v241 = vcvt.s32.f32 %v225
      %v242 = vcvt.s32.f32 %v226
      %v243 = vcvt.s32.f32 %v227
      %v244 = vcvt.s32.f32 %v228
      %v245 = vcvt.s32.f32 %v229
      %v246 = vcvt.s32.f32 %v230
      %v247 = vcvt.s32.f32 %v231
      %v248 = vcvt.s32.f32 %v232
      %v249 = vcvt.s32.f32 %v233
      %v250 = vcvt.s32.f32 %v234
      %v251 = vcvt.s32.f32 %v235
      %v252 = vcvt.s32.f32 %v236
      %v253 = vmul.f32 %v237, 1e+30
      %v254 = vmul.f32 %v238, 1e+30
      %v255 = vmul.f32 %v239, 1e+30
      %v256 = vmul.f32 %v240, 1e+30
      %v257 = vmul.f32 %v241, 1e+30
      %v258 = vmul.f32 %v242, 1e+30
      %v259 = vmul.f32 %v243, 1e+30
      %v260 = vmul.f32 %v244, 1e+30
      %v261 = vmul.f32 %v245, 1e+30
      %v262 = vmul.f32 %v246, 1e+30
      %v263 = vmul.f32 %v247, 1e+30
      %v264 = vmul.f32 %v248, 1e+30
      %v265 = vmul.f32 %v249, 1e+30
      %v266 = vmul.f32 %v250, 1e+30
      %v267 = vmul.f32 %v251, 1e+30
      %v268 = vmul.f32 %v252, 1e+30
      %v269 = vld [vmem:[#allocation11] sm:$0xf]
      %v270 = vld [vmem:[#allocation11 + $0x4] sm:$0xf]
      %v271 = vld [vmem:[#allocation11 + $0x8] sm:$0xf]
      %v272 = vld [vmem:[#allocation11 + $0xc] sm:$0xf]
      %v273 = vld [vmem:[#allocation11 + $0x10] sm:$0xf]
      %v274 = vld [vmem:[#allocation11 + $0x14] sm:$0xf]
      %v275 = vld [vmem:[#allocation11 + $0x18] sm:$0xf]
      %v276 = vld [vmem:[#allocation11 + $0x1c] sm:$0xf]
      %v277 = vld [vmem:[#allocation11 + $0x20] sm:$0xf]
      %v278 = vld [vmem:[#allocation11 + $0x24] sm:$0xf]
      %v279 = vld [vmem:[#allocation11 + $0x28] sm:$0xf]
      %v280 = vld [vmem:[#allocation11 + $0x2c] sm:$0xf]
      %v281 = vld [vmem:[#allocation11 + $0x30] sm:$0xf]
      %v282 = vld [vmem:[#allocation11 + $0x34] sm:$0xf]
      %v283 = vld [vmem:[#allocation11 + $0x38] sm:$0xf]
      %v284 = vld [vmem:[#allocation11 + $0x3c] sm:$0xf]
      %v285 = vld [vmem:[#allocation13] sm:$0xff]
      %v286 = vld [vmem:[#allocation13 + $0x8] sm:$0xff]
      %v287 = vld [vmem:[#allocation13 + $0x10] sm:$0xff]
      %v288 = vld [vmem:[#allocation13 + $0x18] sm:$0xff]
      %v289 = vld [vmem:[#allocation13 + $0x20] sm:$0xff]
      %v290 = vld [vmem:[#allocation13 + $0x28] sm:$0xff]
      %v291 = vld [vmem:[#allocation13 + $0x30] sm:$0xff]
      %v292 = vld [vmem:[#allocation13 + $0x38] sm:$0xff]
      %v293 = vld [vmem:[#allocation13 + $0x40] sm:$0xff]
      %v294 = vld [vmem:[#allocation13 + $0x48] sm:$0xff]
      %v295 = vld [vmem:[#allocation13 + $0x50] sm:$0xff]
      %v296 = vld [vmem:[#allocation13 + $0x58] sm:$0xff]
      %v297 = vld [vmem:[#allocation13 + $0x60] sm:$0xff]
      %v298 = vld [vmem:[#allocation13 + $0x68] sm:$0xff]
      %v299 = vld [vmem:[#allocation13 + $0x70] sm:$0xff]
      %v300 = vld [vmem:[#allocation13 + $0x78] sm:$0xff]
      %v301 = vld [vmem:[#allocation14] sm:$0x3]
      %303 = vset.pattern.permute.xlu0 0
      %304 = vperm.xlu0 %303, %v285
      %v305 = vpop.permute.xlu0 %304
      %308 = vset.pattern.permute.xlu0 0
      %309 = vperm.xlu0 %308, %v286
      %v310 = vpop.permute.xlu0 %309
      %313 = vset.pattern.permute.xlu0 0
      %314 = vperm.xlu0 %313, %v287
      %v315 = vpop.permute.xlu0 %314
      %318 = vset.pattern.permute.xlu0 0
      %319 = vperm.xlu0 %318, %v288
      %v320 = vpop.permute.xlu0 %319
      %323 = vset.pattern.permute.xlu0 0
      %324 = vperm.xlu0 %323, %v289
      %v325 = vpop.permute.xlu0 %324
      %328 = vset.pattern.permute.xlu0 0
      %329 = vperm.xlu0 %328, %v290
      %v330 = vpop.permute.xlu0 %329
      %333 = vset.pattern.permute.xlu0 0
      %334 = vperm.xlu0 %333, %v291
      %v335 = vpop.permute.xlu0 %334
      %338 = vset.pattern.permute.xlu0 0
      %339 = vperm.xlu0 %338, %v292
      %v340 = vpop.permute.xlu0 %339
      %343 = vset.pattern.permute.xlu0 0
      %344 = vperm.xlu0 %343, %v293
      %v345 = vpop.permute.xlu0 %344
      %348 = vset.pattern.permute.xlu0 0
      %349 = vperm.xlu0 %348, %v294
      %v350 = vpop.permute.xlu0 %349
      %353 = vset.pattern.permute.xlu0 0
      %354 = vperm.xlu0 %353, %v295
      %v355 = vpop.permute.xlu0 %354
      %358 = vset.pattern.permute.xlu0 0
      %359 = vperm.xlu0 %358, %v296
      %v360 = vpop.permute.xlu0 %359
      %363 = vset.pattern.permute.xlu0 0
      %364 = vperm.xlu0 %363, %v297
      %v365 = vpop.permute.xlu0 %364
      %368 = vset.pattern.permute.xlu0 0
      %369 = vperm.xlu0 %368, %v298
      %v370 = vpop.permute.xlu0 %369
      %373 = vset.pattern.permute.xlu0 0
      %374 = vperm.xlu0 %373, %v299
      %v375 = vpop.permute.xlu0 %374
      %378 = vset.pattern.permute.xlu0 0
      %379 = vperm.xlu0 %378, %v300
      %v380 = vpop.permute.xlu0 %379
      %v382 = vlaneseq
      %v383 = vshrl.u32 %v382, 7
      %v384 = vsub.s32 0, %v383
      %v385 = vrot.slane %v301, %v384
      %v386 = vadd.f32 %v305, %v385
      %v387 = vadd.f32 %v310, %v385
      %v388 = vadd.f32 %v315, %v385
      %v389 = vadd.f32 %v320, %v385
      %v390 = vadd.f32 %v325, %v385
      %v391 = vadd.f32 %v330, %v385
      %v392 = vadd.f32 %v335, %v385
      %v393 = vadd.f32 %v340, %v385
      %v394 = vadd.f32 %v345, %v385
      %v395 = vadd.f32 %v350, %v385
      %v396 = vadd.f32 %v355, %v385
      %v397 = vadd.f32 %v360, %v385
      %v398 = vadd.f32 %v365, %v385
      %v399 = vadd.f32 %v370, %v385
      %v400 = vadd.f32 %v375, %v385
      %v401 = vadd.f32 %v380, %v385
      %v402 = vmul.f32 %v386, 0.2
      %v403 = vmul.f32 %v387, 0.2
      %v404 = vmul.f32 %v388, 0.2
      %v405 = vmul.f32 %v389, 0.2
      %v406 = vmul.f32 %v390, 0.2
      %v407 = vmul.f32 %v391, 0.2
      %v408 = vmul.f32 %v392, 0.2
      %v409 = vmul.f32 %v393, 0.2
      %v410 = vmul.f32 %v394, 0.2
      %v411 = vmul.f32 %v395, 0.2
      %v412 = vmul.f32 %v396, 0.2
      %v413 = vmul.f32 %v397, 0.2
      %v414 = vmul.f32 %v398, 0.2
      %v415 = vmul.f32 %v399, 0.2
      %v416 = vmul.f32 %v400, 0.2
      %v417 = vmul.f32 %v401, 0.2
      %v418 = vmax.f32 %v386, %v402
      %v419 = vmax.f32 %v387, %v403
      %v420 = vmax.f32 %v388, %v404
      %v421 = vmax.f32 %v389, %v405
      %v422 = vmax.f32 %v390, %v406
      %v423 = vmax.f32 %v391, %v407
      %v424 = vmax.f32 %v392, %v408
      %v425 = vmax.f32 %v393, %v409
      %v426 = vmax.f32 %v394, %v410
      %v427 = vmax.f32 %v395, %v411
      %v428 = vmax.f32 %v396, %v412
      %v429 = vmax.f32 %v397, %v413
      %v430 = vmax.f32 %v398, %v414
      %v431 = vmax.f32 %v399, %v415
      %v432 = vmax.f32 %v400, %v416
      %v433 = vmax.f32 %v401, %v417
      %v434 = vadd.f32 %v418, %v253
      %v435 = vadd.f32 %v419, %v254
      %v436 = vadd.f32 %v420, %v255
      %v437 = vadd.f32 %v421, %v256
      %v438 = vadd.f32 %v422, %v257
      %v439 = vadd.f32 %v423, %v258
      %v440 = vadd.f32 %v424, %v259
      %v441 = vadd.f32 %v425, %v260
      %v442 = vadd.f32 %v426, %v261
      %v443 = vadd.f32 %v427, %v262
      %v444 = vadd.f32 %v428, %v263
      %v445 = vadd.f32 %v429, %v264
      %v446 = vadd.f32 %v430, %v265
      %v447 = vadd.f32 %v431, %v266
      %v448 = vadd.f32 %v432, %v267
      %v449 = vadd.f32 %v433, %v268
      %v450 = vld [vmem:[#allocation2] sm:$0xff]
      %v451 = vld [vmem:[#allocation2 + $0x8] sm:$0xff]
      %v452 = vld [vmem:[#allocation2 + $0x10] sm:$0xff]
      %v453 = vld [vmem:[#allocation2 + $0x18] sm:$0xff]
      %v454 = vld [vmem:[#allocation2 + $0x20] sm:$0xff]
      %v455 = vld [vmem:[#allocation2 + $0x28] sm:$0xff]
      %v456 = vld [vmem:[#allocation2 + $0x30] sm:$0xff]
      %v457 = vld [vmem:[#allocation2 + $0x38] sm:$0xff]
      %v458 = vld [vmem:[#allocation2 + $0x40] sm:$0xff]
      %v459 = vld [vmem:[#allocation2 + $0x48] sm:$0xff]
      %v460 = vld [vmem:[#allocation2 + $0x50] sm:$0xff]
      %v461 = vld [vmem:[#allocation2 + $0x58] sm:$0xff]
      %v462 = vld [vmem:[#allocation2 + $0x60] sm:$0xff]
      %v463 = vld [vmem:[#allocation2 + $0x68] sm:$0xff]
      %v464 = vld [vmem:[#allocation2 + $0x70] sm:$0xff]
      %v465 = vld [vmem:[#allocation2 + $0x78] sm:$0xff]
      %466 = vmax.xlane.f32.xlu0 %v434
      %v467 = vpop.xlane.xlu0 %466
      %468 = vmax.xlane.f32.xlu0 %v435
      %v469 = vpop.xlane.xlu0 %468
      %470 = vmax.xlane.f32.xlu0 %v436
      %v471 = vpop.xlane.xlu0 %470
      %472 = vmax.xlane.f32.xlu0 %v437
      %v473 = vpop.xlane.xlu0 %472
      %474 = vmax.xlane.f32.xlu0 %v438
      %v475 = vpop.xlane.xlu0 %474
      %476 = vmax.xlane.f32.xlu0 %v439
      %v477 = vpop.xlane.xlu0 %476
      %478 = vmax.xlane.f32.xlu0 %v440
      %v479 = vpop.xlane.xlu0 %478
      %480 = vmax.xlane.f32.xlu0 %v441
      %v481 = vpop.xlane.xlu0 %480
      %482 = vmax.xlane.f32.xlu0 %v442
      %v483 = vpop.xlane.xlu0 %482
      %484 = vmax.xlane.f32.xlu0 %v443
      %v485 = vpop.xlane.xlu0 %484
      %486 = vmax.xlane.f32.xlu0 %v444
      %v487 = vpop.xlane.xlu0 %486
      %488 = vmax.xlane.f32.xlu0 %v445
      %v489 = vpop.xlane.xlu0 %488
      %490 = vmax.xlane.f32.xlu0 %v446
      %v491 = vpop.xlane.xlu0 %490
      %492 = vmax.xlane.f32.xlu0 %v447
      %v493 = vpop.xlane.xlu0 %492
      %494 = vmax.xlane.f32.xlu0 %v448
      %v495 = vpop.xlane.xlu0 %494
      %496 = vmax.xlane.f32.xlu0 %v449
      %v497 = vpop.xlane.xlu0 %496
      %v498 = vmax.f32 %v450, %v467
      %v499 = vmax.f32 %v451, %v469
      %v500 = vmax.f32 %v452, %v471
      %v501 = vmax.f32 %v453, %v473
      %v502 = vmax.f32 %v454, %v475
      %v503 = vmax.f32 %v455, %v477
      %v504 = vmax.f32 %v456, %v479
      %v505 = vmax.f32 %v457, %v481
      %v506 = vmax.f32 %v458, %v483
      %v507 = vmax.f32 %v459, %v485
      %v508 = vmax.f32 %v460, %v487
      %v509 = vmax.f32 %v461, %v489
      %v510 = vmax.f32 %v462, %v491
      %v511 = vmax.f32 %v463, %v493
      %v512 = vmax.f32 %v464, %v495
      %v513 = vmax.f32 %v465, %v497
      %v514 = vsub.f32 %v450, %v498
      %v515 = vsub.f32 %v451, %v499
      %v516 = vsub.f32 %v452, %v500
      %v517 = vsub.f32 %v453, %v501
      %v518 = vsub.f32 %v454, %v502
      %v519 = vsub.f32 %v455, %v503
      %v520 = vsub.f32 %v456, %v504
      %v521 = vsub.f32 %v457, %v505
      %v522 = vsub.f32 %v458, %v506
      %v523 = vsub.f32 %v459, %v507
      %v524 = vsub.f32 %v460, %v508
      %v525 = vsub.f32 %v461, %v509
      %v526 = vsub.f32 %v462, %v510
      %v527 = vsub.f32 %v463, %v511
      %v528 = vsub.f32 %v464, %v512
      %v529 = vsub.f32 %v465, %v513
      %v530 = vmul.f32 %v514, 1.442695
      %v531 = vpow.pop %v530
      %v532 = vmul.f32 %v515, 1.442695
      %v533 = vpow.pop %v532
      %v534 = vmul.f32 %v516, 1.442695
      %v535 = vpow.pop %v534
      %v536 = vmul.f32 %v517, 1.442695
      %v537 = vpow.pop %v536
      %v538 = vmul.f32 %v518, 1.442695
      %v539 = vpow.pop %v538
      %v540 = vmul.f32 %v519, 1.442695
      %v541 = vpow.pop %v540
      %v542 = vmul.f32 %v520, 1.442695
      %v543 = vpow.pop %v542
      %v544 = vmul.f32 %v521, 1.442695
      %v545 = vpow.pop %v544
      %v546 = vmul.f32 %v522, 1.442695
      %v547 = vpow.pop %v546
      %v548 = vmul.f32 %v523, 1.442695
      %v549 = vpow.pop %v548
      %v550 = vmul.f32 %v524, 1.442695
      %v551 = vpow.pop %v550
      %v552 = vmul.f32 %v525, 1.442695
      %v553 = vpow.pop %v552
      %v554 = vmul.f32 %v526, 1.442695
      %v555 = vpow.pop %v554
      %v556 = vmul.f32 %v527, 1.442695
      %v557 = vpow.pop %v556
      %v558 = vmul.f32 %v528, 1.442695
      %v559 = vpow.pop %v558
      %v560 = vmul.f32 %v529, 1.442695
      %v561 = vpow.pop %v560
      %563 = vset.pattern.permute.xlu0 0
      %564 = vperm.xlu0 %563, %v498
      %v565 = vpop.permute.xlu0 %564
      %568 = vset.pattern.permute.xlu0 0
      %569 = vperm.xlu0 %568, %v499
      %v570 = vpop.permute.xlu0 %569
      %573 = vset.pattern.permute.xlu0 0
      %574 = vperm.xlu0 %573, %v500
      %v575 = vpop.permute.xlu0 %574
      %578 = vset.pattern.permute.xlu0 0
      %579 = vperm.xlu0 %578, %v501
      %v580 = vpop.permute.xlu0 %579
      %583 = vset.pattern.permute.xlu0 0
      %584 = vperm.xlu0 %583, %v502
      %v585 = vpop.permute.xlu0 %584
      %588 = vset.pattern.permute.xlu0 0
      %589 = vperm.xlu0 %588, %v503
      %v590 = vpop.permute.xlu0 %589
      %593 = vset.pattern.permute.xlu0 0
      %594 = vperm.xlu0 %593, %v504
      %v595 = vpop.permute.xlu0 %594
      %598 = vset.pattern.permute.xlu0 0
      %599 = vperm.xlu0 %598, %v505
      %v600 = vpop.permute.xlu0 %599
      %603 = vset.pattern.permute.xlu0 0
      %604 = vperm.xlu0 %603, %v506
      %v605 = vpop.permute.xlu0 %604
      %608 = vset.pattern.permute.xlu0 0
      %609 = vperm.xlu0 %608, %v507
      %v610 = vpop.permute.xlu0 %609
      %613 = vset.pattern.permute.xlu0 0
      %614 = vperm.xlu0 %613, %v508
      %v615 = vpop.permute.xlu0 %614
      %618 = vset.pattern.permute.xlu0 0
      %619 = vperm.xlu0 %618, %v509
      %v620 = vpop.permute.xlu0 %619
      %623 = vset.pattern.permute.xlu0 0
      %624 = vperm.xlu0 %623, %v510
      %v625 = vpop.permute.xlu0 %624
      %628 = vset.pattern.permute.xlu0 0
      %629 = vperm.xlu0 %628, %v511
      %v630 = vpop.permute.xlu0 %629
      %633 = vset.pattern.permute.xlu0 0
      %634 = vperm.xlu0 %633, %v512
      %v635 = vpop.permute.xlu0 %634
      %638 = vset.pattern.permute.xlu0 0
      %639 = vperm.xlu0 %638, %v513
      %v640 = vpop.permute.xlu0 %639
      %v642 = vsub.f32 %v434, %v565
      %v643 = vsub.f32 %v435, %v570
      %v644 = vsub.f32 %v436, %v575
      %v645 = vsub.f32 %v437, %v580
      %v646 = vsub.f32 %v438, %v585
      %v647 = vsub.f32 %v439, %v590
      %v648 = vsub.f32 %v440, %v595
      %v649 = vsub.f32 %v441, %v600
      %v650 = vsub.f32 %v442, %v605
      %v651 = vsub.f32 %v443, %v610
      %v652 = vsub.f32 %v444, %v615
      %v653 = vsub.f32 %v445, %v620
      %v654 = vsub.f32 %v446, %v625
      %v655 = vsub.f32 %v447, %v630
      %v656 = vsub.f32 %v448, %v635
      %v657 = vsub.f32 %v449, %v640
      %v658 = vmul.f32 %v642, 1.442695
      %v659 = vpow.pop %v658
      %v660 = vmul.f32 %v643, 1.442695
      %v661 = vpow.pop %v660
      %v662 = vmul.f32 %v644, 1.442695
      %v663 = vpow.pop %v662
      %v664 = vmul.f32 %v645, 1.442695
      %v665 = vpow.pop %v664
      %v666 = vmul.f32 %v646, 1.442695
      %v667 = vpow.pop %v666
      %v668 = vmul.f32 %v647, 1.442695
      %v669 = vpow.pop %v668
      %v670 = vmul.f32 %v648, 1.442695
      %v671 = vpow.pop %v670
      %v672 = vmul.f32 %v649, 1.442695
      %v673 = vpow.pop %v672
      %v674 = vmul.f32 %v650, 1.442695
      %v675 = vpow.pop %v674
      %v676 = vmul.f32 %v651, 1.442695
      %v677 = vpow.pop %v676
      %v678 = vmul.f32 %v652, 1.442695
      %v679 = vpow.pop %v678
      %v680 = vmul.f32 %v653, 1.442695
      %v681 = vpow.pop %v680
      %v682 = vmul.f32 %v654, 1.442695
      %v683 = vpow.pop %v682
      %v684 = vmul.f32 %v655, 1.442695
      %v685 = vpow.pop %v684
      %v686 = vmul.f32 %v656, 1.442695
      %v687 = vpow.pop %v686
      %v688 = vmul.f32 %v657, 1.442695
      %v689 = vpow.pop %v688
      %v690 = vld [vmem:[#allocation3] sm:$0xff]
      %v691 = vld [vmem:[#allocation3 + $0x8] sm:$0xff]
      %v692 = vld [vmem:[#allocation3 + $0x10] sm:$0xff]
      %v693 = vld [vmem:[#allocation3 + $0x18] sm:$0xff]
      %v694 = vld [vmem:[#allocation3 + $0x20] sm:$0xff]
      %v695 = vld [vmem:[#allocation3 + $0x28] sm:$0xff]
      %v696 = vld [vmem:[#allocation3 + $0x30] sm:$0xff]
      %v697 = vld [vmem:[#allocation3 + $0x38] sm:$0xff]
      %v698 = vld [vmem:[#allocation3 + $0x40] sm:$0xff]
      %v699 = vld [vmem:[#allocation3 + $0x48] sm:$0xff]
      %v700 = vld [vmem:[#allocation3 + $0x50] sm:$0xff]
      %v701 = vld [vmem:[#allocation3 + $0x58] sm:$0xff]
      %v702 = vld [vmem:[#allocation3 + $0x60] sm:$0xff]
      %v703 = vld [vmem:[#allocation3 + $0x68] sm:$0xff]
      %v704 = vld [vmem:[#allocation3 + $0x70] sm:$0xff]
      %v705 = vld [vmem:[#allocation3 + $0x78] sm:$0xff]
      %v706 = vmul.f32 %v531, %v690
      %v707 = vmul.f32 %v533, %v691
      %v708 = vmul.f32 %v535, %v692
      %v709 = vmul.f32 %v537, %v693
      %v710 = vmul.f32 %v539, %v694
      %v711 = vmul.f32 %v541, %v695
      %v712 = vmul.f32 %v543, %v696
      %v713 = vmul.f32 %v545, %v697
      %v714 = vmul.f32 %v547, %v698
      %v715 = vmul.f32 %v549, %v699
      %v716 = vmul.f32 %v551, %v700
      %v717 = vmul.f32 %v553, %v701
      %v718 = vmul.f32 %v555, %v702
      %v719 = vmul.f32 %v557, %v703
      %v720 = vmul.f32 %v559, %v704
      %v721 = vmul.f32 %v561, %v705
      %722 = vadd.xlane.f32.xlu0 %v659
      %v723 = vpop.xlane.xlu0 %722
      %724 = vadd.xlane.f32.xlu0 %v661
      %v725 = vpop.xlane.xlu0 %724
      %726 = vadd.xlane.f32.xlu0 %v663
      %v727 = vpop.xlane.xlu0 %726
      %728 = vadd.xlane.f32.xlu0 %v665
      %v729 = vpop.xlane.xlu0 %728
      %730 = vadd.xlane.f32.xlu0 %v667
      %v731 = vpop.xlane.xlu0 %730
      %732 = vadd.xlane.f32.xlu0 %v669
      %v733 = vpop.xlane.xlu0 %732
      %734 = vadd.xlane.f32.xlu0 %v671
      %v735 = vpop.xlane.xlu0 %734
      %736 = vadd.xlane.f32.xlu0 %v673
      %v737 = vpop.xlane.xlu0 %736
      %738 = vadd.xlane.f32.xlu0 %v675
      %v739 = vpop.xlane.xlu0 %738
      %740 = vadd.xlane.f32.xlu0 %v677
      %v741 = vpop.xlane.xlu0 %740
      %742 = vadd.xlane.f32.xlu0 %v679
      %v743 = vpop.xlane.xlu0 %742
      %744 = vadd.xlane.f32.xlu0 %v681
      %v745 = vpop.xlane.xlu0 %744
      %746 = vadd.xlane.f32.xlu0 %v683
      %v747 = vpop.xlane.xlu0 %746
      %748 = vadd.xlane.f32.xlu0 %v685
      %v749 = vpop.xlane.xlu0 %748
      %750 = vadd.xlane.f32.xlu0 %v687
      %v751 = vpop.xlane.xlu0 %750
      %752 = vadd.xlane.f32.xlu0 %v689
      %v753 = vpop.xlane.xlu0 %752
      %v754 = vadd.f32 %v706, %v723
      %v755 = vadd.f32 %v707, %v725
      %v756 = vadd.f32 %v708, %v727
      %v757 = vadd.f32 %v709, %v729
      %v758 = vadd.f32 %v710, %v731
      %v759 = vadd.f32 %v711, %v733
      %v760 = vadd.f32 %v712, %v735
      %v761 = vadd.f32 %v713, %v737
      %v762 = vadd.f32 %v714, %v739
      %v763 = vadd.f32 %v715, %v741
      %v764 = vadd.f32 %v716, %v743
      %v765 = vadd.f32 %v717, %v745
      %v766 = vadd.f32 %v718, %v747
      %v767 = vadd.f32 %v719, %v749
      %v768 = vadd.f32 %v720, %v751
      %v769 = vadd.f32 %v721, %v753
      %vm770 = vcmask 7168
      %771 = vst.msk [vmem:[#allocation3] sm:$0xff] %vm770, %v754
      %772 = vst.msk [vmem:[#allocation3 + $0x8] sm:$0xff] %vm770, %v755
      %773 = vst.msk [vmem:[#allocation3 + $0x10] sm:$0xff] %vm770, %v756
      %774 = vst.msk [vmem:[#allocation3 + $0x18] sm:$0xff] %vm770, %v757
      %775 = vst.msk [vmem:[#allocation3 + $0x20] sm:$0xff] %vm770, %v758
      %776 = vst.msk [vmem:[#allocation3 + $0x28] sm:$0xff] %vm770, %v759
      %777 = vst.msk [vmem:[#allocation3 + $0x30] sm:$0xff] %vm770, %v760
      %778 = vst.msk [vmem:[#allocation3 + $0x38] sm:$0xff] %vm770, %v761
      %779 = vst.msk [vmem:[#allocation3 + $0x40] sm:$0xff] %vm770, %v762
      %780 = vst.msk [vmem:[#allocation3 + $0x48] sm:$0xff] %vm770, %v763
      %781 = vst.msk [vmem:[#allocation3 + $0x50] sm:$0xff] %vm770, %v764
      %782 = vst.msk [vmem:[#allocation3 + $0x58] sm:$0xff] %vm770, %v765
      %783 = vst.msk [vmem:[#allocation3 + $0x60] sm:$0xff] %vm770, %v766
      %784 = vst.msk [vmem:[#allocation3 + $0x68] sm:$0xff] %vm770, %v767
      %785 = vst.msk [vmem:[#allocation3 + $0x70] sm:$0xff] %vm770, %v768
      %786 = vst.msk [vmem:[#allocation3 + $0x78] sm:$0xff] %vm770, %v769
      %v787 = vld [vmem:[#allocation4] sm:$0xff]
      %v788 = vld [vmem:[#allocation4 + $0x8] sm:$0xff]
      %v789 = vld [vmem:[#allocation4 + $0x10] sm:$0xff]
      %v790 = vld [vmem:[#allocation4 + $0x18] sm:$0xff]
      %v791 = vld [vmem:[#allocation4 + $0x20] sm:$0xff]
      %v792 = vld [vmem:[#allocation4 + $0x28] sm:$0xff]
      %v793 = vld [vmem:[#allocation4 + $0x30] sm:$0xff]
      %v794 = vld [vmem:[#allocation4 + $0x38] sm:$0xff]
      %v795 = vld [vmem:[#allocation4 + $0x40] sm:$0xff]
      %v796 = vld [vmem:[#allocation4 + $0x48] sm:$0xff]
      %v797 = vld [vmem:[#allocation4 + $0x50] sm:$0xff]
      %v798 = vld [vmem:[#allocation4 + $0x58] sm:$0xff]
      %v799 = vld [vmem:[#allocation4 + $0x60] sm:$0xff]
      %v800 = vld [vmem:[#allocation4 + $0x68] sm:$0xff]
      %v801 = vld [vmem:[#allocation4 + $0x70] sm:$0xff]
      %v802 = vld [vmem:[#allocation4 + $0x78] sm:$0xff]
      %804 = vset.pattern.permute.xlu0 0
      %805 = vperm.xlu0 %804, %v531
      %v806 = vpop.permute.xlu0 %805
      %809 = vset.pattern.permute.xlu0 0
      %810 = vperm.xlu0 %809, %v533
      %v811 = vpop.permute.xlu0 %810
      %814 = vset.pattern.permute.xlu0 0
      %815 = vperm.xlu0 %814, %v535
      %v816 = vpop.permute.xlu0 %815
      %819 = vset.pattern.permute.xlu0 0
      %820 = vperm.xlu0 %819, %v537
      %v821 = vpop.permute.xlu0 %820
      %824 = vset.pattern.permute.xlu0 0
      %825 = vperm.xlu0 %824, %v539
      %v826 = vpop.permute.xlu0 %825
      %829 = vset.pattern.permute.xlu0 0
      %830 = vperm.xlu0 %829, %v541
      %v831 = vpop.permute.xlu0 %830
      %834 = vset.pattern.permute.xlu0 0
      %835 = vperm.xlu0 %834, %v543
      %v836 = vpop.permute.xlu0 %835
      %839 = vset.pattern.permute.xlu0 0
      %840 = vperm.xlu0 %839, %v545
      %v841 = vpop.permute.xlu0 %840
      %844 = vset.pattern.permute.xlu0 0
      %845 = vperm.xlu0 %844, %v547
      %v846 = vpop.permute.xlu0 %845
      %849 = vset.pattern.permute.xlu0 0
      %850 = vperm.xlu0 %849, %v549
      %v851 = vpop.permute.xlu0 %850
      %854 = vset.pattern.permute.xlu0 0
      %855 = vperm.xlu0 %854, %v551
      %v856 = vpop.permute.xlu0 %855
      %859 = vset.pattern.permute.xlu0 0
      %860 = vperm.xlu0 %859, %v553
      %v861 = vpop.permute.xlu0 %860
      %864 = vset.pattern.permute.xlu0 0
      %865 = vperm.xlu0 %864, %v555
      %v866 = vpop.permute.xlu0 %865
      %869 = vset.pattern.permute.xlu0 0
      %870 = vperm.xlu0 %869, %v557
      %v871 = vpop.permute.xlu0 %870
      %874 = vset.pattern.permute.xlu0 0
      %875 = vperm.xlu0 %874, %v559
      %v876 = vpop.permute.xlu0 %875
      %879 = vset.pattern.permute.xlu0 0
      %880 = vperm.xlu0 %879, %v561
      %v881 = vpop.permute.xlu0 %880
      %v883 = vmul.f32 %v806, %v787
      %v884 = vmul.f32 %v811, %v788
      %v885 = vmul.f32 %v816, %v789
      %v886 = vmul.f32 %v821, %v790
      %v887 = vmul.f32 %v826, %v791
      %v888 = vmul.f32 %v831, %v792
      %v889 = vmul.f32 %v836, %v793
      %v890 = vmul.f32 %v841, %v794
      %v891 = vmul.f32 %v846, %v795
      %v892 = vmul.f32 %v851, %v796
      %v893 = vmul.f32 %v856, %v797
      %v894 = vmul.f32 %v861, %v798
      %v895 = vmul.f32 %v866, %v799
      %v896 = vmul.f32 %v871, %v800
      %v897 = vmul.f32 %v876, %v801
      %v898 = vmul.f32 %v881, %v802
      %v899 = vpack.c.bf16 %v661, %v659
      %v900 = vpack.c.bf16 %v665, %v663
      %v901 = vpack.c.bf16 %v669, %v667
      %v902 = vpack.c.bf16 %v673, %v671
      %v903 = vpack.c.bf16 %v677, %v675
      %v904 = vpack.c.bf16 %v681, %v679
      %v905 = vpack.c.bf16 %v685, %v683
      %v906 = vpack.c.bf16 %v689, %v687
      %v923 = vunpack.c.l.b16 %v269
      %v924 = vunpack.c.l.b16 %v270
      %v925 = vunpack.c.l.b16 %v271
      %v926 = vunpack.c.l.b16 %v272
      %v927 = vunpack.c.l.b16 %v273
      %v928 = vunpack.c.l.b16 %v274
      %v929 = vunpack.c.l.b16 %v275
      %v930 = vunpack.c.l.b16 %v276
      %v931 = vunpack.c.l.b16 %v277
      %v932 = vunpack.c.l.b16 %v278
      %v933 = vunpack.c.l.b16 %v279
      %v934 = vunpack.c.l.b16 %v280
      %v935 = vunpack.c.l.b16 %v281
      %v936 = vunpack.c.l.b16 %v282
      %v937 = vunpack.c.l.b16 %v283
      %v938 = vunpack.c.l.b16 %v284
      %v939 = vpack.c.b16 %v924, %v923
      %v940 = vpack.c.b16 %v926, %v925
      %v941 = vpack.c.b16 %v928, %v927
      %v942 = vpack.c.b16 %v930, %v929
      %v943 = vpack.c.b16 %v932, %v931
      %v944 = vpack.c.b16 %v934, %v933
      %v945 = vpack.c.b16 %v936, %v935
      %v946 = vpack.c.b16 %v938, %v937
      %955 = vmatprep.subr.bf16.mxu0 0
      %956 = vmatpush1.bf16.msra.mxu0 %v939
      %957 = vmatprep.subr.bf16.mxu0 0
      %958 = vmatpush1.bf16.msra.mxu0 %v940
      %959 = vmatprep.subr.bf16.mxu0 0
      %960 = vmatpush1.bf16.msra.mxu0 %v941
      %961 = vmatprep.subr.bf16.mxu0 0
      %962 = vmatpush1.bf16.msra.mxu0 %v942
      %963 = vmatprep.subr.bf16.mxu0 0
      %964 = vmatpush1.bf16.msra.mxu0 %v943
      %965 = vmatprep.subr.bf16.mxu0 0
      %966 = vmatpush1.bf16.msra.mxu0 %v944
      %967 = vmatprep.subr.bf16.mxu0 0
      %968 = vmatpush1.bf16.msra.mxu0 %v945
      %969 = vmatprep.subr.bf16.mxu0 0
      %970 = vmatpush1.bf16.msra.mxu0 %v946
      %971 = vmatprep.subr.bf16.mxu0 0
      %972 = vmatpush1.bf16.msra.mxu0 0
      %973 = vmatprep.subr.bf16.mxu0 0
      %974 = vmatpush1.bf16.msra.mxu0 0
      %975 = vmatprep.subr.bf16.mxu0 0
      %976 = vmatpush1.bf16.msra.mxu0 0
      %977 = vmatprep.subr.bf16.mxu0 0
      %978 = vmatpush1.bf16.msra.mxu0 0
      %979 = vmatprep.subr.bf16.mxu0 0
      %980 = vmatpush1.bf16.msra.mxu0 0
      %981 = vmatprep.subr.bf16.mxu0 0
      %982 = vmatpush1.bf16.msra.mxu0 0
      %983 = vmatprep.subr.bf16.mxu0 0
      %984 = vmatpush1.bf16.msra.mxu0 0
      %985 = vmatprep.subr.bf16.mxu0 0
      %986 = vmatpush1.bf16.msra.mxu0 0
      %987 = vmatprep.mubr.bf16.mxu0 0
      %988 = vmatmul.mubr.bf16.gmra.mrb[0].mxu0 %v899
      %v989 = vpop.f32.mrb[0].mxu0
      %v990 = vadd.f32 0.0, %v989
      %v991 = vpop.f32.mrb[0].mxu0
      %v992 = vpop.f32.mrb[0].mxu0
      %v993 = vadd.f32 0.0, %v992
      %v994 = vpop.f32.mrb[0].mxu0
      %995 = vmatprep.mubr.bf16.mxu0 0
      %996 = vmatmul.mubr.bf16.gmra.mrb[0].mxu0 %v900
      %v997 = vpop.f32.mrb[0].mxu0
      %v998 = vadd.f32 0.0, %v997
      %v999 = vpop.f32.mrb[0].mxu0
      %v1000 = vpop.f32.mrb[0].mxu0
      %v1001 = vadd.f32 0.0, %v1000
      %v1002 = vpop.f32.mrb[0].mxu0
      %1003 = vmatprep.mubr.bf16.mxu0 0
      %1004 = vmatmul.mubr.bf16.gmra.mrb[0].mxu0 %v901
      %v1005 = vpop.f32.mrb[0].mxu0
      %v1006 = vadd.f32 0.0, %v1005
      %v1007 = vpop.f32.mrb[0].mxu0
      %v1008 = vpop.f32.mrb[0].mxu0
      %v1009 = vadd.f32 0.0, %v1008
      %v1010 = vpop.f32.mrb[0].mxu0
      %1011 = vmatprep.mubr.bf16.mxu0 0
      %1012 = vmatmul.mubr.bf16.gmra.mrb[0].mxu0 %v902
      %v1013 = vpop.f32.mrb[0].mxu0
      %v1014 = vadd.f32 0.0, %v1013
      %v1015 = vpop.f32.mrb[0].mxu0
      %v1016 = vpop.f32.mrb[0].mxu0
      %v1017 = vadd.f32 0.0, %v1016
      %v1018 = vpop.f32.mrb[0].mxu0
      %1019 = vmatprep.mubr.bf16.mxu0 0
      %1020 = vmatmul.mubr.bf16.gmra.mrb[0].mxu0 %v903
      %v1021 = vpop.f32.mrb[0].mxu0
      %v1022 = vadd.f32 0.0, %v1021
      %v1023 = vpop.f32.mrb[0].mxu0
      %v1024 = vpop.f32.mrb[0].mxu0
      %v1025 = vadd.f32 0.0, %v1024
      %v1026 = vpop.f32.mrb[0].mxu0
      %1027 = vmatprep.mubr.bf16.mxu0 0
      %1028 = vmatmul.mubr.bf16.gmra.mrb[0].mxu0 %v904
      %v1029 = vpop.f32.mrb[0].mxu0
      %v1030 = vadd.f32 0.0, %v1029
      %v1031 = vpop.f32.mrb[0].mxu0
      %v1032 = vpop.f32.mrb[0].mxu0
      %v1033 = vadd.f32 0.0, %v1032
      %v1034 = vpop.f32.mrb[0].mxu0
      %1035 = vmatprep.mubr.bf16.mxu0 0
      %1036 = vmatmul.mubr.bf16.gmra.mrb[0].mxu0 %v905
      %v1037 = vpop.f32.mrb[0].mxu0
      %v1038 = vadd.f32 0.0, %v1037
      %v1039 = vpop.f32.mrb[0].mxu0
      %v1040 = vpop.f32.mrb[0].mxu0
      %v1041 = vadd.f32 0.0, %v1040
      %v1042 = vpop.f32.mrb[0].mxu0
      %1043 = vmatprep.mubr.bf16.mxu0 0
      %1044 = vmatmul.mubr.bf16.gmra.mrb[0].mxu0 %v906
      %v1045 = vpop.f32.mrb[0].mxu0
      %v1046 = vadd.f32 0.0, %v1045
      %v1047 = vpop.f32.mrb[0].mxu0
      %v1048 = vpop.f32.mrb[0].mxu0
      %v1049 = vadd.f32 0.0, %v1048
      %v1050 = vpop.f32.mrb[0].mxu0
      %1051 = vdwg.mxu0
      %v1052 = vadd.f32 %v883, %v990
      %v1053 = vadd.f32 %v884, %v993
      %v1054 = vadd.f32 %v885, %v998
      %v1055 = vadd.f32 %v886, %v1001
      %v1056 = vadd.f32 %v887, %v1006
      %v1057 = vadd.f32 %v888, %v1009
      %v1058 = vadd.f32 %v889, %v1014
      %v1059 = vadd.f32 %v890, %v1017
      %v1060 = vadd.f32 %v891, %v1022
      %v1061 = vadd.f32 %v892, %v1025
      %v1062 = vadd.f32 %v893, %v1030
      %v1063 = vadd.f32 %v894, %v1033
      %v1064 = vadd.f32 %v895, %v1038
      %v1065 = vadd.f32 %v896, %v1041
      %v1066 = vadd.f32 %v897, %v1046
      %v1067 = vadd.f32 %v898, %v1049
      %vm1068 = vcmask 130048
      %1069 = vst.msk [vmem:[#allocation4] sm:$0xff] %vm1068, %v1052
      %1070 = vst.msk [vmem:[#allocation4 + $0x8] sm:$0xff] %vm1068, %v1053
      %1071 = vst.msk [vmem:[#allocation4 + $0x10] sm:$0xff] %vm1068, %v1054
      %1072 = vst.msk [vmem:[#allocation4 + $0x18] sm:$0xff] %vm1068, %v1055
      %1073 = vst.msk [vmem:[#allocation4 + $0x20] sm:$0xff] %vm1068, %v1056
      %1074 = vst.msk [vmem:[#allocation4 + $0x28] sm:$0xff] %vm1068, %v1057
      %1075 = vst.msk [vmem:[#allocation4 + $0x30] sm:$0xff] %vm1068, %v1058
      %1076 = vst.msk [vmem:[#allocation4 + $0x38] sm:$0xff] %vm1068, %v1059
      %1077 = vst.msk [vmem:[#allocation4 + $0x40] sm:$0xff] %vm1068, %v1060
      %1078 = vst.msk [vmem:[#allocation4 + $0x48] sm:$0xff] %vm1068, %v1061
      %1079 = vst.msk [vmem:[#allocation4 + $0x50] sm:$0xff] %vm1068, %v1062
      %1080 = vst.msk [vmem:[#allocation4 + $0x58] sm:$0xff] %vm1068, %v1063
      %1081 = vst.msk [vmem:[#allocation4 + $0x60] sm:$0xff] %vm1068, %v1064
      %1082 = vst.msk [vmem:[#allocation4 + $0x68] sm:$0xff] %vm1068, %v1065
      %1083 = vst.msk [vmem:[#allocation4 + $0x70] sm:$0xff] %vm1068, %v1066
      %1084 = vst.msk [vmem:[#allocation4 + $0x78] sm:$0xff] %vm1068, %v1067
      %1085 = vst.msk [vmem:[#allocation2] sm:$0xff] %vm770, %v498
      %1086 = vst.msk [vmem:[#allocation2 + $0x8] sm:$0xff] %vm770, %v499
      %1087 = vst.msk [vmem:[#allocation2 + $0x10] sm:$0xff] %vm770, %v500
      %1088 = vst.msk [vmem:[#allocation2 + $0x18] sm:$0xff] %vm770, %v501
      %1089 = vst.msk [vmem:[#allocation2 + $0x20] sm:$0xff] %vm770, %v502
      %1090 = vst.msk [vmem:[#allocation2 + $0x28] sm:$0xff] %vm770, %v503
      %1091 = vst.msk [vmem:[#allocation2 + $0x30] sm:$0xff] %vm770, %v504
      %1092 = vst.msk [vmem:[#allocation2 + $0x38] sm:$0xff] %vm770, %v505
      %1093 = vst.msk [vmem:[#allocation2 + $0x40] sm:$0xff] %vm770, %v506
      %1094 = vst.msk [vmem:[#allocation2 + $0x48] sm:$0xff] %vm770, %v507
      %1095 = vst.msk [vmem:[#allocation2 + $0x50] sm:$0xff] %vm770, %v508
      %1096 = vst.msk [vmem:[#allocation2 + $0x58] sm:$0xff] %vm770, %v509
      %1097 = vst.msk [vmem:[#allocation2 + $0x60] sm:$0xff] %vm770, %v510
      %1098 = vst.msk [vmem:[#allocation2 + $0x68] sm:$0xff] %vm770, %v511
      %1099 = vst.msk [vmem:[#allocation2 + $0x70] sm:$0xff] %vm770, %v512
      %1100 = vst.msk [vmem:[#allocation2 + $0x78] sm:$0xff] %vm770, %v513
      %1101 = vset.pattern.permute.xlu0 1
      %1102 = vperm.xlu0 %1101, %v285
      %v1103 = vpop.permute.xlu0 %1102
      %1105 = vset.pattern.permute.xlu0 1
      %1106 = vperm.xlu0 %1105, %v286
      %v1107 = vpop.permute.xlu0 %1106
      %1109 = vset.pattern.permute.xlu0 1
      %1110 = vperm.xlu0 %1109, %v287
      %v1111 = vpop.permute.xlu0 %1110
      %1113 = vset.pattern.permute.xlu0 1
      %1114 = vperm.xlu0 %1113, %v288
      %v1115 = vpop.permute.xlu0 %1114
      %1117 = vset.pattern.permute.xlu0 1
      %1118 = vperm.xlu0 %1117, %v289
      %v1119 = vpop.permute.xlu0 %1118
      %1121 = vset.pattern.permute.xlu0 1
      %1122 = vperm.xlu0 %1121, %v290
      %v1123 = vpop.permute.xlu0 %1122
      %1125 = vset.pattern.permute.xlu0 1
      %1126 = vperm.xlu0 %1125, %v291
      %v1127 = vpop.permute.xlu0 %1126
      %1129 = vset.pattern.permute.xlu0 1
      %1130 = vperm.xlu0 %1129, %v292
      %v1131 = vpop.permute.xlu0 %1130
      %1133 = vset.pattern.permute.xlu0 1
      %1134 = vperm.xlu0 %1133, %v293
      %v1135 = vpop.permute.xlu0 %1134
      %1137 = vset.pattern.permute.xlu0 1
      %1138 = vperm.xlu0 %1137, %v294
      %v1139 = vpop.permute.xlu0 %1138
      %1141 = vset.pattern.permute.xlu0 1
      %1142 = vperm.xlu0 %1141, %v295
      %v1143 = vpop.permute.xlu0 %1142
      %1145 = vset.pattern.permute.xlu0 1
      %1146 = vperm.xlu0 %1145, %v296
      %v1147 = vpop.permute.xlu0 %1146
      %1149 = vset.pattern.permute.xlu0 1
      %1150 = vperm.xlu0 %1149, %v297
      %v1151 = vpop.permute.xlu0 %1150
      %1153 = vset.pattern.permute.xlu0 1
      %1154 = vperm.xlu0 %1153, %v298
      %v1155 = vpop.permute.xlu0 %1154
      %1157 = vset.pattern.permute.xlu0 1
      %1158 = vperm.xlu0 %1157, %v299
      %v1159 = vpop.permute.xlu0 %1158
      %1161 = vset.pattern.permute.xlu0 1
      %1162 = vperm.xlu0 %1161, %v300
      %v1163 = vpop.permute.xlu0 %1162
      %v1165 = vlaneseq
      %v1166 = vshrl.u32 %v1165, 7
      %v1167 = vsub.s32 1, %v1166
      %v1168 = vrot.slane %v301, %v1167
      %v1169 = vadd.f32 %v1103, %v1168
      %v1170 = vadd.f32 %v1107, %v1168
      %v1171 = vadd.f32 %v1111, %v1168
      %v1172 = vadd.f32 %v1115, %v1168
      %v1173 = vadd.f32 %v1119, %v1168
      %v1174 = vadd.f32 %v1123, %v1168
      %v1175 = vadd.f32 %v1127, %v1168
      %v1176 = vadd.f32 %v1131, %v1168
      %v1177 = vadd.f32 %v1135, %v1168
      %v1178 = vadd.f32 %v1139, %v1168
      %v1179 = vadd.f32 %v1143, %v1168
      %v1180 = vadd.f32 %v1147, %v1168
      %v1181 = vadd.f32 %v1151, %v1168
      %v1182 = vadd.f32 %v1155, %v1168
      %v1183 = vadd.f32 %v1159, %v1168
      %v1184 = vadd.f32 %v1163, %v1168
      %v1185 = vmul.f32 %v1169, 0.2
      %v1186 = vmul.f32 %v1170, 0.2
      %v1187 = vmul.f32 %v1171, 0.2
      %v1188 = vmul.f32 %v1172, 0.2
      %v1189 = vmul.f32 %v1173, 0.2
      %v1190 = vmul.f32 %v1174, 0.2
      %v1191 = vmul.f32 %v1175, 0.2
      %v1192 = vmul.f32 %v1176, 0.2
      %v1193 = vmul.f32 %v1177, 0.2
      %v1194 = vmul.f32 %v1178, 0.2
      %v1195 = vmul.f32 %v1179, 0.2
      %v1196 = vmul.f32 %v1180, 0.2
      %v1197 = vmul.f32 %v1181, 0.2
      %v1198 = vmul.f32 %v1182, 0.2
      %v1199 = vmul.f32 %v1183, 0.2
      %v1200 = vmul.f32 %v1184, 0.2
      %v1201 = vmax.f32 %v1169, %v1185
      %v1202 = vmax.f32 %v1170, %v1186
      %v1203 = vmax.f32 %v1171, %v1187
      %v1204 = vmax.f32 %v1172, %v1188
      %v1205 = vmax.f32 %v1173, %v1189
      %v1206 = vmax.f32 %v1174, %v1190
      %v1207 = vmax.f32 %v1175, %v1191
      %v1208 = vmax.f32 %v1176, %v1192
      %v1209 = vmax.f32 %v1177, %v1193
      %v1210 = vmax.f32 %v1178, %v1194
      %v1211 = vmax.f32 %v1179, %v1195
      %v1212 = vmax.f32 %v1180, %v1196
      %v1213 = vmax.f32 %v1181, %v1197
      %v1214 = vmax.f32 %v1182, %v1198
      %v1215 = vmax.f32 %v1183, %v1199
      %v1216 = vmax.f32 %v1184, %v1200
      %v1217 = vadd.f32 %v1201, %v253
      %v1218 = vadd.f32 %v1202, %v254
      %v1219 = vadd.f32 %v1203, %v255
      %v1220 = vadd.f32 %v1204, %v256
      %v1221 = vadd.f32 %v1205, %v257
      %v1222 = vadd.f32 %v1206, %v258
      %v1223 = vadd.f32 %v1207, %v259
      %v1224 = vadd.f32 %v1208, %v260
      %v1225 = vadd.f32 %v1209, %v261
      %v1226 = vadd.f32 %v1210, %v262
      %v1227 = vadd.f32 %v1211, %v263
      %v1228 = vadd.f32 %v1212, %v264
      %v1229 = vadd.f32 %v1213, %v265
      %v1230 = vadd.f32 %v1214, %v266
      %v1231 = vadd.f32 %v1215, %v267
      %v1232 = vadd.f32 %v1216, %v268
      %s1233 = scalar_lea.vmem [#allocation2], 128
      %v1234 = vld [vmem:[%s1233] sm:$0xff]
      %v1235 = vld [vmem:[%s1233 + $0x8] sm:$0xff]
      %v1236 = vld [vmem:[%s1233 + $0x10] sm:$0xff]
      %v1237 = vld [vmem:[%s1233 + $0x18] sm:$0xff]
      %v1238 = vld [vmem:[%s1233 + $0x20] sm:$0xff]
      %v1239 = vld [vmem:[%s1233 + $0x28] sm:$0xff]
      %v1240 = vld [vmem:[%s1233 + $0x30] sm:$0xff]
      %v1241 = vld [vmem:[%s1233 + $0x38] sm:$0xff]
      %v1242 = vld [vmem:[%s1233 + $0x40] sm:$0xff]
      %v1243 = vld [vmem:[%s1233 + $0x48] sm:$0xff]
      %v1244 = vld [vmem:[%s1233 + $0x50] sm:$0xff]
      %v1245 = vld [vmem:[%s1233 + $0x58] sm:$0xff]
      %v1246 = vld [vmem:[%s1233 + $0x60] sm:$0xff]
      %v1247 = vld [vmem:[%s1233 + $0x68] sm:$0xff]
      %v1248 = vld [vmem:[%s1233 + $0x70] sm:$0xff]
      %v1249 = vld [vmem:[%s1233 + $0x78] sm:$0xff]
      %1250 = vmax.xlane.f32.xlu0 %v1217
      %v1251 = vpop.xlane.xlu0 %1250
      %1252 = vmax.xlane.f32.xlu0 %v1218
      %v1253 = vpop.xlane.xlu0 %1252
      %1254 = vmax.xlane.f32.xlu0 %v1219
      %v1255 = vpop.xlane.xlu0 %1254
      %1256 = vmax.xlane.f32.xlu0 %v1220
      %v1257 = vpop.xlane.xlu0 %1256
      %1258 = vmax.xlane.f32.xlu0 %v1221
      %v1259 = vpop.xlane.xlu0 %1258
      %1260 = vmax.xlane.f32.xlu0 %v1222
      %v1261 = vpop.xlane.xlu0 %1260
      %1262 = vmax.xlane.f32.xlu0 %v1223
      %v1263 = vpop.xlane.xlu0 %1262
      %1264 = vmax.xlane.f32.xlu0 %v1224
      %v1265 = vpop.xlane.xlu0 %1264
      %1266 = vmax.xlane.f32.xlu0 %v1225
      %v1267 = vpop.xlane.xlu0 %1266
      %1268 = vmax.xlane.f32.xlu0 %v1226
      %v1269 = vpop.xlane.xlu0 %1268
      %1270 = vmax.xlane.f32.xlu0 %v1227
      %v1271 = vpop.xlane.xlu0 %1270
      %1272 = vmax.xlane.f32.xlu0 %v1228
      %v1273 = vpop.xlane.xlu0 %1272
      %1274 = vmax.xlane.f32.xlu0 %v1229
      %v1275 = vpop.xlane.xlu0 %1274
      %1276 = vmax.xlane.f32.xlu0 %v1230
      %v1277 = vpop.xlane.xlu0 %1276
      %1278 = vmax.xlane.f32.xlu0 %v1231
      %v1279 = vpop.xlane.xlu0 %1278
      %1280 = vmax.xlane.f32.xlu0 %v1232
      %v1281 = vpop.xlane.xlu0 %1280
      %v1282 = vmax.f32 %v1234, %v1251
      %v1283 = vmax.f32 %v1235, %v1253
      %v1284 = vmax.f32 %v1236, %v1255
      %v1285 = vmax.f32 %v1237, %v1257
      %v1286 = vmax.f32 %v1238, %v1259
      %v1287 = vmax.f32 %v1239, %v1261
      %v1288 = vmax.f32 %v1240, %v1263
      %v1289 = vmax.f32 %v1241, %v1265
      %v1290 = vmax.f32 %v1242, %v1267
      %v1291 = vmax.f32 %v1243, %v1269
      %v1292 = vmax.f32 %v1244, %v1271
      %v1293 = vmax.f32 %v1245, %v1273
      %v1294 = vmax.f32 %v1246, %v1275
      %v1295 = vmax.f32 %v1247, %v1277
      %v1296 = vmax.f32 %v1248, %v1279
      %v1297 = vmax.f32 %v1249, %v1281
      %v1298 = vsub.f32 %v1234, %v1282
      %v1299 = vsub.f32 %v1235, %v1283
      %v1300 = vsub.f32 %v1236, %v1284
      %v1301 = vsub.f32 %v1237, %v1285
      %v1302 = vsub.f32 %v1238, %v1286
      %v1303 = vsub.f32 %v1239, %v1287
      %v1304 = vsub.f32 %v1240, %v1288
      %v1305 = vsub.f32 %v1241, %v1289
      %v1306 = vsub.f32 %v1242, %v1290
      %v1307 = vsub.f32 %v1243, %v1291
      %v1308 = vsub.f32 %v1244, %v1292
      %v1309 = vsub.f32 %v1245, %v1293
      %v1310 = vsub.f32 %v1246, %v1294
      %v1311 = vsub.f32 %v1247, %v1295
      %v1312 = vsub.f32 %v1248, %v1296
      %v1313 = vsub.f32 %v1249, %v1297
      %v1314 = vmul.f32 %v1298, 1.442695
      %v1315 = vpow.pop %v1314
      %v1316 = vmul.f32 %v1299, 1.442695
      %v1317 = vpow.pop %v1316
      %v1318 = vmul.f32 %v1300, 1.442695
      %v1319 = vpow.pop %v1318
      %v1320 = vmul.f32 %v1301, 1.442695
      %v1321 = vpow.pop %v1320
      %v1322 = vmul.f32 %v1302, 1.442695
      %v1323 = vpow.pop %v1322
      %v1324 = vmul.f32 %v1303, 1.442695
      %v1325 = vpow.pop %v1324
      %v1326 = vmul.f32 %v1304, 1.442695
      %v1327 = vpow.pop %v1326
      %v1328 = vmul.f32 %v1305, 1.442695
      %v1329 = vpow.pop %v1328
      %v1330 = vmul.f32 %v1306, 1.442695
      %v1331 = vpow.pop %v1330
      %v1332 = vmul.f32 %v1307, 1.442695
      %v1333 = vpow.pop %v1332
      %v1334 = vmul.f32 %v1308, 1.442695
      %v1335 = vpow.pop %v1334
      %v1336 = vmul.f32 %v1309, 1.442695
      %v1337 = vpow.pop %v1336
      %v1338 = vmul.f32 %v1310, 1.442695
      %v1339 = vpow.pop %v1338
      %v1340 = vmul.f32 %v1311, 1.442695
      %v1341 = vpow.pop %v1340
      %v1342 = vmul.f32 %v1312, 1.442695
      %v1343 = vpow.pop %v1342
      %v1344 = vmul.f32 %v1313, 1.442695
      %v1345 = vpow.pop %v1344
      %1347 = vset.pattern.permute.xlu0 0
      %1348 = vperm.xlu0 %1347, %v1282
      %v1349 = vpop.permute.xlu0 %1348
      %1352 = vset.pattern.permute.xlu0 0
      %1353 = vperm.xlu0 %1352, %v1283
      %v1354 = vpop.permute.xlu0 %1353
      %1357 = vset.pattern.permute.xlu0 0
      %1358 = vperm.xlu0 %1357, %v1284
      %v1359 = vpop.permute.xlu0 %1358
      %1362 = vset.pattern.permute.xlu0 0
      %1363 = vperm.xlu0 %1362, %v1285
      %v1364 = vpop.permute.xlu0 %1363
      %1367 = vset.pattern.permute.xlu0 0
      %1368 = vperm.xlu0 %1367, %v1286
      %v1369 = vpop.permute.xlu0 %1368
      %1372 = vset.pattern.permute.xlu0 0
      %1373 = vperm.xlu0 %1372, %v1287
      %v1374 = vpop.permute.xlu0 %1373
      %1377 = vset.pattern.permute.xlu0 0
      %1378 = vperm.xlu0 %1377, %v1288
      %v1379 = vpop.permute.xlu0 %1378
      %1382 = vset.pattern.permute.xlu0 0
      %1383 = vperm.xlu0 %1382, %v1289
      %v1384 = vpop.permute.xlu0 %1383
      %1387 = vset.pattern.permute.xlu0 0
      %1388 = vperm.xlu0 %1387, %v1290
      %v1389 = vpop.permute.xlu0 %1388
      %1392 = vset.pattern.permute.xlu0 0
      %1393 = vperm.xlu0 %1392, %v1291
      %v1394 = vpop.permute.xlu0 %1393
      %1397 = vset.pattern.permute.xlu0 0
      %1398 = vperm.xlu0 %1397, %v1292
      %v1399 = vpop.permute.xlu0 %1398
      %1402 = vset.pattern.permute.xlu0 0
      %1403 = vperm.xlu0 %1402, %v1293
      %v1404 = vpop.permute.xlu0 %1403
      %1407 = vset.pattern.permute.xlu0 0
      %1408 = vperm.xlu0 %1407, %v1294
      %v1409 = vpop.permute.xlu0 %1408
      %1412 = vset.pattern.permute.xlu0 0
      %1413 = vperm.xlu0 %1412, %v1295
      %v1414 = vpop.permute.xlu0 %1413
      %1417 = vset.pattern.permute.xlu0 0
      %1418 = vperm.xlu0 %1417, %v1296
      %v1419 = vpop.permute.xlu0 %1418
      %1422 = vset.pattern.permute.xlu0 0
      %1423 = vperm.xlu0 %1422, %v1297
      %v1424 = vpop.permute.xlu0 %1423
      %v1426 = vsub.f32 %v1217, %v1349
      %v1427 = vsub.f32 %v1218, %v1354
      %v1428 = vsub.f32 %v1219, %v1359
      %v1429 = vsub.f32 %v1220, %v1364
      %v1430 = vsub.f32 %v1221, %v1369
      %v1431 = vsub.f32 %v1222, %v1374
      %v1432 = vsub.f32 %v1223, %v1379
      %v1433 = vsub.f32 %v1224, %v1384
      %v1434 = vsub.f32 %v1225, %v1389
      %v1435 = vsub.f32 %v1226, %v1394
      %v1436 = vsub.f32 %v1227, %v1399
      %v1437 = vsub.f32 %v1228, %v1404
      %v1438 = vsub.f32 %v1229, %v1409
      %v1439 = vsub.f32 %v1230, %v1414
      %v1440 = vsub.f32 %v1231, %v1419
      %v1441 = vsub.f32 %v1232, %v1424
      %v1442 = vmul.f32 %v1426, 1.442695
      %v1443 = vpow.pop %v1442
      %v1444 = vmul.f32 %v1427, 1.442695
      %v1445 = vpow.pop %v1444
      %v1446 = vmul.f32 %v1428, 1.442695
      %v1447 = vpow.pop %v1446
      %v1448 = vmul.f32 %v1429, 1.442695
      %v1449 = vpow.pop %v1448
      %v1450 = vmul.f32 %v1430, 1.442695
      %v1451 = vpow.pop %v1450
      %v1452 = vmul.f32 %v1431, 1.442695
      %v1453 = vpow.pop %v1452
      %v1454 = vmul.f32 %v1432, 1.442695
      %v1455 = vpow.pop %v1454
      %v1456 = vmul.f32 %v1433, 1.442695
      %v1457 = vpow.pop %v1456
      %v1458 = vmul.f32 %v1434, 1.442695
      %v1459 = vpow.pop %v1458
      %v1460 = vmul.f32 %v1435, 1.442695
      %v1461 = vpow.pop %v1460
      %v1462 = vmul.f32 %v1436, 1.442695
      %v1463 = vpow.pop %v1462
      %v1464 = vmul.f32 %v1437, 1.442695
      %v1465 = vpow.pop %v1464
      %v1466 = vmul.f32 %v1438, 1.442695
      %v1467 = vpow.pop %v1466
      %v1468 = vmul.f32 %v1439, 1.442695
      %v1469 = vpow.pop %v1468
      %v1470 = vmul.f32 %v1440, 1.442695
      %v1471 = vpow.pop %v1470
      %v1472 = vmul.f32 %v1441, 1.442695
      %v1473 = vpow.pop %v1472
      %s1474 = scalar_lea.vmem [#allocation3], 128
      %v1475 = vld [vmem:[%s1474] sm:$0xff]
      %v1476 = vld [vmem:[%s1474 + $0x8] sm:$0xff]
      %v1477 = vld [vmem:[%s1474 + $0x10] sm:$0xff]
      %v1478 = vld [vmem:[%s1474 + $0x18] sm:$0xff]
      %v1479 = vld [vmem:[%s1474 + $0x20] sm:$0xff]
      %v1480 = vld [vmem:[%s1474 + $0x28] sm:$0xff]
      %v1481 = vld [vmem:[%s1474 + $0x30] sm:$0xff]
      %v1482 = vld [vmem:[%s1474 + $0x38] sm:$0xff]
      %v1483 = vld [vmem:[%s1474 + $0x40] sm:$0xff]
      %v1484 = vld [vmem:[%s1474 + $0x48] sm:$0xff]
      %v1485 = vld [vmem:[%s1474 + $0x50] sm:$0xff]
      %v1486 = vld [vmem:[%s1474 + $0x58] sm:$0xff]
      %v1487 = vld [vmem:[%s1474 + $0x60] sm:$0xff]
      %v1488 = vld [vmem:[%s1474 + $0x68] sm:$0xff]
      %v1489 = vld [vmem:[%s1474 + $0x70] sm:$0xff]
      %v1490 = vld [vmem:[%s1474 + $0x78] sm:$0xff]
      %v1491 = vmul.f32 %v1315, %v1475
      %v1492 = vmul.f32 %v1317, %v1476
      %v1493 = vmul.f32 %v1319, %v1477
      %v1494 = vmul.f32 %v1321, %v1478
      %v1495 = vmul.f32 %v1323, %v1479
      %v1496 = vmul.f32 %v1325, %v1480
      %v1497 = vmul.f32 %v1327, %v1481
      %v1498 = vmul.f32 %v1329, %v1482
      %v1499 = vmul.f32 %v1331, %v1483
      %v1500 = vmul.f32 %v1333, %v1484
      %v1501 = vmul.f32 %v1335, %v1485
      %v1502 = vmul.f32 %v1337, %v1486
      %v1503 = vmul.f32 %v1339, %v1487
      %v1504 = vmul.f32 %v1341, %v1488
      %v1505 = vmul.f32 %v1343, %v1489
      %v1506 = vmul.f32 %v1345, %v1490
      %1507 = vadd.xlane.f32.xlu0 %v1443
      %v1508 = vpop.xlane.xlu0 %1507
      %1509 = vadd.xlane.f32.xlu0 %v1445
      %v1510 = vpop.xlane.xlu0 %1509
      %1511 = vadd.xlane.f32.xlu0 %v1447
      %v1512 = vpop.xlane.xlu0 %1511
      %1513 = vadd.xlane.f32.xlu0 %v1449
      %v1514 = vpop.xlane.xlu0 %1513
      %1515 = vadd.xlane.f32.xlu0 %v1451
      %v1516 = vpop.xlane.xlu0 %1515
      %1517 = vadd.xlane.f32.xlu0 %v1453
      %v1518 = vpop.xlane.xlu0 %1517
      %1519 = vadd.xlane.f32.xlu0 %v1455
      %v1520 = vpop.xlane.xlu0 %1519
      %1521 = vadd.xlane.f32.xlu0 %v1457
      %v1522 = vpop.xlane.xlu0 %1521
      %1523 = vadd.xlane.f32.xlu0 %v1459
      %v1524 = vpop.xlane.xlu0 %1523
      %1525 = vadd.xlane.f32.xlu0 %v1461
      %v1526 = vpop.xlane.xlu0 %1525
      %1527 = vadd.xlane.f32.xlu0 %v1463
      %v1528 = vpop.xlane.xlu0 %1527
      %1529 = vadd.xlane.f32.xlu0 %v1465
      %v1530 = vpop.xlane.xlu0 %1529
      %1531 = vadd.xlane.f32.xlu0 %v1467
      %v1532 = vpop.xlane.xlu0 %1531
      %1533 = vadd.xlane.f32.xlu0 %v1469
      %v1534 = vpop.xlane.xlu0 %1533
      %1535 = vadd.xlane.f32.xlu0 %v1471
      %v1536 = vpop.xlane.xlu0 %1535
      %1537 = vadd.xlane.f32.xlu0 %v1473
      %v1538 = vpop.xlane.xlu0 %1537
      %v1539 = vadd.f32 %v1491, %v1508
      %v1540 = vadd.f32 %v1492, %v1510
      %v1541 = vadd.f32 %v1493, %v1512
      %v1542 = vadd.f32 %v1494, %v1514
      %v1543 = vadd.f32 %v1495, %v1516
      %v1544 = vadd.f32 %v1496, %v1518
      %v1545 = vadd.f32 %v1497, %v1520
      %v1546 = vadd.f32 %v1498, %v1522
      %v1547 = vadd.f32 %v1499, %v1524
      %v1548 = vadd.f32 %v1500, %v1526
      %v1549 = vadd.f32 %v1501, %v1528
      %v1550 = vadd.f32 %v1502, %v1530
      %v1551 = vadd.f32 %v1503, %v1532
      %v1552 = vadd.f32 %v1504, %v1534
      %v1553 = vadd.f32 %v1505, %v1536
      %v1554 = vadd.f32 %v1506, %v1538
      %1555 = vst.msk [vmem:[%s1474] sm:$0xff] %vm770, %v1539
      %1556 = vst.msk [vmem:[%s1474 + $0x8] sm:$0xff] %vm770, %v1540
      %1557 = vst.msk [vmem:[%s1474 + $0x10] sm:$0xff] %vm770, %v1541
      %1558 = vst.msk [vmem:[%s1474 + $0x18] sm:$0xff] %vm770, %v1542
      %1559 = vst.msk [vmem:[%s1474 + $0x20] sm:$0xff] %vm770, %v1543
      %1560 = vst.msk [vmem:[%s1474 + $0x28] sm:$0xff] %vm770, %v1544
      %1561 = vst.msk [vmem:[%s1474 + $0x30] sm:$0xff] %vm770, %v1545
      %1562 = vst.msk [vmem:[%s1474 + $0x38] sm:$0xff] %vm770, %v1546
      %1563 = vst.msk [vmem:[%s1474 + $0x40] sm:$0xff] %vm770, %v1547
      %1564 = vst.msk [vmem:[%s1474 + $0x48] sm:$0xff] %vm770, %v1548
      %1565 = vst.msk [vmem:[%s1474 + $0x50] sm:$0xff] %vm770, %v1549
      %1566 = vst.msk [vmem:[%s1474 + $0x58] sm:$0xff] %vm770, %v1550
      %1567 = vst.msk [vmem:[%s1474 + $0x60] sm:$0xff] %vm770, %v1551
      %1568 = vst.msk [vmem:[%s1474 + $0x68] sm:$0xff] %vm770, %v1552
      %1569 = vst.msk [vmem:[%s1474 + $0x70] sm:$0xff] %vm770, %v1553
      %1570 = vst.msk [vmem:[%s1474 + $0x78] sm:$0xff] %vm770, %v1554
      %s1571 = scalar_lea.vmem [#allocation4], 128
      %v1572 = vld [vmem:[%s1571] sm:$0xff]
      %v1573 = vld [vmem:[%s1571 + $0x8] sm:$0xff]
      %v1574 = vld [vmem:[%s1571 + $0x10] sm:$0xff]
      %v1575 = vld [vmem:[%s1571 + $0x18] sm:$0xff]
      %v1576 = vld [vmem:[%s1571 + $0x20] sm:$0xff]
      %v1577 = vld [vmem:[%s1571 + $0x28] sm:$0xff]
      %v1578 = vld [vmem:[%s1571 + $0x30] sm:$0xff]
      %v1579 = vld [vmem:[%s1571 + $0x38] sm:$0xff]
      %v1580 = vld [vmem:[%s1571 + $0x40] sm:$0xff]
      %v1581 = vld [vmem:[%s1571 + $0x48] sm:$0xff]
      %v1582 = vld [vmem:[%s1571 + $0x50] sm:$0xff]
      %v1583 = vld [vmem:[%s1571 + $0x58] sm:$0xff]
      %v1584 = vld [vmem:[%s1571 + $0x60] sm:$0xff]
      %v1585 = vld [vmem:[%s1571 + $0x68] sm:$0xff]
      %v1586 = vld [vmem:[%s1571 + $0x70] sm:$0xff]
      %v1587 = vld [vmem:[%s1571 + $0x78] sm:$0xff]
      %1589 = vset.pattern.permute.xlu0 0
      %1590 = vperm.xlu0 %1589, %v1315
      %v1591 = vpop.permute.xlu0 %1590
      %1594 = vset.pattern.permute.xlu0 0
      %1595 = vperm.xlu0 %1594, %v1317
      %v1596 = vpop.permute.xlu0 %1595
      %1599 = vset.pattern.permute.xlu0 0
      %1600 = vperm.xlu0 %1599, %v1319
      %v1601 = vpop.permute.xlu0 %1600
      %1604 = vset.pattern.permute.xlu0 0
      %1605 = vperm.xlu0 %1604, %v1321
      %v1606 = vpop.permute.xlu0 %1605
      %1609 = vset.pattern.permute.xlu0 0
      %1610 = vperm.xlu0 %1609, %v1323
      %v1611 = vpop.permute.xlu0 %1610
      %1614 = vset.pattern.permute.xlu0 0
      %1615 = vperm.xlu0 %1614, %v1325
      %v1616 = vpop.permute.xlu0 %1615
      %1619 = vset.pattern.permute.xlu0 0
      %1620 = vperm.xlu0 %1619, %v1327
      %v1621 = vpop.permute.xlu0 %1620
      %1624 = vset.pattern.permute.xlu0 0
      %1625 = vperm.xlu0 %1624, %v1329
      %v1626 = vpop.permute.xlu0 %1625
      %1629 = vset.pattern.permute.xlu0 0
      %1630 = vperm.xlu0 %1629, %v1331
      %v1631 = vpop.permute.xlu0 %1630
      %1634 = vset.pattern.permute.xlu0 0
      %1635 = vperm.xlu0 %1634, %v1333
      %v1636 = vpop.permute.xlu0 %1635
      %1639 = vset.pattern.permute.xlu0 0
      %1640 = vperm.xlu0 %1639, %v1335
      %v1641 = vpop.permute.xlu0 %1640
      %1644 = vset.pattern.permute.xlu0 0
      %1645 = vperm.xlu0 %1644, %v1337
      %v1646 = vpop.permute.xlu0 %1645
      %1649 = vset.pattern.permute.xlu0 0
      %1650 = vperm.xlu0 %1649, %v1339
      %v1651 = vpop.permute.xlu0 %1650
      %1654 = vset.pattern.permute.xlu0 0
      %1655 = vperm.xlu0 %1654, %v1341
      %v1656 = vpop.permute.xlu0 %1655
      %1659 = vset.pattern.permute.xlu0 0
      %1660 = vperm.xlu0 %1659, %v1343
      %v1661 = vpop.permute.xlu0 %1660
      %1664 = vset.pattern.permute.xlu0 0
      %1665 = vperm.xlu0 %1664, %v1345
      %v1666 = vpop.permute.xlu0 %1665
      %v1668 = vmul.f32 %v1591, %v1572
      %v1669 = vmul.f32 %v1596, %v1573
      %v1670 = vmul.f32 %v1601, %v1574
      %v1671 = vmul.f32 %v1606, %v1575
      %v1672 = vmul.f32 %v1611, %v1576
      %v1673 = vmul.f32 %v1616, %v1577
      %v1674 = vmul.f32 %v1621, %v1578
      %v1675 = vmul.f32 %v1626, %v1579
      %v1676 = vmul.f32 %v1631, %v1580
      %v1677 = vmul.f32 %v1636, %v1581
      %v1678 = vmul.f32 %v1641, %v1582
      %v1679 = vmul.f32 %v1646, %v1583
      %v1680 = vmul.f32 %v1651, %v1584
      %v1681 = vmul.f32 %v1656, %v1585
      %v1682 = vmul.f32 %v1661, %v1586
      %v1683 = vmul.f32 %v1666, %v1587
      %v1684 = vpack.c.bf16 %v1445, %v1443
      %v1685 = vpack.c.bf16 %v1449, %v1447
      %v1686 = vpack.c.bf16 %v1453, %v1451
      %v1687 = vpack.c.bf16 %v1457, %v1455
      %v1688 = vpack.c.bf16 %v1461, %v1459
      %v1689 = vpack.c.bf16 %v1465, %v1463
      %v1690 = vpack.c.bf16 %v1469, %v1467
      %v1691 = vpack.c.bf16 %v1473, %v1471
      %1692 = vrot.lane.b32.xlu0 %v939, 112
      %v1693 = vpop.permute.xlu0 %1692
      %1694 = vrot.lane.b32.xlu0 %v940, 112
      %v1695 = vpop.permute.xlu0 %1694
      %1696 = vrot.lane.b32.xlu0 %v941, 112
      %v1697 = vpop.permute.xlu0 %1696
      %1698 = vrot.lane.b32.xlu0 %v942, 112
      %v1699 = vpop.permute.xlu0 %1698
      %1700 = vrot.lane.b32.xlu0 %v943, 112
      %v1701 = vpop.permute.xlu0 %1700
      %1702 = vrot.lane.b32.xlu0 %v944, 112
      %v1703 = vpop.permute.xlu0 %1702
      %1704 = vrot.lane.b32.xlu0 %v945, 112
      %v1705 = vpop.permute.xlu0 %1704
      %1706 = vrot.lane.b32.xlu0 %v946, 112
      %v1707 = vpop.permute.xlu0 %1706
      %1716 = vmatprep.subr.bf16.mxu0 0
      %1717 = vmatpush1.bf16.msra.mxu0 %v1693
      %1718 = vmatprep.subr.bf16.mxu0 0
      %1719 = vmatpush1.bf16.msra.mxu0 %v1695
      %1720 = vmatprep.subr.bf16.mxu0 0
      %1721 = vmatpush1.bf16.msra.mxu0 %v1697
      %1722 = vmatprep.subr.bf16.mxu0 0
      %1723 = vmatpush1.bf16.msra.mxu0 %v1699
      %1724 = vmatprep.subr.bf16.mxu0 0
      %1725 = vmatpush1.bf16.msra.mxu0 %v1701
      %1726 = vmatprep.subr.bf16.mxu0 0
      %1727 = vmatpush1.bf16.msra.mxu0 %v1703
      %1728 = vmatprep.subr.bf16.mxu0 0
      %1729 = vmatpush1.bf16.msra.mxu0 %v1705
      %1730 = vmatprep.subr.bf16.mxu0 0
      %1731 = vmatpush1.bf16.msra.mxu0 %v1707
      %1732 = vmatprep.subr.bf16.mxu0 0
      %1733 = vmatpush1.bf16.msra.mxu0 0
      %1734 = vmatprep.subr.bf16.mxu0 0
      %1735 = vmatpush1.bf16.msra.mxu0 0
      %1736 = vmatprep.subr.bf16.mxu0 0
      %1737 = vmatpush1.bf16.msra.mxu0 0
      %1738 = vmatprep.subr.bf16.mxu0 0
      %1739 = vmatpush1.bf16.msra.mxu0 0
      %1740 = vmatprep.subr.bf16.mxu0 0
      %1741 = vmatpush1.bf16.msra.mxu0 0
      %1742 = vmatprep.subr.bf16.mxu0 0
      %1743 = vmatpush1.bf16.msra.mxu0 0
      %1744 = vmatprep.subr.bf16.mxu0 0
      %1745 = vmatpush1.bf16.msra.mxu0 0
      %1746 = vmatprep.subr.bf16.mxu0 0
      %1747 = vmatpush1.bf16.msra.mxu0 0
      %1748 = vmatprep.mubr.bf16.mxu0 0
      %1749 = vmatmul.mubr.bf16.gmra.mrb[0].mxu0 %v1684
      %v1750 = vpop.f32.mrb[0].mxu0
      %v1751 = vadd.f32 0.0, %v1750
      %v1752 = vpop.f32.mrb[0].mxu0
      %v1753 = vpop.f32.mrb[0].mxu0
      %v1754 = vadd.f32 0.0, %v1753
      %v1755 = vpop.f32.mrb[0].mxu0
      %1756 = vmatprep.mubr.bf16.mxu0 0
      %1757 = vmatmul.mubr.bf16.gmra.mrb[0].mxu0 %v1685
      %v1758 = vpop.f32.mrb[0].mxu0
      %v1759 = vadd.f32 0.0, %v1758
      %v1760 = vpop.f32.mrb[0].mxu0
      %v1761 = vpop.f32.mrb[0].mxu0
      %v1762 = vadd.f32 0.0, %v1761
      %v1763 = vpop.f32.mrb[0].mxu0
      %1764 = vmatprep.mubr.bf16.mxu0 0
      %1765 = vmatmul.mubr.bf16.gmra.mrb[0].mxu0 %v1686
      %v1766 = vpop.f32.mrb[0].mxu0
      %v1767 = vadd.f32 0.0, %v1766
      %v1768 = vpop.f32.mrb[0].mxu0
      %v1769 = vpop.f32.mrb[0].mxu0
      %v1770 = vadd.f32 0.0, %v1769
      %v1771 = vpop.f32.mrb[0].mxu0
      %1772 = vmatprep.mubr.bf16.mxu0 0
      %1773 = vmatmul.mubr.bf16.gmra.mrb[0].mxu0 %v1687
      %v1774 = vpop.f32.mrb[0].mxu0
      %v1775 = vadd.f32 0.0, %v1774
      %v1776 = vpop.f32.mrb[0].mxu0
      %v1777 = vpop.f32.mrb[0].mxu0
      %v1778 = vadd.f32 0.0, %v1777
      %v1779 = vpop.f32.mrb[0].mxu0
      %1780 = vmatprep.mubr.bf16.mxu0 0
      %1781 = vmatmul.mubr.bf16.gmra.mrb[0].mxu0 %v1688
      %v1782 = vpop.f32.mrb[0].mxu0
      %v1783 = vadd.f32 0.0, %v1782
      %v1784 = vpop.f32.mrb[0].mxu0
      %v1785 = vpop.f32.mrb[0].mxu0
      %v1786 = vadd.f32 0.0, %v1785
      %v1787 = vpop.f32.mrb[0].mxu0
      %1788 = vmatprep.mubr.bf16.mxu0 0
      %1789 = vmatmul.mubr.bf16.gmra.mrb[0].mxu0 %v1689
      %v1790 = vpop.f32.mrb[0].mxu0
      %v1791 = vadd.f32 0.0, %v1790
      %v1792 = vpop.f32.mrb[0].mxu0
      %v1793 = vpop.f32.mrb[0].mxu0
      %v1794 = vadd.f32 0.0, %v1793
      %v1795 = vpop.f32.mrb[0].mxu0
      %1796 = vmatprep.mubr.bf16.mxu0 0
      %1797 = vmatmul.mubr.bf16.gmra.mrb[0].mxu0 %v1690
      %v1798 = vpop.f32.mrb[0].mxu0
      %v1799 = vadd.f32 0.0, %v1798
      %v1800 = vpop.f32.mrb[0].mxu0
      %v1801 = vpop.f32.mrb[0].mxu0
      %v1802 = vadd.f32 0.0, %v1801
      %v1803 = vpop.f32.mrb[0].mxu0
      %1804 = vmatprep.mubr.bf16.mxu0 0
      %1805 = vmatmul.mubr.bf16.gmra.mrb[0].mxu0 %v1691
      %v1806 = vpop.f32.mrb[0].mxu0
      %v1807 = vadd.f32 0.0, %v1806
      %v1808 = vpop.f32.mrb[0].mxu0
      %v1809 = vpop.f32.mrb[0].mxu0
      %v1810 = vadd.f32 0.0, %v1809
      %v1811 = vpop.f32.mrb[0].mxu0
      %1812 = vdwg.mxu0
      %v1813 = vadd.f32 %v1668, %v1751
      %v1814 = vadd.f32 %v1669, %v1754
      %v1815 = vadd.f32 %v1670, %v1759
      %v1816 = vadd.f32 %v1671, %v1762
      %v1817 = vadd.f32 %v1672, %v1767
      %v1818 = vadd.f32 %v1673, %v1770
      %v1819 = vadd.f32 %v1674, %v1775
      %v1820 = vadd.f32 %v1675, %v1778
      %v1821 = vadd.f32 %v1676, %v1783
      %v1822 = vadd.f32 %v1677, %v1786
      %v1823 = vadd.f32 %v1678, %v1791
      %v1824 = vadd.f32 %v1679, %v1794
      %v1825 = vadd.f32 %v1680, %v1799
      %v1826 = vadd.f32 %v1681, %v1802
      %v1827 = vadd.f32 %v1682, %v1807
      %v1828 = vadd.f32 %v1683, %v1810
      %1829 = vst.msk [vmem:[%s1571] sm:$0xff] %vm1068, %v1813
      %1830 = vst.msk [vmem:[%s1571 + $0x8] sm:$0xff] %vm1068, %v1814
      %1831 = vst.msk [vmem:[%s1571 + $0x10] sm:$0xff] %vm1068, %v1815
      %1832 = vst.msk [vmem:[%s1571 + $0x18] sm:$0xff] %vm1068, %v1816
      %1833 = vst.msk [vmem:[%s1571 + $0x20] sm:$0xff] %vm1068, %v1817
      %1834 = vst.msk [vmem:[%s1571 + $0x28] sm:$0xff] %vm1068, %v1818
      %1835 = vst.msk [vmem:[%s1571 + $0x30] sm:$0xff] %vm1068, %v1819
      %1836 = vst.msk [vmem:[%s1571 + $0x38] sm:$0xff] %vm1068, %v1820
      %1837 = vst.msk [vmem:[%s1571 + $0x40] sm:$0xff] %vm1068, %v1821
      %1838 = vst.msk [vmem:[%s1571 + $0x48] sm:$0xff] %vm1068, %v1822
      %1839 = vst.msk [vmem:[%s1571 + $0x50] sm:$0xff] %vm1068, %v1823
      %1840 = vst.msk [vmem:[%s1571 + $0x58] sm:$0xff] %vm1068, %v1824
      %1841 = vst.msk [vmem:[%s1571 + $0x60] sm:$0xff] %vm1068, %v1825
      %1842 = vst.msk [vmem:[%s1571 + $0x68] sm:$0xff] %vm1068, %v1826
      %1843 = vst.msk [vmem:[%s1571 + $0x70] sm:$0xff] %vm1068, %v1827
      %1844 = vst.msk [vmem:[%s1571 + $0x78] sm:$0xff] %vm1068, %v1828
      %1845 = vst.msk [vmem:[%s1233] sm:$0xff] %vm770, %v1282
      %1846 = vst.msk [vmem:[%s1233 + $0x8] sm:$0xff] %vm770, %v1283
      %1847 = vst.msk [vmem:[%s1233 + $0x10] sm:$0xff] %vm770, %v1284
      %1848 = vst.msk [vmem:[%s1233 + $0x18] sm:$0xff] %vm770, %v1285
      %1849 = vst.msk [vmem:[%s1233 + $0x20] sm:$0xff] %vm770, %v1286
      %1850 = vst.msk [vmem:[%s1233 + $0x28] sm:$0xff] %vm770, %v1287
      %1851 = vst.msk [vmem:[%s1233 + $0x30] sm:$0xff] %vm770, %v1288
      %1852 = vst.msk [vmem:[%s1233 + $0x38] sm:$0xff] %vm770, %v1289
      %1853 = vst.msk [vmem:[%s1233 + $0x40] sm:$0xff] %vm770, %v1290
      %1854 = vst.msk [vmem:[%s1233 + $0x48] sm:$0xff] %vm770, %v1291
      %1855 = vst.msk [vmem:[%s1233 + $0x50] sm:$0xff] %vm770, %v1292
      %1856 = vst.msk [vmem:[%s1233 + $0x58] sm:$0xff] %vm770, %v1293
      %1857 = vst.msk [vmem:[%s1233 + $0x60] sm:$0xff] %vm770, %v1294
      %1858 = vst.msk [vmem:[%s1233 + $0x68] sm:$0xff] %vm770, %v1295
      %1859 = vst.msk [vmem:[%s1233 + $0x70] sm:$0xff] %vm770, %v1296
      %1860 = vst.msk [vmem:[%s1233 + $0x78] sm:$0xff] %vm770, %v1297
    $region49: #{gat_forward.5} parent=1 // pred_fallthru
      _
    // Predicated region
    $region50: #{gat_forward.5} parent=1 // pred_check
      %p1861 = pneg %p110
    $region51: #{gat_forward.5} parent=1 // pred_check_branch
      %1863 = sbr.rel (%p1861) target = $region53
    $region52: #{gat_forward.5} parent=1 // pred_region
      %v1864 = vld [vmem:[#allocation3] sm:$0xff]
      %v1865 = vld [vmem:[#allocation3 + $0x8] sm:$0xff]
      %v1866 = vld [vmem:[#allocation3 + $0x10] sm:$0xff]
      %v1867 = vld [vmem:[#allocation3 + $0x18] sm:$0xff]
      %v1868 = vld [vmem:[#allocation3 + $0x20] sm:$0xff]
      %v1869 = vld [vmem:[#allocation3 + $0x28] sm:$0xff]
      %v1870 = vld [vmem:[#allocation3 + $0x30] sm:$0xff]
      %v1871 = vld [vmem:[#allocation3 + $0x38] sm:$0xff]
      %v1872 = vld [vmem:[#allocation3 + $0x40] sm:$0xff]
      %v1873 = vld [vmem:[#allocation3 + $0x48] sm:$0xff]
      %v1874 = vld [vmem:[#allocation3 + $0x50] sm:$0xff]
      %v1875 = vld [vmem:[#allocation3 + $0x58] sm:$0xff]
      %v1876 = vld [vmem:[#allocation3 + $0x60] sm:$0xff]
      %v1877 = vld [vmem:[#allocation3 + $0x68] sm:$0xff]
      %v1878 = vld [vmem:[#allocation3 + $0x70] sm:$0xff]
      %v1879 = vld [vmem:[#allocation3 + $0x78] sm:$0xff]
      %vm1880 = vcmp.gt.f32.partialorder %v1864, 0.0
      %vm1881 = vcmp.gt.f32.partialorder %v1865, 0.0
      %vm1882 = vcmp.gt.f32.partialorder %v1866, 0.0
      %vm1883 = vcmp.gt.f32.partialorder %v1867, 0.0
      %vm1884 = vcmp.gt.f32.partialorder %v1868, 0.0
      %vm1885 = vcmp.gt.f32.partialorder %v1869, 0.0
      %vm1886 = vcmp.gt.f32.partialorder %v1870, 0.0
      %vm1887 = vcmp.gt.f32.partialorder %v1871, 0.0
      %vm1888 = vcmp.gt.f32.partialorder %v1872, 0.0
      %vm1889 = vcmp.gt.f32.partialorder %v1873, 0.0
      %vm1890 = vcmp.gt.f32.partialorder %v1874, 0.0
      %vm1891 = vcmp.gt.f32.partialorder %v1875, 0.0
      %vm1892 = vcmp.gt.f32.partialorder %v1876, 0.0
      %vm1893 = vcmp.gt.f32.partialorder %v1877, 0.0
      %vm1894 = vcmp.gt.f32.partialorder %v1878, 0.0
      %vm1895 = vcmp.gt.f32.partialorder %v1879, 0.0
      %v1896 = vsel %vm1880, %v1864, 1.0
      %v1897 = vsel %vm1881, %v1865, 1.0
      %v1898 = vsel %vm1882, %v1866, 1.0
      %v1899 = vsel %vm1883, %v1867, 1.0
      %v1900 = vsel %vm1884, %v1868, 1.0
      %v1901 = vsel %vm1885, %v1869, 1.0
      %v1902 = vsel %vm1886, %v1870, 1.0
      %v1903 = vsel %vm1887, %v1871, 1.0
      %v1904 = vsel %vm1888, %v1872, 1.0
      %v1905 = vsel %vm1889, %v1873, 1.0
      %v1906 = vsel %vm1890, %v1874, 1.0
      %v1907 = vsel %vm1891, %v1875, 1.0
      %v1908 = vsel %vm1892, %v1876, 1.0
      %v1909 = vsel %vm1893, %v1877, 1.0
      %v1910 = vsel %vm1894, %v1878, 1.0
      %v1911 = vsel %vm1895, %v1879, 1.0
      %v1912 = vrcp.pop %v1896
      %v1913 = vrcp.pop %v1897
      %v1914 = vrcp.pop %v1898
      %v1915 = vrcp.pop %v1899
      %v1916 = vrcp.pop %v1900
      %v1917 = vrcp.pop %v1901
      %v1918 = vrcp.pop %v1902
      %v1919 = vrcp.pop %v1903
      %v1920 = vrcp.pop %v1904
      %v1921 = vrcp.pop %v1905
      %v1922 = vrcp.pop %v1906
      %v1923 = vrcp.pop %v1907
      %v1924 = vrcp.pop %v1908
      %v1925 = vrcp.pop %v1909
      %v1926 = vrcp.pop %v1910
      %v1927 = vrcp.pop %v1911
      %v1928 = vld [vmem:[#allocation4] sm:$0xff]
      %v1929 = vld [vmem:[#allocation4 + $0x8] sm:$0xff]
      %v1930 = vld [vmem:[#allocation4 + $0x10] sm:$0xff]
      %v1931 = vld [vmem:[#allocation4 + $0x18] sm:$0xff]
      %v1932 = vld [vmem:[#allocation4 + $0x20] sm:$0xff]
      %v1933 = vld [vmem:[#allocation4 + $0x28] sm:$0xff]
      %v1934 = vld [vmem:[#allocation4 + $0x30] sm:$0xff]
      %v1935 = vld [vmem:[#allocation4 + $0x38] sm:$0xff]
      %v1936 = vld [vmem:[#allocation4 + $0x40] sm:$0xff]
      %v1937 = vld [vmem:[#allocation4 + $0x48] sm:$0xff]
      %v1938 = vld [vmem:[#allocation4 + $0x50] sm:$0xff]
      %v1939 = vld [vmem:[#allocation4 + $0x58] sm:$0xff]
      %v1940 = vld [vmem:[#allocation4 + $0x60] sm:$0xff]
      %v1941 = vld [vmem:[#allocation4 + $0x68] sm:$0xff]
      %v1942 = vld [vmem:[#allocation4 + $0x70] sm:$0xff]
      %v1943 = vld [vmem:[#allocation4 + $0x78] sm:$0xff]
      %1945 = vset.pattern.permute.xlu0 0
      %1946 = vperm.xlu0 %1945, %v1912
      %v1947 = vpop.permute.xlu0 %1946
      %1950 = vset.pattern.permute.xlu0 0
      %1951 = vperm.xlu0 %1950, %v1913
      %v1952 = vpop.permute.xlu0 %1951
      %1955 = vset.pattern.permute.xlu0 0
      %1956 = vperm.xlu0 %1955, %v1914
      %v1957 = vpop.permute.xlu0 %1956
      %1960 = vset.pattern.permute.xlu0 0
      %1961 = vperm.xlu0 %1960, %v1915
      %v1962 = vpop.permute.xlu0 %1961
      %1965 = vset.pattern.permute.xlu0 0
      %1966 = vperm.xlu0 %1965, %v1916
      %v1967 = vpop.permute.xlu0 %1966
      %1970 = vset.pattern.permute.xlu0 0
      %1971 = vperm.xlu0 %1970, %v1917
      %v1972 = vpop.permute.xlu0 %1971
      %1975 = vset.pattern.permute.xlu0 0
      %1976 = vperm.xlu0 %1975, %v1918
      %v1977 = vpop.permute.xlu0 %1976
      %1980 = vset.pattern.permute.xlu0 0
      %1981 = vperm.xlu0 %1980, %v1919
      %v1982 = vpop.permute.xlu0 %1981
      %1985 = vset.pattern.permute.xlu0 0
      %1986 = vperm.xlu0 %1985, %v1920
      %v1987 = vpop.permute.xlu0 %1986
      %1990 = vset.pattern.permute.xlu0 0
      %1991 = vperm.xlu0 %1990, %v1921
      %v1992 = vpop.permute.xlu0 %1991
      %1995 = vset.pattern.permute.xlu0 0
      %1996 = vperm.xlu0 %1995, %v1922
      %v1997 = vpop.permute.xlu0 %1996
      %2000 = vset.pattern.permute.xlu0 0
      %2001 = vperm.xlu0 %2000, %v1923
      %v2002 = vpop.permute.xlu0 %2001
      %2005 = vset.pattern.permute.xlu0 0
      %2006 = vperm.xlu0 %2005, %v1924
      %v2007 = vpop.permute.xlu0 %2006
      %2010 = vset.pattern.permute.xlu0 0
      %2011 = vperm.xlu0 %2010, %v1925
      %v2012 = vpop.permute.xlu0 %2011
      %2015 = vset.pattern.permute.xlu0 0
      %2016 = vperm.xlu0 %2015, %v1926
      %v2017 = vpop.permute.xlu0 %2016
      %2020 = vset.pattern.permute.xlu0 0
      %2021 = vperm.xlu0 %2020, %v1927
      %v2022 = vpop.permute.xlu0 %2021
      %v2024 = vmul.f32 %v1928, %v1947
      %v2025 = vmul.f32 %v1929, %v1952
      %v2026 = vmul.f32 %v1930, %v1957
      %v2027 = vmul.f32 %v1931, %v1962
      %v2028 = vmul.f32 %v1932, %v1967
      %v2029 = vmul.f32 %v1933, %v1972
      %v2030 = vmul.f32 %v1934, %v1977
      %v2031 = vmul.f32 %v1935, %v1982
      %v2032 = vmul.f32 %v1936, %v1987
      %v2033 = vmul.f32 %v1937, %v1992
      %v2034 = vmul.f32 %v1938, %v1997
      %v2035 = vmul.f32 %v1939, %v2002
      %v2036 = vmul.f32 %v1940, %v2007
      %v2037 = vmul.f32 %v1941, %v2012
      %v2038 = vmul.f32 %v1942, %v2017
      %v2039 = vmul.f32 %v1943, %v2022
      %s2040 = scalar_lea.vmem [#allocation3], 128
      %v2041 = vld [vmem:[%s2040] sm:$0xff]
      %v2042 = vld [vmem:[%s2040 + $0x8] sm:$0xff]
      %v2043 = vld [vmem:[%s2040 + $0x10] sm:$0xff]
      %v2044 = vld [vmem:[%s2040 + $0x18] sm:$0xff]
      %v2045 = vld [vmem:[%s2040 + $0x20] sm:$0xff]
      %v2046 = vld [vmem:[%s2040 + $0x28] sm:$0xff]
      %v2047 = vld [vmem:[%s2040 + $0x30] sm:$0xff]
      %v2048 = vld [vmem:[%s2040 + $0x38] sm:$0xff]
      %v2049 = vld [vmem:[%s2040 + $0x40] sm:$0xff]
      %v2050 = vld [vmem:[%s2040 + $0x48] sm:$0xff]
      %v2051 = vld [vmem:[%s2040 + $0x50] sm:$0xff]
      %v2052 = vld [vmem:[%s2040 + $0x58] sm:$0xff]
      %v2053 = vld [vmem:[%s2040 + $0x60] sm:$0xff]
      %v2054 = vld [vmem:[%s2040 + $0x68] sm:$0xff]
      %v2055 = vld [vmem:[%s2040 + $0x70] sm:$0xff]
      %v2056 = vld [vmem:[%s2040 + $0x78] sm:$0xff]
      %vm2057 = vcmp.gt.f32.partialorder %v2041, 0.0
      %vm2058 = vcmp.gt.f32.partialorder %v2042, 0.0
      %vm2059 = vcmp.gt.f32.partialorder %v2043, 0.0
      %vm2060 = vcmp.gt.f32.partialorder %v2044, 0.0
      %vm2061 = vcmp.gt.f32.partialorder %v2045, 0.0
      %vm2062 = vcmp.gt.f32.partialorder %v2046, 0.0
      %vm2063 = vcmp.gt.f32.partialorder %v2047, 0.0
      %vm2064 = vcmp.gt.f32.partialorder %v2048, 0.0
      %vm2065 = vcmp.gt.f32.partialorder %v2049, 0.0
      %vm2066 = vcmp.gt.f32.partialorder %v2050, 0.0
      %vm2067 = vcmp.gt.f32.partialorder %v2051, 0.0
      %vm2068 = vcmp.gt.f32.partialorder %v2052, 0.0
      %vm2069 = vcmp.gt.f32.partialorder %v2053, 0.0
      %vm2070 = vcmp.gt.f32.partialorder %v2054, 0.0
      %vm2071 = vcmp.gt.f32.partialorder %v2055, 0.0
      %vm2072 = vcmp.gt.f32.partialorder %v2056, 0.0
      %v2073 = vsel %vm2057, %v2041, 1.0
      %v2074 = vsel %vm2058, %v2042, 1.0
      %v2075 = vsel %vm2059, %v2043, 1.0
      %v2076 = vsel %vm2060, %v2044, 1.0
      %v2077 = vsel %vm2061, %v2045, 1.0
      %v2078 = vsel %vm2062, %v2046, 1.0
      %v2079 = vsel %vm2063, %v2047, 1.0
      %v2080 = vsel %vm2064, %v2048, 1.0
      %v2081 = vsel %vm2065, %v2049, 1.0
      %v2082 = vsel %vm2066, %v2050, 1.0
      %v2083 = vsel %vm2067, %v2051, 1.0
      %v2084 = vsel %vm2068, %v2052, 1.0
      %v2085 = vsel %vm2069, %v2053, 1.0
      %v2086 = vsel %vm2070, %v2054, 1.0
      %v2087 = vsel %vm2071, %v2055, 1.0
      %v2088 = vsel %vm2072, %v2056, 1.0
      %v2089 = vrcp.pop %v2073
      %v2090 = vrcp.pop %v2074
      %v2091 = vrcp.pop %v2075
      %v2092 = vrcp.pop %v2076
      %v2093 = vrcp.pop %v2077
      %v2094 = vrcp.pop %v2078
      %v2095 = vrcp.pop %v2079
      %v2096 = vrcp.pop %v2080
      %v2097 = vrcp.pop %v2081
      %v2098 = vrcp.pop %v2082
      %v2099 = vrcp.pop %v2083
      %v2100 = vrcp.pop %v2084
      %v2101 = vrcp.pop %v2085
      %v2102 = vrcp.pop %v2086
      %v2103 = vrcp.pop %v2087
      %v2104 = vrcp.pop %v2088
      %s2105 = scalar_lea.vmem [#allocation4], 128
      %v2106 = vld [vmem:[%s2105] sm:$0xff]
      %v2107 = vld [vmem:[%s2105 + $0x8] sm:$0xff]
      %v2108 = vld [vmem:[%s2105 + $0x10] sm:$0xff]
      %v2109 = vld [vmem:[%s2105 + $0x18] sm:$0xff]
      %v2110 = vld [vmem:[%s2105 + $0x20] sm:$0xff]
      %v2111 = vld [vmem:[%s2105 + $0x28] sm:$0xff]
      %v2112 = vld [vmem:[%s2105 + $0x30] sm:$0xff]
      %v2113 = vld [vmem:[%s2105 + $0x38] sm:$0xff]
      %v2114 = vld [vmem:[%s2105 + $0x40] sm:$0xff]
      %v2115 = vld [vmem:[%s2105 + $0x48] sm:$0xff]
      %v2116 = vld [vmem:[%s2105 + $0x50] sm:$0xff]
      %v2117 = vld [vmem:[%s2105 + $0x58] sm:$0xff]
      %v2118 = vld [vmem:[%s2105 + $0x60] sm:$0xff]
      %v2119 = vld [vmem:[%s2105 + $0x68] sm:$0xff]
      %v2120 = vld [vmem:[%s2105 + $0x70] sm:$0xff]
      %v2121 = vld [vmem:[%s2105 + $0x78] sm:$0xff]
      %2123 = vset.pattern.permute.xlu0 0
      %2124 = vperm.xlu0 %2123, %v2089
      %v2125 = vpop.permute.xlu0 %2124
      %2128 = vset.pattern.permute.xlu0 0
      %2129 = vperm.xlu0 %2128, %v2090
      %v2130 = vpop.permute.xlu0 %2129
      %2133 = vset.pattern.permute.xlu0 0
      %2134 = vperm.xlu0 %2133, %v2091
      %v2135 = vpop.permute.xlu0 %2134
      %2138 = vset.pattern.permute.xlu0 0
      %2139 = vperm.xlu0 %2138, %v2092
      %v2140 = vpop.permute.xlu0 %2139
      %2143 = vset.pattern.permute.xlu0 0
      %2144 = vperm.xlu0 %2143, %v2093
      %v2145 = vpop.permute.xlu0 %2144
      %2148 = vset.pattern.permute.xlu0 0
      %2149 = vperm.xlu0 %2148, %v2094
      %v2150 = vpop.permute.xlu0 %2149
      %2153 = vset.pattern.permute.xlu0 0
      %2154 = vperm.xlu0 %2153, %v2095
      %v2155 = vpop.permute.xlu0 %2154
      %2158 = vset.pattern.permute.xlu0 0
      %2159 = vperm.xlu0 %2158, %v2096
      %v2160 = vpop.permute.xlu0 %2159
      %2163 = vset.pattern.permute.xlu0 0
      %2164 = vperm.xlu0 %2163, %v2097
      %v2165 = vpop.permute.xlu0 %2164
      %2168 = vset.pattern.permute.xlu0 0
      %2169 = vperm.xlu0 %2168, %v2098
      %v2170 = vpop.permute.xlu0 %2169
      %2173 = vset.pattern.permute.xlu0 0
      %2174 = vperm.xlu0 %2173, %v2099
      %v2175 = vpop.permute.xlu0 %2174
      %2178 = vset.pattern.permute.xlu0 0
      %2179 = vperm.xlu0 %2178, %v2100
      %v2180 = vpop.permute.xlu0 %2179
      %2183 = vset.pattern.permute.xlu0 0
      %2184 = vperm.xlu0 %2183, %v2101
      %v2185 = vpop.permute.xlu0 %2184
      %2188 = vset.pattern.permute.xlu0 0
      %2189 = vperm.xlu0 %2188, %v2102
      %v2190 = vpop.permute.xlu0 %2189
      %2193 = vset.pattern.permute.xlu0 0
      %2194 = vperm.xlu0 %2193, %v2103
      %v2195 = vpop.permute.xlu0 %2194
      %2198 = vset.pattern.permute.xlu0 0
      %2199 = vperm.xlu0 %2198, %v2104
      %v2200 = vpop.permute.xlu0 %2199
      %v2202 = vmul.f32 %v2106, %v2125
      %v2203 = vmul.f32 %v2107, %v2130
      %v2204 = vmul.f32 %v2108, %v2135
      %v2205 = vmul.f32 %v2109, %v2140
      %v2206 = vmul.f32 %v2110, %v2145
      %v2207 = vmul.f32 %v2111, %v2150
      %v2208 = vmul.f32 %v2112, %v2155
      %v2209 = vmul.f32 %v2113, %v2160
      %v2210 = vmul.f32 %v2114, %v2165
      %v2211 = vmul.f32 %v2115, %v2170
      %v2212 = vmul.f32 %v2116, %v2175
      %v2213 = vmul.f32 %v2117, %v2180
      %v2214 = vmul.f32 %v2118, %v2185
      %v2215 = vmul.f32 %v2119, %v2190
      %v2216 = vmul.f32 %v2120, %v2195
      %v2217 = vmul.f32 %v2121, %v2200
      %2234 = vrot.lane.b32.xlu0 %v2202, 16
      %v2235 = vpop.permute.xlu0 %2234
      %2236 = vrot.lane.b32.xlu0 %v2203, 16
      %v2237 = vpop.permute.xlu0 %2236
      %2238 = vrot.lane.b32.xlu0 %v2204, 16
      %v2239 = vpop.permute.xlu0 %2238
      %2240 = vrot.lane.b32.xlu0 %v2205, 16
      %v2241 = vpop.permute.xlu0 %2240
      %2242 = vrot.lane.b32.xlu0 %v2206, 16
      %v2243 = vpop.permute.xlu0 %2242
      %2244 = vrot.lane.b32.xlu0 %v2207, 16
      %v2245 = vpop.permute.xlu0 %2244
      %2246 = vrot.lane.b32.xlu0 %v2208, 16
      %v2247 = vpop.permute.xlu0 %2246
      %2248 = vrot.lane.b32.xlu0 %v2209, 16
      %v2249 = vpop.permute.xlu0 %2248
      %2250 = vrot.lane.b32.xlu0 %v2210, 16
      %v2251 = vpop.permute.xlu0 %2250
      %2252 = vrot.lane.b32.xlu0 %v2211, 16
      %v2253 = vpop.permute.xlu0 %2252
      %2254 = vrot.lane.b32.xlu0 %v2212, 16
      %v2255 = vpop.permute.xlu0 %2254
      %2256 = vrot.lane.b32.xlu0 %v2213, 16
      %v2257 = vpop.permute.xlu0 %2256
      %2258 = vrot.lane.b32.xlu0 %v2214, 16
      %v2259 = vpop.permute.xlu0 %2258
      %2260 = vrot.lane.b32.xlu0 %v2215, 16
      %v2261 = vpop.permute.xlu0 %2260
      %2262 = vrot.lane.b32.xlu0 %v2216, 16
      %v2263 = vpop.permute.xlu0 %2262
      %2264 = vrot.lane.b32.xlu0 %v2217, 16
      %v2265 = vpop.permute.xlu0 %2264
      %vm2282 = vcmask 130048
      %v2283 = vsel %vm2282, %v2024, %v2235
      %v2284 = vsel %vm2282, %v2025, %v2237
      %v2285 = vsel %vm2282, %v2026, %v2239
      %v2286 = vsel %vm2282, %v2027, %v2241
      %v2287 = vsel %vm2282, %v2028, %v2243
      %v2288 = vsel %vm2282, %v2029, %v2245
      %v2289 = vsel %vm2282, %v2030, %v2247
      %v2290 = vsel %vm2282, %v2031, %v2249
      %v2291 = vsel %vm2282, %v2032, %v2251
      %v2292 = vsel %vm2282, %v2033, %v2253
      %v2293 = vsel %vm2282, %v2034, %v2255
      %v2294 = vsel %vm2282, %v2035, %v2257
      %v2295 = vsel %vm2282, %v2036, %v2259
      %v2296 = vsel %vm2282, %v2037, %v2261
      %v2297 = vsel %vm2282, %v2038, %v2263
      %v2298 = vsel %vm2282, %v2039, %v2265
      %v2299 = vld [vmem:[#allocation16] sm:$0x1]
      %v2301 = vlaneseq
      %v2302 = vshrl.u32 %v2301, 7
      %v2303 = vsub.s32 0, %v2302
      %v2304 = vrot.slane %v2299, %v2303
      %v2306 = vadd.f32 %v2283, %v2304
      %v2307 = vadd.f32 %v2284, %v2304
      %v2308 = vadd.f32 %v2285, %v2304
      %v2309 = vadd.f32 %v2286, %v2304
      %v2310 = vadd.f32 %v2287, %v2304
      %v2311 = vadd.f32 %v2288, %v2304
      %v2312 = vadd.f32 %v2289, %v2304
      %v2313 = vadd.f32 %v2290, %v2304
      %v2314 = vadd.f32 %v2291, %v2304
      %v2315 = vadd.f32 %v2292, %v2304
      %v2316 = vadd.f32 %v2293, %v2304
      %v2317 = vadd.f32 %v2294, %v2304
      %v2318 = vadd.f32 %v2295, %v2304
      %v2319 = vadd.f32 %v2296, %v2304
      %v2320 = vadd.f32 %v2297, %v2304
      %v2321 = vadd.f32 %v2298, %v2304
      %v2322 = vmul.f32 %v2306, 0.5
      %v2323 = vmul.f32 %v2307, 0.5
      %v2324 = vmul.f32 %v2308, 0.5
      %v2325 = vmul.f32 %v2309, 0.5
      %v2326 = vmul.f32 %v2310, 0.5
      %v2327 = vmul.f32 %v2311, 0.5
      %v2328 = vmul.f32 %v2312, 0.5
      %v2329 = vmul.f32 %v2313, 0.5
      %v2330 = vmul.f32 %v2314, 0.5
      %v2331 = vmul.f32 %v2315, 0.5
      %v2332 = vmul.f32 %v2316, 0.5
      %v2333 = vmul.f32 %v2317, 0.5
      %v2334 = vmul.f32 %v2318, 0.5
      %v2335 = vmul.f32 %v2319, 0.5
      %v2336 = vmul.f32 %v2320, 0.5
      %v2337 = vmul.f32 %v2321, 0.5
      %v2338 = vmul.f32 %v2306, 0.70710677
      %v2339 = vmul.f32 %v2307, 0.70710677
      %v2340 = vmul.f32 %v2308, 0.70710677
      %v2341 = vmul.f32 %v2309, 0.70710677
      %v2342 = vmul.f32 %v2310, 0.70710677
      %v2343 = vmul.f32 %v2311, 0.70710677
      %v2344 = vmul.f32 %v2312, 0.70710677
      %v2345 = vmul.f32 %v2313, 0.70710677
      %v2346 = vmul.f32 %v2314, 0.70710677
      %v2347 = vmul.f32 %v2315, 0.70710677
      %v2348 = vmul.f32 %v2316, 0.70710677
      %v2349 = vmul.f32 %v2317, 0.70710677
      %v2350 = vmul.f32 %v2318, 0.70710677
      %v2351 = vmul.f32 %v2319, 0.70710677
      %v2352 = vmul.f32 %v2320, 0.70710677
      %v2353 = vmul.f32 %v2321, 0.70710677
      %vm2354 = vcmp.ge.f32.partialorder %v2338, 0.0
      %vm2355 = vcmp.ge.f32.partialorder %v2339, 0.0
      %vm2356 = vcmp.ge.f32.partialorder %v2340, 0.0
      %vm2357 = vcmp.ge.f32.partialorder %v2341, 0.0
      %vm2358 = vcmp.ge.f32.partialorder %v2342, 0.0
      %vm2359 = vcmp.ge.f32.partialorder %v2343, 0.0
      %vm2360 = vcmp.ge.f32.partialorder %v2344, 0.0
      %vm2361 = vcmp.ge.f32.partialorder %v2345, 0.0
      %vm2362 = vcmp.ge.f32.partialorder %v2346, 0.0
      %vm2363 = vcmp.ge.f32.partialorder %v2347, 0.0
      %vm2364 = vcmp.ge.f32.partialorder %v2348, 0.0
      %vm2365 = vcmp.ge.f32.partialorder %v2349, 0.0
      %vm2366 = vcmp.ge.f32.partialorder %v2350, 0.0
      %vm2367 = vcmp.ge.f32.partialorder %v2351, 0.0
      %vm2368 = vcmp.ge.f32.partialorder %v2352, 0.0
      %vm2369 = vcmp.ge.f32.partialorder %v2353, 0.0
      %v2370 = vsel %vm2354, 1.0, -1.0
      %v2371 = vsel %vm2355, 1.0, -1.0
      %v2372 = vsel %vm2356, 1.0, -1.0
      %v2373 = vsel %vm2357, 1.0, -1.0
      %v2374 = vsel %vm2358, 1.0, -1.0
      %v2375 = vsel %vm2359, 1.0, -1.0
      %v2376 = vsel %vm2360, 1.0, -1.0
      %v2377 = vsel %vm2361, 1.0, -1.0
      %v2378 = vsel %vm2362, 1.0, -1.0
      %v2379 = vsel %vm2363, 1.0, -1.0
      %v2380 = vsel %vm2364, 1.0, -1.0
      %v2381 = vsel %vm2365, 1.0, -1.0
      %v2382 = vsel %vm2366, 1.0, -1.0
      %v2383 = vsel %vm2367, 1.0, -1.0
      %v2384 = vsel %vm2368, 1.0, -1.0
      %v2385 = vsel %vm2369, 1.0, -1.0
      %v2386 = vand.u32 2147483647, %v2338
      %v2387 = vand.u32 2147483647, %v2339
      %v2388 = vand.u32 2147483647, %v2340
      %v2389 = vand.u32 2147483647, %v2341
      %v2390 = vand.u32 2147483647, %v2342
      %v2391 = vand.u32 2147483647, %v2343
      %v2392 = vand.u32 2147483647, %v2344
      %v2393 = vand.u32 2147483647, %v2345
      %v2394 = vand.u32 2147483647, %v2346
      %v2395 = vand.u32 2147483647, %v2347
      %v2396 = vand.u32 2147483647, %v2348
      %v2397 = vand.u32 2147483647, %v2349
      %v2398 = vand.u32 2147483647, %v2350
      %v2399 = vand.u32 2147483647, %v2351
      %v2400 = vand.u32 2147483647, %v2352
      %v2401 = vand.u32 2147483647, %v2353
      %v2402 = vmul.f32 %v2386, 0.3275911
      %v2403 = vmul.f32 %v2387, 0.3275911
      %v2404 = vmul.f32 %v2388, 0.3275911
      %v2405 = vmul.f32 %v2389, 0.3275911
      %v2406 = vmul.f32 %v2390, 0.3275911
      %v2407 = vmul.f32 %v2391, 0.3275911
      %v2408 = vmul.f32 %v2392, 0.3275911
      %v2409 = vmul.f32 %v2393, 0.3275911
      %v2410 = vmul.f32 %v2394, 0.3275911
      %v2411 = vmul.f32 %v2395, 0.3275911
      %v2412 = vmul.f32 %v2396, 0.3275911
      %v2413 = vmul.f32 %v2397, 0.3275911
      %v2414 = vmul.f32 %v2398, 0.3275911
      %v2415 = vmul.f32 %v2399, 0.3275911
      %v2416 = vmul.f32 %v2400, 0.3275911
      %v2417 = vmul.f32 %v2401, 0.3275911
      %v2418 = vadd.f32 %v2402, 1.0
      %v2419 = vadd.f32 %v2403, 1.0
      %v2420 = vadd.f32 %v2404, 1.0
      %v2421 = vadd.f32 %v2405, 1.0
      %v2422 = vadd.f32 %v2406, 1.0
      %v2423 = vadd.f32 %v2407, 1.0
      %v2424 = vadd.f32 %v2408, 1.0
      %v2425 = vadd.f32 %v2409, 1.0
      %v2426 = vadd.f32 %v2410, 1.0
      %v2427 = vadd.f32 %v2411, 1.0
      %v2428 = vadd.f32 %v2412, 1.0
      %v2429 = vadd.f32 %v2413, 1.0
      %v2430 = vadd.f32 %v2414, 1.0
      %v2431 = vadd.f32 %v2415, 1.0
      %v2432 = vadd.f32 %v2416, 1.0
      %v2433 = vadd.f32 %v2417, 1.0
      %v2434 = vrcp.pop %v2418
      %v2435 = vmul.f32 1.0, %v2434
      %v2436 = vrcp.pop %v2419
      %v2437 = vmul.f32 1.0, %v2436
      %v2438 = vrcp.pop %v2420
      %v2439 = vmul.f32 1.0, %v2438
      %v2440 = vrcp.pop %v2421
      %v2441 = vmul.f32 1.0, %v2440
      %v2442 = vrcp.pop %v2422
      %v2443 = vmul.f32 1.0, %v2442
      %v2444 = vrcp.pop %v2423
      %v2445 = vmul.f32 1.0, %v2444
      %v2446 = vrcp.pop %v2424
      %v2447 = vmul.f32 1.0, %v2446
      %v2448 = vrcp.pop %v2425
      %v2449 = vmul.f32 1.0, %v2448
      %v2450 = vrcp.pop %v2426
      %v2451 = vmul.f32 1.0, %v2450
      %v2452 = vrcp.pop %v2427
      %v2453 = vmul.f32 1.0, %v2452
      %v2454 = vrcp.pop %v2428
      %v2455 = vmul.f32 1.0, %v2454
      %v2456 = vrcp.pop %v2429
      %v2457 = vmul.f32 1.0, %v2456
      %v2458 = vrcp.pop %v2430
      %v2459 = vmul.f32 1.0, %v2458
      %v2460 = vrcp.pop %v2431
      %v2461 = vmul.f32 1.0, %v2460
      %v2462 = vrcp.pop %v2432
      %v2463 = vmul.f32 1.0, %v2462
      %v2464 = vrcp.pop %v2433
      %v2465 = vmul.f32 1.0, %v2464
      %v2466 = vmul.f32 %v2435, 1.0614054
      %v2467 = vmul.f32 %v2437, 1.0614054
      %v2468 = vmul.f32 %v2439, 1.0614054
      %v2469 = vmul.f32 %v2441, 1.0614054
      %v2470 = vmul.f32 %v2443, 1.0614054
      %v2471 = vmul.f32 %v2445, 1.0614054
      %v2472 = vmul.f32 %v2447, 1.0614054
      %v2473 = vmul.f32 %v2449, 1.0614054
      %v2474 = vmul.f32 %v2451, 1.0614054
      %v2475 = vmul.f32 %v2453, 1.0614054
      %v2476 = vmul.f32 %v2455, 1.0614054
      %v2477 = vmul.f32 %v2457, 1.0614054
      %v2478 = vmul.f32 %v2459, 1.0614054
      %v2479 = vmul.f32 %v2461, 1.0614054
      %v2480 = vmul.f32 %v2463, 1.0614054
      %v2481 = vmul.f32 %v2465, 1.0614054
      %v2482 = vadd.f32 %v2466, -1.4531521
      %v2483 = vadd.f32 %v2467, -1.4531521
      %v2484 = vadd.f32 %v2468, -1.4531521
      %v2485 = vadd.f32 %v2469, -1.4531521
      %v2486 = vadd.f32 %v2470, -1.4531521
      %v2487 = vadd.f32 %v2471, -1.4531521
      %v2488 = vadd.f32 %v2472, -1.4531521
      %v2489 = vadd.f32 %v2473, -1.4531521
      %v2490 = vadd.f32 %v2474, -1.4531521
      %v2491 = vadd.f32 %v2475, -1.4531521
      %v2492 = vadd.f32 %v2476, -1.4531521
      %v2493 = vadd.f32 %v2477, -1.4531521
      %v2494 = vadd.f32 %v2478, -1.4531521
      %v2495 = vadd.f32 %v2479, -1.4531521
      %v2496 = vadd.f32 %v2480, -1.4531521
      %v2497 = vadd.f32 %v2481, -1.4531521
      %v2498 = vmul.f32 %v2482, %v2435
      %v2499 = vmul.f32 %v2483, %v2437
      %v2500 = vmul.f32 %v2484, %v2439
      %v2501 = vmul.f32 %v2485, %v2441
      %v2502 = vmul.f32 %v2486, %v2443
      %v2503 = vmul.f32 %v2487, %v2445
      %v2504 = vmul.f32 %v2488, %v2447
      %v2505 = vmul.f32 %v2489, %v2449
      %v2506 = vmul.f32 %v2490, %v2451
      %v2507 = vmul.f32 %v2491, %v2453
      %v2508 = vmul.f32 %v2492, %v2455
      %v2509 = vmul.f32 %v2493, %v2457
      %v2510 = vmul.f32 %v2494, %v2459
      %v2511 = vmul.f32 %v2495, %v2461
      %v2512 = vmul.f32 %v2496, %v2463
      %v2513 = vmul.f32 %v2497, %v2465
      %v2514 = vadd.f32 %v2498, 1.4214138
      %v2515 = vadd.f32 %v2499, 1.4214138
      %v2516 = vadd.f32 %v2500, 1.4214138
      %v2517 = vadd.f32 %v2501, 1.4214138
      %v2518 = vadd.f32 %v2502, 1.4214138
      %v2519 = vadd.f32 %v2503, 1.4214138
      %v2520 = vadd.f32 %v2504, 1.4214138
      %v2521 = vadd.f32 %v2505, 1.4214138
      %v2522 = vadd.f32 %v2506, 1.4214138
      %v2523 = vadd.f32 %v2507, 1.4214138
      %v2524 = vadd.f32 %v2508, 1.4214138
      %v2525 = vadd.f32 %v2509, 1.4214138
      %v2526 = vadd.f32 %v2510, 1.4214138
      %v2527 = vadd.f32 %v2511, 1.4214138
      %v2528 = vadd.f32 %v2512, 1.4214138
      %v2529 = vadd.f32 %v2513, 1.4214138
      %v2530 = vmul.f32 %v2514, %v2435
      %v2531 = vmul.f32 %v2515, %v2437
      %v2532 = vmul.f32 %v2516, %v2439
      %v2533 = vmul.f32 %v2517, %v2441
      %v2534 = vmul.f32 %v2518, %v2443
      %v2535 = vmul.f32 %v2519, %v2445
      %v2536 = vmul.f32 %v2520, %v2447
      %v2537 = vmul.f32 %v2521, %v2449
      %v2538 = vmul.f32 %v2522, %v2451
      %v2539 = vmul.f32 %v2523, %v2453
      %v2540 = vmul.f32 %v2524, %v2455
      %v2541 = vmul.f32 %v2525, %v2457
      %v2542 = vmul.f32 %v2526, %v2459
      %v2543 = vmul.f32 %v2527, %v2461
      %v2544 = vmul.f32 %v2528, %v2463
      %v2545 = vmul.f32 %v2529, %v2465
      %v2546 = vadd.f32 %v2530, -0.28449672
      %v2547 = vadd.f32 %v2531, -0.28449672
      %v2548 = vadd.f32 %v2532, -0.28449672
      %v2549 = vadd.f32 %v2533, -0.28449672
      %v2550 = vadd.f32 %v2534, -0.28449672
      %v2551 = vadd.f32 %v2535, -0.28449672
      %v2552 = vadd.f32 %v2536, -0.28449672
      %v2553 = vadd.f32 %v2537, -0.28449672
      %v2554 = vadd.f32 %v2538, -0.28449672
      %v2555 = vadd.f32 %v2539, -0.28449672
      %v2556 = vadd.f32 %v2540, -0.28449672
      %v2557 = vadd.f32 %v2541, -0.28449672
      %v2558 = vadd.f32 %v2542, -0.28449672
      %v2559 = vadd.f32 %v2543, -0.28449672
      %v2560 = vadd.f32 %v2544, -0.28449672
      %v2561 = vadd.f32 %v2545, -0.28449672
      %v2562 = vmul.f32 %v2546, %v2435
      %v2563 = vmul.f32 %v2547, %v2437
      %v2564 = vmul.f32 %v2548, %v2439
      %v2565 = vmul.f32 %v2549, %v2441
      %v2566 = vmul.f32 %v2550, %v2443
      %v2567 = vmul.f32 %v2551, %v2445
      %v2568 = vmul.f32 %v2552, %v2447
      %v2569 = vmul.f32 %v2553, %v2449
      %v2570 = vmul.f32 %v2554, %v2451
      %v2571 = vmul.f32 %v2555, %v2453
      %v2572 = vmul.f32 %v2556, %v2455
      %v2573 = vmul.f32 %v2557, %v2457
      %v2574 = vmul.f32 %v2558, %v2459
      %v2575 = vmul.f32 %v2559, %v2461
      %v2576 = vmul.f32 %v2560, %v2463
      %v2577 = vmul.f32 %v2561, %v2465
      %v2578 = vadd.f32 %v2562, 0.2548296
      %v2579 = vadd.f32 %v2563, 0.2548296
      %v2580 = vadd.f32 %v2564, 0.2548296
      %v2581 = vadd.f32 %v2565, 0.2548296
      %v2582 = vadd.f32 %v2566, 0.2548296
      %v2583 = vadd.f32 %v2567, 0.2548296
      %v2584 = vadd.f32 %v2568, 0.2548296
      %v2585 = vadd.f32 %v2569, 0.2548296
      %v2586 = vadd.f32 %v2570, 0.2548296
      %v2587 = vadd.f32 %v2571, 0.2548296
      %v2588 = vadd.f32 %v2572, 0.2548296
      %v2589 = vadd.f32 %v2573, 0.2548296
      %v2590 = vadd.f32 %v2574, 0.2548296
      %v2591 = vadd.f32 %v2575, 0.2548296
      %v2592 = vadd.f32 %v2576, 0.2548296
      %v2593 = vadd.f32 %v2577, 0.2548296
      %v2594 = vmul.f32 %v2578, %v2435
      %v2595 = vmul.f32 %v2579, %v2437
      %v2596 = vmul.f32 %v2580, %v2439
      %v2597 = vmul.f32 %v2581, %v2441
      %v2598 = vmul.f32 %v2582, %v2443
      %v2599 = vmul.f32 %v2583, %v2445
      %v2600 = vmul.f32 %v2584, %v2447
      %v2601 = vmul.f32 %v2585, %v2449
      %v2602 = vmul.f32 %v2586, %v2451
      %v2603 = vmul.f32 %v2587, %v2453
      %v2604 = vmul.f32 %v2588, %v2455
      %v2605 = vmul.f32 %v2589, %v2457
      %v2606 = vmul.f32 %v2590, %v2459
      %v2607 = vmul.f32 %v2591, %v2461
      %v2608 = vmul.f32 %v2592, %v2463
      %v2609 = vmul.f32 %v2593, %v2465
      %v2610 = vsub.f32 0.0, %v2386
      %v2611 = vsub.f32 0.0, %v2387
      %v2612 = vsub.f32 0.0, %v2388
      %v2613 = vsub.f32 0.0, %v2389
      %v2614 = vsub.f32 0.0, %v2390
      %v2615 = vsub.f32 0.0, %v2391
      %v2616 = vsub.f32 0.0, %v2392
      %v2617 = vsub.f32 0.0, %v2393
      %v2618 = vsub.f32 0.0, %v2394
      %v2619 = vsub.f32 0.0, %v2395
      %v2620 = vsub.f32 0.0, %v2396
      %v2621 = vsub.f32 0.0, %v2397
      %v2622 = vsub.f32 0.0, %v2398
      %v2623 = vsub.f32 0.0, %v2399
      %v2624 = vsub.f32 0.0, %v2400
      %v2625 = vsub.f32 0.0, %v2401
      %v2626 = vmul.f32 %v2610, %v2386
      %v2627 = vmul.f32 %v2611, %v2387
      %v2628 = vmul.f32 %v2612, %v2388
      %v2629 = vmul.f32 %v2613, %v2389
      %v2630 = vmul.f32 %v2614, %v2390
      %v2631 = vmul.f32 %v2615, %v2391
      %v2632 = vmul.f32 %v2616, %v2392
      %v2633 = vmul.f32 %v2617, %v2393
      %v2634 = vmul.f32 %v2618, %v2394
      %v2635 = vmul.f32 %v2619, %v2395
      %v2636 = vmul.f32 %v2620, %v2396
      %v2637 = vmul.f32 %v2621, %v2397
      %v2638 = vmul.f32 %v2622, %v2398
      %v2639 = vmul.f32 %v2623, %v2399
      %v2640 = vmul.f32 %v2624, %v2400
      %v2641 = vmul.f32 %v2625, %v2401
      %v2642 = vmul.f32 %v2626, 1.442695
      %v2643 = vpow.pop %v2642
      %v2644 = vmul.f32 %v2627, 1.442695
      %v2645 = vpow.pop %v2644
      %v2646 = vmul.f32 %v2628, 1.442695
      %v2647 = vpow.pop %v2646
      %v2648 = vmul.f32 %v2629, 1.442695
      %v2649 = vpow.pop %v2648
      %v2650 = vmul.f32 %v2630, 1.442695
      %v2651 = vpow.pop %v2650
      %v2652 = vmul.f32 %v2631, 1.442695
      %v2653 = vpow.pop %v2652
      %v2654 = vmul.f32 %v2632, 1.442695
      %v2655 = vpow.pop %v2654
      %v2656 = vmul.f32 %v2633, 1.442695
      %v2657 = vpow.pop %v2656
      %v2658 = vmul.f32 %v2634, 1.442695
      %v2659 = vpow.pop %v2658
      %v2660 = vmul.f32 %v2635, 1.442695
      %v2661 = vpow.pop %v2660
      %v2662 = vmul.f32 %v2636, 1.442695
      %v2663 = vpow.pop %v2662
      %v2664 = vmul.f32 %v2637, 1.442695
      %v2665 = vpow.pop %v2664
      %v2666 = vmul.f32 %v2638, 1.442695
      %v2667 = vpow.pop %v2666
      %v2668 = vmul.f32 %v2639, 1.442695
      %v2669 = vpow.pop %v2668
      %v2670 = vmul.f32 %v2640, 1.442695
      %v2671 = vpow.pop %v2670
      %v2672 = vmul.f32 %v2641, 1.442695
      %v2673 = vpow.pop %v2672
      %v2674 = vmul.f32 %v2594, %v2643
      %v2675 = vmul.f32 %v2595, %v2645
      %v2676 = vmul.f32 %v2596, %v2647
      %v2677 = vmul.f32 %v2597, %v2649
      %v2678 = vmul.f32 %v2598, %v2651
      %v2679 = vmul.f32 %v2599, %v2653
      %v2680 = vmul.f32 %v2600, %v2655
      %v2681 = vmul.f32 %v2601, %v2657
      %v2682 = vmul.f32 %v2602, %v2659
      %v2683 = vmul.f32 %v2603, %v2661
      %v2684 = vmul.f32 %v2604, %v2663
      %v2685 = vmul.f32 %v2605, %v2665
      %v2686 = vmul.f32 %v2606, %v2667
      %v2687 = vmul.f32 %v2607, %v2669
      %v2688 = vmul.f32 %v2608, %v2671
      %v2689 = vmul.f32 %v2609, %v2673
      %v2690 = vsub.f32 1.0, %v2674
      %v2691 = vsub.f32 1.0, %v2675
      %v2692 = vsub.f32 1.0, %v2676
      %v2693 = vsub.f32 1.0, %v2677
      %v2694 = vsub.f32 1.0, %v2678
      %v2695 = vsub.f32 1.0, %v2679
      %v2696 = vsub.f32 1.0, %v2680
      %v2697 = vsub.f32 1.0, %v2681
      %v2698 = vsub.f32 1.0, %v2682
      %v2699 = vsub.f32 1.0, %v2683
      %v2700 = vsub.f32 1.0, %v2684
      %v2701 = vsub.f32 1.0, %v2685
      %v2702 = vsub.f32 1.0, %v2686
      %v2703 = vsub.f32 1.0, %v2687
      %v2704 = vsub.f32 1.0, %v2688
      %v2705 = vsub.f32 1.0, %v2689
      %v2706 = vmul.f32 %v2370, %v2690
      %v2707 = vmul.f32 %v2371, %v2691
      %v2708 = vmul.f32 %v2372, %v2692
      %v2709 = vmul.f32 %v2373, %v2693
      %v2710 = vmul.f32 %v2374, %v2694
      %v2711 = vmul.f32 %v2375, %v2695
      %v2712 = vmul.f32 %v2376, %v2696
      %v2713 = vmul.f32 %v2377, %v2697
      %v2714 = vmul.f32 %v2378, %v2698
      %v2715 = vmul.f32 %v2379, %v2699
      %v2716 = vmul.f32 %v2380, %v2700
      %v2717 = vmul.f32 %v2381, %v2701
      %v2718 = vmul.f32 %v2382, %v2702
      %v2719 = vmul.f32 %v2383, %v2703
      %v2720 = vmul.f32 %v2384, %v2704
      %v2721 = vmul.f32 %v2385, %v2705
      %v2722 = vadd.f32 %v2706, 1.0
      %v2723 = vadd.f32 %v2707, 1.0
      %v2724 = vadd.f32 %v2708, 1.0
      %v2725 = vadd.f32 %v2709, 1.0
      %v2726 = vadd.f32 %v2710, 1.0
      %v2727 = vadd.f32 %v2711, 1.0
      %v2728 = vadd.f32 %v2712, 1.0
      %v2729 = vadd.f32 %v2713, 1.0
      %v2730 = vadd.f32 %v2714, 1.0
      %v2731 = vadd.f32 %v2715, 1.0
      %v2732 = vadd.f32 %v2716, 1.0
      %v2733 = vadd.f32 %v2717, 1.0
      %v2734 = vadd.f32 %v2718, 1.0
      %v2735 = vadd.f32 %v2719, 1.0
      %v2736 = vadd.f32 %v2720, 1.0
      %v2737 = vadd.f32 %v2721, 1.0
      %v2738 = vmul.f32 %v2322, %v2722
      %v2739 = vmul.f32 %v2323, %v2723
      %v2740 = vmul.f32 %v2324, %v2724
      %v2741 = vmul.f32 %v2325, %v2725
      %v2742 = vmul.f32 %v2326, %v2726
      %v2743 = vmul.f32 %v2327, %v2727
      %v2744 = vmul.f32 %v2328, %v2728
      %v2745 = vmul.f32 %v2329, %v2729
      %v2746 = vmul.f32 %v2330, %v2730
      %v2747 = vmul.f32 %v2331, %v2731
      %v2748 = vmul.f32 %v2332, %v2732
      %v2749 = vmul.f32 %v2333, %v2733
      %v2750 = vmul.f32 %v2334, %v2734
      %v2751 = vmul.f32 %v2335, %v2735
      %v2752 = vmul.f32 %v2336, %v2736
      %v2753 = vmul.f32 %v2337, %v2737
      %v2754 = vpack.c.bf16 %v2739, %v2738
      %v2755 = vpack.c.bf16 %v2741, %v2740
      %v2756 = vpack.c.bf16 %v2743, %v2742
      %v2757 = vpack.c.bf16 %v2745, %v2744
      %v2758 = vpack.c.bf16 %v2747, %v2746
      %v2759 = vpack.c.bf16 %v2749, %v2748
      %v2760 = vpack.c.bf16 %v2751, %v2750
      %v2761 = vpack.c.bf16 %v2753, %v2752
      %v2770 = vunpack.c.l.b16 %v2754
      %v2771 = vunpack.c.h.b16 %v2754
      %v2772 = vunpack.c.l.b16 %v2755
      %v2773 = vunpack.c.h.b16 %v2755
      %v2774 = vunpack.c.l.b16 %v2756
      %v2775 = vunpack.c.h.b16 %v2756
      %v2776 = vunpack.c.l.b16 %v2757
      %v2777 = vunpack.c.h.b16 %v2757
      %v2778 = vunpack.c.l.b16 %v2758
      %v2779 = vunpack.c.h.b16 %v2758
      %v2780 = vunpack.c.l.b16 %v2759
      %v2781 = vunpack.c.h.b16 %v2759
      %v2782 = vunpack.c.l.b16 %v2760
      %v2783 = vunpack.c.h.b16 %v2760
      %v2784 = vunpack.c.l.b16 %v2761
      %v2785 = vunpack.c.h.b16 %v2761
      %v2786 = vpack.c.b16 %v2770, %v2770
      %v2787 = vpack.c.b16 %v2771, %v2771
      %v2788 = vpack.c.b16 %v2772, %v2772
      %v2789 = vpack.c.b16 %v2773, %v2773
      %v2790 = vpack.c.b16 %v2774, %v2774
      %v2791 = vpack.c.b16 %v2775, %v2775
      %v2792 = vpack.c.b16 %v2776, %v2776
      %v2793 = vpack.c.b16 %v2777, %v2777
      %v2794 = vpack.c.b16 %v2778, %v2778
      %v2795 = vpack.c.b16 %v2779, %v2779
      %v2796 = vpack.c.b16 %v2780, %v2780
      %v2797 = vpack.c.b16 %v2781, %v2781
      %v2798 = vpack.c.b16 %v2782, %v2782
      %v2799 = vpack.c.b16 %v2783, %v2783
      %v2800 = vpack.c.b16 %v2784, %v2784
      %v2801 = vpack.c.b16 %v2785, %v2785
      %vm2818 = vcmask 257024
      %2819 = vst.msk [vmem:[#allocation17] sm:$0xf] %vm2818, %v2786
      %2820 = vst.msk [vmem:[#allocation17 + $0x4] sm:$0xf] %vm2818, %v2787
      %2821 = vst.msk [vmem:[#allocation17 + $0x8] sm:$0xf] %vm2818, %v2788
      %2822 = vst.msk [vmem:[#allocation17 + $0xc] sm:$0xf] %vm2818, %v2789
      %2823 = vst.msk [vmem:[#allocation17 + $0x10] sm:$0xf] %vm2818, %v2790
      %2824 = vst.msk [vmem:[#allocation17 + $0x14] sm:$0xf] %vm2818, %v2791
      %2825 = vst.msk [vmem:[#allocation17 + $0x18] sm:$0xf] %vm2818, %v2792
      %2826 = vst.msk [vmem:[#allocation17 + $0x1c] sm:$0xf] %vm2818, %v2793
      %2827 = vst.msk [vmem:[#allocation17 + $0x20] sm:$0xf] %vm2818, %v2794
      %2828 = vst.msk [vmem:[#allocation17 + $0x24] sm:$0xf] %vm2818, %v2795
      %2829 = vst.msk [vmem:[#allocation17 + $0x28] sm:$0xf] %vm2818, %v2796
      %2830 = vst.msk [vmem:[#allocation17 + $0x2c] sm:$0xf] %vm2818, %v2797
      %2831 = vst.msk [vmem:[#allocation17 + $0x30] sm:$0xf] %vm2818, %v2798
      %2832 = vst.msk [vmem:[#allocation17 + $0x34] sm:$0xf] %vm2818, %v2799
      %2833 = vst.msk [vmem:[#allocation17 + $0x38] sm:$0xf] %vm2818, %v2800
      %2834 = vst.msk [vmem:[#allocation17 + $0x3c] sm:$0xf] %vm2818, %v2801
    $region53: #{gat_forward.5} parent=1 // pred_fallthru
      _
    // Predicated region
    $region54: #{gat_forward.5} parent=1 // pred_check
      _
    $region55: #{gat_forward.5} parent=1 // pred_check_branch
      %2836 = sbr.rel (0) target = $region57
    $region56: #{gat_forward.5} parent=1 // pred_region
      %s2838 = ssub.s32 1024, 1024
      %2839 = vsyncadd [#allocation10], %s2838
      %s2840 = sshll.u32 [#allocation17], 4
      %s2841 = int_to_ptr.vmem [resolvable:$true] %s2840
      %2846 = dma.vmem_to_hbm [thread:$0]  %s2841, 1024, %s7, [#allocation10], 64, 64, 4
    $region57: #{gat_forward.5} parent=1 // pred_fallthru
      _
    // Predicated region
    $region58: #{gat_forward.5} parent=1 // pred_check
      _
    $region59: #{gat_forward.5} parent=1 // pred_check_branch
      %2848 = sbr.rel (0) target = $region61
    $region60: #{gat_forward.5} parent=1 // pred_region
      %2849 = dma.done [#allocation10], 1024
    $region61: #{gat_forward.5} parent=1 // pred_fallthru
      _
    %2850 = vsyncpa [#allocation9], 1
    %2851 = vsyncpa [#allocation12], 1
    %2852 = vsyncpa [#allocation15], 1
    %2853 = vsyncpa [#allocation10], 1

// kernel: gat_forward.7
$region0: #{gat_forward.7}
  #allocation0 [shape = 'u32[]', space=smem, size = 0x4, offset = 0x4, fixed_abs, tag = 'smem constant byte address 0x4 - core index']
  #allocation1 [shape = 'u32[144,128]{1,0:T(1,128)}', space=vmem, size = 0x12000, scoped, tag = 'internal scratch']
  #allocation2 [shape = 'f32[2,128,1]{2,1,0:T(8,128)}', space=vmem, size = 0x20000, scoped, tag = 'scratch operand']
  #allocation3 [shape = 'f32[2,128,1]{2,1,0:T(8,128)}', space=vmem, size = 0x20000, scoped, tag = 'scratch operand']
  #allocation4 [shape = 'f32[2,128,16]{2,1,0:T(8,128)}', space=vmem, size = 0x20000, scoped, tag = 'scratch operand']
  #allocation5 [shape = 's32[1]{0}', space=sflag, size = 0x4, scoped, tag = 'scoped memory for gat_forward.7']
  #allocation6 [shape = 's32[1]{0:T(128)S(6)}', space=smem, size = 0x200, scoped, tag = 'prefetched SMEM operand 0']
  #allocation7 [shape = 's32[1]{0:T(128)S(6)}', space=smem, size = 0x200, scoped, tag = 'prefetched SMEM operand 1']
  %s0 = inlined_call_operand.<no memory space> [shape: s32[1], index: 0, kind: input, shape index: {}]
  %s1 = inlined_call_operand.<no memory space> [shape: s32[1], index: 1, kind: input, shape index: {}]
  %s2 = inlined_call_operand.hbm [shape: s8[128,128], index: 2, kind: input, shape index: {}]
  %s3 = inlined_call_operand.hbm [shape: bf16[128,32], index: 3, kind: input, shape index: {}]
  %s4 = inlined_call_operand.hbm [shape: f32[128,2], index: 4, kind: input, shape index: {}]
  %s5 = inlined_call_operand.hbm [shape: f32[2,128], index: 5, kind: input, shape index: {}]
  %s6 = inlined_call_operand.hbm [shape: f32[1,32], index: 6, kind: input, shape index: {}]
  %s7 = inlined_call_operand.hbm [shape: f32[32,128], index: 7, kind: input, shape index: {}]
  %s8 = inlined_call_operand.hbm [shape: f32[1,128], index: 8, kind: input, shape index: {}]
  %s9 = inlined_call_operand.hbm [shape: f32[128,128], index: 9, kind: output, shape index: {}]
  %s10 = sld [smem:[#allocation0]]
  $region78: #{gat_forward.7} parent=0
    _
  %s12 = ssub.s32 1, %s10
  %s13 = scalar_select 0, %s12, %s10
  %14 = sst [smem:[#allocation6]] %s0
  %15 = sst [smem:[#allocation7]] %s1
  $region1: #{gat_forward.7} parent=0
    #allocation8 [shape = 'u8[16384]{0}', space=vmem, size = 0x4000, scoped, tag = 'input window, operand 2, single buffered']
    #allocation9 [shape = 's32[1]{0}', space=sflag, size = 0x4, scoped, tag = 'scoped memory for gat_forward.7']
    #allocation10 [shape = 's32[1]{0}', space=sflag, size = 0x4, scoped, tag = 'scoped memory for gat_forward.7']
    #allocation11 [shape = 'u8[32768]{0}', space=vmem, size = 0x8000, scoped, tag = 'input window, operand 3, single buffered']
    #allocation12 [shape = 's32[1]{0}', space=sflag, size = 0x4, scoped, tag = 'scoped memory for gat_forward.7']
    #allocation13 [shape = 'u8[65536]{0}', space=vmem, size = 0x10000, scoped, tag = 'input window, operand 4, single buffered']
    #allocation14 [shape = 'u8[1024]{0}', space=vmem, size = 0x400, scoped, tag = 'input window, operand 5, single buffered']
    #allocation15 [shape = 's32[1]{0}', space=sflag, size = 0x4, scoped, tag = 'scoped memory for gat_forward.7']
    #allocation16 [shape = 'u8[512]{0}', space=vmem, size = 0x400, scoped, tag = 'input window, operand 6, single buffered']
    #allocation17 [shape = 'u8[16384]{0}', space=vmem, size = 0x4000, scoped, tag = 'input window, operand 7, single buffered']
    #allocation18 [shape = 's32[1]{0}', space=sflag, size = 0x4, scoped, tag = 'scoped memory for gat_forward.7']
    #allocation19 [shape = 'u8[512]{0}', space=vmem, size = 0x400, scoped, tag = 'input window, operand 8, single buffered']
    #allocation20 [shape = 'u8[65536]{0}', space=vmem, size = 0x10000, scoped, tag = 'output window, operand 0, single buffered']
    %16 = vsyncpa [#allocation9], 0
    %17 = vsyncpa [#allocation12], 0
    %18 = vsyncpa [#allocation15], 0
    %19 = vsyncpa [#allocation18], 0
    %20 = vsyncpa [#allocation10], 0
    // Predicated region
    $region2: #{gat_forward.7} parent=1 // pred_check
      _
    $region3: #{gat_forward.7} parent=1 // pred_check_branch
      %22 = sbr.rel (0) target = $region5
    $region4: #{gat_forward.7} parent=1 // pred_region
      %s23 = sadd.s32 0, 0
      %s24 = sld [smem:[#allocation6 + %s23]]
      %s26 = ssub.s32 512, 512
      %27 = vsyncadd [#allocation9], %s26
      %s28 = smul.addr %s24, 128
      %s29 = scalar_lea.hbm %s2, %s28
      %s30 = sshll.u32 [#allocation8], 4
      %s31 = int_to_ptr.vmem [resolvable:$true] %s30
      %36 = dma.hbm_to_vmem [thread:$0]  %s29, 512, %s31, [#allocation9], 128, 128, 8
    $region5: #{gat_forward.7} parent=1 // pred_fallthru
      _
    // Predicated region
    $region6: #{gat_forward.7} parent=1 // pred_check
      _
    $region7: #{gat_forward.7} parent=1 // pred_check_branch
      %38 = sbr.rel (0) target = $region9
    $region8: #{gat_forward.7} parent=1 // pred_region
      %s39 = sadd.s32 0, 0
      %s40 = sld [smem:[#allocation6 + %s39]]
      %s41 = smul.u32 16, %s40
      %s43 = ssub.s32 1024, 1024
      %44 = vsyncadd [#allocation12], %s43
      %s45 = smul.addr %s41, 64
      %s46 = scalar_lea.hbm %s3, %s45
      %s47 = sshll.u32 [#allocation11], 4
      %s48 = int_to_ptr.vmem [resolvable:$true] %s47
      %53 = dma.hbm_to_vmem [thread:$0]  %s46, 1024, %s48, [#allocation12], 64, 64, 4
    $region9: #{gat_forward.7} parent=1 // pred_fallthru
      _
    // Predicated region
    $region10: #{gat_forward.7} parent=1 // pred_check
      _
    $region11: #{gat_forward.7} parent=1 // pred_check_branch
      %55 = sbr.rel (0) target = $region13
    $region12: #{gat_forward.7} parent=1 // pred_region
      %s57 = ssub.s32 2048, 2048
      %58 = vsyncadd [#allocation12], %s57
      %s59 = sshll.u32 [#allocation13], 4
      %s60 = int_to_ptr.vmem [resolvable:$true] %s59
      %65 = dma.hbm_to_vmem [thread:$0]  %s4, 2048, %s60, [#allocation12], 128, 128, 8
    $region13: #{gat_forward.7} parent=1 // pred_fallthru
      _
    // Predicated region
    $region14: #{gat_forward.7} parent=1 // pred_check
      _
    $region15: #{gat_forward.7} parent=1 // pred_check_branch
      %67 = sbr.rel (0) target = $region17
    $region16: #{gat_forward.7} parent=1 // pred_region
      %s68 = sadd.s32 0, 0
      %s69 = sld [smem:[#allocation6 + %s68]]
      %s71 = ssub.s32 32, 32
      %72 = vsyncadd [#allocation15], %s71
      %s73 = smul.addr %s69, 32
      %s74 = scalar_lea.hbm %s5, %s73
      %s76 = sshll.u32 [#allocation14], 4
      %s77 = int_to_ptr.vmem [resolvable:$true] %s76
      %79 = dma.hbm_to_vmem [thread:$0]  %s74, 32, %s77, [#allocation15]
    $region17: #{gat_forward.7} parent=1 // pred_fallthru
      _
    // Predicated region
    $region18: #{gat_forward.7} parent=1 // pred_check
      _
    $region19: #{gat_forward.7} parent=1 // pred_check_branch
      %81 = sbr.rel (0) target = $region21
    $region20: #{gat_forward.7} parent=1 // pred_region
      %s83 = ssub.s32 16, 16
      %84 = vsyncadd [#allocation15], %s83
      %s86 = sshll.u32 [#allocation16], 4
      %s87 = int_to_ptr.vmem [resolvable:$true] %s86
      %89 = dma.hbm_to_vmem [thread:$0]  %s6, 16, %s87, [#allocation15]
    $region21: #{gat_forward.7} parent=1 // pred_fallthru
      _
    // Predicated region
    $region22: #{gat_forward.7} parent=1 // pred_check
      _
    $region23: #{gat_forward.7} parent=1 // pred_check_branch
      %91 = sbr.rel (0) target = $region25
    $region24: #{gat_forward.7} parent=1 // pred_region
      %s93 = ssub.s32 512, 512
      %94 = vsyncadd [#allocation18], %s93
      %s95 = sshll.u32 [#allocation17], 4
      %s96 = int_to_ptr.vmem [resolvable:$true] %s95
      %101 = dma.hbm_to_vmem [thread:$0]  %s7, 512, %s96, [#allocation18], 128, 128, 8
    $region25: #{gat_forward.7} parent=1 // pred_fallthru
      _
    // Predicated region
    $region26: #{gat_forward.7} parent=1 // pred_check
      _
    $region27: #{gat_forward.7} parent=1 // pred_check_branch
      %103 = sbr.rel (0) target = $region29
    $region28: #{gat_forward.7} parent=1 // pred_region
      %s105 = ssub.s32 16, 16
      %106 = vsyncadd [#allocation18], %s105
      %s108 = sshll.u32 [#allocation19], 4
      %s109 = int_to_ptr.vmem [resolvable:$true] %s108
      %111 = dma.hbm_to_vmem [thread:$0]  %s8, 16, %s109, [#allocation18]
    $region29: #{gat_forward.7} parent=1 // pred_fallthru
      _
    // Predicated region
    $region30: #{gat_forward.7} parent=1 // pred_check
      _
    $region31: #{gat_forward.7} parent=1 // pred_check_branch
      %113 = sbr.rel (0) target = $region33
    $region32: #{gat_forward.7} parent=1 // pred_region
      %114 = dma.done [#allocation9], 512
    $region33: #{gat_forward.7} parent=1 // pred_fallthru
      _
    // Predicated region
    $region34: #{gat_forward.7} parent=1 // pred_check
      _
    $region35: #{gat_forward.7} parent=1 // pred_check_branch
      %116 = sbr.rel (0) target = $region37
    $region36: #{gat_forward.7} parent=1 // pred_region
      %117 = dma.done [#allocation12], 1024
    $region37: #{gat_forward.7} parent=1 // pred_fallthru
      _
    // Predicated region
    $region38: #{gat_forward.7} parent=1 // pred_check
      _
    $region39: #{gat_forward.7} parent=1 // pred_check_branch
      %119 = sbr.rel (0) target = $region41
    $region40: #{gat_forward.7} parent=1 // pred_region
      %120 = dma.done [#allocation12], 2048
    $region41: #{gat_forward.7} parent=1 // pred_fallthru
      _
    // Predicated region
    $region42: #{gat_forward.7} parent=1 // pred_check
      _
    $region43: #{gat_forward.7} parent=1 // pred_check_branch
      %122 = sbr.rel (0) target = $region45
    $region44: #{gat_forward.7} parent=1 // pred_region
      %123 = dma.done [#allocation15], 32
    $region45: #{gat_forward.7} parent=1 // pred_fallthru
      _
    // Predicated region
    $region46: #{gat_forward.7} parent=1 // pred_check
      _
    $region47: #{gat_forward.7} parent=1 // pred_check_branch
      %125 = sbr.rel (0) target = $region49
    $region48: #{gat_forward.7} parent=1 // pred_region
      %126 = dma.done [#allocation15], 16
    $region49: #{gat_forward.7} parent=1 // pred_fallthru
      _
    // Predicated region
    $region50: #{gat_forward.7} parent=1 // pred_check
      _
    $region51: #{gat_forward.7} parent=1 // pred_check_branch
      %128 = sbr.rel (0) target = $region53
    $region52: #{gat_forward.7} parent=1 // pred_region
      %129 = dma.done [#allocation18], 512
    $region53: #{gat_forward.7} parent=1 // pred_fallthru
      _
    // Predicated region
    $region54: #{gat_forward.7} parent=1 // pred_check
      _
    $region55: #{gat_forward.7} parent=1 // pred_check_branch
      %131 = sbr.rel (0) target = $region57
    $region56: #{gat_forward.7} parent=1 // pred_region
      %132 = dma.done [#allocation18], 16
    $region57: #{gat_forward.7} parent=1 // pred_fallthru
      _
    %s133 = sadd.s32 0, 0
    %s134 = sld [smem:[#allocation6 + %s133]]
    %s135 = sadd.s32 0, 0
    %s136 = sld [smem:[#allocation6 + %s135]]
    %s137 = smul.u32 16, %s136
    %s138 = sadd.s32 0, 0
    %s139 = sld [smem:[#allocation6 + %s138]]
    %p141 = scmp.eq.s32.totalorder 0, 0
    // Predicated region
    $region58: #{gat_forward.7} parent=1 // pred_check
      %p142 = pneg %p141
    $region59: #{gat_forward.7} parent=1 // pred_check_branch
      %144 = sbr.rel (%p142) target = $region61
    $region60: #{gat_forward.7} parent=1 // pred_region
      %vm145 = vcmask 7168
      %146 = vst.msk [vmem:[#allocation2] sm:$0xff] %vm145, -1e+29
      %147 = vst.msk [vmem:[#allocation2 + $0x8] sm:$0xff] %vm145, -1e+29
      %148 = vst.msk [vmem:[#allocation2 + $0x10] sm:$0xff] %vm145, -1e+29
      %149 = vst.msk [vmem:[#allocation2 + $0x18] sm:$0xff] %vm145, -1e+29
      %150 = vst.msk [vmem:[#allocation2 + $0x20] sm:$0xff] %vm145, -1e+29
      %151 = vst.msk [vmem:[#allocation2 + $0x28] sm:$0xff] %vm145, -1e+29
      %152 = vst.msk [vmem:[#allocation2 + $0x30] sm:$0xff] %vm145, -1e+29
      %153 = vst.msk [vmem:[#allocation2 + $0x38] sm:$0xff] %vm145, -1e+29
      %154 = vst.msk [vmem:[#allocation2 + $0x40] sm:$0xff] %vm145, -1e+29
      %155 = vst.msk [vmem:[#allocation2 + $0x48] sm:$0xff] %vm145, -1e+29
      %156 = vst.msk [vmem:[#allocation2 + $0x50] sm:$0xff] %vm145, -1e+29
      %157 = vst.msk [vmem:[#allocation2 + $0x58] sm:$0xff] %vm145, -1e+29
      %158 = vst.msk [vmem:[#allocation2 + $0x60] sm:$0xff] %vm145, -1e+29
      %159 = vst.msk [vmem:[#allocation2 + $0x68] sm:$0xff] %vm145, -1e+29
      %160 = vst.msk [vmem:[#allocation2 + $0x70] sm:$0xff] %vm145, -1e+29
      %161 = vst.msk [vmem:[#allocation2 + $0x78] sm:$0xff] %vm145, -1e+29
      %162 = vst.msk [vmem:[#allocation2 + $0x80] sm:$0xff] %vm145, -1e+29
      %163 = vst.msk [vmem:[#allocation2 + $0x88] sm:$0xff] %vm145, -1e+29
      %164 = vst.msk [vmem:[#allocation2 + $0x90] sm:$0xff] %vm145, -1e+29
      %165 = vst.msk [vmem:[#allocation2 + $0x98] sm:$0xff] %vm145, -1e+29
      %166 = vst.msk [vmem:[#allocation2 + $0xa0] sm:$0xff] %vm145, -1e+29
      %167 = vst.msk [vmem:[#allocation2 + $0xa8] sm:$0xff] %vm145, -1e+29
      %168 = vst.msk [vmem:[#allocation2 + $0xb0] sm:$0xff] %vm145, -1e+29
      %169 = vst.msk [vmem:[#allocation2 + $0xb8] sm:$0xff] %vm145, -1e+29
      %170 = vst.msk [vmem:[#allocation2 + $0xc0] sm:$0xff] %vm145, -1e+29
      %171 = vst.msk [vmem:[#allocation2 + $0xc8] sm:$0xff] %vm145, -1e+29
      %172 = vst.msk [vmem:[#allocation2 + $0xd0] sm:$0xff] %vm145, -1e+29
      %173 = vst.msk [vmem:[#allocation2 + $0xd8] sm:$0xff] %vm145, -1e+29
      %174 = vst.msk [vmem:[#allocation2 + $0xe0] sm:$0xff] %vm145, -1e+29
      %175 = vst.msk [vmem:[#allocation2 + $0xe8] sm:$0xff] %vm145, -1e+29
      %176 = vst.msk [vmem:[#allocation2 + $0xf0] sm:$0xff] %vm145, -1e+29
      %177 = vst.msk [vmem:[#allocation2 + $0xf8] sm:$0xff] %vm145, -1e+29
      %178 = vst.msk [vmem:[#allocation3] sm:$0xff] %vm145, 0.0
      %179 = vst.msk [vmem:[#allocation3 + $0x8] sm:$0xff] %vm145, 0.0
      %180 = vst.msk [vmem:[#allocation3 + $0x10] sm:$0xff] %vm145, 0.0
      %181 = vst.msk [vmem:[#allocation3 + $0x18] sm:$0xff] %vm145, 0.0
      %182 = vst.msk [vmem:[#allocation3 + $0x20] sm:$0xff] %vm145, 0.0
      %183 = vst.msk [vmem:[#allocation3 + $0x28] sm:$0xff] %vm145, 0.0
      %184 = vst.msk [vmem:[#allocation3 + $0x30] sm:$0xff] %vm145, 0.0
      %185 = vst.msk [vmem:[#allocation3 + $0x38] sm:$0xff] %vm145, 0.0
      %186 = vst.msk [vmem:[#allocation3 + $0x40] sm:$0xff] %vm145, 0.0
      %187 = vst.msk [vmem:[#allocation3 + $0x48] sm:$0xff] %vm145, 0.0
      %188 = vst.msk [vmem:[#allocation3 + $0x50] sm:$0xff] %vm145, 0.0
      %189 = vst.msk [vmem:[#allocation3 + $0x58] sm:$0xff] %vm145, 0.0
      %190 = vst.msk [vmem:[#allocation3 + $0x60] sm:$0xff] %vm145, 0.0
      %191 = vst.msk [vmem:[#allocation3 + $0x68] sm:$0xff] %vm145, 0.0
      %192 = vst.msk [vmem:[#allocation3 + $0x70] sm:$0xff] %vm145, 0.0
      %193 = vst.msk [vmem:[#allocation3 + $0x78] sm:$0xff] %vm145, 0.0
      %194 = vst.msk [vmem:[#allocation3 + $0x80] sm:$0xff] %vm145, 0.0
      %195 = vst.msk [vmem:[#allocation3 + $0x88] sm:$0xff] %vm145, 0.0
      %196 = vst.msk [vmem:[#allocation3 + $0x90] sm:$0xff] %vm145, 0.0
      %197 = vst.msk [vmem:[#allocation3 + $0x98] sm:$0xff] %vm145, 0.0
      %198 = vst.msk [vmem:[#allocation3 + $0xa0] sm:$0xff] %vm145, 0.0
      %199 = vst.msk [vmem:[#allocation3 + $0xa8] sm:$0xff] %vm145, 0.0
      %200 = vst.msk [vmem:[#allocation3 + $0xb0] sm:$0xff] %vm145, 0.0
      %201 = vst.msk [vmem:[#allocation3 + $0xb8] sm:$0xff] %vm145, 0.0
      %202 = vst.msk [vmem:[#allocation3 + $0xc0] sm:$0xff] %vm145, 0.0
      %203 = vst.msk [vmem:[#allocation3 + $0xc8] sm:$0xff] %vm145, 0.0
      %204 = vst.msk [vmem:[#allocation3 + $0xd0] sm:$0xff] %vm145, 0.0
      %205 = vst.msk [vmem:[#allocation3 + $0xd8] sm:$0xff] %vm145, 0.0
      %206 = vst.msk [vmem:[#allocation3 + $0xe0] sm:$0xff] %vm145, 0.0
      %207 = vst.msk [vmem:[#allocation3 + $0xe8] sm:$0xff] %vm145, 0.0
      %208 = vst.msk [vmem:[#allocation3 + $0xf0] sm:$0xff] %vm145, 0.0
      %209 = vst.msk [vmem:[#allocation3 + $0xf8] sm:$0xff] %vm145, 0.0
      %vm210 = vcmask 130048
      %211 = vst.msk [vmem:[#allocation4] sm:$0xff] %vm210, 0.0
      %212 = vst.msk [vmem:[#allocation4 + $0x8] sm:$0xff] %vm210, 0.0
      %213 = vst.msk [vmem:[#allocation4 + $0x10] sm:$0xff] %vm210, 0.0
      %214 = vst.msk [vmem:[#allocation4 + $0x18] sm:$0xff] %vm210, 0.0
      %215 = vst.msk [vmem:[#allocation4 + $0x20] sm:$0xff] %vm210, 0.0
      %216 = vst.msk [vmem:[#allocation4 + $0x28] sm:$0xff] %vm210, 0.0
      %217 = vst.msk [vmem:[#allocation4 + $0x30] sm:$0xff] %vm210, 0.0
      %218 = vst.msk [vmem:[#allocation4 + $0x38] sm:$0xff] %vm210, 0.0
      %219 = vst.msk [vmem:[#allocation4 + $0x40] sm:$0xff] %vm210, 0.0
      %220 = vst.msk [vmem:[#allocation4 + $0x48] sm:$0xff] %vm210, 0.0
      %221 = vst.msk [vmem:[#allocation4 + $0x50] sm:$0xff] %vm210, 0.0
      %222 = vst.msk [vmem:[#allocation4 + $0x58] sm:$0xff] %vm210, 0.0
      %223 = vst.msk [vmem:[#allocation4 + $0x60] sm:$0xff] %vm210, 0.0
      %224 = vst.msk [vmem:[#allocation4 + $0x68] sm:$0xff] %vm210, 0.0
      %225 = vst.msk [vmem:[#allocation4 + $0x70] sm:$0xff] %vm210, 0.0
      %226 = vst.msk [vmem:[#allocation4 + $0x78] sm:$0xff] %vm210, 0.0
      %227 = vst.msk [vmem:[#allocation4 + $0x80] sm:$0xff] %vm210, 0.0
      %228 = vst.msk [vmem:[#allocation4 + $0x88] sm:$0xff] %vm210, 0.0
      %229 = vst.msk [vmem:[#allocation4 + $0x90] sm:$0xff] %vm210, 0.0
      %230 = vst.msk [vmem:[#allocation4 + $0x98] sm:$0xff] %vm210, 0.0
      %231 = vst.msk [vmem:[#allocation4 + $0xa0] sm:$0xff] %vm210, 0.0
      %232 = vst.msk [vmem:[#allocation4 + $0xa8] sm:$0xff] %vm210, 0.0
      %233 = vst.msk [vmem:[#allocation4 + $0xb0] sm:$0xff] %vm210, 0.0
      %234 = vst.msk [vmem:[#allocation4 + $0xb8] sm:$0xff] %vm210, 0.0
      %235 = vst.msk [vmem:[#allocation4 + $0xc0] sm:$0xff] %vm210, 0.0
      %236 = vst.msk [vmem:[#allocation4 + $0xc8] sm:$0xff] %vm210, 0.0
      %237 = vst.msk [vmem:[#allocation4 + $0xd0] sm:$0xff] %vm210, 0.0
      %238 = vst.msk [vmem:[#allocation4 + $0xd8] sm:$0xff] %vm210, 0.0
      %239 = vst.msk [vmem:[#allocation4 + $0xe0] sm:$0xff] %vm210, 0.0
      %240 = vst.msk [vmem:[#allocation4 + $0xe8] sm:$0xff] %vm210, 0.0
      %241 = vst.msk [vmem:[#allocation4 + $0xf0] sm:$0xff] %vm210, 0.0
      %242 = vst.msk [vmem:[#allocation4 + $0xf8] sm:$0xff] %vm210, 0.0
    $region61: #{gat_forward.7} parent=1 // pred_fallthru
      _
    %s243 = sld [smem:[#allocation7]]
    %p244 = scmp.lt.s32.totalorder 0, %s243
    // Predicated region
    $region62: #{gat_forward.7} parent=1 // pred_check
      %p245 = pneg %p244
    $region63: #{gat_forward.7} parent=1 // pred_check_branch
      %247 = sbr.rel (%p245) target = $region65
    $region64: #{gat_forward.7} parent=1 // pred_region
      %v248 = vld [vmem:[#allocation8] sm:$0xff]
      %v249 = vld [vmem:[#allocation8 + $0x8] sm:$0xff]
      %v250 = vld [vmem:[#allocation8 + $0x10] sm:$0xff]
      %v251 = vld [vmem:[#allocation8 + $0x18] sm:$0xff]
      %v252 = vunpack.c.0.s8 %v248
      %v253 = vunpack.c.1.s8 %v248
      %v254 = vunpack.c.2.s8 %v248
      %v255 = vunpack.c.3.s8 %v248
      %v256 = vunpack.c.0.s8 %v249
      %v257 = vunpack.c.1.s8 %v249
      %v258 = vunpack.c.2.s8 %v249
      %v259 = vunpack.c.3.s8 %v249
      %v260 = vunpack.c.0.s8 %v250
      %v261 = vunpack.c.1.s8 %v250
      %v262 = vunpack.c.2.s8 %v250
      %v263 = vunpack.c.3.s8 %v250
      %v264 = vunpack.c.0.s8 %v251
      %v265 = vunpack.c.1.s8 %v251
      %v266 = vunpack.c.2.s8 %v251
      %v267 = vunpack.c.3.s8 %v251
      %v268 = vcvt.s32.f32 %v252
      %v269 = vcvt.s32.f32 %v253
      %v270 = vcvt.s32.f32 %v254
      %v271 = vcvt.s32.f32 %v255
      %v272 = vcvt.s32.f32 %v256
      %v273 = vcvt.s32.f32 %v257
      %v274 = vcvt.s32.f32 %v258
      %v275 = vcvt.s32.f32 %v259
      %v276 = vcvt.s32.f32 %v260
      %v277 = vcvt.s32.f32 %v261
      %v278 = vcvt.s32.f32 %v262
      %v279 = vcvt.s32.f32 %v263
      %v280 = vcvt.s32.f32 %v264
      %v281 = vcvt.s32.f32 %v265
      %v282 = vcvt.s32.f32 %v266
      %v283 = vcvt.s32.f32 %v267
      %v284 = vmul.f32 %v268, 1e+30
      %v285 = vmul.f32 %v269, 1e+30
      %v286 = vmul.f32 %v270, 1e+30
      %v287 = vmul.f32 %v271, 1e+30
      %v288 = vmul.f32 %v272, 1e+30
      %v289 = vmul.f32 %v273, 1e+30
      %v290 = vmul.f32 %v274, 1e+30
      %v291 = vmul.f32 %v275, 1e+30
      %v292 = vmul.f32 %v276, 1e+30
      %v293 = vmul.f32 %v277, 1e+30
      %v294 = vmul.f32 %v278, 1e+30
      %v295 = vmul.f32 %v279, 1e+30
      %v296 = vmul.f32 %v280, 1e+30
      %v297 = vmul.f32 %v281, 1e+30
      %v298 = vmul.f32 %v282, 1e+30
      %v299 = vmul.f32 %v283, 1e+30
      %v300 = vld [vmem:[#allocation11] sm:$0xf]
      %v301 = vld [vmem:[#allocation11 + $0x4] sm:$0xf]
      %v302 = vld [vmem:[#allocation11 + $0x8] sm:$0xf]
      %v303 = vld [vmem:[#allocation11 + $0xc] sm:$0xf]
      %v304 = vld [vmem:[#allocation11 + $0x10] sm:$0xf]
      %v305 = vld [vmem:[#allocation11 + $0x14] sm:$0xf]
      %v306 = vld [vmem:[#allocation11 + $0x18] sm:$0xf]
      %v307 = vld [vmem:[#allocation11 + $0x1c] sm:$0xf]
      %v308 = vld [vmem:[#allocation11 + $0x20] sm:$0xf]
      %v309 = vld [vmem:[#allocation11 + $0x24] sm:$0xf]
      %v310 = vld [vmem:[#allocation11 + $0x28] sm:$0xf]
      %v311 = vld [vmem:[#allocation11 + $0x2c] sm:$0xf]
      %v312 = vld [vmem:[#allocation11 + $0x30] sm:$0xf]
      %v313 = vld [vmem:[#allocation11 + $0x34] sm:$0xf]
      %v314 = vld [vmem:[#allocation11 + $0x38] sm:$0xf]
      %v315 = vld [vmem:[#allocation11 + $0x3c] sm:$0xf]
      %v316 = vld [vmem:[#allocation13] sm:$0xff]
      %v317 = vld [vmem:[#allocation13 + $0x8] sm:$0xff]
      %v318 = vld [vmem:[#allocation13 + $0x10] sm:$0xff]
      %v319 = vld [vmem:[#allocation13 + $0x18] sm:$0xff]
      %v320 = vld [vmem:[#allocation13 + $0x20] sm:$0xff]
      %v321 = vld [vmem:[#allocation13 + $0x28] sm:$0xff]
      %v322 = vld [vmem:[#allocation13 + $0x30] sm:$0xff]
      %v323 = vld [vmem:[#allocation13 + $0x38] sm:$0xff]
      %v324 = vld [vmem:[#allocation13 + $0x40] sm:$0xff]
      %v325 = vld [vmem:[#allocation13 + $0x48] sm:$0xff]
      %v326 = vld [vmem:[#allocation13 + $0x50] sm:$0xff]
      %v327 = vld [vmem:[#allocation13 + $0x58] sm:$0xff]
      %v328 = vld [vmem:[#allocation13 + $0x60] sm:$0xff]
      %v329 = vld [vmem:[#allocation13 + $0x68] sm:$0xff]
      %v330 = vld [vmem:[#allocation13 + $0x70] sm:$0xff]
      %v331 = vld [vmem:[#allocation13 + $0x78] sm:$0xff]
      %v332 = vld [vmem:[#allocation14] sm:$0x3]
      %334 = vset.pattern.permute.xlu0 0
      %335 = vperm.xlu0 %334, %v316
      %v336 = vpop.permute.xlu0 %335
      %339 = vset.pattern.permute.xlu0 0
      %340 = vperm.xlu0 %339, %v317
      %v341 = vpop.permute.xlu0 %340
      %344 = vset.pattern.permute.xlu0 0
      %345 = vperm.xlu0 %344, %v318
      %v346 = vpop.permute.xlu0 %345
      %349 = vset.pattern.permute.xlu0 0
      %350 = vperm.xlu0 %349, %v319
      %v351 = vpop.permute.xlu0 %350
      %354 = vset.pattern.permute.xlu0 0
      %355 = vperm.xlu0 %354, %v320
      %v356 = vpop.permute.xlu0 %355
      %359 = vset.pattern.permute.xlu0 0
      %360 = vperm.xlu0 %359, %v321
      %v361 = vpop.permute.xlu0 %360
      %364 = vset.pattern.permute.xlu0 0
      %365 = vperm.xlu0 %364, %v322
      %v366 = vpop.permute.xlu0 %365
      %369 = vset.pattern.permute.xlu0 0
      %370 = vperm.xlu0 %369, %v323
      %v371 = vpop.permute.xlu0 %370
      %374 = vset.pattern.permute.xlu0 0
      %375 = vperm.xlu0 %374, %v324
      %v376 = vpop.permute.xlu0 %375
      %379 = vset.pattern.permute.xlu0 0
      %380 = vperm.xlu0 %379, %v325
      %v381 = vpop.permute.xlu0 %380
      %384 = vset.pattern.permute.xlu0 0
      %385 = vperm.xlu0 %384, %v326
      %v386 = vpop.permute.xlu0 %385
      %389 = vset.pattern.permute.xlu0 0
      %390 = vperm.xlu0 %389, %v327
      %v391 = vpop.permute.xlu0 %390
      %394 = vset.pattern.permute.xlu0 0
      %395 = vperm.xlu0 %394, %v328
      %v396 = vpop.permute.xlu0 %395
      %399 = vset.pattern.permute.xlu0 0
      %400 = vperm.xlu0 %399, %v329
      %v401 = vpop.permute.xlu0 %400
      %404 = vset.pattern.permute.xlu0 0
      %405 = vperm.xlu0 %404, %v330
      %v406 = vpop.permute.xlu0 %405
      %409 = vset.pattern.permute.xlu0 0
      %410 = vperm.xlu0 %409, %v331
      %v411 = vpop.permute.xlu0 %410
      %v413 = vlaneseq
      %v414 = vshrl.u32 %v413, 7
      %v415 = vsub.s32 0, %v414
      %v416 = vrot.slane %v332, %v415
      %v417 = vadd.f32 %v336, %v416
      %v418 = vadd.f32 %v341, %v416
      %v419 = vadd.f32 %v346, %v416
      %v420 = vadd.f32 %v351, %v416
      %v421 = vadd.f32 %v356, %v416
      %v422 = vadd.f32 %v361, %v416
      %v423 = vadd.f32 %v366, %v416
      %v424 = vadd.f32 %v371, %v416
      %v425 = vadd.f32 %v376, %v416
      %v426 = vadd.f32 %v381, %v416
      %v427 = vadd.f32 %v386, %v416
      %v428 = vadd.f32 %v391, %v416
      %v429 = vadd.f32 %v396, %v416
      %v430 = vadd.f32 %v401, %v416
      %v431 = vadd.f32 %v406, %v416
      %v432 = vadd.f32 %v411, %v416
      %v433 = vmul.f32 %v417, 0.2
      %v434 = vmul.f32 %v418, 0.2
      %v435 = vmul.f32 %v419, 0.2
      %v436 = vmul.f32 %v420, 0.2
      %v437 = vmul.f32 %v421, 0.2
      %v438 = vmul.f32 %v422, 0.2
      %v439 = vmul.f32 %v423, 0.2
      %v440 = vmul.f32 %v424, 0.2
      %v441 = vmul.f32 %v425, 0.2
      %v442 = vmul.f32 %v426, 0.2
      %v443 = vmul.f32 %v427, 0.2
      %v444 = vmul.f32 %v428, 0.2
      %v445 = vmul.f32 %v429, 0.2
      %v446 = vmul.f32 %v430, 0.2
      %v447 = vmul.f32 %v431, 0.2
      %v448 = vmul.f32 %v432, 0.2
      %v449 = vmax.f32 %v417, %v433
      %v450 = vmax.f32 %v418, %v434
      %v451 = vmax.f32 %v419, %v435
      %v452 = vmax.f32 %v420, %v436
      %v453 = vmax.f32 %v421, %v437
      %v454 = vmax.f32 %v422, %v438
      %v455 = vmax.f32 %v423, %v439
      %v456 = vmax.f32 %v424, %v440
      %v457 = vmax.f32 %v425, %v441
      %v458 = vmax.f32 %v426, %v442
      %v459 = vmax.f32 %v427, %v443
      %v460 = vmax.f32 %v428, %v444
      %v461 = vmax.f32 %v429, %v445
      %v462 = vmax.f32 %v430, %v446
      %v463 = vmax.f32 %v431, %v447
      %v464 = vmax.f32 %v432, %v448
      %v465 = vadd.f32 %v449, %v284
      %v466 = vadd.f32 %v450, %v285
      %v467 = vadd.f32 %v451, %v286
      %v468 = vadd.f32 %v452, %v287
      %v469 = vadd.f32 %v453, %v288
      %v470 = vadd.f32 %v454, %v289
      %v471 = vadd.f32 %v455, %v290
      %v472 = vadd.f32 %v456, %v291
      %v473 = vadd.f32 %v457, %v292
      %v474 = vadd.f32 %v458, %v293
      %v475 = vadd.f32 %v459, %v294
      %v476 = vadd.f32 %v460, %v295
      %v477 = vadd.f32 %v461, %v296
      %v478 = vadd.f32 %v462, %v297
      %v479 = vadd.f32 %v463, %v298
      %v480 = vadd.f32 %v464, %v299
      %v481 = vld [vmem:[#allocation2] sm:$0xff]
      %v482 = vld [vmem:[#allocation2 + $0x8] sm:$0xff]
      %v483 = vld [vmem:[#allocation2 + $0x10] sm:$0xff]
      %v484 = vld [vmem:[#allocation2 + $0x18] sm:$0xff]
      %v485 = vld [vmem:[#allocation2 + $0x20] sm:$0xff]
      %v486 = vld [vmem:[#allocation2 + $0x28] sm:$0xff]
      %v487 = vld [vmem:[#allocation2 + $0x30] sm:$0xff]
      %v488 = vld [vmem:[#allocation2 + $0x38] sm:$0xff]
      %v489 = vld [vmem:[#allocation2 + $0x40] sm:$0xff]
      %v490 = vld [vmem:[#allocation2 + $0x48] sm:$0xff]
      %v491 = vld [vmem:[#allocation2 + $0x50] sm:$0xff]
      %v492 = vld [vmem:[#allocation2 + $0x58] sm:$0xff]
      %v493 = vld [vmem:[#allocation2 + $0x60] sm:$0xff]
      %v494 = vld [vmem:[#allocation2 + $0x68] sm:$0xff]
      %v495 = vld [vmem:[#allocation2 + $0x70] sm:$0xff]
      %v496 = vld [vmem:[#allocation2 + $0x78] sm:$0xff]
      %497 = vmax.xlane.f32.xlu0 %v465
      %v498 = vpop.xlane.xlu0 %497
      %499 = vmax.xlane.f32.xlu0 %v466
      %v500 = vpop.xlane.xlu0 %499
      %501 = vmax.xlane.f32.xlu0 %v467
      %v502 = vpop.xlane.xlu0 %501
      %503 = vmax.xlane.f32.xlu0 %v468
      %v504 = vpop.xlane.xlu0 %503
      %505 = vmax.xlane.f32.xlu0 %v469
      %v506 = vpop.xlane.xlu0 %505
      %507 = vmax.xlane.f32.xlu0 %v470
      %v508 = vpop.xlane.xlu0 %507
      %509 = vmax.xlane.f32.xlu0 %v471
      %v510 = vpop.xlane.xlu0 %509
      %511 = vmax.xlane.f32.xlu0 %v472
      %v512 = vpop.xlane.xlu0 %511
      %513 = vmax.xlane.f32.xlu0 %v473
      %v514 = vpop.xlane.xlu0 %513
      %515 = vmax.xlane.f32.xlu0 %v474
      %v516 = vpop.xlane.xlu0 %515
      %517 = vmax.xlane.f32.xlu0 %v475
      %v518 = vpop.xlane.xlu0 %517
      %519 = vmax.xlane.f32.xlu0 %v476
      %v520 = vpop.xlane.xlu0 %519
      %521 = vmax.xlane.f32.xlu0 %v477
      %v522 = vpop.xlane.xlu0 %521
      %523 = vmax.xlane.f32.xlu0 %v478
      %v524 = vpop.xlane.xlu0 %523
      %525 = vmax.xlane.f32.xlu0 %v479
      %v526 = vpop.xlane.xlu0 %525
      %527 = vmax.xlane.f32.xlu0 %v480
      %v528 = vpop.xlane.xlu0 %527
      %v529 = vmax.f32 %v481, %v498
      %v530 = vmax.f32 %v482, %v500
      %v531 = vmax.f32 %v483, %v502
      %v532 = vmax.f32 %v484, %v504
      %v533 = vmax.f32 %v485, %v506
      %v534 = vmax.f32 %v486, %v508
      %v535 = vmax.f32 %v487, %v510
      %v536 = vmax.f32 %v488, %v512
      %v537 = vmax.f32 %v489, %v514
      %v538 = vmax.f32 %v490, %v516
      %v539 = vmax.f32 %v491, %v518
      %v540 = vmax.f32 %v492, %v520
      %v541 = vmax.f32 %v493, %v522
      %v542 = vmax.f32 %v494, %v524
      %v543 = vmax.f32 %v495, %v526
      %v544 = vmax.f32 %v496, %v528
      %v545 = vsub.f32 %v481, %v529
      %v546 = vsub.f32 %v482, %v530
      %v547 = vsub.f32 %v483, %v531
      %v548 = vsub.f32 %v484, %v532
      %v549 = vsub.f32 %v485, %v533
      %v550 = vsub.f32 %v486, %v534
      %v551 = vsub.f32 %v487, %v535
      %v552 = vsub.f32 %v488, %v536
      %v553 = vsub.f32 %v489, %v537
      %v554 = vsub.f32 %v490, %v538
      %v555 = vsub.f32 %v491, %v539
      %v556 = vsub.f32 %v492, %v540
      %v557 = vsub.f32 %v493, %v541
      %v558 = vsub.f32 %v494, %v542
      %v559 = vsub.f32 %v495, %v543
      %v560 = vsub.f32 %v496, %v544
      %v561 = vmul.f32 %v545, 1.442695
      %v562 = vpow.pop %v561
      %v563 = vmul.f32 %v546, 1.442695
      %v564 = vpow.pop %v563
      %v565 = vmul.f32 %v547, 1.442695
      %v566 = vpow.pop %v565
      %v567 = vmul.f32 %v548, 1.442695
      %v568 = vpow.pop %v567
      %v569 = vmul.f32 %v549, 1.442695
      %v570 = vpow.pop %v569
      %v571 = vmul.f32 %v550, 1.442695
      %v572 = vpow.pop %v571
      %v573 = vmul.f32 %v551, 1.442695
      %v574 = vpow.pop %v573
      %v575 = vmul.f32 %v552, 1.442695
      %v576 = vpow.pop %v575
      %v577 = vmul.f32 %v553, 1.442695
      %v578 = vpow.pop %v577
      %v579 = vmul.f32 %v554, 1.442695
      %v580 = vpow.pop %v579
      %v581 = vmul.f32 %v555, 1.442695
      %v582 = vpow.pop %v581
      %v583 = vmul.f32 %v556, 1.442695
      %v584 = vpow.pop %v583
      %v585 = vmul.f32 %v557, 1.442695
      %v586 = vpow.pop %v585
      %v587 = vmul.f32 %v558, 1.442695
      %v588 = vpow.pop %v587
      %v589 = vmul.f32 %v559, 1.442695
      %v590 = vpow.pop %v589
      %v591 = vmul.f32 %v560, 1.442695
      %v592 = vpow.pop %v591
      %594 = vset.pattern.permute.xlu0 0
      %595 = vperm.xlu0 %594, %v529
      %v596 = vpop.permute.xlu0 %595
      %599 = vset.pattern.permute.xlu0 0
      %600 = vperm.xlu0 %599, %v530
      %v601 = vpop.permute.xlu0 %600
      %604 = vset.pattern.permute.xlu0 0
      %605 = vperm.xlu0 %604, %v531
      %v606 = vpop.permute.xlu0 %605
      %609 = vset.pattern.permute.xlu0 0
      %610 = vperm.xlu0 %609, %v532
      %v611 = vpop.permute.xlu0 %610
      %614 = vset.pattern.permute.xlu0 0
      %615 = vperm.xlu0 %614, %v533
      %v616 = vpop.permute.xlu0 %615
      %619 = vset.pattern.permute.xlu0 0
      %620 = vperm.xlu0 %619, %v534
      %v621 = vpop.permute.xlu0 %620
      %624 = vset.pattern.permute.xlu0 0
      %625 = vperm.xlu0 %624, %v535
      %v626 = vpop.permute.xlu0 %625
      %629 = vset.pattern.permute.xlu0 0
      %630 = vperm.xlu0 %629, %v536
      %v631 = vpop.permute.xlu0 %630
      %634 = vset.pattern.permute.xlu0 0
      %635 = vperm.xlu0 %634, %v537
      %v636 = vpop.permute.xlu0 %635
      %639 = vset.pattern.permute.xlu0 0
      %640 = vperm.xlu0 %639, %v538
      %v641 = vpop.permute.xlu0 %640
      %644 = vset.pattern.permute.xlu0 0
      %645 = vperm.xlu0 %644, %v539
      %v646 = vpop.permute.xlu0 %645
      %649 = vset.pattern.permute.xlu0 0
      %650 = vperm.xlu0 %649, %v540
      %v651 = vpop.permute.xlu0 %650
      %654 = vset.pattern.permute.xlu0 0
      %655 = vperm.xlu0 %654, %v541
      %v656 = vpop.permute.xlu0 %655
      %659 = vset.pattern.permute.xlu0 0
      %660 = vperm.xlu0 %659, %v542
      %v661 = vpop.permute.xlu0 %660
      %664 = vset.pattern.permute.xlu0 0
      %665 = vperm.xlu0 %664, %v543
      %v666 = vpop.permute.xlu0 %665
      %669 = vset.pattern.permute.xlu0 0
      %670 = vperm.xlu0 %669, %v544
      %v671 = vpop.permute.xlu0 %670
      %v673 = vsub.f32 %v465, %v596
      %v674 = vsub.f32 %v466, %v601
      %v675 = vsub.f32 %v467, %v606
      %v676 = vsub.f32 %v468, %v611
      %v677 = vsub.f32 %v469, %v616
      %v678 = vsub.f32 %v470, %v621
      %v679 = vsub.f32 %v471, %v626
      %v680 = vsub.f32 %v472, %v631
      %v681 = vsub.f32 %v473, %v636
      %v682 = vsub.f32 %v474, %v641
      %v683 = vsub.f32 %v475, %v646
      %v684 = vsub.f32 %v476, %v651
      %v685 = vsub.f32 %v477, %v656
      %v686 = vsub.f32 %v478, %v661
      %v687 = vsub.f32 %v479, %v666
      %v688 = vsub.f32 %v480, %v671
      %v689 = vmul.f32 %v673, 1.442695
      %v690 = vpow.pop %v689
      %v691 = vmul.f32 %v674, 1.442695
      %v692 = vpow.pop %v691
      %v693 = vmul.f32 %v675, 1.442695
      %v694 = vpow.pop %v693
      %v695 = vmul.f32 %v676, 1.442695
      %v696 = vpow.pop %v695
      %v697 = vmul.f32 %v677, 1.442695
      %v698 = vpow.pop %v697
      %v699 = vmul.f32 %v678, 1.442695
      %v700 = vpow.pop %v699
      %v701 = vmul.f32 %v679, 1.442695
      %v702 = vpow.pop %v701
      %v703 = vmul.f32 %v680, 1.442695
      %v704 = vpow.pop %v703
      %v705 = vmul.f32 %v681, 1.442695
      %v706 = vpow.pop %v705
      %v707 = vmul.f32 %v682, 1.442695
      %v708 = vpow.pop %v707
      %v709 = vmul.f32 %v683, 1.442695
      %v710 = vpow.pop %v709
      %v711 = vmul.f32 %v684, 1.442695
      %v712 = vpow.pop %v711
      %v713 = vmul.f32 %v685, 1.442695
      %v714 = vpow.pop %v713
      %v715 = vmul.f32 %v686, 1.442695
      %v716 = vpow.pop %v715
      %v717 = vmul.f32 %v687, 1.442695
      %v718 = vpow.pop %v717
      %v719 = vmul.f32 %v688, 1.442695
      %v720 = vpow.pop %v719
      %v721 = vld [vmem:[#allocation3] sm:$0xff]
      %v722 = vld [vmem:[#allocation3 + $0x8] sm:$0xff]
      %v723 = vld [vmem:[#allocation3 + $0x10] sm:$0xff]
      %v724 = vld [vmem:[#allocation3 + $0x18] sm:$0xff]
      %v725 = vld [vmem:[#allocation3 + $0x20] sm:$0xff]
      %v726 = vld [vmem:[#allocation3 + $0x28] sm:$0xff]
      %v727 = vld [vmem:[#allocation3 + $0x30] sm:$0xff]
      %v728 = vld [vmem:[#allocation3 + $0x38] sm:$0xff]
      %v729 = vld [vmem:[#allocation3 + $0x40] sm:$0xff]
      %v730 = vld [vmem:[#allocation3 + $0x48] sm:$0xff]
      %v731 = vld [vmem:[#allocation3 + $0x50] sm:$0xff]
      %v732 = vld [vmem:[#allocation3 + $0x58] sm:$0xff]
      %v733 = vld [vmem:[#allocation3 + $0x60] sm:$0xff]
      %v734 = vld [vmem:[#allocation3 + $0x68] sm:$0xff]
      %v735 = vld [vmem:[#allocation3 + $0x70] sm:$0xff]
      %v736 = vld [vmem:[#allocation3 + $0x78] sm:$0xff]
      %v737 = vmul.f32 %v562, %v721
      %v738 = vmul.f32 %v564, %v722
      %v739 = vmul.f32 %v566, %v723
      %v740 = vmul.f32 %v568, %v724
      %v741 = vmul.f32 %v570, %v725
      %v742 = vmul.f32 %v572, %v726
      %v743 = vmul.f32 %v574, %v727
      %v744 = vmul.f32 %v576, %v728
      %v745 = vmul.f32 %v578, %v729
      %v746 = vmul.f32 %v580, %v730
      %v747 = vmul.f32 %v582, %v731
      %v748 = vmul.f32 %v584, %v732
      %v749 = vmul.f32 %v586, %v733
      %v750 = vmul.f32 %v588, %v734
      %v751 = vmul.f32 %v590, %v735
      %v752 = vmul.f32 %v592, %v736
      %753 = vadd.xlane.f32.xlu0 %v690
      %v754 = vpop.xlane.xlu0 %753
      %755 = vadd.xlane.f32.xlu0 %v692
      %v756 = vpop.xlane.xlu0 %755
      %757 = vadd.xlane.f32.xlu0 %v694
      %v758 = vpop.xlane.xlu0 %757
      %759 = vadd.xlane.f32.xlu0 %v696
      %v760 = vpop.xlane.xlu0 %759
      %761 = vadd.xlane.f32.xlu0 %v698
      %v762 = vpop.xlane.xlu0 %761
      %763 = vadd.xlane.f32.xlu0 %v700
      %v764 = vpop.xlane.xlu0 %763
      %765 = vadd.xlane.f32.xlu0 %v702
      %v766 = vpop.xlane.xlu0 %765
      %767 = vadd.xlane.f32.xlu0 %v704
      %v768 = vpop.xlane.xlu0 %767
      %769 = vadd.xlane.f32.xlu0 %v706
      %v770 = vpop.xlane.xlu0 %769
      %771 = vadd.xlane.f32.xlu0 %v708
      %v772 = vpop.xlane.xlu0 %771
      %773 = vadd.xlane.f32.xlu0 %v710
      %v774 = vpop.xlane.xlu0 %773
      %775 = vadd.xlane.f32.xlu0 %v712
      %v776 = vpop.xlane.xlu0 %775
      %777 = vadd.xlane.f32.xlu0 %v714
      %v778 = vpop.xlane.xlu0 %777
      %779 = vadd.xlane.f32.xlu0 %v716
      %v780 = vpop.xlane.xlu0 %779
      %781 = vadd.xlane.f32.xlu0 %v718
      %v782 = vpop.xlane.xlu0 %781
      %783 = vadd.xlane.f32.xlu0 %v720
      %v784 = vpop.xlane.xlu0 %783
      %v785 = vadd.f32 %v737, %v754
      %v786 = vadd.f32 %v738, %v756
      %v787 = vadd.f32 %v739, %v758
      %v788 = vadd.f32 %v740, %v760
      %v789 = vadd.f32 %v741, %v762
      %v790 = vadd.f32 %v742, %v764
      %v791 = vadd.f32 %v743, %v766
      %v792 = vadd.f32 %v744, %v768
      %v793 = vadd.f32 %v745, %v770
      %v794 = vadd.f32 %v746, %v772
      %v795 = vadd.f32 %v747, %v774
      %v796 = vadd.f32 %v748, %v776
      %v797 = vadd.f32 %v749, %v778
      %v798 = vadd.f32 %v750, %v780
      %v799 = vadd.f32 %v751, %v782
      %v800 = vadd.f32 %v752, %v784
      %vm801 = vcmask 7168
      %802 = vst.msk [vmem:[#allocation3] sm:$0xff] %vm801, %v785
      %803 = vst.msk [vmem:[#allocation3 + $0x8] sm:$0xff] %vm801, %v786
      %804 = vst.msk [vmem:[#allocation3 + $0x10] sm:$0xff] %vm801, %v787
      %805 = vst.msk [vmem:[#allocation3 + $0x18] sm:$0xff] %vm801, %v788
      %806 = vst.msk [vmem:[#allocation3 + $0x20] sm:$0xff] %vm801, %v789
      %807 = vst.msk [vmem:[#allocation3 + $0x28] sm:$0xff] %vm801, %v790
      %808 = vst.msk [vmem:[#allocation3 + $0x30] sm:$0xff] %vm801, %v791
      %809 = vst.msk [vmem:[#allocation3 + $0x38] sm:$0xff] %vm801, %v792
      %810 = vst.msk [vmem:[#allocation3 + $0x40] sm:$0xff] %vm801, %v793
      %811 = vst.msk [vmem:[#allocation3 + $0x48] sm:$0xff] %vm801, %v794
      %812 = vst.msk [vmem:[#allocation3 + $0x50] sm:$0xff] %vm801, %v795
      %813 = vst.msk [vmem:[#allocation3 + $0x58] sm:$0xff] %vm801, %v796
      %814 = vst.msk [vmem:[#allocation3 + $0x60] sm:$0xff] %vm801, %v797
      %815 = vst.msk [vmem:[#allocation3 + $0x68] sm:$0xff] %vm801, %v798
      %816 = vst.msk [vmem:[#allocation3 + $0x70] sm:$0xff] %vm801, %v799
      %817 = vst.msk [vmem:[#allocation3 + $0x78] sm:$0xff] %vm801, %v800
      %v818 = vld [vmem:[#allocation4] sm:$0xff]
      %v819 = vld [vmem:[#allocation4 + $0x8] sm:$0xff]
      %v820 = vld [vmem:[#allocation4 + $0x10] sm:$0xff]
      %v821 = vld [vmem:[#allocation4 + $0x18] sm:$0xff]
      %v822 = vld [vmem:[#allocation4 + $0x20] sm:$0xff]
      %v823 = vld [vmem:[#allocation4 + $0x28] sm:$0xff]
      %v824 = vld [vmem:[#allocation4 + $0x30] sm:$0xff]
      %v825 = vld [vmem:[#allocation4 + $0x38] sm:$0xff]
      %v826 = vld [vmem:[#allocation4 + $0x40] sm:$0xff]
      %v827 = vld [vmem:[#allocation4 + $0x48] sm:$0xff]
      %v828 = vld [vmem:[#allocation4 + $0x50] sm:$0xff]
      %v829 = vld [vmem:[#allocation4 + $0x58] sm:$0xff]
      %v830 = vld [vmem:[#allocation4 + $0x60] sm:$0xff]
      %v831 = vld [vmem:[#allocation4 + $0x68] sm:$0xff]
      %v832 = vld [vmem:[#allocation4 + $0x70] sm:$0xff]
      %v833 = vld [vmem:[#allocation4 + $0x78] sm:$0xff]
      %835 = vset.pattern.permute.xlu0 0
      %836 = vperm.xlu0 %835, %v562
      %v837 = vpop.permute.xlu0 %836
      %840 = vset.pattern.permute.xlu0 0
      %841 = vperm.xlu0 %840, %v564
      %v842 = vpop.permute.xlu0 %841
      %845 = vset.pattern.permute.xlu0 0
      %846 = vperm.xlu0 %845, %v566
      %v847 = vpop.permute.xlu0 %846
      %850 = vset.pattern.permute.xlu0 0
      %851 = vperm.xlu0 %850, %v568
      %v852 = vpop.permute.xlu0 %851
      %855 = vset.pattern.permute.xlu0 0
      %856 = vperm.xlu0 %855, %v570
      %v857 = vpop.permute.xlu0 %856
      %860 = vset.pattern.permute.xlu0 0
      %861 = vperm.xlu0 %860, %v572
      %v862 = vpop.permute.xlu0 %861
      %865 = vset.pattern.permute.xlu0 0
      %866 = vperm.xlu0 %865, %v574
      %v867 = vpop.permute.xlu0 %866
      %870 = vset.pattern.permute.xlu0 0
      %871 = vperm.xlu0 %870, %v576
      %v872 = vpop.permute.xlu0 %871
      %875 = vset.pattern.permute.xlu0 0
      %876 = vperm.xlu0 %875, %v578
      %v877 = vpop.permute.xlu0 %876
      %880 = vset.pattern.permute.xlu0 0
      %881 = vperm.xlu0 %880, %v580
      %v882 = vpop.permute.xlu0 %881
      %885 = vset.pattern.permute.xlu0 0
      %886 = vperm.xlu0 %885, %v582
      %v887 = vpop.permute.xlu0 %886
      %890 = vset.pattern.permute.xlu0 0
      %891 = vperm.xlu0 %890, %v584
      %v892 = vpop.permute.xlu0 %891
      %895 = vset.pattern.permute.xlu0 0
      %896 = vperm.xlu0 %895, %v586
      %v897 = vpop.permute.xlu0 %896
      %900 = vset.pattern.permute.xlu0 0
      %901 = vperm.xlu0 %900, %v588
      %v902 = vpop.permute.xlu0 %901
      %905 = vset.pattern.permute.xlu0 0
      %906 = vperm.xlu0 %905, %v590
      %v907 = vpop.permute.xlu0 %906
      %910 = vset.pattern.permute.xlu0 0
      %911 = vperm.xlu0 %910, %v592
      %v912 = vpop.permute.xlu0 %911
      %v914 = vmul.f32 %v837, %v818
      %v915 = vmul.f32 %v842, %v819
      %v916 = vmul.f32 %v847, %v820
      %v917 = vmul.f32 %v852, %v821
      %v918 = vmul.f32 %v857, %v822
      %v919 = vmul.f32 %v862, %v823
      %v920 = vmul.f32 %v867, %v824
      %v921 = vmul.f32 %v872, %v825
      %v922 = vmul.f32 %v877, %v826
      %v923 = vmul.f32 %v882, %v827
      %v924 = vmul.f32 %v887, %v828
      %v925 = vmul.f32 %v892, %v829
      %v926 = vmul.f32 %v897, %v830
      %v927 = vmul.f32 %v902, %v831
      %v928 = vmul.f32 %v907, %v832
      %v929 = vmul.f32 %v912, %v833
      %v930 = vpack.c.bf16 %v692, %v690
      %v931 = vpack.c.bf16 %v696, %v694
      %v932 = vpack.c.bf16 %v700, %v698
      %v933 = vpack.c.bf16 %v704, %v702
      %v934 = vpack.c.bf16 %v708, %v706
      %v935 = vpack.c.bf16 %v712, %v710
      %v936 = vpack.c.bf16 %v716, %v714
      %v937 = vpack.c.bf16 %v720, %v718
      %v954 = vunpack.c.l.b16 %v300
      %v955 = vunpack.c.l.b16 %v301
      %v956 = vunpack.c.l.b16 %v302
      %v957 = vunpack.c.l.b16 %v303
      %v958 = vunpack.c.l.b16 %v304
      %v959 = vunpack.c.l.b16 %v305
      %v960 = vunpack.c.l.b16 %v306
      %v961 = vunpack.c.l.b16 %v307
      %v962 = vunpack.c.l.b16 %v308
      %v963 = vunpack.c.l.b16 %v309
      %v964 = vunpack.c.l.b16 %v310
      %v965 = vunpack.c.l.b16 %v311
      %v966 = vunpack.c.l.b16 %v312
      %v967 = vunpack.c.l.b16 %v313
      %v968 = vunpack.c.l.b16 %v314
      %v969 = vunpack.c.l.b16 %v315
      %v970 = vpack.c.b16 %v955, %v954
      %v971 = vpack.c.b16 %v957, %v956
      %v972 = vpack.c.b16 %v959, %v958
      %v973 = vpack.c.b16 %v961, %v960
      %v974 = vpack.c.b16 %v963, %v962
      %v975 = vpack.c.b16 %v965, %v964
      %v976 = vpack.c.b16 %v967, %v966
      %v977 = vpack.c.b16 %v969, %v968
      %986 = vmatprep.subr.bf16.mxu0 0
      %987 = vmatpush1.bf16.msra.mxu0 %v970
      %988 = vmatprep.subr.bf16.mxu0 0
      %989 = vmatpush1.bf16.msra.mxu0 %v971
      %990 = vmatprep.subr.bf16.mxu0 0
      %991 = vmatpush1.bf16.msra.mxu0 %v972
      %992 = vmatprep.subr.bf16.mxu0 0
      %993 = vmatpush1.bf16.msra.mxu0 %v973
      %994 = vmatprep.subr.bf16.mxu0 0
      %995 = vmatpush1.bf16.msra.mxu0 %v974
      %996 = vmatprep.subr.bf16.mxu0 0
      %997 = vmatpush1.bf16.msra.mxu0 %v975
      %998 = vmatprep.subr.bf16.mxu0 0
      %999 = vmatpush1.bf16.msra.mxu0 %v976
      %1000 = vmatprep.subr.bf16.mxu0 0
      %1001 = vmatpush1.bf16.msra.mxu0 %v977
      %1002 = vmatprep.subr.bf16.mxu0 0
      %1003 = vmatpush1.bf16.msra.mxu0 0
      %1004 = vmatprep.subr.bf16.mxu0 0
      %1005 = vmatpush1.bf16.msra.mxu0 0
      %1006 = vmatprep.subr.bf16.mxu0 0
      %1007 = vmatpush1.bf16.msra.mxu0 0
      %1008 = vmatprep.subr.bf16.mxu0 0
      %1009 = vmatpush1.bf16.msra.mxu0 0
      %1010 = vmatprep.subr.bf16.mxu0 0
      %1011 = vmatpush1.bf16.msra.mxu0 0
      %1012 = vmatprep.subr.bf16.mxu0 0
      %1013 = vmatpush1.bf16.msra.mxu0 0
      %1014 = vmatprep.subr.bf16.mxu0 0
      %1015 = vmatpush1.bf16.msra.mxu0 0
      %1016 = vmatprep.subr.bf16.mxu0 0
      %1017 = vmatpush1.bf16.msra.mxu0 0
      %1018 = vmatprep.mubr.bf16.mxu0 0
      %1019 = vmatmul.mubr.bf16.gmra.mrb[0].mxu0 %v930
      %v1020 = vpop.f32.mrb[0].mxu0
      %v1021 = vadd.f32 0.0, %v1020
      %v1022 = vpop.f32.mrb[0].mxu0
      %v1023 = vpop.f32.mrb[0].mxu0
      %v1024 = vadd.f32 0.0, %v1023
      %v1025 = vpop.f32.mrb[0].mxu0
      %1026 = vmatprep.mubr.bf16.mxu0 0
      %1027 = vmatmul.mubr.bf16.gmra.mrb[0].mxu0 %v931
      %v1028 = vpop.f32.mrb[0].mxu0
      %v1029 = vadd.f32 0.0, %v1028
      %v1030 = vpop.f32.mrb[0].mxu0
      %v1031 = vpop.f32.mrb[0].mxu0
      %v1032 = vadd.f32 0.0, %v1031
      %v1033 = vpop.f32.mrb[0].mxu0
      %1034 = vmatprep.mubr.bf16.mxu0 0
      %1035 = vmatmul.mubr.bf16.gmra.mrb[0].mxu0 %v932
      %v1036 = vpop.f32.mrb[0].mxu0
      %v1037 = vadd.f32 0.0, %v1036
      %v1038 = vpop.f32.mrb[0].mxu0
      %v1039 = vpop.f32.mrb[0].mxu0
      %v1040 = vadd.f32 0.0, %v1039
      %v1041 = vpop.f32.mrb[0].mxu0
      %1042 = vmatprep.mubr.bf16.mxu0 0
      %1043 = vmatmul.mubr.bf16.gmra.mrb[0].mxu0 %v933
      %v1044 = vpop.f32.mrb[0].mxu0
      %v1045 = vadd.f32 0.0, %v1044
      %v1046 = vpop.f32.mrb[0].mxu0
      %v1047 = vpop.f32.mrb[0].mxu0
      %v1048 = vadd.f32 0.0, %v1047
      %v1049 = vpop.f32.mrb[0].mxu0
      %1050 = vmatprep.mubr.bf16.mxu0 0
      %1051 = vmatmul.mubr.bf16.gmra.mrb[0].mxu0 %v934
      %v1052 = vpop.f32.mrb[0].mxu0
      %v1053 = vadd.f32 0.0, %v1052
      %v1054 = vpop.f32.mrb[0].mxu0
      %v1055 = vpop.f32.mrb[0].mxu0
      %v1056 = vadd.f32 0.0, %v1055
      %v1057 = vpop.f32.mrb[0].mxu0
      %1058 = vmatprep.mubr.bf16.mxu0 0
      %1059 = vmatmul.mubr.bf16.gmra.mrb[0].mxu0 %v935
      %v1060 = vpop.f32.mrb[0].mxu0
      %v1061 = vadd.f32 0.0, %v1060
      %v1062 = vpop.f32.mrb[0].mxu0
      %v1063 = vpop.f32.mrb[0].mxu0
      %v1064 = vadd.f32 0.0, %v1063
      %v1065 = vpop.f32.mrb[0].mxu0
      %1066 = vmatprep.mubr.bf16.mxu0 0
      %1067 = vmatmul.mubr.bf16.gmra.mrb[0].mxu0 %v936
      %v1068 = vpop.f32.mrb[0].mxu0
      %v1069 = vadd.f32 0.0, %v1068
      %v1070 = vpop.f32.mrb[0].mxu0
      %v1071 = vpop.f32.mrb[0].mxu0
      %v1072 = vadd.f32 0.0, %v1071
      %v1073 = vpop.f32.mrb[0].mxu0
      %1074 = vmatprep.mubr.bf16.mxu0 0
      %1075 = vmatmul.mubr.bf16.gmra.mrb[0].mxu0 %v937
      %v1076 = vpop.f32.mrb[0].mxu0
      %v1077 = vadd.f32 0.0, %v1076
      %v1078 = vpop.f32.mrb[0].mxu0
      %v1079 = vpop.f32.mrb[0].mxu0
      %v1080 = vadd.f32 0.0, %v1079
      %v1081 = vpop.f32.mrb[0].mxu0
      %1082 = vdwg.mxu0
      %v1083 = vadd.f32 %v914, %v1021
      %v1084 = vadd.f32 %v915, %v1024
      %v1085 = vadd.f32 %v916, %v1029
      %v1086 = vadd.f32 %v917, %v1032
      %v1087 = vadd.f32 %v918, %v1037
      %v1088 = vadd.f32 %v919, %v1040
      %v1089 = vadd.f32 %v920, %v1045
      %v1090 = vadd.f32 %v921, %v1048
      %v1091 = vadd.f32 %v922, %v1053
      %v1092 = vadd.f32 %v923, %v1056
      %v1093 = vadd.f32 %v924, %v1061
      %v1094 = vadd.f32 %v925, %v1064
      %v1095 = vadd.f32 %v926, %v1069
      %v1096 = vadd.f32 %v927, %v1072
      %v1097 = vadd.f32 %v928, %v1077
      %v1098 = vadd.f32 %v929, %v1080
      %vm1099 = vcmask 130048
      %1100 = vst.msk [vmem:[#allocation4] sm:$0xff] %vm1099, %v1083
      %1101 = vst.msk [vmem:[#allocation4 + $0x8] sm:$0xff] %vm1099, %v1084
      %1102 = vst.msk [vmem:[#allocation4 + $0x10] sm:$0xff] %vm1099, %v1085
      %1103 = vst.msk [vmem:[#allocation4 + $0x18] sm:$0xff] %vm1099, %v1086
      %1104 = vst.msk [vmem:[#allocation4 + $0x20] sm:$0xff] %vm1099, %v1087
      %1105 = vst.msk [vmem:[#allocation4 + $0x28] sm:$0xff] %vm1099, %v1088
      %1106 = vst.msk [vmem:[#allocation4 + $0x30] sm:$0xff] %vm1099, %v1089
      %1107 = vst.msk [vmem:[#allocation4 + $0x38] sm:$0xff] %vm1099, %v1090
      %1108 = vst.msk [vmem:[#allocation4 + $0x40] sm:$0xff] %vm1099, %v1091
      %1109 = vst.msk [vmem:[#allocation4 + $0x48] sm:$0xff] %vm1099, %v1092
      %1110 = vst.msk [vmem:[#allocation4 + $0x50] sm:$0xff] %vm1099, %v1093
      %1111 = vst.msk [vmem:[#allocation4 + $0x58] sm:$0xff] %vm1099, %v1094
      %1112 = vst.msk [vmem:[#allocation4 + $0x60] sm:$0xff] %vm1099, %v1095
      %1113 = vst.msk [vmem:[#allocation4 + $0x68] sm:$0xff] %vm1099, %v1096
      %1114 = vst.msk [vmem:[#allocation4 + $0x70] sm:$0xff] %vm1099, %v1097
      %1115 = vst.msk [vmem:[#allocation4 + $0x78] sm:$0xff] %vm1099, %v1098
      %1116 = vst.msk [vmem:[#allocation2] sm:$0xff] %vm801, %v529
      %1117 = vst.msk [vmem:[#allocation2 + $0x8] sm:$0xff] %vm801, %v530
      %1118 = vst.msk [vmem:[#allocation2 + $0x10] sm:$0xff] %vm801, %v531
      %1119 = vst.msk [vmem:[#allocation2 + $0x18] sm:$0xff] %vm801, %v532
      %1120 = vst.msk [vmem:[#allocation2 + $0x20] sm:$0xff] %vm801, %v533
      %1121 = vst.msk [vmem:[#allocation2 + $0x28] sm:$0xff] %vm801, %v534
      %1122 = vst.msk [vmem:[#allocation2 + $0x30] sm:$0xff] %vm801, %v535
      %1123 = vst.msk [vmem:[#allocation2 + $0x38] sm:$0xff] %vm801, %v536
      %1124 = vst.msk [vmem:[#allocation2 + $0x40] sm:$0xff] %vm801, %v537
      %1125 = vst.msk [vmem:[#allocation2 + $0x48] sm:$0xff] %vm801, %v538
      %1126 = vst.msk [vmem:[#allocation2 + $0x50] sm:$0xff] %vm801, %v539
      %1127 = vst.msk [vmem:[#allocation2 + $0x58] sm:$0xff] %vm801, %v540
      %1128 = vst.msk [vmem:[#allocation2 + $0x60] sm:$0xff] %vm801, %v541
      %1129 = vst.msk [vmem:[#allocation2 + $0x68] sm:$0xff] %vm801, %v542
      %1130 = vst.msk [vmem:[#allocation2 + $0x70] sm:$0xff] %vm801, %v543
      %1131 = vst.msk [vmem:[#allocation2 + $0x78] sm:$0xff] %vm801, %v544
      %1132 = vset.pattern.permute.xlu0 1
      %1133 = vperm.xlu0 %1132, %v316
      %v1134 = vpop.permute.xlu0 %1133
      %1136 = vset.pattern.permute.xlu0 1
      %1137 = vperm.xlu0 %1136, %v317
      %v1138 = vpop.permute.xlu0 %1137
      %1140 = vset.pattern.permute.xlu0 1
      %1141 = vperm.xlu0 %1140, %v318
      %v1142 = vpop.permute.xlu0 %1141
      %1144 = vset.pattern.permute.xlu0 1
      %1145 = vperm.xlu0 %1144, %v319
      %v1146 = vpop.permute.xlu0 %1145
      %1148 = vset.pattern.permute.xlu0 1
      %1149 = vperm.xlu0 %1148, %v320
      %v1150 = vpop.permute.xlu0 %1149
      %1152 = vset.pattern.permute.xlu0 1
      %1153 = vperm.xlu0 %1152, %v321
      %v1154 = vpop.permute.xlu0 %1153
      %1156 = vset.pattern.permute.xlu0 1
      %1157 = vperm.xlu0 %1156, %v322
      %v1158 = vpop.permute.xlu0 %1157
      %1160 = vset.pattern.permute.xlu0 1
      %1161 = vperm.xlu0 %1160, %v323
      %v1162 = vpop.permute.xlu0 %1161
      %1164 = vset.pattern.permute.xlu0 1
      %1165 = vperm.xlu0 %1164, %v324
      %v1166 = vpop.permute.xlu0 %1165
      %1168 = vset.pattern.permute.xlu0 1
      %1169 = vperm.xlu0 %1168, %v325
      %v1170 = vpop.permute.xlu0 %1169
      %1172 = vset.pattern.permute.xlu0 1
      %1173 = vperm.xlu0 %1172, %v326
      %v1174 = vpop.permute.xlu0 %1173
      %1176 = vset.pattern.permute.xlu0 1
      %1177 = vperm.xlu0 %1176, %v327
      %v1178 = vpop.permute.xlu0 %1177
      %1180 = vset.pattern.permute.xlu0 1
      %1181 = vperm.xlu0 %1180, %v328
      %v1182 = vpop.permute.xlu0 %1181
      %1184 = vset.pattern.permute.xlu0 1
      %1185 = vperm.xlu0 %1184, %v329
      %v1186 = vpop.permute.xlu0 %1185
      %1188 = vset.pattern.permute.xlu0 1
      %1189 = vperm.xlu0 %1188, %v330
      %v1190 = vpop.permute.xlu0 %1189
      %1192 = vset.pattern.permute.xlu0 1
      %1193 = vperm.xlu0 %1192, %v331
      %v1194 = vpop.permute.xlu0 %1193
      %v1196 = vlaneseq
      %v1197 = vshrl.u32 %v1196, 7
      %v1198 = vsub.s32 1, %v1197
      %v1199 = vrot.slane %v332, %v1198
      %v1200 = vadd.f32 %v1134, %v1199
      %v1201 = vadd.f32 %v1138, %v1199
      %v1202 = vadd.f32 %v1142, %v1199
      %v1203 = vadd.f32 %v1146, %v1199
      %v1204 = vadd.f32 %v1150, %v1199
      %v1205 = vadd.f32 %v1154, %v1199
      %v1206 = vadd.f32 %v1158, %v1199
      %v1207 = vadd.f32 %v1162, %v1199
      %v1208 = vadd.f32 %v1166, %v1199
      %v1209 = vadd.f32 %v1170, %v1199
      %v1210 = vadd.f32 %v1174, %v1199
      %v1211 = vadd.f32 %v1178, %v1199
      %v1212 = vadd.f32 %v1182, %v1199
      %v1213 = vadd.f32 %v1186, %v1199
      %v1214 = vadd.f32 %v1190, %v1199
      %v1215 = vadd.f32 %v1194, %v1199
      %v1216 = vmul.f32 %v1200, 0.2
      %v1217 = vmul.f32 %v1201, 0.2
      %v1218 = vmul.f32 %v1202, 0.2
      %v1219 = vmul.f32 %v1203, 0.2
      %v1220 = vmul.f32 %v1204, 0.2
      %v1221 = vmul.f32 %v1205, 0.2
      %v1222 = vmul.f32 %v1206, 0.2
      %v1223 = vmul.f32 %v1207, 0.2
      %v1224 = vmul.f32 %v1208, 0.2
      %v1225 = vmul.f32 %v1209, 0.2
      %v1226 = vmul.f32 %v1210, 0.2
      %v1227 = vmul.f32 %v1211, 0.2
      %v1228 = vmul.f32 %v1212, 0.2
      %v1229 = vmul.f32 %v1213, 0.2
      %v1230 = vmul.f32 %v1214, 0.2
      %v1231 = vmul.f32 %v1215, 0.2
      %v1232 = vmax.f32 %v1200, %v1216
      %v1233 = vmax.f32 %v1201, %v1217
      %v1234 = vmax.f32 %v1202, %v1218
      %v1235 = vmax.f32 %v1203, %v1219
      %v1236 = vmax.f32 %v1204, %v1220
      %v1237 = vmax.f32 %v1205, %v1221
      %v1238 = vmax.f32 %v1206, %v1222
      %v1239 = vmax.f32 %v1207, %v1223
      %v1240 = vmax.f32 %v1208, %v1224
      %v1241 = vmax.f32 %v1209, %v1225
      %v1242 = vmax.f32 %v1210, %v1226
      %v1243 = vmax.f32 %v1211, %v1227
      %v1244 = vmax.f32 %v1212, %v1228
      %v1245 = vmax.f32 %v1213, %v1229
      %v1246 = vmax.f32 %v1214, %v1230
      %v1247 = vmax.f32 %v1215, %v1231
      %v1248 = vadd.f32 %v1232, %v284
      %v1249 = vadd.f32 %v1233, %v285
      %v1250 = vadd.f32 %v1234, %v286
      %v1251 = vadd.f32 %v1235, %v287
      %v1252 = vadd.f32 %v1236, %v288
      %v1253 = vadd.f32 %v1237, %v289
      %v1254 = vadd.f32 %v1238, %v290
      %v1255 = vadd.f32 %v1239, %v291
      %v1256 = vadd.f32 %v1240, %v292
      %v1257 = vadd.f32 %v1241, %v293
      %v1258 = vadd.f32 %v1242, %v294
      %v1259 = vadd.f32 %v1243, %v295
      %v1260 = vadd.f32 %v1244, %v296
      %v1261 = vadd.f32 %v1245, %v297
      %v1262 = vadd.f32 %v1246, %v298
      %v1263 = vadd.f32 %v1247, %v299
      %s1264 = scalar_lea.vmem [#allocation2], 128
      %v1265 = vld [vmem:[%s1264] sm:$0xff]
      %v1266 = vld [vmem:[%s1264 + $0x8] sm:$0xff]
      %v1267 = vld [vmem:[%s1264 + $0x10] sm:$0xff]
      %v1268 = vld [vmem:[%s1264 + $0x18] sm:$0xff]
      %v1269 = vld [vmem:[%s1264 + $0x20] sm:$0xff]
      %v1270 = vld [vmem:[%s1264 + $0x28] sm:$0xff]
      %v1271 = vld [vmem:[%s1264 + $0x30] sm:$0xff]
      %v1272 = vld [vmem:[%s1264 + $0x38] sm:$0xff]
      %v1273 = vld [vmem:[%s1264 + $0x40] sm:$0xff]
      %v1274 = vld [vmem:[%s1264 + $0x48] sm:$0xff]
      %v1275 = vld [vmem:[%s1264 + $0x50] sm:$0xff]
      %v1276 = vld [vmem:[%s1264 + $0x58] sm:$0xff]
      %v1277 = vld [vmem:[%s1264 + $0x60] sm:$0xff]
      %v1278 = vld [vmem:[%s1264 + $0x68] sm:$0xff]
      %v1279 = vld [vmem:[%s1264 + $0x70] sm:$0xff]
      %v1280 = vld [vmem:[%s1264 + $0x78] sm:$0xff]
      %1281 = vmax.xlane.f32.xlu0 %v1248
      %v1282 = vpop.xlane.xlu0 %1281
      %1283 = vmax.xlane.f32.xlu0 %v1249
      %v1284 = vpop.xlane.xlu0 %1283
      %1285 = vmax.xlane.f32.xlu0 %v1250
      %v1286 = vpop.xlane.xlu0 %1285
      %1287 = vmax.xlane.f32.xlu0 %v1251
      %v1288 = vpop.xlane.xlu0 %1287
      %1289 = vmax.xlane.f32.xlu0 %v1252
      %v1290 = vpop.xlane.xlu0 %1289
      %1291 = vmax.xlane.f32.xlu0 %v1253
      %v1292 = vpop.xlane.xlu0 %1291
      %1293 = vmax.xlane.f32.xlu0 %v1254
      %v1294 = vpop.xlane.xlu0 %1293
      %1295 = vmax.xlane.f32.xlu0 %v1255
      %v1296 = vpop.xlane.xlu0 %1295
      %1297 = vmax.xlane.f32.xlu0 %v1256
      %v1298 = vpop.xlane.xlu0 %1297
      %1299 = vmax.xlane.f32.xlu0 %v1257
      %v1300 = vpop.xlane.xlu0 %1299
      %1301 = vmax.xlane.f32.xlu0 %v1258
      %v1302 = vpop.xlane.xlu0 %1301
      %1303 = vmax.xlane.f32.xlu0 %v1259
      %v1304 = vpop.xlane.xlu0 %1303
      %1305 = vmax.xlane.f32.xlu0 %v1260
      %v1306 = vpop.xlane.xlu0 %1305
      %1307 = vmax.xlane.f32.xlu0 %v1261
      %v1308 = vpop.xlane.xlu0 %1307
      %1309 = vmax.xlane.f32.xlu0 %v1262
      %v1310 = vpop.xlane.xlu0 %1309
      %1311 = vmax.xlane.f32.xlu0 %v1263
      %v1312 = vpop.xlane.xlu0 %1311
      %v1313 = vmax.f32 %v1265, %v1282
      %v1314 = vmax.f32 %v1266, %v1284
      %v1315 = vmax.f32 %v1267, %v1286
      %v1316 = vmax.f32 %v1268, %v1288
      %v1317 = vmax.f32 %v1269, %v1290
      %v1318 = vmax.f32 %v1270, %v1292
      %v1319 = vmax.f32 %v1271, %v1294
      %v1320 = vmax.f32 %v1272, %v1296
      %v1321 = vmax.f32 %v1273, %v1298
      %v1322 = vmax.f32 %v1274, %v1300
      %v1323 = vmax.f32 %v1275, %v1302
      %v1324 = vmax.f32 %v1276, %v1304
      %v1325 = vmax.f32 %v1277, %v1306
      %v1326 = vmax.f32 %v1278, %v1308
      %v1327 = vmax.f32 %v1279, %v1310
      %v1328 = vmax.f32 %v1280, %v1312
      %v1329 = vsub.f32 %v1265, %v1313
      %v1330 = vsub.f32 %v1266, %v1314
      %v1331 = vsub.f32 %v1267, %v1315
      %v1332 = vsub.f32 %v1268, %v1316
      %v1333 = vsub.f32 %v1269, %v1317
      %v1334 = vsub.f32 %v1270, %v1318
      %v1335 = vsub.f32 %v1271, %v1319
      %v1336 = vsub.f32 %v1272, %v1320
      %v1337 = vsub.f32 %v1273, %v1321
      %v1338 = vsub.f32 %v1274, %v1322
      %v1339 = vsub.f32 %v1275, %v1323
      %v1340 = vsub.f32 %v1276, %v1324
      %v1341 = vsub.f32 %v1277, %v1325
      %v1342 = vsub.f32 %v1278, %v1326
      %v1343 = vsub.f32 %v1279, %v1327
      %v1344 = vsub.f32 %v1280, %v1328
      %v1345 = vmul.f32 %v1329, 1.442695
      %v1346 = vpow.pop %v1345
      %v1347 = vmul.f32 %v1330, 1.442695
      %v1348 = vpow.pop %v1347
      %v1349 = vmul.f32 %v1331, 1.442695
      %v1350 = vpow.pop %v1349
      %v1351 = vmul.f32 %v1332, 1.442695
      %v1352 = vpow.pop %v1351
      %v1353 = vmul.f32 %v1333, 1.442695
      %v1354 = vpow.pop %v1353
      %v1355 = vmul.f32 %v1334, 1.442695
      %v1356 = vpow.pop %v1355
      %v1357 = vmul.f32 %v1335, 1.442695
      %v1358 = vpow.pop %v1357
      %v1359 = vmul.f32 %v1336, 1.442695
      %v1360 = vpow.pop %v1359
      %v1361 = vmul.f32 %v1337, 1.442695
      %v1362 = vpow.pop %v1361
      %v1363 = vmul.f32 %v1338, 1.442695
      %v1364 = vpow.pop %v1363
      %v1365 = vmul.f32 %v1339, 1.442695
      %v1366 = vpow.pop %v1365
      %v1367 = vmul.f32 %v1340, 1.442695
      %v1368 = vpow.pop %v1367
      %v1369 = vmul.f32 %v1341, 1.442695
      %v1370 = vpow.pop %v1369
      %v1371 = vmul.f32 %v1342, 1.442695
      %v1372 = vpow.pop %v1371
      %v1373 = vmul.f32 %v1343, 1.442695
      %v1374 = vpow.pop %v1373
      %v1375 = vmul.f32 %v1344, 1.442695
      %v1376 = vpow.pop %v1375
      %1378 = vset.pattern.permute.xlu0 0
      %1379 = vperm.xlu0 %1378, %v1313
      %v1380 = vpop.permute.xlu0 %1379
      %1383 = vset.pattern.permute.xlu0 0
      %1384 = vperm.xlu0 %1383, %v1314
      %v1385 = vpop.permute.xlu0 %1384
      %1388 = vset.pattern.permute.xlu0 0
      %1389 = vperm.xlu0 %1388, %v1315
      %v1390 = vpop.permute.xlu0 %1389
      %1393 = vset.pattern.permute.xlu0 0
      %1394 = vperm.xlu0 %1393, %v1316
      %v1395 = vpop.permute.xlu0 %1394
      %1398 = vset.pattern.permute.xlu0 0
      %1399 = vperm.xlu0 %1398, %v1317
      %v1400 = vpop.permute.xlu0 %1399
      %1403 = vset.pattern.permute.xlu0 0
      %1404 = vperm.xlu0 %1403, %v1318
      %v1405 = vpop.permute.xlu0 %1404
      %1408 = vset.pattern.permute.xlu0 0
      %1409 = vperm.xlu0 %1408, %v1319
      %v1410 = vpop.permute.xlu0 %1409
      %1413 = vset.pattern.permute.xlu0 0
      %1414 = vperm.xlu0 %1413, %v1320
      %v1415 = vpop.permute.xlu0 %1414
      %1418 = vset.pattern.permute.xlu0 0
      %1419 = vperm.xlu0 %1418, %v1321
      %v1420 = vpop.permute.xlu0 %1419
      %1423 = vset.pattern.permute.xlu0 0
      %1424 = vperm.xlu0 %1423, %v1322
      %v1425 = vpop.permute.xlu0 %1424
      %1428 = vset.pattern.permute.xlu0 0
      %1429 = vperm.xlu0 %1428, %v1323
      %v1430 = vpop.permute.xlu0 %1429
      %1433 = vset.pattern.permute.xlu0 0
      %1434 = vperm.xlu0 %1433, %v1324
      %v1435 = vpop.permute.xlu0 %1434
      %1438 = vset.pattern.permute.xlu0 0
      %1439 = vperm.xlu0 %1438, %v1325
      %v1440 = vpop.permute.xlu0 %1439
      %1443 = vset.pattern.permute.xlu0 0
      %1444 = vperm.xlu0 %1443, %v1326
      %v1445 = vpop.permute.xlu0 %1444
      %1448 = vset.pattern.permute.xlu0 0
      %1449 = vperm.xlu0 %1448, %v1327
      %v1450 = vpop.permute.xlu0 %1449
      %1453 = vset.pattern.permute.xlu0 0
      %1454 = vperm.xlu0 %1453, %v1328
      %v1455 = vpop.permute.xlu0 %1454
      %v1457 = vsub.f32 %v1248, %v1380
      %v1458 = vsub.f32 %v1249, %v1385
      %v1459 = vsub.f32 %v1250, %v1390
      %v1460 = vsub.f32 %v1251, %v1395
      %v1461 = vsub.f32 %v1252, %v1400
      %v1462 = vsub.f32 %v1253, %v1405
      %v1463 = vsub.f32 %v1254, %v1410
      %v1464 = vsub.f32 %v1255, %v1415
      %v1465 = vsub.f32 %v1256, %v1420
      %v1466 = vsub.f32 %v1257, %v1425
      %v1467 = vsub.f32 %v1258, %v1430
      %v1468 = vsub.f32 %v1259, %v1435
      %v1469 = vsub.f32 %v1260, %v1440
      %v1470 = vsub.f32 %v1261, %v1445
      %v1471 = vsub.f32 %v1262, %v1450
      %v1472 = vsub.f32 %v1263, %v1455
      %v1473 = vmul.f32 %v1457, 1.442695
      %v1474 = vpow.pop %v1473
      %v1475 = vmul.f32 %v1458, 1.442695
      %v1476 = vpow.pop %v1475
      %v1477 = vmul.f32 %v1459, 1.442695
      %v1478 = vpow.pop %v1477
      %v1479 = vmul.f32 %v1460, 1.442695
      %v1480 = vpow.pop %v1479
      %v1481 = vmul.f32 %v1461, 1.442695
      %v1482 = vpow.pop %v1481
      %v1483 = vmul.f32 %v1462, 1.442695
      %v1484 = vpow.pop %v1483
      %v1485 = vmul.f32 %v1463, 1.442695
      %v1486 = vpow.pop %v1485
      %v1487 = vmul.f32 %v1464, 1.442695
      %v1488 = vpow.pop %v1487
      %v1489 = vmul.f32 %v1465, 1.442695
      %v1490 = vpow.pop %v1489
      %v1491 = vmul.f32 %v1466, 1.442695
      %v1492 = vpow.pop %v1491
      %v1493 = vmul.f32 %v1467, 1.442695
      %v1494 = vpow.pop %v1493
      %v1495 = vmul.f32 %v1468, 1.442695
      %v1496 = vpow.pop %v1495
      %v1497 = vmul.f32 %v1469, 1.442695
      %v1498 = vpow.pop %v1497
      %v1499 = vmul.f32 %v1470, 1.442695
      %v1500 = vpow.pop %v1499
      %v1501 = vmul.f32 %v1471, 1.442695
      %v1502 = vpow.pop %v1501
      %v1503 = vmul.f32 %v1472, 1.442695
      %v1504 = vpow.pop %v1503
      %s1505 = scalar_lea.vmem [#allocation3], 128
      %v1506 = vld [vmem:[%s1505] sm:$0xff]
      %v1507 = vld [vmem:[%s1505 + $0x8] sm:$0xff]
      %v1508 = vld [vmem:[%s1505 + $0x10] sm:$0xff]
      %v1509 = vld [vmem:[%s1505 + $0x18] sm:$0xff]
      %v1510 = vld [vmem:[%s1505 + $0x20] sm:$0xff]
      %v1511 = vld [vmem:[%s1505 + $0x28] sm:$0xff]
      %v1512 = vld [vmem:[%s1505 + $0x30] sm:$0xff]
      %v1513 = vld [vmem:[%s1505 + $0x38] sm:$0xff]
      %v1514 = vld [vmem:[%s1505 + $0x40] sm:$0xff]
      %v1515 = vld [vmem:[%s1505 + $0x48] sm:$0xff]
      %v1516 = vld [vmem:[%s1505 + $0x50] sm:$0xff]
      %v1517 = vld [vmem:[%s1505 + $0x58] sm:$0xff]
      %v1518 = vld [vmem:[%s1505 + $0x60] sm:$0xff]
      %v1519 = vld [vmem:[%s1505 + $0x68] sm:$0xff]
      %v1520 = vld [vmem:[%s1505 + $0x70] sm:$0xff]
      %v1521 = vld [vmem:[%s1505 + $0x78] sm:$0xff]
      %v1522 = vmul.f32 %v1346, %v1506
      %v1523 = vmul.f32 %v1348, %v1507
      %v1524 = vmul.f32 %v1350, %v1508
      %v1525 = vmul.f32 %v1352, %v1509
      %v1526 = vmul.f32 %v1354, %v1510
      %v1527 = vmul.f32 %v1356, %v1511
      %v1528 = vmul.f32 %v1358, %v1512
      %v1529 = vmul.f32 %v1360, %v1513
      %v1530 = vmul.f32 %v1362, %v1514
      %v1531 = vmul.f32 %v1364, %v1515
      %v1532 = vmul.f32 %v1366, %v1516
      %v1533 = vmul.f32 %v1368, %v1517
      %v1534 = vmul.f32 %v1370, %v1518
      %v1535 = vmul.f32 %v1372, %v1519
      %v1536 = vmul.f32 %v1374, %v1520
      %v1537 = vmul.f32 %v1376, %v1521
      %1538 = vadd.xlane.f32.xlu0 %v1474
      %v1539 = vpop.xlane.xlu0 %1538
      %1540 = vadd.xlane.f32.xlu0 %v1476
      %v1541 = vpop.xlane.xlu0 %1540
      %1542 = vadd.xlane.f32.xlu0 %v1478
      %v1543 = vpop.xlane.xlu0 %1542
      %1544 = vadd.xlane.f32.xlu0 %v1480
      %v1545 = vpop.xlane.xlu0 %1544
      %1546 = vadd.xlane.f32.xlu0 %v1482
      %v1547 = vpop.xlane.xlu0 %1546
      %1548 = vadd.xlane.f32.xlu0 %v1484
      %v1549 = vpop.xlane.xlu0 %1548
      %1550 = vadd.xlane.f32.xlu0 %v1486
      %v1551 = vpop.xlane.xlu0 %1550
      %1552 = vadd.xlane.f32.xlu0 %v1488
      %v1553 = vpop.xlane.xlu0 %1552
      %1554 = vadd.xlane.f32.xlu0 %v1490
      %v1555 = vpop.xlane.xlu0 %1554
      %1556 = vadd.xlane.f32.xlu0 %v1492
      %v1557 = vpop.xlane.xlu0 %1556
      %1558 = vadd.xlane.f32.xlu0 %v1494
      %v1559 = vpop.xlane.xlu0 %1558
      %1560 = vadd.xlane.f32.xlu0 %v1496
      %v1561 = vpop.xlane.xlu0 %1560
      %1562 = vadd.xlane.f32.xlu0 %v1498
      %v1563 = vpop.xlane.xlu0 %1562
      %1564 = vadd.xlane.f32.xlu0 %v1500
      %v1565 = vpop.xlane.xlu0 %1564
      %1566 = vadd.xlane.f32.xlu0 %v1502
      %v1567 = vpop.xlane.xlu0 %1566
      %1568 = vadd.xlane.f32.xlu0 %v1504
      %v1569 = vpop.xlane.xlu0 %1568
      %v1570 = vadd.f32 %v1522, %v1539
      %v1571 = vadd.f32 %v1523, %v1541
      %v1572 = vadd.f32 %v1524, %v1543
      %v1573 = vadd.f32 %v1525, %v1545
      %v1574 = vadd.f32 %v1526, %v1547
      %v1575 = vadd.f32 %v1527, %v1549
      %v1576 = vadd.f32 %v1528, %v1551
      %v1577 = vadd.f32 %v1529, %v1553
      %v1578 = vadd.f32 %v1530, %v1555
      %v1579 = vadd.f32 %v1531, %v1557
      %v1580 = vadd.f32 %v1532, %v1559
      %v1581 = vadd.f32 %v1533, %v1561
      %v1582 = vadd.f32 %v1534, %v1563
      %v1583 = vadd.f32 %v1535, %v1565
      %v1584 = vadd.f32 %v1536, %v1567
      %v1585 = vadd.f32 %v1537, %v1569
      %1586 = vst.msk [vmem:[%s1505] sm:$0xff] %vm801, %v1570
      %1587 = vst.msk [vmem:[%s1505 + $0x8] sm:$0xff] %vm801, %v1571
      %1588 = vst.msk [vmem:[%s1505 + $0x10] sm:$0xff] %vm801, %v1572
      %1589 = vst.msk [vmem:[%s1505 + $0x18] sm:$0xff] %vm801, %v1573
      %1590 = vst.msk [vmem:[%s1505 + $0x20] sm:$0xff] %vm801, %v1574
      %1591 = vst.msk [vmem:[%s1505 + $0x28] sm:$0xff] %vm801, %v1575
      %1592 = vst.msk [vmem:[%s1505 + $0x30] sm:$0xff] %vm801, %v1576
      %1593 = vst.msk [vmem:[%s1505 + $0x38] sm:$0xff] %vm801, %v1577
      %1594 = vst.msk [vmem:[%s1505 + $0x40] sm:$0xff] %vm801, %v1578
      %1595 = vst.msk [vmem:[%s1505 + $0x48] sm:$0xff] %vm801, %v1579
      %1596 = vst.msk [vmem:[%s1505 + $0x50] sm:$0xff] %vm801, %v1580
      %1597 = vst.msk [vmem:[%s1505 + $0x58] sm:$0xff] %vm801, %v1581
      %1598 = vst.msk [vmem:[%s1505 + $0x60] sm:$0xff] %vm801, %v1582
      %1599 = vst.msk [vmem:[%s1505 + $0x68] sm:$0xff] %vm801, %v1583
      %1600 = vst.msk [vmem:[%s1505 + $0x70] sm:$0xff] %vm801, %v1584
      %1601 = vst.msk [vmem:[%s1505 + $0x78] sm:$0xff] %vm801, %v1585
      %s1602 = scalar_lea.vmem [#allocation4], 128
      %v1603 = vld [vmem:[%s1602] sm:$0xff]
      %v1604 = vld [vmem:[%s1602 + $0x8] sm:$0xff]
      %v1605 = vld [vmem:[%s1602 + $0x10] sm:$0xff]
      %v1606 = vld [vmem:[%s1602 + $0x18] sm:$0xff]
      %v1607 = vld [vmem:[%s1602 + $0x20] sm:$0xff]
      %v1608 = vld [vmem:[%s1602 + $0x28] sm:$0xff]
      %v1609 = vld [vmem:[%s1602 + $0x30] sm:$0xff]
      %v1610 = vld [vmem:[%s1602 + $0x38] sm:$0xff]
      %v1611 = vld [vmem:[%s1602 + $0x40] sm:$0xff]
      %v1612 = vld [vmem:[%s1602 + $0x48] sm:$0xff]
      %v1613 = vld [vmem:[%s1602 + $0x50] sm:$0xff]
      %v1614 = vld [vmem:[%s1602 + $0x58] sm:$0xff]
      %v1615 = vld [vmem:[%s1602 + $0x60] sm:$0xff]
      %v1616 = vld [vmem:[%s1602 + $0x68] sm:$0xff]
      %v1617 = vld [vmem:[%s1602 + $0x70] sm:$0xff]
      %v1618 = vld [vmem:[%s1602 + $0x78] sm:$0xff]
      %1620 = vset.pattern.permute.xlu0 0
      %1621 = vperm.xlu0 %1620, %v1346
      %v1622 = vpop.permute.xlu0 %1621
      %1625 = vset.pattern.permute.xlu0 0
      %1626 = vperm.xlu0 %1625, %v1348
      %v1627 = vpop.permute.xlu0 %1626
      %1630 = vset.pattern.permute.xlu0 0
      %1631 = vperm.xlu0 %1630, %v1350
      %v1632 = vpop.permute.xlu0 %1631
      %1635 = vset.pattern.permute.xlu0 0
      %1636 = vperm.xlu0 %1635, %v1352
      %v1637 = vpop.permute.xlu0 %1636
      %1640 = vset.pattern.permute.xlu0 0
      %1641 = vperm.xlu0 %1640, %v1354
      %v1642 = vpop.permute.xlu0 %1641
      %1645 = vset.pattern.permute.xlu0 0
      %1646 = vperm.xlu0 %1645, %v1356
      %v1647 = vpop.permute.xlu0 %1646
      %1650 = vset.pattern.permute.xlu0 0
      %1651 = vperm.xlu0 %1650, %v1358
      %v1652 = vpop.permute.xlu0 %1651
      %1655 = vset.pattern.permute.xlu0 0
      %1656 = vperm.xlu0 %1655, %v1360
      %v1657 = vpop.permute.xlu0 %1656
      %1660 = vset.pattern.permute.xlu0 0
      %1661 = vperm.xlu0 %1660, %v1362
      %v1662 = vpop.permute.xlu0 %1661
      %1665 = vset.pattern.permute.xlu0 0
      %1666 = vperm.xlu0 %1665, %v1364
      %v1667 = vpop.permute.xlu0 %1666
      %1670 = vset.pattern.permute.xlu0 0
      %1671 = vperm.xlu0 %1670, %v1366
      %v1672 = vpop.permute.xlu0 %1671
      %1675 = vset.pattern.permute.xlu0 0
      %1676 = vperm.xlu0 %1675, %v1368
      %v1677 = vpop.permute.xlu0 %1676
      %1680 = vset.pattern.permute.xlu0 0
      %1681 = vperm.xlu0 %1680, %v1370
      %v1682 = vpop.permute.xlu0 %1681
      %1685 = vset.pattern.permute.xlu0 0
      %1686 = vperm.xlu0 %1685, %v1372
      %v1687 = vpop.permute.xlu0 %1686
      %1690 = vset.pattern.permute.xlu0 0
      %1691 = vperm.xlu0 %1690, %v1374
      %v1692 = vpop.permute.xlu0 %1691
      %1695 = vset.pattern.permute.xlu0 0
      %1696 = vperm.xlu0 %1695, %v1376
      %v1697 = vpop.permute.xlu0 %1696
      %v1699 = vmul.f32 %v1622, %v1603
      %v1700 = vmul.f32 %v1627, %v1604
      %v1701 = vmul.f32 %v1632, %v1605
      %v1702 = vmul.f32 %v1637, %v1606
      %v1703 = vmul.f32 %v1642, %v1607
      %v1704 = vmul.f32 %v1647, %v1608
      %v1705 = vmul.f32 %v1652, %v1609
      %v1706 = vmul.f32 %v1657, %v1610
      %v1707 = vmul.f32 %v1662, %v1611
      %v1708 = vmul.f32 %v1667, %v1612
      %v1709 = vmul.f32 %v1672, %v1613
      %v1710 = vmul.f32 %v1677, %v1614
      %v1711 = vmul.f32 %v1682, %v1615
      %v1712 = vmul.f32 %v1687, %v1616
      %v1713 = vmul.f32 %v1692, %v1617
      %v1714 = vmul.f32 %v1697, %v1618
      %v1715 = vpack.c.bf16 %v1476, %v1474
      %v1716 = vpack.c.bf16 %v1480, %v1478
      %v1717 = vpack.c.bf16 %v1484, %v1482
      %v1718 = vpack.c.bf16 %v1488, %v1486
      %v1719 = vpack.c.bf16 %v1492, %v1490
      %v1720 = vpack.c.bf16 %v1496, %v1494
      %v1721 = vpack.c.bf16 %v1500, %v1498
      %v1722 = vpack.c.bf16 %v1504, %v1502
      %1723 = vrot.lane.b32.xlu0 %v970, 112
      %v1724 = vpop.permute.xlu0 %1723
      %1725 = vrot.lane.b32.xlu0 %v971, 112
      %v1726 = vpop.permute.xlu0 %1725
      %1727 = vrot.lane.b32.xlu0 %v972, 112
      %v1728 = vpop.permute.xlu0 %1727
      %1729 = vrot.lane.b32.xlu0 %v973, 112
      %v1730 = vpop.permute.xlu0 %1729
      %1731 = vrot.lane.b32.xlu0 %v974, 112
      %v1732 = vpop.permute.xlu0 %1731
      %1733 = vrot.lane.b32.xlu0 %v975, 112
      %v1734 = vpop.permute.xlu0 %1733
      %1735 = vrot.lane.b32.xlu0 %v976, 112
      %v1736 = vpop.permute.xlu0 %1735
      %1737 = vrot.lane.b32.xlu0 %v977, 112
      %v1738 = vpop.permute.xlu0 %1737
      %1747 = vmatprep.subr.bf16.mxu0 0
      %1748 = vmatpush1.bf16.msra.mxu0 %v1724
      %1749 = vmatprep.subr.bf16.mxu0 0
      %1750 = vmatpush1.bf16.msra.mxu0 %v1726
      %1751 = vmatprep.subr.bf16.mxu0 0
      %1752 = vmatpush1.bf16.msra.mxu0 %v1728
      %1753 = vmatprep.subr.bf16.mxu0 0
      %1754 = vmatpush1.bf16.msra.mxu0 %v1730
      %1755 = vmatprep.subr.bf16.mxu0 0
      %1756 = vmatpush1.bf16.msra.mxu0 %v1732
      %1757 = vmatprep.subr.bf16.mxu0 0
      %1758 = vmatpush1.bf16.msra.mxu0 %v1734
      %1759 = vmatprep.subr.bf16.mxu0 0
      %1760 = vmatpush1.bf16.msra.mxu0 %v1736
      %1761 = vmatprep.subr.bf16.mxu0 0
      %1762 = vmatpush1.bf16.msra.mxu0 %v1738
      %1763 = vmatprep.subr.bf16.mxu0 0
      %1764 = vmatpush1.bf16.msra.mxu0 0
      %1765 = vmatprep.subr.bf16.mxu0 0
      %1766 = vmatpush1.bf16.msra.mxu0 0
      %1767 = vmatprep.subr.bf16.mxu0 0
      %1768 = vmatpush1.bf16.msra.mxu0 0
      %1769 = vmatprep.subr.bf16.mxu0 0
      %1770 = vmatpush1.bf16.msra.mxu0 0
      %1771 = vmatprep.subr.bf16.mxu0 0
      %1772 = vmatpush1.bf16.msra.mxu0 0
      %1773 = vmatprep.subr.bf16.mxu0 0
      %1774 = vmatpush1.bf16.msra.mxu0 0
      %1775 = vmatprep.subr.bf16.mxu0 0
      %1776 = vmatpush1.bf16.msra.mxu0 0
      %1777 = vmatprep.subr.bf16.mxu0 0
      %1778 = vmatpush1.bf16.msra.mxu0 0
      %1779 = vmatprep.mubr.bf16.mxu0 0
      %1780 = vmatmul.mubr.bf16.gmra.mrb[0].mxu0 %v1715
      %v1781 = vpop.f32.mrb[0].mxu0
      %v1782 = vadd.f32 0.0, %v1781
      %v1783 = vpop.f32.mrb[0].mxu0
      %v1784 = vpop.f32.mrb[0].mxu0
      %v1785 = vadd.f32 0.0, %v1784
      %v1786 = vpop.f32.mrb[0].mxu0
      %1787 = vmatprep.mubr.bf16.mxu0 0
      %1788 = vmatmul.mubr.bf16.gmra.mrb[0].mxu0 %v1716
      %v1789 = vpop.f32.mrb[0].mxu0
      %v1790 = vadd.f32 0.0, %v1789
      %v1791 = vpop.f32.mrb[0].mxu0
      %v1792 = vpop.f32.mrb[0].mxu0
      %v1793 = vadd.f32 0.0, %v1792
      %v1794 = vpop.f32.mrb[0].mxu0
      %1795 = vmatprep.mubr.bf16.mxu0 0
      %1796 = vmatmul.mubr.bf16.gmra.mrb[0].mxu0 %v1717
      %v1797 = vpop.f32.mrb[0].mxu0
      %v1798 = vadd.f32 0.0, %v1797
      %v1799 = vpop.f32.mrb[0].mxu0
      %v1800 = vpop.f32.mrb[0].mxu0
      %v1801 = vadd.f32 0.0, %v1800
      %v1802 = vpop.f32.mrb[0].mxu0
      %1803 = vmatprep.mubr.bf16.mxu0 0
      %1804 = vmatmul.mubr.bf16.gmra.mrb[0].mxu0 %v1718
      %v1805 = vpop.f32.mrb[0].mxu0
      %v1806 = vadd.f32 0.0, %v1805
      %v1807 = vpop.f32.mrb[0].mxu0
      %v1808 = vpop.f32.mrb[0].mxu0
      %v1809 = vadd.f32 0.0, %v1808
      %v1810 = vpop.f32.mrb[0].mxu0
      %1811 = vmatprep.mubr.bf16.mxu0 0
      %1812 = vmatmul.mubr.bf16.gmra.mrb[0].mxu0 %v1719
      %v1813 = vpop.f32.mrb[0].mxu0
      %v1814 = vadd.f32 0.0, %v1813
      %v1815 = vpop.f32.mrb[0].mxu0
      %v1816 = vpop.f32.mrb[0].mxu0
      %v1817 = vadd.f32 0.0, %v1816
      %v1818 = vpop.f32.mrb[0].mxu0
      %1819 = vmatprep.mubr.bf16.mxu0 0
      %1820 = vmatmul.mubr.bf16.gmra.mrb[0].mxu0 %v1720
      %v1821 = vpop.f32.mrb[0].mxu0
      %v1822 = vadd.f32 0.0, %v1821
      %v1823 = vpop.f32.mrb[0].mxu0
      %v1824 = vpop.f32.mrb[0].mxu0
      %v1825 = vadd.f32 0.0, %v1824
      %v1826 = vpop.f32.mrb[0].mxu0
      %1827 = vmatprep.mubr.bf16.mxu0 0
      %1828 = vmatmul.mubr.bf16.gmra.mrb[0].mxu0 %v1721
      %v1829 = vpop.f32.mrb[0].mxu0
      %v1830 = vadd.f32 0.0, %v1829
      %v1831 = vpop.f32.mrb[0].mxu0
      %v1832 = vpop.f32.mrb[0].mxu0
      %v1833 = vadd.f32 0.0, %v1832
      %v1834 = vpop.f32.mrb[0].mxu0
      %1835 = vmatprep.mubr.bf16.mxu0 0
      %1836 = vmatmul.mubr.bf16.gmra.mrb[0].mxu0 %v1722
      %v1837 = vpop.f32.mrb[0].mxu0
      %v1838 = vadd.f32 0.0, %v1837
      %v1839 = vpop.f32.mrb[0].mxu0
      %v1840 = vpop.f32.mrb[0].mxu0
      %v1841 = vadd.f32 0.0, %v1840
      %v1842 = vpop.f32.mrb[0].mxu0
      %1843 = vdwg.mxu0
      %v1844 = vadd.f32 %v1699, %v1782
      %v1845 = vadd.f32 %v1700, %v1785
      %v1846 = vadd.f32 %v1701, %v1790
      %v1847 = vadd.f32 %v1702, %v1793
      %v1848 = vadd.f32 %v1703, %v1798
      %v1849 = vadd.f32 %v1704, %v1801
      %v1850 = vadd.f32 %v1705, %v1806
      %v1851 = vadd.f32 %v1706, %v1809
      %v1852 = vadd.f32 %v1707, %v1814
      %v1853 = vadd.f32 %v1708, %v1817
      %v1854 = vadd.f32 %v1709, %v1822
      %v1855 = vadd.f32 %v1710, %v1825
      %v1856 = vadd.f32 %v1711, %v1830
      %v1857 = vadd.f32 %v1712, %v1833
      %v1858 = vadd.f32 %v1713, %v1838
      %v1859 = vadd.f32 %v1714, %v1841
      %1860 = vst.msk [vmem:[%s1602] sm:$0xff] %vm1099, %v1844
      %1861 = vst.msk [vmem:[%s1602 + $0x8] sm:$0xff] %vm1099, %v1845
      %1862 = vst.msk [vmem:[%s1602 + $0x10] sm:$0xff] %vm1099, %v1846
      %1863 = vst.msk [vmem:[%s1602 + $0x18] sm:$0xff] %vm1099, %v1847
      %1864 = vst.msk [vmem:[%s1602 + $0x20] sm:$0xff] %vm1099, %v1848
      %1865 = vst.msk [vmem:[%s1602 + $0x28] sm:$0xff] %vm1099, %v1849
      %1866 = vst.msk [vmem:[%s1602 + $0x30] sm:$0xff] %vm1099, %v1850
      %1867 = vst.msk [vmem:[%s1602 + $0x38] sm:$0xff] %vm1099, %v1851
      %1868 = vst.msk [vmem:[%s1602 + $0x40] sm:$0xff] %vm1099, %v1852
      %1869 = vst.msk [vmem:[%s1602 + $0x48] sm:$0xff] %vm1099, %v1853
      %1870 = vst.msk [vmem:[%s1602 + $0x50] sm:$0xff] %vm1099, %v1854
      %1871 = vst.msk [vmem:[%s1602 + $0x58] sm:$0xff] %vm1099, %v1855
      %1872 = vst.msk [vmem:[%s1602 + $0x60] sm:$0xff] %vm1099, %v1856
      %1873 = vst.msk [vmem:[%s1602 + $0x68] sm:$0xff] %vm1099, %v1857
      %1874 = vst.msk [vmem:[%s1602 + $0x70] sm:$0xff] %vm1099, %v1858
      %1875 = vst.msk [vmem:[%s1602 + $0x78] sm:$0xff] %vm1099, %v1859
      %1876 = vst.msk [vmem:[%s1264] sm:$0xff] %vm801, %v1313
      %1877 = vst.msk [vmem:[%s1264 + $0x8] sm:$0xff] %vm801, %v1314
      %1878 = vst.msk [vmem:[%s1264 + $0x10] sm:$0xff] %vm801, %v1315
      %1879 = vst.msk [vmem:[%s1264 + $0x18] sm:$0xff] %vm801, %v1316
      %1880 = vst.msk [vmem:[%s1264 + $0x20] sm:$0xff] %vm801, %v1317
      %1881 = vst.msk [vmem:[%s1264 + $0x28] sm:$0xff] %vm801, %v1318
      %1882 = vst.msk [vmem:[%s1264 + $0x30] sm:$0xff] %vm801, %v1319
      %1883 = vst.msk [vmem:[%s1264 + $0x38] sm:$0xff] %vm801, %v1320
      %1884 = vst.msk [vmem:[%s1264 + $0x40] sm:$0xff] %vm801, %v1321
      %1885 = vst.msk [vmem:[%s1264 + $0x48] sm:$0xff] %vm801, %v1322
      %1886 = vst.msk [vmem:[%s1264 + $0x50] sm:$0xff] %vm801, %v1323
      %1887 = vst.msk [vmem:[%s1264 + $0x58] sm:$0xff] %vm801, %v1324
      %1888 = vst.msk [vmem:[%s1264 + $0x60] sm:$0xff] %vm801, %v1325
      %1889 = vst.msk [vmem:[%s1264 + $0x68] sm:$0xff] %vm801, %v1326
      %1890 = vst.msk [vmem:[%s1264 + $0x70] sm:$0xff] %vm801, %v1327
      %1891 = vst.msk [vmem:[%s1264 + $0x78] sm:$0xff] %vm801, %v1328
    $region65: #{gat_forward.7} parent=1 // pred_fallthru
      _
    // Predicated region
    $region66: #{gat_forward.7} parent=1 // pred_check
      %p1892 = pneg %p141
    $region67: #{gat_forward.7} parent=1 // pred_check_branch
      %1894 = sbr.rel (%p1892) target = $region69
    $region68: #{gat_forward.7} parent=1 // pred_region
      %v1895 = vld [vmem:[#allocation3] sm:$0xff]
      %v1896 = vld [vmem:[#allocation3 + $0x8] sm:$0xff]
      %v1897 = vld [vmem:[#allocation3 + $0x10] sm:$0xff]
      %v1898 = vld [vmem:[#allocation3 + $0x18] sm:$0xff]
      %v1899 = vld [vmem:[#allocation3 + $0x20] sm:$0xff]
      %v1900 = vld [vmem:[#allocation3 + $0x28] sm:$0xff]
      %v1901 = vld [vmem:[#allocation3 + $0x30] sm:$0xff]
      %v1902 = vld [vmem:[#allocation3 + $0x38] sm:$0xff]
      %v1903 = vld [vmem:[#allocation3 + $0x40] sm:$0xff]
      %v1904 = vld [vmem:[#allocation3 + $0x48] sm:$0xff]
      %v1905 = vld [vmem:[#allocation3 + $0x50] sm:$0xff]
      %v1906 = vld [vmem:[#allocation3 + $0x58] sm:$0xff]
      %v1907 = vld [vmem:[#allocation3 + $0x60] sm:$0xff]
      %v1908 = vld [vmem:[#allocation3 + $0x68] sm:$0xff]
      %v1909 = vld [vmem:[#allocation3 + $0x70] sm:$0xff]
      %v1910 = vld [vmem:[#allocation3 + $0x78] sm:$0xff]
      %vm1911 = vcmp.gt.f32.partialorder %v1895, 0.0
      %vm1912 = vcmp.gt.f32.partialorder %v1896, 0.0
      %vm1913 = vcmp.gt.f32.partialorder %v1897, 0.0
      %vm1914 = vcmp.gt.f32.partialorder %v1898, 0.0
      %vm1915 = vcmp.gt.f32.partialorder %v1899, 0.0
      %vm1916 = vcmp.gt.f32.partialorder %v1900, 0.0
      %vm1917 = vcmp.gt.f32.partialorder %v1901, 0.0
      %vm1918 = vcmp.gt.f32.partialorder %v1902, 0.0
      %vm1919 = vcmp.gt.f32.partialorder %v1903, 0.0
      %vm1920 = vcmp.gt.f32.partialorder %v1904, 0.0
      %vm1921 = vcmp.gt.f32.partialorder %v1905, 0.0
      %vm1922 = vcmp.gt.f32.partialorder %v1906, 0.0
      %vm1923 = vcmp.gt.f32.partialorder %v1907, 0.0
      %vm1924 = vcmp.gt.f32.partialorder %v1908, 0.0
      %vm1925 = vcmp.gt.f32.partialorder %v1909, 0.0
      %vm1926 = vcmp.gt.f32.partialorder %v1910, 0.0
      %v1927 = vsel %vm1911, %v1895, 1.0
      %v1928 = vsel %vm1912, %v1896, 1.0
      %v1929 = vsel %vm1913, %v1897, 1.0
      %v1930 = vsel %vm1914, %v1898, 1.0
      %v1931 = vsel %vm1915, %v1899, 1.0
      %v1932 = vsel %vm1916, %v1900, 1.0
      %v1933 = vsel %vm1917, %v1901, 1.0
      %v1934 = vsel %vm1918, %v1902, 1.0
      %v1935 = vsel %vm1919, %v1903, 1.0
      %v1936 = vsel %vm1920, %v1904, 1.0
      %v1937 = vsel %vm1921, %v1905, 1.0
      %v1938 = vsel %vm1922, %v1906, 1.0
      %v1939 = vsel %vm1923, %v1907, 1.0
      %v1940 = vsel %vm1924, %v1908, 1.0
      %v1941 = vsel %vm1925, %v1909, 1.0
      %v1942 = vsel %vm1926, %v1910, 1.0
      %v1943 = vrcp.pop %v1927
      %v1944 = vrcp.pop %v1928
      %v1945 = vrcp.pop %v1929
      %v1946 = vrcp.pop %v1930
      %v1947 = vrcp.pop %v1931
      %v1948 = vrcp.pop %v1932
      %v1949 = vrcp.pop %v1933
      %v1950 = vrcp.pop %v1934
      %v1951 = vrcp.pop %v1935
      %v1952 = vrcp.pop %v1936
      %v1953 = vrcp.pop %v1937
      %v1954 = vrcp.pop %v1938
      %v1955 = vrcp.pop %v1939
      %v1956 = vrcp.pop %v1940
      %v1957 = vrcp.pop %v1941
      %v1958 = vrcp.pop %v1942
      %v1959 = vld [vmem:[#allocation4] sm:$0xff]
      %v1960 = vld [vmem:[#allocation4 + $0x8] sm:$0xff]
      %v1961 = vld [vmem:[#allocation4 + $0x10] sm:$0xff]
      %v1962 = vld [vmem:[#allocation4 + $0x18] sm:$0xff]
      %v1963 = vld [vmem:[#allocation4 + $0x20] sm:$0xff]
      %v1964 = vld [vmem:[#allocation4 + $0x28] sm:$0xff]
      %v1965 = vld [vmem:[#allocation4 + $0x30] sm:$0xff]
      %v1966 = vld [vmem:[#allocation4 + $0x38] sm:$0xff]
      %v1967 = vld [vmem:[#allocation4 + $0x40] sm:$0xff]
      %v1968 = vld [vmem:[#allocation4 + $0x48] sm:$0xff]
      %v1969 = vld [vmem:[#allocation4 + $0x50] sm:$0xff]
      %v1970 = vld [vmem:[#allocation4 + $0x58] sm:$0xff]
      %v1971 = vld [vmem:[#allocation4 + $0x60] sm:$0xff]
      %v1972 = vld [vmem:[#allocation4 + $0x68] sm:$0xff]
      %v1973 = vld [vmem:[#allocation4 + $0x70] sm:$0xff]
      %v1974 = vld [vmem:[#allocation4 + $0x78] sm:$0xff]
      %1976 = vset.pattern.permute.xlu0 0
      %1977 = vperm.xlu0 %1976, %v1943
      %v1978 = vpop.permute.xlu0 %1977
      %1981 = vset.pattern.permute.xlu0 0
      %1982 = vperm.xlu0 %1981, %v1944
      %v1983 = vpop.permute.xlu0 %1982
      %1986 = vset.pattern.permute.xlu0 0
      %1987 = vperm.xlu0 %1986, %v1945
      %v1988 = vpop.permute.xlu0 %1987
      %1991 = vset.pattern.permute.xlu0 0
      %1992 = vperm.xlu0 %1991, %v1946
      %v1993 = vpop.permute.xlu0 %1992
      %1996 = vset.pattern.permute.xlu0 0
      %1997 = vperm.xlu0 %1996, %v1947
      %v1998 = vpop.permute.xlu0 %1997
      %2001 = vset.pattern.permute.xlu0 0
      %2002 = vperm.xlu0 %2001, %v1948
      %v2003 = vpop.permute.xlu0 %2002
      %2006 = vset.pattern.permute.xlu0 0
      %2007 = vperm.xlu0 %2006, %v1949
      %v2008 = vpop.permute.xlu0 %2007
      %2011 = vset.pattern.permute.xlu0 0
      %2012 = vperm.xlu0 %2011, %v1950
      %v2013 = vpop.permute.xlu0 %2012
      %2016 = vset.pattern.permute.xlu0 0
      %2017 = vperm.xlu0 %2016, %v1951
      %v2018 = vpop.permute.xlu0 %2017
      %2021 = vset.pattern.permute.xlu0 0
      %2022 = vperm.xlu0 %2021, %v1952
      %v2023 = vpop.permute.xlu0 %2022
      %2026 = vset.pattern.permute.xlu0 0
      %2027 = vperm.xlu0 %2026, %v1953
      %v2028 = vpop.permute.xlu0 %2027
      %2031 = vset.pattern.permute.xlu0 0
      %2032 = vperm.xlu0 %2031, %v1954
      %v2033 = vpop.permute.xlu0 %2032
      %2036 = vset.pattern.permute.xlu0 0
      %2037 = vperm.xlu0 %2036, %v1955
      %v2038 = vpop.permute.xlu0 %2037
      %2041 = vset.pattern.permute.xlu0 0
      %2042 = vperm.xlu0 %2041, %v1956
      %v2043 = vpop.permute.xlu0 %2042
      %2046 = vset.pattern.permute.xlu0 0
      %2047 = vperm.xlu0 %2046, %v1957
      %v2048 = vpop.permute.xlu0 %2047
      %2051 = vset.pattern.permute.xlu0 0
      %2052 = vperm.xlu0 %2051, %v1958
      %v2053 = vpop.permute.xlu0 %2052
      %v2055 = vmul.f32 %v1959, %v1978
      %v2056 = vmul.f32 %v1960, %v1983
      %v2057 = vmul.f32 %v1961, %v1988
      %v2058 = vmul.f32 %v1962, %v1993
      %v2059 = vmul.f32 %v1963, %v1998
      %v2060 = vmul.f32 %v1964, %v2003
      %v2061 = vmul.f32 %v1965, %v2008
      %v2062 = vmul.f32 %v1966, %v2013
      %v2063 = vmul.f32 %v1967, %v2018
      %v2064 = vmul.f32 %v1968, %v2023
      %v2065 = vmul.f32 %v1969, %v2028
      %v2066 = vmul.f32 %v1970, %v2033
      %v2067 = vmul.f32 %v1971, %v2038
      %v2068 = vmul.f32 %v1972, %v2043
      %v2069 = vmul.f32 %v1973, %v2048
      %v2070 = vmul.f32 %v1974, %v2053
      %s2071 = scalar_lea.vmem [#allocation3], 128
      %v2072 = vld [vmem:[%s2071] sm:$0xff]
      %v2073 = vld [vmem:[%s2071 + $0x8] sm:$0xff]
      %v2074 = vld [vmem:[%s2071 + $0x10] sm:$0xff]
      %v2075 = vld [vmem:[%s2071 + $0x18] sm:$0xff]
      %v2076 = vld [vmem:[%s2071 + $0x20] sm:$0xff]
      %v2077 = vld [vmem:[%s2071 + $0x28] sm:$0xff]
      %v2078 = vld [vmem:[%s2071 + $0x30] sm:$0xff]
      %v2079 = vld [vmem:[%s2071 + $0x38] sm:$0xff]
      %v2080 = vld [vmem:[%s2071 + $0x40] sm:$0xff]
      %v2081 = vld [vmem:[%s2071 + $0x48] sm:$0xff]
      %v2082 = vld [vmem:[%s2071 + $0x50] sm:$0xff]
      %v2083 = vld [vmem:[%s2071 + $0x58] sm:$0xff]
      %v2084 = vld [vmem:[%s2071 + $0x60] sm:$0xff]
      %v2085 = vld [vmem:[%s2071 + $0x68] sm:$0xff]
      %v2086 = vld [vmem:[%s2071 + $0x70] sm:$0xff]
      %v2087 = vld [vmem:[%s2071 + $0x78] sm:$0xff]
      %vm2088 = vcmp.gt.f32.partialorder %v2072, 0.0
      %vm2089 = vcmp.gt.f32.partialorder %v2073, 0.0
      %vm2090 = vcmp.gt.f32.partialorder %v2074, 0.0
      %vm2091 = vcmp.gt.f32.partialorder %v2075, 0.0
      %vm2092 = vcmp.gt.f32.partialorder %v2076, 0.0
      %vm2093 = vcmp.gt.f32.partialorder %v2077, 0.0
      %vm2094 = vcmp.gt.f32.partialorder %v2078, 0.0
      %vm2095 = vcmp.gt.f32.partialorder %v2079, 0.0
      %vm2096 = vcmp.gt.f32.partialorder %v2080, 0.0
      %vm2097 = vcmp.gt.f32.partialorder %v2081, 0.0
      %vm2098 = vcmp.gt.f32.partialorder %v2082, 0.0
      %vm2099 = vcmp.gt.f32.partialorder %v2083, 0.0
      %vm2100 = vcmp.gt.f32.partialorder %v2084, 0.0
      %vm2101 = vcmp.gt.f32.partialorder %v2085, 0.0
      %vm2102 = vcmp.gt.f32.partialorder %v2086, 0.0
      %vm2103 = vcmp.gt.f32.partialorder %v2087, 0.0
      %v2104 = vsel %vm2088, %v2072, 1.0
      %v2105 = vsel %vm2089, %v2073, 1.0
      %v2106 = vsel %vm2090, %v2074, 1.0
      %v2107 = vsel %vm2091, %v2075, 1.0
      %v2108 = vsel %vm2092, %v2076, 1.0
      %v2109 = vsel %vm2093, %v2077, 1.0
      %v2110 = vsel %vm2094, %v2078, 1.0
      %v2111 = vsel %vm2095, %v2079, 1.0
      %v2112 = vsel %vm2096, %v2080, 1.0
      %v2113 = vsel %vm2097, %v2081, 1.0
      %v2114 = vsel %vm2098, %v2082, 1.0
      %v2115 = vsel %vm2099, %v2083, 1.0
      %v2116 = vsel %vm2100, %v2084, 1.0
      %v2117 = vsel %vm2101, %v2085, 1.0
      %v2118 = vsel %vm2102, %v2086, 1.0
      %v2119 = vsel %vm2103, %v2087, 1.0
      %v2120 = vrcp.pop %v2104
      %v2121 = vrcp.pop %v2105
      %v2122 = vrcp.pop %v2106
      %v2123 = vrcp.pop %v2107
      %v2124 = vrcp.pop %v2108
      %v2125 = vrcp.pop %v2109
      %v2126 = vrcp.pop %v2110
      %v2127 = vrcp.pop %v2111
      %v2128 = vrcp.pop %v2112
      %v2129 = vrcp.pop %v2113
      %v2130 = vrcp.pop %v2114
      %v2131 = vrcp.pop %v2115
      %v2132 = vrcp.pop %v2116
      %v2133 = vrcp.pop %v2117
      %v2134 = vrcp.pop %v2118
      %v2135 = vrcp.pop %v2119
      %s2136 = scalar_lea.vmem [#allocation4], 128
      %v2137 = vld [vmem:[%s2136] sm:$0xff]
      %v2138 = vld [vmem:[%s2136 + $0x8] sm:$0xff]
      %v2139 = vld [vmem:[%s2136 + $0x10] sm:$0xff]
      %v2140 = vld [vmem:[%s2136 + $0x18] sm:$0xff]
      %v2141 = vld [vmem:[%s2136 + $0x20] sm:$0xff]
      %v2142 = vld [vmem:[%s2136 + $0x28] sm:$0xff]
      %v2143 = vld [vmem:[%s2136 + $0x30] sm:$0xff]
      %v2144 = vld [vmem:[%s2136 + $0x38] sm:$0xff]
      %v2145 = vld [vmem:[%s2136 + $0x40] sm:$0xff]
      %v2146 = vld [vmem:[%s2136 + $0x48] sm:$0xff]
      %v2147 = vld [vmem:[%s2136 + $0x50] sm:$0xff]
      %v2148 = vld [vmem:[%s2136 + $0x58] sm:$0xff]
      %v2149 = vld [vmem:[%s2136 + $0x60] sm:$0xff]
      %v2150 = vld [vmem:[%s2136 + $0x68] sm:$0xff]
      %v2151 = vld [vmem:[%s2136 + $0x70] sm:$0xff]
      %v2152 = vld [vmem:[%s2136 + $0x78] sm:$0xff]
      %2154 = vset.pattern.permute.xlu0 0
      %2155 = vperm.xlu0 %2154, %v2120
      %v2156 = vpop.permute.xlu0 %2155
      %2159 = vset.pattern.permute.xlu0 0
      %2160 = vperm.xlu0 %2159, %v2121
      %v2161 = vpop.permute.xlu0 %2160
      %2164 = vset.pattern.permute.xlu0 0
      %2165 = vperm.xlu0 %2164, %v2122
      %v2166 = vpop.permute.xlu0 %2165
      %2169 = vset.pattern.permute.xlu0 0
      %2170 = vperm.xlu0 %2169, %v2123
      %v2171 = vpop.permute.xlu0 %2170
      %2174 = vset.pattern.permute.xlu0 0
      %2175 = vperm.xlu0 %2174, %v2124
      %v2176 = vpop.permute.xlu0 %2175
      %2179 = vset.pattern.permute.xlu0 0
      %2180 = vperm.xlu0 %2179, %v2125
      %v2181 = vpop.permute.xlu0 %2180
      %2184 = vset.pattern.permute.xlu0 0
      %2185 = vperm.xlu0 %2184, %v2126
      %v2186 = vpop.permute.xlu0 %2185
      %2189 = vset.pattern.permute.xlu0 0
      %2190 = vperm.xlu0 %2189, %v2127
      %v2191 = vpop.permute.xlu0 %2190
      %2194 = vset.pattern.permute.xlu0 0
      %2195 = vperm.xlu0 %2194, %v2128
      %v2196 = vpop.permute.xlu0 %2195
      %2199 = vset.pattern.permute.xlu0 0
      %2200 = vperm.xlu0 %2199, %v2129
      %v2201 = vpop.permute.xlu0 %2200
      %2204 = vset.pattern.permute.xlu0 0
      %2205 = vperm.xlu0 %2204, %v2130
      %v2206 = vpop.permute.xlu0 %2205
      %2209 = vset.pattern.permute.xlu0 0
      %2210 = vperm.xlu0 %2209, %v2131
      %v2211 = vpop.permute.xlu0 %2210
      %2214 = vset.pattern.permute.xlu0 0
      %2215 = vperm.xlu0 %2214, %v2132
      %v2216 = vpop.permute.xlu0 %2215
      %2219 = vset.pattern.permute.xlu0 0
      %2220 = vperm.xlu0 %2219, %v2133
      %v2221 = vpop.permute.xlu0 %2220
      %2224 = vset.pattern.permute.xlu0 0
      %2225 = vperm.xlu0 %2224, %v2134
      %v2226 = vpop.permute.xlu0 %2225
      %2229 = vset.pattern.permute.xlu0 0
      %2230 = vperm.xlu0 %2229, %v2135
      %v2231 = vpop.permute.xlu0 %2230
      %v2233 = vmul.f32 %v2137, %v2156
      %v2234 = vmul.f32 %v2138, %v2161
      %v2235 = vmul.f32 %v2139, %v2166
      %v2236 = vmul.f32 %v2140, %v2171
      %v2237 = vmul.f32 %v2141, %v2176
      %v2238 = vmul.f32 %v2142, %v2181
      %v2239 = vmul.f32 %v2143, %v2186
      %v2240 = vmul.f32 %v2144, %v2191
      %v2241 = vmul.f32 %v2145, %v2196
      %v2242 = vmul.f32 %v2146, %v2201
      %v2243 = vmul.f32 %v2147, %v2206
      %v2244 = vmul.f32 %v2148, %v2211
      %v2245 = vmul.f32 %v2149, %v2216
      %v2246 = vmul.f32 %v2150, %v2221
      %v2247 = vmul.f32 %v2151, %v2226
      %v2248 = vmul.f32 %v2152, %v2231
      %2265 = vrot.lane.b32.xlu0 %v2233, 16
      %v2266 = vpop.permute.xlu0 %2265
      %2267 = vrot.lane.b32.xlu0 %v2234, 16
      %v2268 = vpop.permute.xlu0 %2267
      %2269 = vrot.lane.b32.xlu0 %v2235, 16
      %v2270 = vpop.permute.xlu0 %2269
      %2271 = vrot.lane.b32.xlu0 %v2236, 16
      %v2272 = vpop.permute.xlu0 %2271
      %2273 = vrot.lane.b32.xlu0 %v2237, 16
      %v2274 = vpop.permute.xlu0 %2273
      %2275 = vrot.lane.b32.xlu0 %v2238, 16
      %v2276 = vpop.permute.xlu0 %2275
      %2277 = vrot.lane.b32.xlu0 %v2239, 16
      %v2278 = vpop.permute.xlu0 %2277
      %2279 = vrot.lane.b32.xlu0 %v2240, 16
      %v2280 = vpop.permute.xlu0 %2279
      %2281 = vrot.lane.b32.xlu0 %v2241, 16
      %v2282 = vpop.permute.xlu0 %2281
      %2283 = vrot.lane.b32.xlu0 %v2242, 16
      %v2284 = vpop.permute.xlu0 %2283
      %2285 = vrot.lane.b32.xlu0 %v2243, 16
      %v2286 = vpop.permute.xlu0 %2285
      %2287 = vrot.lane.b32.xlu0 %v2244, 16
      %v2288 = vpop.permute.xlu0 %2287
      %2289 = vrot.lane.b32.xlu0 %v2245, 16
      %v2290 = vpop.permute.xlu0 %2289
      %2291 = vrot.lane.b32.xlu0 %v2246, 16
      %v2292 = vpop.permute.xlu0 %2291
      %2293 = vrot.lane.b32.xlu0 %v2247, 16
      %v2294 = vpop.permute.xlu0 %2293
      %2295 = vrot.lane.b32.xlu0 %v2248, 16
      %v2296 = vpop.permute.xlu0 %2295
      %vm2313 = vcmask 130048
      %v2314 = vsel %vm2313, %v2055, %v2266
      %v2315 = vsel %vm2313, %v2056, %v2268
      %v2316 = vsel %vm2313, %v2057, %v2270
      %v2317 = vsel %vm2313, %v2058, %v2272
      %v2318 = vsel %vm2313, %v2059, %v2274
      %v2319 = vsel %vm2313, %v2060, %v2276
      %v2320 = vsel %vm2313, %v2061, %v2278
      %v2321 = vsel %vm2313, %v2062, %v2280
      %v2322 = vsel %vm2313, %v2063, %v2282
      %v2323 = vsel %vm2313, %v2064, %v2284
      %v2324 = vsel %vm2313, %v2065, %v2286
      %v2325 = vsel %vm2313, %v2066, %v2288
      %v2326 = vsel %vm2313, %v2067, %v2290
      %v2327 = vsel %vm2313, %v2068, %v2292
      %v2328 = vsel %vm2313, %v2069, %v2294
      %v2329 = vsel %vm2313, %v2070, %v2296
      %v2330 = vld [vmem:[#allocation16] sm:$0x1]
      %v2332 = vlaneseq
      %v2333 = vshrl.u32 %v2332, 7
      %v2334 = vsub.s32 0, %v2333
      %v2335 = vrot.slane %v2330, %v2334
      %v2337 = vadd.f32 %v2314, %v2335
      %v2338 = vadd.f32 %v2315, %v2335
      %v2339 = vadd.f32 %v2316, %v2335
      %v2340 = vadd.f32 %v2317, %v2335
      %v2341 = vadd.f32 %v2318, %v2335
      %v2342 = vadd.f32 %v2319, %v2335
      %v2343 = vadd.f32 %v2320, %v2335
      %v2344 = vadd.f32 %v2321, %v2335
      %v2345 = vadd.f32 %v2322, %v2335
      %v2346 = vadd.f32 %v2323, %v2335
      %v2347 = vadd.f32 %v2324, %v2335
      %v2348 = vadd.f32 %v2325, %v2335
      %v2349 = vadd.f32 %v2326, %v2335
      %v2350 = vadd.f32 %v2327, %v2335
      %v2351 = vadd.f32 %v2328, %v2335
      %v2352 = vadd.f32 %v2329, %v2335
      %v2353 = vmul.f32 %v2337, 0.5
      %v2354 = vmul.f32 %v2338, 0.5
      %v2355 = vmul.f32 %v2339, 0.5
      %v2356 = vmul.f32 %v2340, 0.5
      %v2357 = vmul.f32 %v2341, 0.5
      %v2358 = vmul.f32 %v2342, 0.5
      %v2359 = vmul.f32 %v2343, 0.5
      %v2360 = vmul.f32 %v2344, 0.5
      %v2361 = vmul.f32 %v2345, 0.5
      %v2362 = vmul.f32 %v2346, 0.5
      %v2363 = vmul.f32 %v2347, 0.5
      %v2364 = vmul.f32 %v2348, 0.5
      %v2365 = vmul.f32 %v2349, 0.5
      %v2366 = vmul.f32 %v2350, 0.5
      %v2367 = vmul.f32 %v2351, 0.5
      %v2368 = vmul.f32 %v2352, 0.5
      %v2369 = vmul.f32 %v2337, 0.70710677
      %v2370 = vmul.f32 %v2338, 0.70710677
      %v2371 = vmul.f32 %v2339, 0.70710677
      %v2372 = vmul.f32 %v2340, 0.70710677
      %v2373 = vmul.f32 %v2341, 0.70710677
      %v2374 = vmul.f32 %v2342, 0.70710677
      %v2375 = vmul.f32 %v2343, 0.70710677
      %v2376 = vmul.f32 %v2344, 0.70710677
      %v2377 = vmul.f32 %v2345, 0.70710677
      %v2378 = vmul.f32 %v2346, 0.70710677
      %v2379 = vmul.f32 %v2347, 0.70710677
      %v2380 = vmul.f32 %v2348, 0.70710677
      %v2381 = vmul.f32 %v2349, 0.70710677
      %v2382 = vmul.f32 %v2350, 0.70710677
      %v2383 = vmul.f32 %v2351, 0.70710677
      %v2384 = vmul.f32 %v2352, 0.70710677
      %vm2385 = vcmp.ge.f32.partialorder %v2369, 0.0
      %vm2386 = vcmp.ge.f32.partialorder %v2370, 0.0
      %vm2387 = vcmp.ge.f32.partialorder %v2371, 0.0
      %vm2388 = vcmp.ge.f32.partialorder %v2372, 0.0
      %vm2389 = vcmp.ge.f32.partialorder %v2373, 0.0
      %vm2390 = vcmp.ge.f32.partialorder %v2374, 0.0
      %vm2391 = vcmp.ge.f32.partialorder %v2375, 0.0
      %vm2392 = vcmp.ge.f32.partialorder %v2376, 0.0
      %vm2393 = vcmp.ge.f32.partialorder %v2377, 0.0
      %vm2394 = vcmp.ge.f32.partialorder %v2378, 0.0
      %vm2395 = vcmp.ge.f32.partialorder %v2379, 0.0
      %vm2396 = vcmp.ge.f32.partialorder %v2380, 0.0
      %vm2397 = vcmp.ge.f32.partialorder %v2381, 0.0
      %vm2398 = vcmp.ge.f32.partialorder %v2382, 0.0
      %vm2399 = vcmp.ge.f32.partialorder %v2383, 0.0
      %vm2400 = vcmp.ge.f32.partialorder %v2384, 0.0
      %v2401 = vsel %vm2385, 1.0, -1.0
      %v2402 = vsel %vm2386, 1.0, -1.0
      %v2403 = vsel %vm2387, 1.0, -1.0
      %v2404 = vsel %vm2388, 1.0, -1.0
      %v2405 = vsel %vm2389, 1.0, -1.0
      %v2406 = vsel %vm2390, 1.0, -1.0
      %v2407 = vsel %vm2391, 1.0, -1.0
      %v2408 = vsel %vm2392, 1.0, -1.0
      %v2409 = vsel %vm2393, 1.0, -1.0
      %v2410 = vsel %vm2394, 1.0, -1.0
      %v2411 = vsel %vm2395, 1.0, -1.0
      %v2412 = vsel %vm2396, 1.0, -1.0
      %v2413 = vsel %vm2397, 1.0, -1.0
      %v2414 = vsel %vm2398, 1.0, -1.0
      %v2415 = vsel %vm2399, 1.0, -1.0
      %v2416 = vsel %vm2400, 1.0, -1.0
      %v2417 = vand.u32 2147483647, %v2369
      %v2418 = vand.u32 2147483647, %v2370
      %v2419 = vand.u32 2147483647, %v2371
      %v2420 = vand.u32 2147483647, %v2372
      %v2421 = vand.u32 2147483647, %v2373
      %v2422 = vand.u32 2147483647, %v2374
      %v2423 = vand.u32 2147483647, %v2375
      %v2424 = vand.u32 2147483647, %v2376
      %v2425 = vand.u32 2147483647, %v2377
      %v2426 = vand.u32 2147483647, %v2378
      %v2427 = vand.u32 2147483647, %v2379
      %v2428 = vand.u32 2147483647, %v2380
      %v2429 = vand.u32 2147483647, %v2381
      %v2430 = vand.u32 2147483647, %v2382
      %v2431 = vand.u32 2147483647, %v2383
      %v2432 = vand.u32 2147483647, %v2384
      %v2433 = vmul.f32 %v2417, 0.3275911
      %v2434 = vmul.f32 %v2418, 0.3275911
      %v2435 = vmul.f32 %v2419, 0.3275911
      %v2436 = vmul.f32 %v2420, 0.3275911
      %v2437 = vmul.f32 %v2421, 0.3275911
      %v2438 = vmul.f32 %v2422, 0.3275911
      %v2439 = vmul.f32 %v2423, 0.3275911
      %v2440 = vmul.f32 %v2424, 0.3275911
      %v2441 = vmul.f32 %v2425, 0.3275911
      %v2442 = vmul.f32 %v2426, 0.3275911
      %v2443 = vmul.f32 %v2427, 0.3275911
      %v2444 = vmul.f32 %v2428, 0.3275911
      %v2445 = vmul.f32 %v2429, 0.3275911
      %v2446 = vmul.f32 %v2430, 0.3275911
      %v2447 = vmul.f32 %v2431, 0.3275911
      %v2448 = vmul.f32 %v2432, 0.3275911
      %v2449 = vadd.f32 %v2433, 1.0
      %v2450 = vadd.f32 %v2434, 1.0
      %v2451 = vadd.f32 %v2435, 1.0
      %v2452 = vadd.f32 %v2436, 1.0
      %v2453 = vadd.f32 %v2437, 1.0
      %v2454 = vadd.f32 %v2438, 1.0
      %v2455 = vadd.f32 %v2439, 1.0
      %v2456 = vadd.f32 %v2440, 1.0
      %v2457 = vadd.f32 %v2441, 1.0
      %v2458 = vadd.f32 %v2442, 1.0
      %v2459 = vadd.f32 %v2443, 1.0
      %v2460 = vadd.f32 %v2444, 1.0
      %v2461 = vadd.f32 %v2445, 1.0
      %v2462 = vadd.f32 %v2446, 1.0
      %v2463 = vadd.f32 %v2447, 1.0
      %v2464 = vadd.f32 %v2448, 1.0
      %v2465 = vrcp.pop %v2449
      %v2466 = vmul.f32 1.0, %v2465
      %v2467 = vrcp.pop %v2450
      %v2468 = vmul.f32 1.0, %v2467
      %v2469 = vrcp.pop %v2451
      %v2470 = vmul.f32 1.0, %v2469
      %v2471 = vrcp.pop %v2452
      %v2472 = vmul.f32 1.0, %v2471
      %v2473 = vrcp.pop %v2453
      %v2474 = vmul.f32 1.0, %v2473
      %v2475 = vrcp.pop %v2454
      %v2476 = vmul.f32 1.0, %v2475
      %v2477 = vrcp.pop %v2455
      %v2478 = vmul.f32 1.0, %v2477
      %v2479 = vrcp.pop %v2456
      %v2480 = vmul.f32 1.0, %v2479
      %v2481 = vrcp.pop %v2457
      %v2482 = vmul.f32 1.0, %v2481
      %v2483 = vrcp.pop %v2458
      %v2484 = vmul.f32 1.0, %v2483
      %v2485 = vrcp.pop %v2459
      %v2486 = vmul.f32 1.0, %v2485
      %v2487 = vrcp.pop %v2460
      %v2488 = vmul.f32 1.0, %v2487
      %v2489 = vrcp.pop %v2461
      %v2490 = vmul.f32 1.0, %v2489
      %v2491 = vrcp.pop %v2462
      %v2492 = vmul.f32 1.0, %v2491
      %v2493 = vrcp.pop %v2463
      %v2494 = vmul.f32 1.0, %v2493
      %v2495 = vrcp.pop %v2464
      %v2496 = vmul.f32 1.0, %v2495
      %v2497 = vmul.f32 %v2466, 1.0614054
      %v2498 = vmul.f32 %v2468, 1.0614054
      %v2499 = vmul.f32 %v2470, 1.0614054
      %v2500 = vmul.f32 %v2472, 1.0614054
      %v2501 = vmul.f32 %v2474, 1.0614054
      %v2502 = vmul.f32 %v2476, 1.0614054
      %v2503 = vmul.f32 %v2478, 1.0614054
      %v2504 = vmul.f32 %v2480, 1.0614054
      %v2505 = vmul.f32 %v2482, 1.0614054
      %v2506 = vmul.f32 %v2484, 1.0614054
      %v2507 = vmul.f32 %v2486, 1.0614054
      %v2508 = vmul.f32 %v2488, 1.0614054
      %v2509 = vmul.f32 %v2490, 1.0614054
      %v2510 = vmul.f32 %v2492, 1.0614054
      %v2511 = vmul.f32 %v2494, 1.0614054
      %v2512 = vmul.f32 %v2496, 1.0614054
      %v2513 = vadd.f32 %v2497, -1.4531521
      %v2514 = vadd.f32 %v2498, -1.4531521
      %v2515 = vadd.f32 %v2499, -1.4531521
      %v2516 = vadd.f32 %v2500, -1.4531521
      %v2517 = vadd.f32 %v2501, -1.4531521
      %v2518 = vadd.f32 %v2502, -1.4531521
      %v2519 = vadd.f32 %v2503, -1.4531521
      %v2520 = vadd.f32 %v2504, -1.4531521
      %v2521 = vadd.f32 %v2505, -1.4531521
      %v2522 = vadd.f32 %v2506, -1.4531521
      %v2523 = vadd.f32 %v2507, -1.4531521
      %v2524 = vadd.f32 %v2508, -1.4531521
      %v2525 = vadd.f32 %v2509, -1.4531521
      %v2526 = vadd.f32 %v2510, -1.4531521
      %v2527 = vadd.f32 %v2511, -1.4531521
      %v2528 = vadd.f32 %v2512, -1.4531521
      %v2529 = vmul.f32 %v2513, %v2466
      %v2530 = vmul.f32 %v2514, %v2468
      %v2531 = vmul.f32 %v2515, %v2470
      %v2532 = vmul.f32 %v2516, %v2472
      %v2533 = vmul.f32 %v2517, %v2474
      %v2534 = vmul.f32 %v2518, %v2476
      %v2535 = vmul.f32 %v2519, %v2478
      %v2536 = vmul.f32 %v2520, %v2480
      %v2537 = vmul.f32 %v2521, %v2482
      %v2538 = vmul.f32 %v2522, %v2484
      %v2539 = vmul.f32 %v2523, %v2486
      %v2540 = vmul.f32 %v2524, %v2488
      %v2541 = vmul.f32 %v2525, %v2490
      %v2542 = vmul.f32 %v2526, %v2492
      %v2543 = vmul.f32 %v2527, %v2494
      %v2544 = vmul.f32 %v2528, %v2496
      %v2545 = vadd.f32 %v2529, 1.4214138
      %v2546 = vadd.f32 %v2530, 1.4214138
      %v2547 = vadd.f32 %v2531, 1.4214138
      %v2548 = vadd.f32 %v2532, 1.4214138
      %v2549 = vadd.f32 %v2533, 1.4214138
      %v2550 = vadd.f32 %v2534, 1.4214138
      %v2551 = vadd.f32 %v2535, 1.4214138
      %v2552 = vadd.f32 %v2536, 1.4214138
      %v2553 = vadd.f32 %v2537, 1.4214138
      %v2554 = vadd.f32 %v2538, 1.4214138
      %v2555 = vadd.f32 %v2539, 1.4214138
      %v2556 = vadd.f32 %v2540, 1.4214138
      %v2557 = vadd.f32 %v2541, 1.4214138
      %v2558 = vadd.f32 %v2542, 1.4214138
      %v2559 = vadd.f32 %v2543, 1.4214138
      %v2560 = vadd.f32 %v2544, 1.4214138
      %v2561 = vmul.f32 %v2545, %v2466
      %v2562 = vmul.f32 %v2546, %v2468
      %v2563 = vmul.f32 %v2547, %v2470
      %v2564 = vmul.f32 %v2548, %v2472
      %v2565 = vmul.f32 %v2549, %v2474
      %v2566 = vmul.f32 %v2550, %v2476
      %v2567 = vmul.f32 %v2551, %v2478
      %v2568 = vmul.f32 %v2552, %v2480
      %v2569 = vmul.f32 %v2553, %v2482
      %v2570 = vmul.f32 %v2554, %v2484
      %v2571 = vmul.f32 %v2555, %v2486
      %v2572 = vmul.f32 %v2556, %v2488
      %v2573 = vmul.f32 %v2557, %v2490
      %v2574 = vmul.f32 %v2558, %v2492
      %v2575 = vmul.f32 %v2559, %v2494
      %v2576 = vmul.f32 %v2560, %v2496
      %v2577 = vadd.f32 %v2561, -0.28449672
      %v2578 = vadd.f32 %v2562, -0.28449672
      %v2579 = vadd.f32 %v2563, -0.28449672
      %v2580 = vadd.f32 %v2564, -0.28449672
      %v2581 = vadd.f32 %v2565, -0.28449672
      %v2582 = vadd.f32 %v2566, -0.28449672
      %v2583 = vadd.f32 %v2567, -0.28449672
      %v2584 = vadd.f32 %v2568, -0.28449672
      %v2585 = vadd.f32 %v2569, -0.28449672
      %v2586 = vadd.f32 %v2570, -0.28449672
      %v2587 = vadd.f32 %v2571, -0.28449672
      %v2588 = vadd.f32 %v2572, -0.28449672
      %v2589 = vadd.f32 %v2573, -0.28449672
      %v2590 = vadd.f32 %v2574, -0.28449672
      %v2591 = vadd.f32 %v2575, -0.28449672
      %v2592 = vadd.f32 %v2576, -0.28449672
      %v2593 = vmul.f32 %v2577, %v2466
      %v2594 = vmul.f32 %v2578, %v2468
      %v2595 = vmul.f32 %v2579, %v2470
      %v2596 = vmul.f32 %v2580, %v2472
      %v2597 = vmul.f32 %v2581, %v2474
      %v2598 = vmul.f32 %v2582, %v2476
      %v2599 = vmul.f32 %v2583, %v2478
      %v2600 = vmul.f32 %v2584, %v2480
      %v2601 = vmul.f32 %v2585, %v2482
      %v2602 = vmul.f32 %v2586, %v2484
      %v2603 = vmul.f32 %v2587, %v2486
      %v2604 = vmul.f32 %v2588, %v2488
      %v2605 = vmul.f32 %v2589, %v2490
      %v2606 = vmul.f32 %v2590, %v2492
      %v2607 = vmul.f32 %v2591, %v2494
      %v2608 = vmul.f32 %v2592, %v2496
      %v2609 = vadd.f32 %v2593, 0.2548296
      %v2610 = vadd.f32 %v2594, 0.2548296
      %v2611 = vadd.f32 %v2595, 0.2548296
      %v2612 = vadd.f32 %v2596, 0.2548296
      %v2613 = vadd.f32 %v2597, 0.2548296
      %v2614 = vadd.f32 %v2598, 0.2548296
      %v2615 = vadd.f32 %v2599, 0.2548296
      %v2616 = vadd.f32 %v2600, 0.2548296
      %v2617 = vadd.f32 %v2601, 0.2548296
      %v2618 = vadd.f32 %v2602, 0.2548296
      %v2619 = vadd.f32 %v2603, 0.2548296
      %v2620 = vadd.f32 %v2604, 0.2548296
      %v2621 = vadd.f32 %v2605, 0.2548296
      %v2622 = vadd.f32 %v2606, 0.2548296
      %v2623 = vadd.f32 %v2607, 0.2548296
      %v2624 = vadd.f32 %v2608, 0.2548296
      %v2625 = vmul.f32 %v2609, %v2466
      %v2626 = vmul.f32 %v2610, %v2468
      %v2627 = vmul.f32 %v2611, %v2470
      %v2628 = vmul.f32 %v2612, %v2472
      %v2629 = vmul.f32 %v2613, %v2474
      %v2630 = vmul.f32 %v2614, %v2476
      %v2631 = vmul.f32 %v2615, %v2478
      %v2632 = vmul.f32 %v2616, %v2480
      %v2633 = vmul.f32 %v2617, %v2482
      %v2634 = vmul.f32 %v2618, %v2484
      %v2635 = vmul.f32 %v2619, %v2486
      %v2636 = vmul.f32 %v2620, %v2488
      %v2637 = vmul.f32 %v2621, %v2490
      %v2638 = vmul.f32 %v2622, %v2492
      %v2639 = vmul.f32 %v2623, %v2494
      %v2640 = vmul.f32 %v2624, %v2496
      %v2641 = vsub.f32 0.0, %v2417
      %v2642 = vsub.f32 0.0, %v2418
      %v2643 = vsub.f32 0.0, %v2419
      %v2644 = vsub.f32 0.0, %v2420
      %v2645 = vsub.f32 0.0, %v2421
      %v2646 = vsub.f32 0.0, %v2422
      %v2647 = vsub.f32 0.0, %v2423
      %v2648 = vsub.f32 0.0, %v2424
      %v2649 = vsub.f32 0.0, %v2425
      %v2650 = vsub.f32 0.0, %v2426
      %v2651 = vsub.f32 0.0, %v2427
      %v2652 = vsub.f32 0.0, %v2428
      %v2653 = vsub.f32 0.0, %v2429
      %v2654 = vsub.f32 0.0, %v2430
      %v2655 = vsub.f32 0.0, %v2431
      %v2656 = vsub.f32 0.0, %v2432
      %v2657 = vmul.f32 %v2641, %v2417
      %v2658 = vmul.f32 %v2642, %v2418
      %v2659 = vmul.f32 %v2643, %v2419
      %v2660 = vmul.f32 %v2644, %v2420
      %v2661 = vmul.f32 %v2645, %v2421
      %v2662 = vmul.f32 %v2646, %v2422
      %v2663 = vmul.f32 %v2647, %v2423
      %v2664 = vmul.f32 %v2648, %v2424
      %v2665 = vmul.f32 %v2649, %v2425
      %v2666 = vmul.f32 %v2650, %v2426
      %v2667 = vmul.f32 %v2651, %v2427
      %v2668 = vmul.f32 %v2652, %v2428
      %v2669 = vmul.f32 %v2653, %v2429
      %v2670 = vmul.f32 %v2654, %v2430
      %v2671 = vmul.f32 %v2655, %v2431
      %v2672 = vmul.f32 %v2656, %v2432
      %v2673 = vmul.f32 %v2657, 1.442695
      %v2674 = vpow.pop %v2673
      %v2675 = vmul.f32 %v2658, 1.442695
      %v2676 = vpow.pop %v2675
      %v2677 = vmul.f32 %v2659, 1.442695
      %v2678 = vpow.pop %v2677
      %v2679 = vmul.f32 %v2660, 1.442695
      %v2680 = vpow.pop %v2679
      %v2681 = vmul.f32 %v2661, 1.442695
      %v2682 = vpow.pop %v2681
      %v2683 = vmul.f32 %v2662, 1.442695
      %v2684 = vpow.pop %v2683
      %v2685 = vmul.f32 %v2663, 1.442695
      %v2686 = vpow.pop %v2685
      %v2687 = vmul.f32 %v2664, 1.442695
      %v2688 = vpow.pop %v2687
      %v2689 = vmul.f32 %v2665, 1.442695
      %v2690 = vpow.pop %v2689
      %v2691 = vmul.f32 %v2666, 1.442695
      %v2692 = vpow.pop %v2691
      %v2693 = vmul.f32 %v2667, 1.442695
      %v2694 = vpow.pop %v2693
      %v2695 = vmul.f32 %v2668, 1.442695
      %v2696 = vpow.pop %v2695
      %v2697 = vmul.f32 %v2669, 1.442695
      %v2698 = vpow.pop %v2697
      %v2699 = vmul.f32 %v2670, 1.442695
      %v2700 = vpow.pop %v2699
      %v2701 = vmul.f32 %v2671, 1.442695
      %v2702 = vpow.pop %v2701
      %v2703 = vmul.f32 %v2672, 1.442695
      %v2704 = vpow.pop %v2703
      %v2705 = vmul.f32 %v2625, %v2674
      %v2706 = vmul.f32 %v2626, %v2676
      %v2707 = vmul.f32 %v2627, %v2678
      %v2708 = vmul.f32 %v2628, %v2680
      %v2709 = vmul.f32 %v2629, %v2682
      %v2710 = vmul.f32 %v2630, %v2684
      %v2711 = vmul.f32 %v2631, %v2686
      %v2712 = vmul.f32 %v2632, %v2688
      %v2713 = vmul.f32 %v2633, %v2690
      %v2714 = vmul.f32 %v2634, %v2692
      %v2715 = vmul.f32 %v2635, %v2694
      %v2716 = vmul.f32 %v2636, %v2696
      %v2717 = vmul.f32 %v2637, %v2698
      %v2718 = vmul.f32 %v2638, %v2700
      %v2719 = vmul.f32 %v2639, %v2702
      %v2720 = vmul.f32 %v2640, %v2704
      %v2721 = vsub.f32 1.0, %v2705
      %v2722 = vsub.f32 1.0, %v2706
      %v2723 = vsub.f32 1.0, %v2707
      %v2724 = vsub.f32 1.0, %v2708
      %v2725 = vsub.f32 1.0, %v2709
      %v2726 = vsub.f32 1.0, %v2710
      %v2727 = vsub.f32 1.0, %v2711
      %v2728 = vsub.f32 1.0, %v2712
      %v2729 = vsub.f32 1.0, %v2713
      %v2730 = vsub.f32 1.0, %v2714
      %v2731 = vsub.f32 1.0, %v2715
      %v2732 = vsub.f32 1.0, %v2716
      %v2733 = vsub.f32 1.0, %v2717
      %v2734 = vsub.f32 1.0, %v2718
      %v2735 = vsub.f32 1.0, %v2719
      %v2736 = vsub.f32 1.0, %v2720
      %v2737 = vmul.f32 %v2401, %v2721
      %v2738 = vmul.f32 %v2402, %v2722
      %v2739 = vmul.f32 %v2403, %v2723
      %v2740 = vmul.f32 %v2404, %v2724
      %v2741 = vmul.f32 %v2405, %v2725
      %v2742 = vmul.f32 %v2406, %v2726
      %v2743 = vmul.f32 %v2407, %v2727
      %v2744 = vmul.f32 %v2408, %v2728
      %v2745 = vmul.f32 %v2409, %v2729
      %v2746 = vmul.f32 %v2410, %v2730
      %v2747 = vmul.f32 %v2411, %v2731
      %v2748 = vmul.f32 %v2412, %v2732
      %v2749 = vmul.f32 %v2413, %v2733
      %v2750 = vmul.f32 %v2414, %v2734
      %v2751 = vmul.f32 %v2415, %v2735
      %v2752 = vmul.f32 %v2416, %v2736
      %v2753 = vadd.f32 %v2737, 1.0
      %v2754 = vadd.f32 %v2738, 1.0
      %v2755 = vadd.f32 %v2739, 1.0
      %v2756 = vadd.f32 %v2740, 1.0
      %v2757 = vadd.f32 %v2741, 1.0
      %v2758 = vadd.f32 %v2742, 1.0
      %v2759 = vadd.f32 %v2743, 1.0
      %v2760 = vadd.f32 %v2744, 1.0
      %v2761 = vadd.f32 %v2745, 1.0
      %v2762 = vadd.f32 %v2746, 1.0
      %v2763 = vadd.f32 %v2747, 1.0
      %v2764 = vadd.f32 %v2748, 1.0
      %v2765 = vadd.f32 %v2749, 1.0
      %v2766 = vadd.f32 %v2750, 1.0
      %v2767 = vadd.f32 %v2751, 1.0
      %v2768 = vadd.f32 %v2752, 1.0
      %v2769 = vmul.f32 %v2353, %v2753
      %v2770 = vmul.f32 %v2354, %v2754
      %v2771 = vmul.f32 %v2355, %v2755
      %v2772 = vmul.f32 %v2356, %v2756
      %v2773 = vmul.f32 %v2357, %v2757
      %v2774 = vmul.f32 %v2358, %v2758
      %v2775 = vmul.f32 %v2359, %v2759
      %v2776 = vmul.f32 %v2360, %v2760
      %v2777 = vmul.f32 %v2361, %v2761
      %v2778 = vmul.f32 %v2362, %v2762
      %v2779 = vmul.f32 %v2363, %v2763
      %v2780 = vmul.f32 %v2364, %v2764
      %v2781 = vmul.f32 %v2365, %v2765
      %v2782 = vmul.f32 %v2366, %v2766
      %v2783 = vmul.f32 %v2367, %v2767
      %v2784 = vmul.f32 %v2368, %v2768
      %v2785 = vld [vmem:[#allocation17] sm:$0xff]
      %v2786 = vld [vmem:[#allocation17 + $0x8] sm:$0xff]
      %v2787 = vld [vmem:[#allocation17 + $0x10] sm:$0xff]
      %v2788 = vld [vmem:[#allocation17 + $0x18] sm:$0xff]
      %v2789 = vld [vmem:[#allocation19] sm:$0x1]
      %v2791 = vlaneseq
      %v2792 = vshrl.u32 %v2791, 7
      %v2793 = vsub.s32 0, %v2792
      %v2794 = vrot.slane %v2789, %v2793
      %vm2796 = vcmask 261120
      %v2798 = vsel %vm2796, %v2769, 0
      %v2801 = vsel %vm2796, %v2770, 0
      %v2804 = vsel %vm2796, %v2771, 0
      %v2807 = vsel %vm2796, %v2772, 0
      %v2810 = vsel %vm2796, %v2773, 0
      %v2813 = vsel %vm2796, %v2774, 0
      %v2816 = vsel %vm2796, %v2775, 0
      %v2819 = vsel %vm2796, %v2776, 0
      %v2822 = vsel %vm2796, %v2777, 0
      %v2825 = vsel %vm2796, %v2778, 0
      %v2828 = vsel %vm2796, %v2779, 0
      %v2831 = vsel %vm2796, %v2780, 0
      %v2834 = vsel %vm2796, %v2781, 0
      %v2837 = vsel %vm2796, %v2782, 0
      %v2840 = vsel %vm2796, %v2783, 0
      %v2843 = vsel %vm2796, %v2784, 0
      %2845 = vmatprep.subr.mxu0 0.0
      %2846 = vmatpush1.msra.mxu0 %v2785
      %2847 = vmatprep.subr.mxu0 0.0
      %2848 = vmatpush1.msra.mxu0 %v2786
      %2849 = vmatprep.subr.mxu0 0.0
      %2850 = vmatpush1.msra.mxu0 %v2787
      %2851 = vmatprep.subr.mxu0 0.0
      %2852 = vmatpush1.msra.mxu0 %v2788
      %2853 = vmatprep.subr.mxu0 0.0
      %2854 = vmatpush1.msra.mxu0 0.0
      %2855 = vmatprep.subr.mxu0 0.0
      %2856 = vmatpush1.msra.mxu0 0.0
      %2857 = vmatprep.subr.mxu0 0.0
      %2858 = vmatpush1.msra.mxu0 0.0
      %2859 = vmatprep.subr.mxu0 0.0
      %2860 = vmatpush1.msra.mxu0 0.0
      %2861 = vmatprep.subr.mxu0 0.0
      %2862 = vmatpush1.msra.mxu0 0.0
      %2863 = vmatprep.subr.mxu0 0.0
      %2864 = vmatpush1.msra.mxu0 0.0
      %2865 = vmatprep.subr.mxu0 0.0
      %2866 = vmatpush1.msra.mxu0 0.0
      %2867 = vmatprep.subr.mxu0 0.0
      %2868 = vmatpush1.msra.mxu0 0.0
      %2869 = vmatprep.subr.mxu0 0.0
      %2870 = vmatpush1.msra.mxu0 0.0
      %2871 = vmatprep.subr.mxu0 0.0
      %2872 = vmatpush1.msra.mxu0 0.0
      %2873 = vmatprep.subr.mxu0 0.0
      %2874 = vmatpush1.msra.mxu0 0.0
      %2875 = vmatprep.subr.mxu0 0.0
      %2876 = vmatpush1.msra.mxu0 0.0
      %2877 = vmatprep.subr.mxu0 0.0
      %2878 = vmatpush1.msra.mxu0 0.0
      %2879 = vmatprep.subr.mxu0 0.0
      %2880 = vmatpush1.msra.mxu0 0.0
      %2881 = vmatprep.subr.mxu0 0.0
      %2882 = vmatpush1.msra.mxu0 0.0
      %2883 = vmatprep.subr.mxu0 0.0
      %2884 = vmatpush1.msra.mxu0 0.0
      %2885 = vmatprep.subr.mxu0 0.0
      %2886 = vmatpush1.msra.mxu0 0.0
      %2887 = vmatprep.subr.mxu0 0.0
      %2888 = vmatpush1.msra.mxu0 0.0
      %2889 = vmatprep.subr.mxu0 0.0
      %2890 = vmatpush1.msra.mxu0 0.0
      %2891 = vmatprep.subr.mxu0 0.0
      %2892 = vmatpush1.msra.mxu0 0.0
      %2893 = vmatprep.subr.mxu0 0.0
      %2894 = vmatpush1.msra.mxu0 0.0
      %2895 = vmatprep.subr.mxu0 0.0
      %2896 = vmatpush1.msra.mxu0 0.0
      %2897 = vmatprep.subr.mxu0 0.0
      %2898 = vmatpush1.msra.mxu0 0.0
      %2899 = vmatprep.subr.mxu0 0.0
      %2900 = vmatpush1.msra.mxu0 0.0
      %2901 = vmatprep.subr.mxu0 0.0
      %2902 = vmatpush1.msra.mxu0 0.0
      %2903 = vmatprep.subr.mxu0 0.0
      %2904 = vmatpush1.msra.mxu0 0.0
      %2905 = vmatprep.subr.mxu0 0.0
      %2906 = vmatpush1.msra.mxu0 0.0
      %2907 = vmatprep.subr.mxu0 0.0
      %2908 = vmatpush1.msra.mxu0 0.0
      %2909 = vmatprep.mubr.f32.mxu0 0.0
      %2910 = vmatmul.mubr.f32.gmra.mrb[0].mxu0 %v2798
      %v2911 = vpop.f32.mrb[0].mxu0
      %v2912 = vadd.f32 %v2794, %v2911
      %v2913 = vpop.f32.mrb[0].mxu0
      %2914 = vmatprep.mubr.f32.mxu0 0.0
      %2915 = vmatmul.mubr.f32.gmra.mrb[0].mxu0 %v2801
      %v2916 = vpop.f32.mrb[0].mxu0
      %v2917 = vadd.f32 %v2794, %v2916
      %v2918 = vpop.f32.mrb[0].mxu0
      %2919 = vmatprep.mubr.f32.mxu0 0.0
      %2920 = vmatmul.mubr.f32.gmra.mrb[0].mxu0 %v2804
      %v2921 = vpop.f32.mrb[0].mxu0
      %v2922 = vadd.f32 %v2794, %v2921
      %v2923 = vpop.f32.mrb[0].mxu0
      %2924 = vmatprep.mubr.f32.mxu0 0.0
      %2925 = vmatmul.mubr.f32.gmra.mrb[0].mxu0 %v2807
      %v2926 = vpop.f32.mrb[0].mxu0
      %v2927 = vadd.f32 %v2794, %v2926
      %v2928 = vpop.f32.mrb[0].mxu0
      %2929 = vmatprep.mubr.f32.mxu0 0.0
      %2930 = vmatmul.mubr.f32.gmra.mrb[0].mxu0 %v2810
      %v2931 = vpop.f32.mrb[0].mxu0
      %v2932 = vadd.f32 %v2794, %v2931
      %v2933 = vpop.f32.mrb[0].mxu0
      %2934 = vmatprep.mubr.f32.mxu0 0.0
      %2935 = vmatmul.mubr.f32.gmra.mrb[0].mxu0 %v2813
      %v2936 = vpop.f32.mrb[0].mxu0
      %v2937 = vadd.f32 %v2794, %v2936
      %v2938 = vpop.f32.mrb[0].mxu0
      %2939 = vmatprep.mubr.f32.mxu0 0.0
      %2940 = vmatmul.mubr.f32.gmra.mrb[0].mxu0 %v2816
      %v2941 = vpop.f32.mrb[0].mxu0
      %v2942 = vadd.f32 %v2794, %v2941
      %v2943 = vpop.f32.mrb[0].mxu0
      %2944 = vmatprep.mubr.f32.mxu0 0.0
      %2945 = vmatmul.mubr.f32.gmra.mrb[0].mxu0 %v2819
      %v2946 = vpop.f32.mrb[0].mxu0
      %v2947 = vadd.f32 %v2794, %v2946
      %v2948 = vpop.f32.mrb[0].mxu0
      %2949 = vmatprep.mubr.f32.mxu0 0.0
      %2950 = vmatmul.mubr.f32.gmra.mrb[0].mxu0 %v2822
      %v2951 = vpop.f32.mrb[0].mxu0
      %v2952 = vadd.f32 %v2794, %v2951
      %v2953 = vpop.f32.mrb[0].mxu0
      %2954 = vmatprep.mubr.f32.mxu0 0.0
      %2955 = vmatmul.mubr.f32.gmra.mrb[0].mxu0 %v2825
      %v2956 = vpop.f32.mrb[0].mxu0
      %v2957 = vadd.f32 %v2794, %v2956
      %v2958 = vpop.f32.mrb[0].mxu0
      %2959 = vmatprep.mubr.f32.mxu0 0.0
      %2960 = vmatmul.mubr.f32.gmra.mrb[0].mxu0 %v2828
      %v2961 = vpop.f32.mrb[0].mxu0
      %v2962 = vadd.f32 %v2794, %v2961
      %v2963 = vpop.f32.mrb[0].mxu0
      %2964 = vmatprep.mubr.f32.mxu0 0.0
      %2965 = vmatmul.mubr.f32.gmra.mrb[0].mxu0 %v2831
      %v2966 = vpop.f32.mrb[0].mxu0
      %v2967 = vadd.f32 %v2794, %v2966
      %v2968 = vpop.f32.mrb[0].mxu0
      %2969 = vmatprep.mubr.f32.mxu0 0.0
      %2970 = vmatmul.mubr.f32.gmra.mrb[0].mxu0 %v2834
      %v2971 = vpop.f32.mrb[0].mxu0
      %v2972 = vadd.f32 %v2794, %v2971
      %v2973 = vpop.f32.mrb[0].mxu0
      %2974 = vmatprep.mubr.f32.mxu0 0.0
      %2975 = vmatmul.mubr.f32.gmra.mrb[0].mxu0 %v2837
      %v2976 = vpop.f32.mrb[0].mxu0
      %v2977 = vadd.f32 %v2794, %v2976
      %v2978 = vpop.f32.mrb[0].mxu0
      %2979 = vmatprep.mubr.f32.mxu0 0.0
      %2980 = vmatmul.mubr.f32.gmra.mrb[0].mxu0 %v2840
      %v2981 = vpop.f32.mrb[0].mxu0
      %v2982 = vadd.f32 %v2794, %v2981
      %v2983 = vpop.f32.mrb[0].mxu0
      %2984 = vmatprep.mubr.f32.mxu0 0.0
      %2985 = vmatmul.mubr.f32.gmra.mrb[0].mxu0 %v2843
      %v2986 = vpop.f32.mrb[0].mxu0
      %v2987 = vadd.f32 %v2794, %v2986
      %v2988 = vpop.f32.mrb[0].mxu0
      %2989 = vdwg.mxu0
      %2990 = vst [vmem:[#allocation20] sm:$0xff] %v2912
      %2991 = vst [vmem:[#allocation20 + $0x8] sm:$0xff] %v2917
      %2992 = vst [vmem:[#allocation20 + $0x10] sm:$0xff] %v2922
      %2993 = vst [vmem:[#allocation20 + $0x18] sm:$0xff] %v2927
      %2994 = vst [vmem:[#allocation20 + $0x20] sm:$0xff] %v2932
      %2995 = vst [vmem:[#allocation20 + $0x28] sm:$0xff] %v2937
      %2996 = vst [vmem:[#allocation20 + $0x30] sm:$0xff] %v2942
      %2997 = vst [vmem:[#allocation20 + $0x38] sm:$0xff] %v2947
      %2998 = vst [vmem:[#allocation20 + $0x40] sm:$0xff] %v2952
      %2999 = vst [vmem:[#allocation20 + $0x48] sm:$0xff] %v2957
      %3000 = vst [vmem:[#allocation20 + $0x50] sm:$0xff] %v2962
      %3001 = vst [vmem:[#allocation20 + $0x58] sm:$0xff] %v2967
      %3002 = vst [vmem:[#allocation20 + $0x60] sm:$0xff] %v2972
      %3003 = vst [vmem:[#allocation20 + $0x68] sm:$0xff] %v2977
      %3004 = vst [vmem:[#allocation20 + $0x70] sm:$0xff] %v2982
      %3005 = vst [vmem:[#allocation20 + $0x78] sm:$0xff] %v2987
    $region69: #{gat_forward.7} parent=1 // pred_fallthru
      _
    // Predicated region
    $region70: #{gat_forward.7} parent=1 // pred_check
      _
    $region71: #{gat_forward.7} parent=1 // pred_check_branch
      %3007 = sbr.rel (0) target = $region73
    $region72: #{gat_forward.7} parent=1 // pred_region
      %s3009 = ssub.s32 2048, 2048
      %3010 = vsyncadd [#allocation10], %s3009
      %s3011 = sshll.u32 [#allocation20], 4
      %s3012 = int_to_ptr.vmem [resolvable:$true] %s3011
      %3017 = dma.vmem_to_hbm [thread:$0]  %s3012, 2048, %s9, [#allocation10], 128, 128, 8
    $region73: #{gat_forward.7} parent=1 // pred_fallthru
      _
    // Predicated region
    $region74: #{gat_forward.7} parent=1 // pred_check
      _
    $region75: #{gat_forward.7} parent=1 // pred_check_branch
      %3019 = sbr.rel (0) target = $region77
    $region76: #{gat_forward.7} parent=1 // pred_region
      %3020 = dma.done [#allocation10], 2048
    $region77: #{gat_forward.7} parent=1 // pred_fallthru
      _
    %3021 = vsyncpa [#allocation9], 1
    %3022 = vsyncpa [#allocation12], 1
    %3023 = vsyncpa [#allocation15], 1
    %3024 = vsyncpa [#allocation18], 1
    %3025 = vsyncpa [#allocation10], 1

</llo_original>
